<compile_context>
chip_gen: v6e
topology: v6e:2x2x1
jax: 0.10.0
libtpu: 0.0.40
codegen_flags: <defaults>
</compile_context>

<pallas_src>
import functools

import jax
import jax.numpy as jnp
from jax import lax
from jax.experimental import pallas as pl
from jax.experimental.pallas import tpu as pltpu


_TILE_ROWS = 4096                       # row tile for the pointwise (1x1) convs
_VMEM_FALLBACK = 32 * 1024 * 1024


@functools.lru_cache(maxsize=None)
def _vmem_limit_bytes():
    # Generation-aware scoped-VMEM cap: ~96 MiB on v5e/v6e (128 MiB physical),
    # ~48 MiB on v7x (64 MiB physical); safe 32 MiB fallback.
    try:
        cap = getattr(pltpu.get_tpu_info(), "vmem_capacity_bytes", None)
        if cap:
            return int(cap) * 3 // 4
    except Exception:
        pass
    return _VMEM_FALLBACK


def _compiler_params(semantics):
    return pltpu.CompilerParams(
        dimension_semantics=semantics,
        vmem_limit_bytes=_vmem_limit_bytes(),
    )


def _choose_row_tile(h):
    """Largest even divisor of h that is <= 32 and yields >= 2 row tiles.

    Falls back to a single whole-image tile (halo rows are then zero-masked
    in-kernel and never exchanged)."""
    best = None
    for t in range(2, min(32, h // 2) + 1, 2):
        if h % t == 0:
            best = t
    return best if best is not None else h


# ---------------------------------------------------------------------------
# Kernel 1: fused conv1 + conv2 (1x1 conv + folded BN + ReLU, both branches)
# ---------------------------------------------------------------------------

def _pw12_kernel(x_ref, w1_ref, b1_ref, w2_ref, b2_ref, o1_ref, o2_ref):
    x = x_ref[...]                                            # (T, Cin) bf16
    a1 = jnp.dot(x, w1_ref[...], preferred_element_type=jnp.float32)
    a2 = jnp.dot(x, w2_ref[...], preferred_element_type=jnp.float32)
    o1_ref[...] = jnp.maximum(a1 + b1_ref[...], 0.0).astype(o1_ref.dtype)
    o2_ref[...] = jnp.maximum(a2 + b2_ref[...], 0.0).astype(o2_ref.dtype)


def fused_conv1_conv2(x_nhwc, w1, b1, w2, b2, tile_rows=_TILE_ROWS):
    """conv1(x) and conv2(x) in one pass; x is read from HBM exactly once."""
    N, H, W, Cin = x_nhwc.shape
    h = w1.shape[1]
    M = N * H * W
    tile = min(tile_rows, M)
    x2d = x_nhwc.reshape(M, Cin)
    # TODO(synk): with production channel counts (>=128) these stores are
    # lane-dense; at the toy h=8 they are necessarily masked partial stores.
    x1, x2 = pl.pallas_call(
        _pw12_kernel,
        out_shape=(jax.ShapeDtypeStruct((M, h), jnp.bfloat16),
                   jax.ShapeDtypeStruct((M, h), jnp.bfloat16)),
        grid=(pl.cdiv(M, tile),),
        in_specs=[
            pl.BlockSpec((tile, Cin), lambda i: (i, 0)),
            pl.BlockSpec((Cin, h), lambda i: (0, 0)),
            pl.BlockSpec((1, h), lambda i: (0, 0)),
            pl.BlockSpec((Cin, h), lambda i: (0, 0)),
            pl.BlockSpec((1, h), lambda i: (0, 0)),
        ],
        out_specs=(pl.BlockSpec((tile, h), lambda i: (i, 0)),
                   pl.BlockSpec((tile, h), lambda i: (i, 0))),
        compiler_params=_compiler_params(("parallel",)),
    )(x2d, w1, b1.reshape(1, h), w2, b2.reshape(1, h))
    return x1.reshape(N, H, W, h), x2.reshape(N, H, W, h)


# ---------------------------------------------------------------------------
# Kernel 2: fused YoloNASBottleneck (3x3 conv -> 3x3 conv -> + alpha*residual),
# row-tiled with a 2-row recompute halo.
# ---------------------------------------------------------------------------

def _bottleneck_kernel(up_ref, x_ref, dn_ref, w1_ref, b1_ref, w2_ref, b2_ref,
                       alpha_ref, o_ref, pad_ref):
    TR, W, C = o_ref.shape
    i = pl.program_id(1)
    is_first = i == 0
    is_last = i == pl.num_programs(1) - 1

    # Zero only the 2 halo columns; every row of the scratch is rewritten below.
    col0 = jnp.zeros((TR + 4, 1, C), jnp.bfloat16)
    pad_ref[:, 0:1, :] = col0
    pad_ref[:, W + 1:W + 2, :] = col0

    # Input rows + 2-row recompute halo (zero at the true image top/bottom).
    zero2 = jnp.zeros((2, W, C), jnp.bfloat16)
    pad_ref[0:2, 1:W + 1, :] = jnp.where(is_first, zero2, up_ref[...])
    pad_ref[2:TR + 2, 1:W + 1, :] = x_ref[...]
    pad_ref[TR + 2:TR + 4, 1:W + 1, :] = jnp.where(is_last, zero2, dn_ref[...])

    def conv3x3(rows_out, w_ref, b_ref):
        # 9 accumulating (rows_out*W, C) @ (C, C) MXU dots over shifted views
        # of the pad scratch -- no (rows, 9C) im2col slab, no lane-axis concat.
        acc = None
        for dh in range(3):
            for dw in range(3):
                tap = pad_ref[dh:dh + rows_out, dw:dw + W, :]
                d = jnp.dot(tap.reshape(rows_out * W, C), w_ref[dh * 3 + dw],
                            preferred_element_type=jnp.float32)
                acc = d if acc is None else acc + d
        return jnp.maximum(acc + b_ref[...], 0.0)            # f32 (rows*W, C)

    # cv1 over TR+2 rows (recompute halo); the activation never leaves VMEM.
    t = conv3x3(TR + 2, w1_ref, b1_ref).reshape(TR + 2, W, C)
    rows = lax.broadcasted_iota(jnp.int32, (TR + 2, 1, 1), 0)
    border = (is_first & (rows == 0)) | (is_last & (rows == TR + 1))
    t = jnp.where(border, 0.0, t)      # cv2 must see true zero pad at image edges
    pad_ref[0:TR + 2, 1:W + 1, :] = t.astype(jnp.bfloat16)   # reuse the scratch

    # cv2 over the TR output rows (reads only pad rows 0..TR+1).
    y = conv3x3(TR, w2_ref, b2_ref)                          # (TR*W, C) f32

    # Residual: re-read the input block (still resident in VMEM) in the epilogue.
    xres = x_ref[...].astype(jnp.float32).reshape(TR * W, C)
    out = alpha_ref[0] * xres + y
    o_ref[...] = out.reshape(TR, W, C).astype(o_ref.dtype)


def fused_bottleneck(x_nhwc, bp):
    N, H, W, C = x_nhwc.shape
    TR = _choose_row_tile(H)
    n_rt = max(H // TR, 1)
    hb = max(TR // 2, 1)                 # halo blocks are 2 rows tall
    nhb = pl.cdiv(H, 2)

    full_w = pl.BlockSpec((9, C, C), lambda n, i: (0, 0, 0))
    full_b = pl.BlockSpec((1, C), lambda n, i: (0, 0))
    return pl.pallas_call(
        _bottleneck_kernel,
        out_shape=jax.ShapeDtypeStruct((N, H, W, C), jnp.bfloat16),
        grid=(N, n_rt),
        in_specs=[
            # 2 rows above the tile (clamped at the top; zero-masked in-kernel)
            pl.BlockSpec((None, 2, W, C),
                         lambda n, i: (n, jnp.maximum(i * hb - 1, 0), 0, 0)),
            pl.BlockSpec((None, TR, W, C), lambda n, i: (n, i, 0, 0)),
            # 2 rows below the tile (clamped at the bottom; zero-masked in-kernel)
            pl.BlockSpec((None, 2, W, C),
                         lambda n, i: (n, jnp.minimum((i + 1) * hb, nhb - 1), 0, 0)),
            full_w, full_b, full_w, full_b,
            pl.BlockSpec(memory_space=pltpu.MemorySpace.SMEM),
        ],
        out_specs=pl.BlockSpec((None, TR, W, C), lambda n, i: (n, i, 0, 0)),
        scratch_shapes=[pltpu.VMEM((TR + 4, W + 2, C), jnp.bfloat16)],
        compiler_params=_compiler_params(("parallel", "parallel")),
    )(x_nhwc, x_nhwc, x_nhwc, bp["w1"], bp["b1"].reshape(1, C),
      bp["w2"], bp["b2"].reshape(1, C), bp["alpha"])


# ---------------------------------------------------------------------------
# Kernel 3: conv3 over cat([y, x2]) WITHOUT materializing the concat
# ---------------------------------------------------------------------------

def _pw3_kernel(y_ref, x2_ref, wy_ref, wx_ref, b_ref, o_ref):
    acc = jnp.dot(y_ref[...], wy_ref[...], preferred_element_type=jnp.float32)
    acc = acc + jnp.dot(x2_ref[...], wx_ref[...],
                        preferred_element_type=jnp.float32)
    o_ref[...] = jnp.maximum(acc + b_ref[...], 0.0).astype(o_ref.dtype)


def fused_conv3(y_nhwc, x2_nhwc, w3y, w3x2, b3, tile_rows=_TILE_ROWS):
    N, H, W, Ch = y_nhwc.shape
    Cout = w3y.shape[1]
    M = N * H * W
    tile = min(tile_rows, M)
    out = pl.pallas_call(
        _pw3_kernel,
        out_shape=jax.ShapeDtypeStruct((M, Cout), jnp.bfloat16),
        grid=(pl.cdiv(M, tile),),
        in_specs=[
            pl.BlockSpec((tile, Ch), lambda i: (i, 0)),
            pl.BlockSpec((tile, Ch), lambda i: (i, 0)),
            pl.BlockSpec((Ch, Cout), lambda i: (0, 0)),
            pl.BlockSpec((Ch, Cout), lambda i: (0, 0)),
            pl.BlockSpec((1, Cout), lambda i: (0, 0)),
        ],
        out_specs=pl.BlockSpec((tile, Cout), lambda i: (i, 0)),
        compiler_params=_compiler_params(("parallel",)),
    )(y_nhwc.reshape(M, Ch), x2_nhwc.reshape(M, Ch), w3y, w3x2,
      b3.reshape(1, Cout))
    return out.reshape(N, H, W, Cout)


# ---------------------------------------------------------------------------
# Parameter construction (deterministic; BN folded; bf16 weights, f32 biases)
# ---------------------------------------------------------------------------

def make_params(key, in_ch, out_ch, hidden, num_bottlenecks):
    bf16 = jnp.bfloat16

    def dense(k, cin, cout):
        kw, kb = jax.random.split(k)
        w = (jax.random.normal(kw, (cin, cout), jnp.float32)
             / jnp.sqrt(cin)).astype(bf16)
        b = 0.05 * jax.random.normal(kb, (cout,), jnp.float32)
        return w, b

    def conv3x3_w(k, cin, cout):
        kw, kb = jax.random.split(k)
        w = (jax.random.normal(kw, (3, 3, cin, cout), jnp.float32)
             / jnp.sqrt(9 * cin)).astype(bf16)
        b = 0.05 * jax.random.normal(kb, (cout,), jnp.float32)
        return w.reshape(9, cin, cout), b      # tap k = dh*3 + dw

    keys = jax.random.split(key, 3 + num_bottlenecks)
    w1, b1 = dense(keys[0], in_ch, hidden)
    w2, b2 = dense(keys[1], in_ch, hidden)
    w3, b3 = dense(keys[2], 2 * hidden, out_ch)   # concat_intermediates=False

    params = {
        "w1": w1, "b1": b1, "w2": w2, "b2": b2,
        # conv3 split: first half applied to y, second half to x2 (no zero rows).
        "w3y": w3[:hidden, :], "w3x2": w3[hidden:, :], "b3": b3,
        "bottlenecks": [],
    }
    for i in range(num_bottlenecks):
        k1, k2 = jax.random.split(keys[3 + i])
        wa, ba = conv3x3_w(k1, hidden, hidden)
        wb, bb = conv3x3_w(k2, hidden, hidden)
        params["bottlenecks"].append({
            "w1": wa, "b1": ba, "w2": wb, "b2": bb,
            "alpha": jnp.ones((1,), jnp.float32),   # use_alpha=True, init 1.0
        })
    return params


# ---------------------------------------------------------------------------
# YoloNASCSPLayer forward (hot path entirely in Pallas)
# ---------------------------------------------------------------------------

@jax.jit
def yolo_nas_csp_layer(x_nchw, params):
    # NCHW -> NHWC fused with the f32 -> bf16 cast (single XLA pass each way).
    # TODO(synk): in a full NHWC model both wrapper transposes disappear; the
    # Pallas pipeline itself is layout-change free.
    x = jnp.transpose(x_nchw, (0, 2, 3, 1)).astype(jnp.bfloat16)
    x1, x2 = fused_conv1_conv2(x, params["w1"], params["b1"],
                               params["w2"], params["b2"])
    y = x1
    for bp in params["bottlenecks"]:
        y = fused_bottleneck(y, bp)
    out = fused_conv3(y, x2, params["w3y"], params["w3x2"], params["b3"])
    # dropout_rate=0.0 and drop_path=0.0 -> identities (no RNG path).
    return jnp.transpose(out, (0, 3, 1, 2)).astype(jnp.float32)   # NHWC -> NCHW


# ---------------------------------------------------------------------------
# Pure-JAX reference (same bf16 rounding points as the kernel path)
# ---------------------------------------------------------------------------

def _conv3x3_same_ref(t, w_hwio):
    return lax.conv_general_dilated(
        t, w_hwio, (1, 1), "SAME",
        dimension_numbers=("NHWC", "HWIO", "NHWC"))


def _ref_forward(x_nchw, params):
    f32, bf16 = jnp.float32, jnp.bfloat16
    x = jnp.transpose(x_nchw, (0, 2, 3, 1)).astype(bf16).astype(f32)

    x1 = jax.nn.relu(jnp.einsum("nhwc,cd->nhwd", x, params["w1"].astype(f32))
                     + params["b1"]).astype(bf16)
    x2 = jax.nn.relu(jnp.einsum("nhwc,cd->nhwd", x, params["w2"].astype(f32))
                     + params["b2"]).astype(bf16)

    y = x1.astype(f32)
    C = y.shape[-1]
    for bp in params["bottlenecks"]:
        w1 = bp["w1"].astype(f32).reshape(3, 3, C, C)
        w2 = bp["w2"].astype(f32).reshape(3, 3, C, C)
        t = jax.nn.relu(_conv3x3_same_ref(y, w1) + bp["b1"])
        t = t.astype(bf16).astype(f32)            # kernel stores cv1 act in bf16
        z = jax.nn.relu(_conv3x3_same_ref(t, w2) + bp["b2"])
        y = (bp["alpha"][0] * y + z).astype(bf16).astype(f32)    # stored bf16

    out = jax.nn.relu(
        jnp.einsum("nhwc,cd->nhwd", y, params["w3y"].astype(f32))
        + jnp.einsum("nhwc,cd->nhwd", x2.astype(f32), params["w3x2"].astype(f32))
        + params["b3"]).astype(bf16).astype(f32)                 # kernel emits bf16
    return jnp.transpose(out, (0, 3, 1, 2))


if __name__ == "__main__":
    key = jax.random.PRNGKey(0)
    kx, kp = jax.random.split(key)

    N, C_in, H, W = 2, 16, 16, 16
    C_out, num_bottlenecks = 16, 2
    hidden = int(C_out * 0.5)            # expansion=0.5, hidden_channels=None -> 8

    x = jax.random.normal(kx, (N, C_in, H, W), jnp.float32)   # NCHW (PyTorch)
    params = make_params(kp, C_in, C_out, hidden, num_bottlenecks)

    out = jax.block_until_ready(yolo_nas_csp_layer(x, params))
    ref = _ref_forward(x, params)

    assert out.shape == (N, C_out, H, W)
    err = float(jnp.max(jnp.abs(out - ref)))
    assert jnp.allclose(out, ref, atol=2e-2, rtol=2e-2), err

    print("KERNEL_OK")
</pallas_src>

<mosaic_0001>
module attributes {stable_mosaic.version = 11 : i64} {
  func.func @_bottleneck_kernel(%arg0: i32, %arg1: i32, %arg2: memref<1x2x16x8xbf16, #tpu.memory_space<vmem>>, %arg3: memref<1x8x16x8xbf16, #tpu.memory_space<vmem>>, %arg4: memref<1x2x16x8xbf16, #tpu.memory_space<vmem>>, %arg5: memref<9x8x8xbf16, #tpu.memory_space<vmem>>, %arg6: memref<1x8xf32, #tpu.memory_space<vmem>>, %arg7: memref<9x8x8xbf16, #tpu.memory_space<vmem>>, %arg8: memref<1x8xf32, #tpu.memory_space<vmem>>, %arg9: memref<1xf32, #tpu.memory_space<smem>>, %arg10: memref<1x8x16x8xbf16, #tpu.memory_space<vmem>>, %arg11: memref<12x18x8xbf16, #tpu.memory_space<vmem>>) attributes {dimension_semantics = [#tpu.dimension_semantics<parallel>, #tpu.dimension_semantics<parallel>], iteration_bounds = array<i64: 2, 2>, scalar_prefetch = 0 : i64, scratch_operands = 1 : i64, tpu.core_type = #tpu.core_type<tc>, window_params = [{transform_indices = @transform_0, window_bounds = array<i64: 1, 2, 16, 8>}, {transform_indices = @transform_1, window_bounds = array<i64: 1, 8, 16, 8>}, {transform_indices = @transform_2, window_bounds = array<i64: 1, 2, 16, 8>}, {pipeline_mode = #tpu.pipeline_mode<synchronous>, transform_indices = @transform_3, window_bounds = array<i64: 9, 8, 8>}, {pipeline_mode = #tpu.pipeline_mode<synchronous>, transform_indices = @transform_4, window_bounds = array<i64: 1, 8>}, {pipeline_mode = #tpu.pipeline_mode<synchronous>, transform_indices = @transform_5, window_bounds = array<i64: 9, 8, 8>}, {pipeline_mode = #tpu.pipeline_mode<synchronous>, transform_indices = @transform_6, window_bounds = array<i64: 1, 8>}, {transform_indices = @transform_7, window_bounds = array<i64: 1>}, {transform_indices = @transform_8, window_bounds = array<i64: 1, 8, 16, 8>}]} {
    %c0_i32 = arith.constant 0 : i32
    %0 = arith.cmpi eq, %arg1, %c0_i32 : i32
    %c1_i32 = arith.constant 1 : i32
    %1 = arith.cmpi eq, %arg1, %c1_i32 : i32
    %cst = arith.constant 0.000000e+00 : bf16
    %2 = vector.broadcast %cst : bf16 to vector<12x1x8xbf16>
    %c0 = arith.constant 0 : index
    %c0_0 = arith.constant 0 : index
    %c0_1 = arith.constant 0 : index
    %3 = vector.load %arg11[%c0, %c0_0, %c0_1] : memref<12x18x8xbf16, #tpu.memory_space<vmem>>, vector<12x1x8xbf16>
    tpu.vector_store %arg11[%c0, %c0_0, %c0_1], %2 {strides = array<i32>} : memref<12x18x8xbf16, #tpu.memory_space<vmem>>, vector<12x1x8xbf16>,
    %c0_2 = arith.constant 0 : index
    %c17 = arith.constant 17 : index
    %c0_3 = arith.constant 0 : index
    %4 = vector.load %arg11[%c0_2, %c17, %c0_3] : memref<12x18x8xbf16, #tpu.memory_space<vmem>>, vector<12x1x8xbf16>
    tpu.vector_store %arg11[%c0_2, %c17, %c0_3], %2 {strides = array<i32>} : memref<12x18x8xbf16, #tpu.memory_space<vmem>>, vector<12x1x8xbf16>,
    %cst_4 = arith.constant 0.000000e+00 : bf16
    %5 = vector.broadcast %cst_4 : bf16 to vector<2x16x8xbf16>
    %c0_5 = arith.constant 0 : index
    %c0_6 = arith.constant 0 : index
    %c0_7 = arith.constant 0 : index
    %c0_8 = arith.constant 0 : index
    %6 = vector.load %arg2[%c0_5, %c0_6, %c0_7, %c0_8] : memref<1x2x16x8xbf16, #tpu.memory_space<vmem>>, vector<1x2x16x8xbf16>
    %7 = vector.shape_cast %6 : vector<1x2x16x8xbf16> to vector<2x16x8xbf16>
    %8 = arith.select %0, %5, %7 : vector<2x16x8xbf16>
    %c0_9 = arith.constant 0 : index
    %c1 = arith.constant 1 : index
    %c0_10 = arith.constant 0 : index
    %9 = vector.load %arg11[%c0_9, %c1, %c0_10] : memref<12x18x8xbf16, #tpu.memory_space<vmem>>, vector<2x16x8xbf16>
    tpu.vector_store %arg11[%c0_9, %c1, %c0_10], %8 {strides = array<i32>} : memref<12x18x8xbf16, #tpu.memory_space<vmem>>, vector<2x16x8xbf16>,
    %c0_11 = arith.constant 0 : index
    %c0_12 = arith.constant 0 : index
    %c0_13 = arith.constant 0 : index
    %c0_14 = arith.constant 0 : index
    %10 = vector.load %arg3[%c0_11, %c0_12, %c0_13, %c0_14] : memref<1x8x16x8xbf16, #tpu.memory_space<vmem>>, vector<1x8x16x8xbf16>
    %11 = vector.shape_cast %10 : vector<1x8x16x8xbf16> to vector<8x16x8xbf16>
    %c2 = arith.constant 2 : index
    %c1_15 = arith.constant 1 : index
    %c0_16 = arith.constant 0 : index
    %12 = vector.load %arg11[%c2, %c1_15, %c0_16] : memref<12x18x8xbf16, #tpu.memory_space<vmem>>, vector<8x16x8xbf16>
    tpu.vector_store %arg11[%c2, %c1_15, %c0_16], %11 {strides = array<i32>} : memref<12x18x8xbf16, #tpu.memory_space<vmem>>, vector<8x16x8xbf16>,
    %c0_17 = arith.constant 0 : index
    %c0_18 = arith.constant 0 : index
    %c0_19 = arith.constant 0 : index
    %c0_20 = arith.constant 0 : index
    %13 = vector.load %arg4[%c0_17, %c0_18, %c0_19, %c0_20] : memref<1x2x16x8xbf16, #tpu.memory_space<vmem>>, vector<1x2x16x8xbf16>
    %14 = vector.shape_cast %13 : vector<1x2x16x8xbf16> to vector<2x16x8xbf16>
    %15 = arith.select %1, %5, %14 : vector<2x16x8xbf16>
    %c10 = arith.constant 10 : index
    %c1_21 = arith.constant 1 : index
    %c0_22 = arith.constant 0 : index
    %16 = vector.load %arg11[%c10, %c1_21, %c0_22] : memref<12x18x8xbf16, #tpu.memory_space<vmem>>, vector<2x16x8xbf16>
    tpu.vector_store %arg11[%c10, %c1_21, %c0_22], %15 {strides = array<i32>} : memref<12x18x8xbf16, #tpu.memory_space<vmem>>, vector<2x16x8xbf16>,
    %c0_23 = arith.constant 0 : index
    %c0_24 = arith.constant 0 : index
    %c0_25 = arith.constant 0 : index
    %17 = vector.load %arg11[%c0_23, %c0_24, %c0_25] : memref<12x18x8xbf16, #tpu.memory_space<vmem>>, vector<10x16x8xbf16>
    %18 = vector.shape_cast %17 : vector<10x16x8xbf16> to vector<160x8xbf16>
    %c0_26 = arith.constant 0 : index
    %c0_27 = arith.constant 0 : index
    %c0_28 = arith.constant 0 : index
    %19 = vector.load %arg5[%c0_26, %c0_27, %c0_28] : memref<9x8x8xbf16, #tpu.memory_space<vmem>>, vector<1x8x8xbf16>
    %20 = vector.shape_cast %19 : vector<1x8x8xbf16> to vector<8x8xbf16>
    %cst_29 = arith.constant dense<0.000000e+00> : vector<160x8xf32>
    %21 = tpu.matmul %18, %20, %cst_29 {dimension_numbers = #tpu.dot_dimension_numbers<[1], [0], [0], [1], [0, 0, 1, 1], [], []>} : vector<160x8xbf16>, vector<8x8xbf16>, vector<160x8xf32> -> vector<160x8xf32>
    %c0_30 = arith.constant 0 : index
    %c1_31 = arith.constant 1 : index
    %c0_32 = arith.constant 0 : index
    %22 = vector.load %arg11[%c0_30, %c1_31, %c0_32] : memref<12x18x8xbf16, #tpu.memory_space<vmem>>, vector<10x16x8xbf16>
    %23 = vector.shape_cast %22 : vector<10x16x8xbf16> to vector<160x8xbf16>
    %c1_33 = arith.constant 1 : index
    %c0_34 = arith.constant 0 : index
    %c0_35 = arith.constant 0 : index
    %24 = vector.load %arg5[%c1_33, %c0_34, %c0_35] : memref<9x8x8xbf16, #tpu.memory_space<vmem>>, vector<1x8x8xbf16>
    %25 = vector.shape_cast %24 : vector<1x8x8xbf16> to vector<8x8xbf16>
    %cst_36 = arith.constant dense<0.000000e+00> : vector<160x8xf32>
    %26 = tpu.matmul %23, %25, %cst_36 {dimension_numbers = #tpu.dot_dimension_numbers<[1], [0], [0], [1], [0, 0, 1, 1], [], []>} : vector<160x8xbf16>, vector<8x8xbf16>, vector<160x8xf32> -> vector<160x8xf32>
    %27 = arith.addf %21, %26 : vector<160x8xf32>
    %c0_37 = arith.constant 0 : index
    %c2_38 = arith.constant 2 : index
    %c0_39 = arith.constant 0 : index
    %28 = vector.load %arg11[%c0_37, %c2_38, %c0_39] : memref<12x18x8xbf16, #tpu.memory_space<vmem>>, vector<10x16x8xbf16>
    %29 = vector.shape_cast %28 : vector<10x16x8xbf16> to vector<160x8xbf16>
    %c2_40 = arith.constant 2 : index
    %c0_41 = arith.constant 0 : index
    %c0_42 = arith.constant 0 : index
    %30 = vector.load %arg5[%c2_40, %c0_41, %c0_42] : memref<9x8x8xbf16, #tpu.memory_space<vmem>>, vector<1x8x8xbf16>
    %31 = vector.shape_cast %30 : vector<1x8x8xbf16> to vector<8x8xbf16>
    %cst_43 = arith.constant dense<0.000000e+00> : vector<160x8xf32>
    %32 = tpu.matmul %29, %31, %cst_43 {dimension_numbers = #tpu.dot_dimension_numbers<[1], [0], [0], [1], [0, 0, 1, 1], [], []>} : vector<160x8xbf16>, vector<8x8xbf16>, vector<160x8xf32> -> vector<160x8xf32>
    %33 = arith.addf %27, %32 : vector<160x8xf32>
    %c1_44 = arith.constant 1 : index
    %c0_45 = arith.constant 0 : index
    %c0_46 = arith.constant 0 : index
    %34 = vector.load %arg11[%c1_44, %c0_45, %c0_46] : memref<12x18x8xbf16, #tpu.memory_space<vmem>>, vector<10x16x8xbf16>
    %35 = vector.shape_cast %34 : vector<10x16x8xbf16> to vector<160x8xbf16>
    %c3 = arith.constant 3 : index
    %c0_47 = arith.constant 0 : index
    %c0_48 = arith.constant 0 : index
    %36 = vector.load %arg5[%c3, %c0_47, %c0_48] : memref<9x8x8xbf16, #tpu.memory_space<vmem>>, vector<1x8x8xbf16>
    %37 = vector.shape_cast %36 : vector<1x8x8xbf16> to vector<8x8xbf16>
    %cst_49 = arith.constant dense<0.000000e+00> : vector<160x8xf32>
    %38 = tpu.matmul %35, %37, %cst_49 {dimension_numbers = #tpu.dot_dimension_numbers<[1], [0], [0], [1], [0, 0, 1, 1], [], []>} : vector<160x8xbf16>, vector<8x8xbf16>, vector<160x8xf32> -> vector<160x8xf32>
    %39 = arith.addf %33, %38 : vector<160x8xf32>
    %c1_50 = arith.constant 1 : index
    %c1_51 = arith.constant 1 : index
    %c0_52 = arith.constant 0 : index
    %40 = vector.load %arg11[%c1_50, %c1_51, %c0_52] : memref<12x18x8xbf16, #tpu.memory_space<vmem>>, vector<10x16x8xbf16>
    %41 = vector.shape_cast %40 : vector<10x16x8xbf16> to vector<160x8xbf16>
    %c4 = arith.constant 4 : index
    %c0_53 = arith.constant 0 : index
    %c0_54 = arith.constant 0 : index
    %42 = vector.load %arg5[%c4, %c0_53, %c0_54] : memref<9x8x8xbf16, #tpu.memory_space<vmem>>, vector<1x8x8xbf16>
    %43 = vector.shape_cast %42 : vector<1x8x8xbf16> to vector<8x8xbf16>
    %cst_55 = arith.constant dense<0.000000e+00> : vector<160x8xf32>
    %44 = tpu.matmul %41, %43, %cst_55 {dimension_numbers = #tpu.dot_dimension_numbers<[1], [0], [0], [1], [0, 0, 1, 1], [], []>} : vector<160x8xbf16>, vector<8x8xbf16>, vector<160x8xf32> -> vector<160x8xf32>
    %45 = arith.addf %39, %44 : vector<160x8xf32>
    %c1_56 = arith.constant 1 : index
    %c2_57 = arith.constant 2 : index
    %c0_58 = arith.constant 0 : index
    %46 = vector.load %arg11[%c1_56, %c2_57, %c0_58] : memref<12x18x8xbf16, #tpu.memory_space<vmem>>, vector<10x16x8xbf16>
    %47 = vector.shape_cast %46 : vector<10x16x8xbf16> to vector<160x8xbf16>
    %c5 = arith.constant 5 : index
    %c0_59 = arith.constant 0 : index
    %c0_60 = arith.constant 0 : index
    %48 = vector.load %arg5[%c5, %c0_59, %c0_60] : memref<9x8x8xbf16, #tpu.memory_space<vmem>>, vector<1x8x8xbf16>
    %49 = vector.shape_cast %48 : vector<1x8x8xbf16> to vector<8x8xbf16>
    %cst_61 = arith.constant dense<0.000000e+00> : vector<160x8xf32>
    %50 = tpu.matmul %47, %49, %cst_61 {dimension_numbers = #tpu.dot_dimension_numbers<[1], [0], [0], [1], [0, 0, 1, 1], [], []>} : vector<160x8xbf16>, vector<8x8xbf16>, vector<160x8xf32> -> vector<160x8xf32>
    %51 = arith.addf %45, %50 : vector<160x8xf32>
    %c2_62 = arith.constant 2 : index
    %c0_63 = arith.constant 0 : index
    %c0_64 = arith.constant 0 : index
    %52 = vector.load %arg11[%c2_62, %c0_63, %c0_64] : memref<12x18x8xbf16, #tpu.memory_space<vmem>>, vector<10x16x8xbf16>
    %53 = vector.shape_cast %52 : vector<10x16x8xbf16> to vector<160x8xbf16>
    %c6 = arith.constant 6 : index
    %c0_65 = arith.constant 0 : index
    %c0_66 = arith.constant 0 : index
    %54 = vector.load %arg5[%c6, %c0_65, %c0_66] : memref<9x8x8xbf16, #tpu.memory_space<vmem>>, vector<1x8x8xbf16>
    %55 = vector.shape_cast %54 : vector<1x8x8xbf16> to vector<8x8xbf16>
    %cst_67 = arith.constant dense<0.000000e+00> : vector<160x8xf32>
    %56 = tpu.matmul %53, %55, %cst_67 {dimension_numbers = #tpu.dot_dimension_numbers<[1], [0], [0], [1], [0, 0, 1, 1], [], []>} : vector<160x8xbf16>, vector<8x8xbf16>, vector<160x8xf32> -> vector<160x8xf32>
    %57 = arith.addf %51, %56 : vector<160x8xf32>
    %c2_68 = arith.constant 2 : index
    %c1_69 = arith.constant 1 : index
    %c0_70 = arith.constant 0 : index
    %58 = vector.load %arg11[%c2_68, %c1_69, %c0_70] : memref<12x18x8xbf16, #tpu.memory_space<vmem>>, vector<10x16x8xbf16>
    %59 = vector.shape_cast %58 : vector<10x16x8xbf16> to vector<160x8xbf16>
    %c7 = arith.constant 7 : index
    %c0_71 = arith.constant 0 : index
    %c0_72 = arith.constant 0 : index
    %60 = vector.load %arg5[%c7, %c0_71, %c0_72] : memref<9x8x8xbf16, #tpu.memory_space<vmem>>, vector<1x8x8xbf16>
    %61 = vector.shape_cast %60 : vector<1x8x8xbf16> to vector<8x8xbf16>
    %cst_73 = arith.constant dense<0.000000e+00> : vector<160x8xf32>
    %62 = tpu.matmul %59, %61, %cst_73 {dimension_numbers = #tpu.dot_dimension_numbers<[1], [0], [0], [1], [0, 0, 1, 1], [], []>} : vector<160x8xbf16>, vector<8x8xbf16>, vector<160x8xf32> -> vector<160x8xf32>
    %63 = arith.addf %57, %62 : vector<160x8xf32>
    %c2_74 = arith.constant 2 : index
    %c2_75 = arith.constant 2 : index
    %c0_76 = arith.constant 0 : index
    %64 = vector.load %arg11[%c2_74, %c2_75, %c0_76] : memref<12x18x8xbf16, #tpu.memory_space<vmem>>, vector<10x16x8xbf16>
    %65 = vector.shape_cast %64 : vector<10x16x8xbf16> to vector<160x8xbf16>
    %c8 = arith.constant 8 : index
    %c0_77 = arith.constant 0 : index
    %c0_78 = arith.constant 0 : index
    %66 = vector.load %arg5[%c8, %c0_77, %c0_78] : memref<9x8x8xbf16, #tpu.memory_space<vmem>>, vector<1x8x8xbf16>
    %67 = vector.shape_cast %66 : vector<1x8x8xbf16> to vector<8x8xbf16>
    %cst_79 = arith.constant dense<0.000000e+00> : vector<160x8xf32>
    %68 = tpu.matmul %65, %67, %cst_79 {dimension_numbers = #tpu.dot_dimension_numbers<[1], [0], [0], [1], [0, 0, 1, 1], [], []>} : vector<160x8xbf16>, vector<8x8xbf16>, vector<160x8xf32> -> vector<160x8xf32>
    %69 = arith.addf %63, %68 : vector<160x8xf32>
    %c0_80 = arith.constant 0 : index
    %c0_81 = arith.constant 0 : index
    %70 = vector.load %arg6[%c0_80, %c0_81] : memref<1x8xf32, #tpu.memory_space<vmem>>, vector<1x8xf32>
    %71 = vector.broadcast %70 : vector<1x8xf32> to vector<160x8xf32>
    %72 = arith.addf %69, %71 : vector<160x8xf32>
    %cst_82 = arith.constant 0.000000e+00 : f32
    %73 = vector.broadcast %cst_82 : f32 to vector<160x8xf32>
    %74 = arith.maximumf %72, %73 : vector<160x8xf32>
    %75 = vector.shape_cast %74 : vector<160x8xf32> to vector<10x16x8xf32>
    %76 = tpu.iota {dimensions = array<i32: 0>} : vector<10x1x1xi32>
    %c0_i32_83 = arith.constant 0 : i32
    %77 = vector.broadcast %c0_i32_83 : i32 to vector<10x1x1xi32>
    %78 = arith.cmpi eq, %76, %77 : vector<10x1x1xi32>
    %79 = vector.broadcast %0 : i1 to vector<10x1x1xi1>
    %80 = arith.andi %79, %78 : vector<10x1x1xi1>
    %c9_i32 = arith.constant 9 : i32
    %81 = vector.broadcast %c9_i32 : i32 to vector<10x1x1xi32>
    %82 = arith.cmpi eq, %76, %81 : vector<10x1x1xi32>
    %83 = vector.broadcast %1 : i1 to vector<10x1x1xi1>
    %84 = arith.andi %83, %82 : vector<10x1x1xi1>
    %85 = arith.ori %80, %84 : vector<10x1x1xi1>
    %cst_84 = arith.constant 0.000000e+00 : f32
    %86 = vector.shape_cast %85 : vector<10x1x1xi1> to vector<10x1x1xi1>
    %87 = vector.broadcast %86 : vector<10x1x1xi1> to vector<10x16x8xi1>
    %88 = vector.broadcast %cst_84 : f32 to vector<10x16x8xf32>
    %89 = arith.select %87, %88, %75 : vector<10x16x8xi1>, vector<10x16x8xf32>
    %90 = arith.truncf %89 : vector<10x16x8xf32> to vector<10x16x8xbf16>
    %c0_85 = arith.constant 0 : index
    %c1_86 = arith.constant 1 : index
    %c0_87 = arith.constant 0 : index
    %91 = vector.load %arg11[%c0_85, %c1_86, %c0_87] : memref<12x18x8xbf16, #tpu.memory_space<vmem>>, vector<10x16x8xbf16>
    tpu.vector_store %arg11[%c0_85, %c1_86, %c0_87], %90 {strides = array<i32>} : memref<12x18x8xbf16, #tpu.memory_space<vmem>>, vector<10x16x8xbf16>,
    %c0_88 = arith.constant 0 : index
    %c0_89 = arith.constant 0 : index
    %c0_90 = arith.constant 0 : index
    %92 = vector.load %arg11[%c0_88, %c0_89, %c0_90] : memref<12x18x8xbf16, #tpu.memory_space<vmem>>, vector<8x16x8xbf16>
    %93 = vector.shape_cast %92 : vector<8x16x8xbf16> to vector<128x8xbf16>
    %c0_91 = arith.constant 0 : index
    %c0_92 = arith.constant 0 : index
    %c0_93 = arith.constant 0 : index
    %94 = vector.load %arg7[%c0_91, %c0_92, %c0_93] : memref<9x8x8xbf16, #tpu.memory_space<vmem>>, vector<1x8x8xbf16>
    %95 = vector.shape_cast %94 : vector<1x8x8xbf16> to vector<8x8xbf16>
    %cst_94 = arith.constant dense<0.000000e+00> : vector<128x8xf32>
    %96 = tpu.matmul %93, %95, %cst_94 {dimension_numbers = #tpu.dot_dimension_numbers<[1], [0], [0], [1], [0, 0, 1, 1], [], []>} : vector<128x8xbf16>, vector<8x8xbf16>, vector<128x8xf32> -> vector<128x8xf32>
    %c0_95 = arith.constant 0 : index
    %c1_96 = arith.constant 1 : index
    %c0_97 = arith.constant 0 : index
    %97 = vector.load %arg11[%c0_95, %c1_96, %c0_97] : memref<12x18x8xbf16, #tpu.memory_space<vmem>>, vector<8x16x8xbf16>
    %98 = vector.shape_cast %97 : vector<8x16x8xbf16> to vector<128x8xbf16>
    %c1_98 = arith.constant 1 : index
    %c0_99 = arith.constant 0 : index
    %c0_100 = arith.constant 0 : index
    %99 = vector.load %arg7[%c1_98, %c0_99, %c0_100] : memref<9x8x8xbf16, #tpu.memory_space<vmem>>, vector<1x8x8xbf16>
    %100 = vector.shape_cast %99 : vector<1x8x8xbf16> to vector<8x8xbf16>
    %cst_101 = arith.constant dense<0.000000e+00> : vector<128x8xf32>
    %101 = tpu.matmul %98, %100, %cst_101 {dimension_numbers = #tpu.dot_dimension_numbers<[1], [0], [0], [1], [0, 0, 1, 1], [], []>} : vector<128x8xbf16>, vector<8x8xbf16>, vector<128x8xf32> -> vector<128x8xf32>
    %102 = arith.addf %96, %101 : vector<128x8xf32>
    %c0_102 = arith.constant 0 : index
    %c2_103 = arith.constant 2 : index
    %c0_104 = arith.constant 0 : index
    %103 = vector.load %arg11[%c0_102, %c2_103, %c0_104] : memref<12x18x8xbf16, #tpu.memory_space<vmem>>, vector<8x16x8xbf16>
    %104 = vector.shape_cast %103 : vector<8x16x8xbf16> to vector<128x8xbf16>
    %c2_105 = arith.constant 2 : index
    %c0_106 = arith.constant 0 : index
    %c0_107 = arith.constant 0 : index
    %105 = vector.load %arg7[%c2_105, %c0_106, %c0_107] : memref<9x8x8xbf16, #tpu.memory_space<vmem>>, vector<1x8x8xbf16>
    %106 = vector.shape_cast %105 : vector<1x8x8xbf16> to vector<8x8xbf16>
    %cst_108 = arith.constant dense<0.000000e+00> : vector<128x8xf32>
    %107 = tpu.matmul %104, %106, %cst_108 {dimension_numbers = #tpu.dot_dimension_numbers<[1], [0], [0], [1], [0, 0, 1, 1], [], []>} : vector<128x8xbf16>, vector<8x8xbf16>, vector<128x8xf32> -> vector<128x8xf32>
    %108 = arith.addf %102, %107 : vector<128x8xf32>
    %c1_109 = arith.constant 1 : index
    %c0_110 = arith.constant 0 : index
    %c0_111 = arith.constant 0 : index
    %109 = vector.load %arg11[%c1_109, %c0_110, %c0_111] : memref<12x18x8xbf16, #tpu.memory_space<vmem>>, vector<8x16x8xbf16>
    %110 = vector.shape_cast %109 : vector<8x16x8xbf16> to vector<128x8xbf16>
    %c3_112 = arith.constant 3 : index
    %c0_113 = arith.constant 0 : index
    %c0_114 = arith.constant 0 : index
    %111 = vector.load %arg7[%c3_112, %c0_113, %c0_114] : memref<9x8x8xbf16, #tpu.memory_space<vmem>>, vector<1x8x8xbf16>
    %112 = vector.shape_cast %111 : vector<1x8x8xbf16> to vector<8x8xbf16>
    %cst_115 = arith.constant dense<0.000000e+00> : vector<128x8xf32>
    %113 = tpu.matmul %110, %112, %cst_115 {dimension_numbers = #tpu.dot_dimension_numbers<[1], [0], [0], [1], [0, 0, 1, 1], [], []>} : vector<128x8xbf16>, vector<8x8xbf16>, vector<128x8xf32> -> vector<128x8xf32>
    %114 = arith.addf %108, %113 : vector<128x8xf32>
    %c1_116 = arith.constant 1 : index
    %c1_117 = arith.constant 1 : index
    %c0_118 = arith.constant 0 : index
    %115 = vector.load %arg11[%c1_116, %c1_117, %c0_118] : memref<12x18x8xbf16, #tpu.memory_space<vmem>>, vector<8x16x8xbf16>
    %116 = vector.shape_cast %115 : vector<8x16x8xbf16> to vector<128x8xbf16>
    %c4_119 = arith.constant 4 : index
    %c0_120 = arith.constant 0 : index
    %c0_121 = arith.constant 0 : index
    %117 = vector.load %arg7[%c4_119, %c0_120, %c0_121] : memref<9x8x8xbf16, #tpu.memory_space<vmem>>, vector<1x8x8xbf16>
    %118 = vector.shape_cast %117 : vector<1x8x8xbf16> to vector<8x8xbf16>
    %cst_122 = arith.constant dense<0.000000e+00> : vector<128x8xf32>
    %119 = tpu.matmul %116, %118, %cst_122 {dimension_numbers = #tpu.dot_dimension_numbers<[1], [0], [0], [1], [0, 0, 1, 1], [], []>} : vector<128x8xbf16>, vector<8x8xbf16>, vector<128x8xf32> -> vector<128x8xf32>
    %120 = arith.addf %114, %119 : vector<128x8xf32>
    %c1_123 = arith.constant 1 : index
    %c2_124 = arith.constant 2 : index
    %c0_125 = arith.constant 0 : index
    %121 = vector.load %arg11[%c1_123, %c2_124, %c0_125] : memref<12x18x8xbf16, #tpu.memory_space<vmem>>, vector<8x16x8xbf16>
    %122 = vector.shape_cast %121 : vector<8x16x8xbf16> to vector<128x8xbf16>
    %c5_126 = arith.constant 5 : index
    %c0_127 = arith.constant 0 : index
    %c0_128 = arith.constant 0 : index
    %123 = vector.load %arg7[%c5_126, %c0_127, %c0_128] : memref<9x8x8xbf16, #tpu.memory_space<vmem>>, vector<1x8x8xbf16>
    %124 = vector.shape_cast %123 : vector<1x8x8xbf16> to vector<8x8xbf16>
    %cst_129 = arith.constant dense<0.000000e+00> : vector<128x8xf32>
    %125 = tpu.matmul %122, %124, %cst_129 {dimension_numbers = #tpu.dot_dimension_numbers<[1], [0], [0], [1], [0, 0, 1, 1], [], []>} : vector<128x8xbf16>, vector<8x8xbf16>, vector<128x8xf32> -> vector<128x8xf32>
    %126 = arith.addf %120, %125 : vector<128x8xf32>
    %c2_130 = arith.constant 2 : index
    %c0_131 = arith.constant 0 : index
    %c0_132 = arith.constant 0 : index
    %127 = vector.load %arg11[%c2_130, %c0_131, %c0_132] : memref<12x18x8xbf16, #tpu.memory_space<vmem>>, vector<8x16x8xbf16>
    %128 = vector.shape_cast %127 : vector<8x16x8xbf16> to vector<128x8xbf16>
    %c6_133 = arith.constant 6 : index
    %c0_134 = arith.constant 0 : index
    %c0_135 = arith.constant 0 : index
    %129 = vector.load %arg7[%c6_133, %c0_134, %c0_135] : memref<9x8x8xbf16, #tpu.memory_space<vmem>>, vector<1x8x8xbf16>
    %130 = vector.shape_cast %129 : vector<1x8x8xbf16> to vector<8x8xbf16>
    %cst_136 = arith.constant dense<0.000000e+00> : vector<128x8xf32>
    %131 = tpu.matmul %128, %130, %cst_136 {dimension_numbers = #tpu.dot_dimension_numbers<[1], [0], [0], [1], [0, 0, 1, 1], [], []>} : vector<128x8xbf16>, vector<8x8xbf16>, vector<128x8xf32> -> vector<128x8xf32>
    %132 = arith.addf %126, %131 : vector<128x8xf32>
    %c2_137 = arith.constant 2 : index
    %c1_138 = arith.constant 1 : index
    %c0_139 = arith.constant 0 : index
    %133 = vector.load %arg11[%c2_137, %c1_138, %c0_139] : memref<12x18x8xbf16, #tpu.memory_space<vmem>>, vector<8x16x8xbf16>
    %134 = vector.shape_cast %133 : vector<8x16x8xbf16> to vector<128x8xbf16>
    %c7_140 = arith.constant 7 : index
    %c0_141 = arith.constant 0 : index
    %c0_142 = arith.constant 0 : index
    %135 = vector.load %arg7[%c7_140, %c0_141, %c0_142] : memref<9x8x8xbf16, #tpu.memory_space<vmem>>, vector<1x8x8xbf16>
    %136 = vector.shape_cast %135 : vector<1x8x8xbf16> to vector<8x8xbf16>
    %cst_143 = arith.constant dense<0.000000e+00> : vector<128x8xf32>
    %137 = tpu.matmul %134, %136, %cst_143 {dimension_numbers = #tpu.dot_dimension_numbers<[1], [0], [0], [1], [0, 0, 1, 1], [], []>} : vector<128x8xbf16>, vector<8x8xbf16>, vector<128x8xf32> -> vector<128x8xf32>
    %138 = arith.addf %132, %137 : vector<128x8xf32>
    %c2_144 = arith.constant 2 : index
    %c2_145 = arith.constant 2 : index
    %c0_146 = arith.constant 0 : index
    %139 = vector.load %arg11[%c2_144, %c2_145, %c0_146] : memref<12x18x8xbf16, #tpu.memory_space<vmem>>, vector<8x16x8xbf16>
    %140 = vector.shape_cast %139 : vector<8x16x8xbf16> to vector<128x8xbf16>
    %c8_147 = arith.constant 8 : index
    %c0_148 = arith.constant 0 : index
    %c0_149 = arith.constant 0 : index
    %141 = vector.load %arg7[%c8_147, %c0_148, %c0_149] : memref<9x8x8xbf16, #tpu.memory_space<vmem>>, vector<1x8x8xbf16>
    %142 = vector.shape_cast %141 : vector<1x8x8xbf16> to vector<8x8xbf16>
    %cst_150 = arith.constant dense<0.000000e+00> : vector<128x8xf32>
    %143 = tpu.matmul %140, %142, %cst_150 {dimension_numbers = #tpu.dot_dimension_numbers<[1], [0], [0], [1], [0, 0, 1, 1], [], []>} : vector<128x8xbf16>, vector<8x8xbf16>, vector<128x8xf32> -> vector<128x8xf32>
    %144 = arith.addf %138, %143 : vector<128x8xf32>
    %c0_151 = arith.constant 0 : index
    %c0_152 = arith.constant 0 : index
    %145 = vector.load %arg8[%c0_151, %c0_152] : memref<1x8xf32, #tpu.memory_space<vmem>>, vector<1x8xf32>
    %146 = vector.broadcast %145 : vector<1x8xf32> to vector<128x8xf32>
    %147 = arith.addf %144, %146 : vector<128x8xf32>
    %cst_153 = arith.constant 0.000000e+00 : f32
    %148 = vector.broadcast %cst_153 : f32 to vector<128x8xf32>
    %149 = arith.maximumf %147, %148 : vector<128x8xf32>
    %c0_154 = arith.constant 0 : index
    %c0_155 = arith.constant 0 : index
    %c0_156 = arith.constant 0 : index
    %c0_157 = arith.constant 0 : index
    %150 = vector.load %arg3[%c0_154, %c0_155, %c0_156, %c0_157] : memref<1x8x16x8xbf16, #tpu.memory_space<vmem>>, vector<1x8x16x8xbf16>
    %151 = vector.shape_cast %150 : vector<1x8x16x8xbf16> to vector<8x16x8xbf16>
    %152 = arith.extf %151 : vector<8x16x8xbf16> to vector<8x16x8xf32>
    %153 = vector.shape_cast %152 : vector<8x16x8xf32> to vector<128x8xf32>
    %c0_158 = arith.constant 0 : index
    %154 = memref.load %arg9[%c0_158] : memref<1xf32, #tpu.memory_space<smem>>
    %155 = vector.broadcast %154 : f32 to vector<128x8xf32>
    %156 = arith.mulf %155, %153 : vector<128x8xf32>
    %157 = arith.addf %156, %149 : vector<128x8xf32>
    %158 = vector.shape_cast %157 : vector<128x8xf32> to vector<8x16x8xf32>
    %159 = arith.truncf %158 : vector<8x16x8xf32> to vector<8x16x8xbf16>
    %c0_159 = arith.constant 0 : index
    %c0_160 = arith.constant 0 : index
    %c0_161 = arith.constant 0 : index
    %c0_162 = arith.constant 0 : index
    %160 = vector.load %arg10[%c0_159, %c0_160, %c0_161, %c0_162] : memref<1x8x16x8xbf16, #tpu.memory_space<vmem>>, vector<1x8x16x8xbf16>
    %161 = vector.shape_cast %160 : vector<1x8x16x8xbf16> to vector<8x16x8xbf16>
    %162 = vector.shape_cast %159 : vector<8x16x8xbf16> to vector<1x8x16x8xbf16>
    tpu.vector_store %arg10[%c0_159, %c0_160, %c0_161, %c0_162], %162 {strides = array<i32>} : memref<1x8x16x8xbf16, #tpu.memory_space<vmem>>, vector<1x8x16x8xbf16>,
    return
  }
  func.func @transform_0(%arg0: i32, %arg1: i32) -> (i32, i32, i32, i32) {
    %c4_i32 = arith.constant 4 : i32
    %0 = arith.muli %arg1, %c4_i32 : i32
    %c1_i32 = arith.constant 1 : i32
    %1 = arith.subi %0, %c1_i32 : i32
    %c0_i32 = arith.constant 0 : i32
    %2 = arith.maxsi %1, %c0_i32 : i32
    %c0_i32_0 = arith.constant 0 : i32
    %c0_i32_1 = arith.constant 0 : i32
    %c0_i32_2 = arith.constant 0 : i32
    return %arg0, %2, %c0_i32_0, %c0_i32_1 : i32, i32, i32, i32
  }
  func.func @transform_1(%arg0: i32, %arg1: i32) -> (i32, i32, i32, i32) {
    %c0_i32 = arith.constant 0 : i32
    %c0_i32_0 = arith.constant 0 : i32
    %c0_i32_1 = arith.constant 0 : i32
    return %arg0, %arg1, %c0_i32, %c0_i32_0 : i32, i32, i32, i32
  }
  func.func @transform_2(%arg0: i32, %arg1: i32) -> (i32, i32, i32, i32) {
    %c1_i32 = arith.constant 1 : i32
    %0 = arith.addi %arg1, %c1_i32 : i32
    %c4_i32 = arith.constant 4 : i32
    %1 = arith.muli %0, %c4_i32 : i32
    %c7_i32 = arith.constant 7 : i32
    %2 = arith.minsi %1, %c7_i32 : i32
    %c0_i32 = arith.constant 0 : i32
    %c0_i32_0 = arith.constant 0 : i32
    %c0_i32_1 = arith.constant 0 : i32
    return %arg0, %2, %c0_i32, %c0_i32_0 : i32, i32, i32, i32
  }
  func.func @transform_3(%arg0: i32, %arg1: i32) -> (i32, i32, i32) {
    %c0_i32 = arith.constant 0 : i32
    %c0_i32_0 = arith.constant 0 : i32
    %c0_i32_1 = arith.constant 0 : i32
    %c0_i32_2 = arith.constant 0 : i32
    return %c0_i32, %c0_i32_0, %c0_i32_1 : i32, i32, i32
  }
  func.func @transform_4(%arg0: i32, %arg1: i32) -> (i32, i32) {
    %c0_i32 = arith.constant 0 : i32
    %c0_i32_0 = arith.constant 0 : i32
    %c0_i32_1 = arith.constant 0 : i32
    return %c0_i32, %c0_i32_0 : i32, i32
  }
  func.func @transform_5(%arg0: i32, %arg1: i32) -> (i32, i32, i32) {
    %c0_i32 = arith.constant 0 : i32
    %c0_i32_0 = arith.constant 0 : i32
    %c0_i32_1 = arith.constant 0 : i32
    %c0_i32_2 = arith.constant 0 : i32
    return %c0_i32, %c0_i32_0, %c0_i32_1 : i32, i32, i32
  }
  func.func @transform_6(%arg0: i32, %arg1: i32) -> (i32, i32) {
    %c0_i32 = arith.constant 0 : i32
    %c0_i32_0 = arith.constant 0 : i32
    %c0_i32_1 = arith.constant 0 : i32
    return %c0_i32, %c0_i32_0 : i32, i32
  }
  func.func @transform_7(%arg0: i32, %arg1: i32) -> i32 {
    %c0_i32 = arith.constant 0 : i32
    %c0_i32_0 = arith.constant 0 : i32
    return %c0_i32 : i32
  }
  func.func @transform_8(%arg0: i32, %arg1: i32) -> (i32, i32, i32, i32) {
    %c0_i32 = arith.constant 0 : i32
    %c0_i32_0 = arith.constant 0 : i32
    %c0_i32_1 = arith.constant 0 : i32
    return %arg0, %arg1, %c0_i32, %c0_i32_0 : i32, i32, i32, i32
  }
}

module attributes {stable_mosaic.version = 11 : i64} {
  func.func @_pw3_kernel(%arg0: i32, %arg1: memref<512x8xbf16, #tpu.memory_space<vmem>>, %arg2: memref<512x8xbf16, #tpu.memory_space<vmem>>, %arg3: memref<8x16xbf16, #tpu.memory_space<vmem>>, %arg4: memref<8x16xbf16, #tpu.memory_space<vmem>>, %arg5: memref<1x16xf32, #tpu.memory_space<vmem>>, %arg6: memref<512x16xbf16, #tpu.memory_space<vmem>>) attributes {dimension_semantics = [#tpu.dimension_semantics<parallel>], iteration_bounds = array<i64: 1>, scalar_prefetch = 0 : i64, scratch_operands = 0 : i64, tpu.core_type = #tpu.core_type<tc>, window_params = [{transform_indices = @transform_0, window_bounds = array<i64: 512, 8>}, {transform_indices = @transform_1, window_bounds = array<i64: 512, 8>}, {pipeline_mode = #tpu.pipeline_mode<synchronous>, transform_indices = @transform_2, window_bounds = array<i64: 8, 16>}, {pipeline_mode = #tpu.pipeline_mode<synchronous>, transform_indices = @transform_3, window_bounds = array<i64: 8, 16>}, {pipeline_mode = #tpu.pipeline_mode<synchronous>, transform_indices = @transform_4, window_bounds = array<i64: 1, 16>}, {transform_indices = @transform_5, window_bounds = array<i64: 512, 16>}]} {
    %c0 = arith.constant 0 : index
    %c0_0 = arith.constant 0 : index
    %0 = vector.load %arg1[%c0, %c0_0] : memref<512x8xbf16, #tpu.memory_space<vmem>>, vector<512x8xbf16>
    %c0_1 = arith.constant 0 : index
    %c0_2 = arith.constant 0 : index
    %1 = vector.load %arg3[%c0_1, %c0_2] : memref<8x16xbf16, #tpu.memory_space<vmem>>, vector<8x16xbf16>
    %cst = arith.constant dense<0.000000e+00> : vector<512x16xf32>
    %2 = tpu.matmul %0, %1, %cst {dimension_numbers = #tpu.dot_dimension_numbers<[1], [0], [0], [1], [0, 0, 1, 1], [], []>} : vector<512x8xbf16>, vector<8x16xbf16>, vector<512x16xf32> -> vector<512x16xf32>
    %c0_3 = arith.constant 0 : index
    %c0_4 = arith.constant 0 : index
    %3 = vector.load %arg2[%c0_3, %c0_4] : memref<512x8xbf16, #tpu.memory_space<vmem>>, vector<512x8xbf16>
    %c0_5 = arith.constant 0 : index
    %c0_6 = arith.constant 0 : index
    %4 = vector.load %arg4[%c0_5, %c0_6] : memref<8x16xbf16, #tpu.memory_space<vmem>>, vector<8x16xbf16>
    %cst_7 = arith.constant dense<0.000000e+00> : vector<512x16xf32>
    %5 = tpu.matmul %3, %4, %cst_7 {dimension_numbers = #tpu.dot_dimension_numbers<[1], [0], [0], [1], [0, 0, 1, 1], [], []>} : vector<512x8xbf16>, vector<8x16xbf16>, vector<512x16xf32> -> vector<512x16xf32>
    %6 = arith.addf %2, %5 : vector<512x16xf32>
    %c0_8 = arith.constant 0 : index
    %c0_9 = arith.constant 0 : index
    %7 = vector.load %arg5[%c0_8, %c0_9] : memref<1x16xf32, #tpu.memory_space<vmem>>, vector<1x16xf32>
    %8 = vector.broadcast %7 : vector<1x16xf32> to vector<512x16xf32>
    %9 = arith.addf %6, %8 : vector<512x16xf32>
    %cst_10 = arith.constant 0.000000e+00 : f32
    %10 = vector.broadcast %cst_10 : f32 to vector<512x16xf32>
    %11 = arith.maximumf %9, %10 : vector<512x16xf32>
    %12 = arith.truncf %11 : vector<512x16xf32> to vector<512x16xbf16>
    %c0_11 = arith.constant 0 : index
    %c0_12 = arith.constant 0 : index
    %13 = vector.load %arg6[%c0_11, %c0_12] : memref<512x16xbf16, #tpu.memory_space<vmem>>, vector<512x16xbf16>
    tpu.vector_store %arg6[%c0_11, %c0_12], %12 {strides = array<i32>} : memref<512x16xbf16, #tpu.memory_space<vmem>>, vector<512x16xbf16>,
    return
  }
  func.func @transform_0(%arg0: i32) -> (i32, i32) {
    %c0_i32 = arith.constant 0 : i32
    %c0_i32_0 = arith.constant 0 : i32
    return %arg0, %c0_i32 : i32, i32
  }
  func.func @transform_1(%arg0: i32) -> (i32, i32) {
    %c0_i32 = arith.constant 0 : i32
    %c0_i32_0 = arith.constant 0 : i32
    return %arg0, %c0_i32 : i32, i32
  }
  func.func @transform_2(%arg0: i32) -> (i32, i32) {
    %c0_i32 = arith.constant 0 : i32
    %c0_i32_0 = arith.constant 0 : i32
    %c0_i32_1 = arith.constant 0 : i32
    return %c0_i32, %c0_i32_0 : i32, i32
  }
  func.func @transform_3(%arg0: i32) -> (i32, i32) {
    %c0_i32 = arith.constant 0 : i32
    %c0_i32_0 = arith.constant 0 : i32
    %c0_i32_1 = arith.constant 0 : i32
    return %c0_i32, %c0_i32_0 : i32, i32
  }
  func.func @transform_4(%arg0: i32) -> (i32, i32) {
    %c0_i32 = arith.constant 0 : i32
    %c0_i32_0 = arith.constant 0 : i32
    %c0_i32_1 = arith.constant 0 : i32
    return %c0_i32, %c0_i32_0 : i32, i32
  }
  func.func @transform_5(%arg0: i32) -> (i32, i32) {
    %c0_i32 = arith.constant 0 : i32
    %c0_i32_0 = arith.constant 0 : i32
    return %arg0, %c0_i32 : i32, i32
  }
}

module attributes {stable_mosaic.version = 11 : i64} {
  func.func @_pw12_kernel(%arg0: i32, %arg1: memref<512x16xbf16, #tpu.memory_space<vmem>>, %arg2: memref<16x8xbf16, #tpu.memory_space<vmem>>, %arg3: memref<1x8xf32, #tpu.memory_space<vmem>>, %arg4: memref<16x8xbf16, #tpu.memory_space<vmem>>, %arg5: memref<1x8xf32, #tpu.memory_space<vmem>>, %arg6: memref<512x8xbf16, #tpu.memory_space<vmem>>, %arg7: memref<512x8xbf16, #tpu.memory_space<vmem>>) attributes {dimension_semantics = [#tpu.dimension_semantics<parallel>], iteration_bounds = array<i64: 1>, scalar_prefetch = 0 : i64, scratch_operands = 0 : i64, tpu.core_type = #tpu.core_type<tc>, window_params = [{transform_indices = @transform_0, window_bounds = array<i64: 512, 16>}, {pipeline_mode = #tpu.pipeline_mode<synchronous>, transform_indices = @transform_1, window_bounds = array<i64: 16, 8>}, {pipeline_mode = #tpu.pipeline_mode<synchronous>, transform_indices = @transform_2, window_bounds = array<i64: 1, 8>}, {pipeline_mode = #tpu.pipeline_mode<synchronous>, transform_indices = @transform_3, window_bounds = array<i64: 16, 8>}, {pipeline_mode = #tpu.pipeline_mode<synchronous>, transform_indices = @transform_4, window_bounds = array<i64: 1, 8>}, {transform_indices = @transform_5, window_bounds = array<i64: 512, 8>}, {transform_indices = @transform_6, window_bounds = array<i64: 512, 8>}]} {
    %c0 = arith.constant 0 : index
    %c0_0 = arith.constant 0 : index
    %0 = vector.load %arg1[%c0, %c0_0] : memref<512x16xbf16, #tpu.memory_space<vmem>>, vector<512x16xbf16>
    %c0_1 = arith.constant 0 : index
    %c0_2 = arith.constant 0 : index
    %1 = vector.load %arg2[%c0_1, %c0_2] : memref<16x8xbf16, #tpu.memory_space<vmem>>, vector<16x8xbf16>
    %cst = arith.constant dense<0.000000e+00> : vector<512x8xf32>
    %2 = tpu.matmul %0, %1, %cst {dimension_numbers = #tpu.dot_dimension_numbers<[1], [0], [0], [1], [0, 0, 1, 1], [], []>} : vector<512x16xbf16>, vector<16x8xbf16>, vector<512x8xf32> -> vector<512x8xf32>
    %c0_3 = arith.constant 0 : index
    %c0_4 = arith.constant 0 : index
    %3 = vector.load %arg4[%c0_3, %c0_4] : memref<16x8xbf16, #tpu.memory_space<vmem>>, vector<16x8xbf16>
    %cst_5 = arith.constant dense<0.000000e+00> : vector<512x8xf32>
    %4 = tpu.matmul %0, %3, %cst_5 {dimension_numbers = #tpu.dot_dimension_numbers<[1], [0], [0], [1], [0, 0, 1, 1], [], []>} : vector<512x16xbf16>, vector<16x8xbf16>, vector<512x8xf32> -> vector<512x8xf32>
    %c0_6 = arith.constant 0 : index
    %c0_7 = arith.constant 0 : index
    %5 = vector.load %arg3[%c0_6, %c0_7] : memref<1x8xf32, #tpu.memory_space<vmem>>, vector<1x8xf32>
    %6 = vector.broadcast %5 : vector<1x8xf32> to vector<512x8xf32>
    %7 = arith.addf %2, %6 : vector<512x8xf32>
    %cst_8 = arith.constant 0.000000e+00 : f32
    %8 = vector.broadcast %cst_8 : f32 to vector<512x8xf32>
    %9 = arith.maximumf %7, %8 : vector<512x8xf32>
    %10 = arith.truncf %9 : vector<512x8xf32> to vector<512x8xbf16>
    %c0_9 = arith.constant 0 : index
    %c0_10 = arith.constant 0 : index
    %11 = vector.load %arg6[%c0_9, %c0_10] : memref<512x8xbf16, #tpu.memory_space<vmem>>, vector<512x8xbf16>
    tpu.vector_store %arg6[%c0_9, %c0_10], %10 {strides = array<i32>} : memref<512x8xbf16, #tpu.memory_space<vmem>>, vector<512x8xbf16>,
    %c0_11 = arith.constant 0 : index
    %c0_12 = arith.constant 0 : index
    %12 = vector.load %arg5[%c0_11, %c0_12] : memref<1x8xf32, #tpu.memory_space<vmem>>, vector<1x8xf32>
    %13 = vector.broadcast %12 : vector<1x8xf32> to vector<512x8xf32>
    %14 = arith.addf %4, %13 : vector<512x8xf32>
    %cst_13 = arith.constant 0.000000e+00 : f32
    %15 = vector.broadcast %cst_13 : f32 to vector<512x8xf32>
    %16 = arith.maximumf %14, %15 : vector<512x8xf32>
    %17 = arith.truncf %16 : vector<512x8xf32> to vector<512x8xbf16>
    %c0_14 = arith.constant 0 : index
    %c0_15 = arith.constant 0 : index
    %18 = vector.load %arg7[%c0_14, %c0_15] : memref<512x8xbf16, #tpu.memory_space<vmem>>, vector<512x8xbf16>
    tpu.vector_store %arg7[%c0_14, %c0_15], %17 {strides = array<i32>} : memref<512x8xbf16, #tpu.memory_space<vmem>>, vector<512x8xbf16>,
    return
  }
  func.func @transform_0(%arg0: i32) -> (i32, i32) {
    %c0_i32 = arith.constant 0 : i32
    %c0_i32_0 = arith.constant 0 : i32
    return %arg0, %c0_i32 : i32, i32
  }
  func.func @transform_1(%arg0: i32) -> (i32, i32) {
    %c0_i32 = arith.constant 0 : i32
    %c0_i32_0 = arith.constant 0 : i32
    %c0_i32_1 = arith.constant 0 : i32
    return %c0_i32, %c0_i32_0 : i32, i32
  }
  func.func @transform_2(%arg0: i32) -> (i32, i32) {
    %c0_i32 = arith.constant 0 : i32
    %c0_i32_0 = arith.constant 0 : i32
    %c0_i32_1 = arith.constant 0 : i32
    return %c0_i32, %c0_i32_0 : i32, i32
  }
  func.func @transform_3(%arg0: i32) -> (i32, i32) {
    %c0_i32 = arith.constant 0 : i32
    %c0_i32_0 = arith.constant 0 : i32
    %c0_i32_1 = arith.constant 0 : i32
    return %c0_i32, %c0_i32_0 : i32, i32
  }
  func.func @transform_4(%arg0: i32) -> (i32, i32) {
    %c0_i32 = arith.constant 0 : i32
    %c0_i32_0 = arith.constant 0 : i32
    %c0_i32_1 = arith.constant 0 : i32
    return %c0_i32, %c0_i32_0 : i32, i32
  }
  func.func @transform_5(%arg0: i32) -> (i32, i32) {
    %c0_i32 = arith.constant 0 : i32
    %c0_i32_0 = arith.constant 0 : i32
    return %arg0, %c0_i32 : i32, i32
  }
  func.func @transform_6(%arg0: i32) -> (i32, i32) {
    %c0_i32 = arith.constant 0 : i32
    %c0_i32_0 = arith.constant 0 : i32
    return %arg0, %c0_i32 : i32, i32
  }
}

</mosaic_0001>

<llo_original>
// kernel: yolo_nas_csp_layer.7
$region0: #{yolo_nas_csp_layer.7}
  #allocation0 [shape = 'u32[]', space=smem, size = 0x4, offset = 0x4, fixed_abs, tag = 'smem constant byte address 0x4 - core index']
  #allocation1 [shape = 'u32[144,128]{1,0:T(1,128)}', space=vmem, size = 0x12000, scoped, tag = 'internal scratch']
  %s0 = inlined_call_operand.vmem [shape: bf16[512,8], index: 0, kind: input, shape index: {}]
  %s1 = inlined_call_operand.vmem [shape: bf16[512,8], index: 1, kind: input, shape index: {}]
  %s2 = inlined_call_operand.vmem [shape: bf16[8,16], index: 2, kind: input, shape index: {}]
  %s3 = inlined_call_operand.vmem [shape: bf16[8,16], index: 3, kind: input, shape index: {}]
  %s4 = inlined_call_operand.vmem [shape: f32[1,16], index: 4, kind: input, shape index: {}]
  %s5 = inlined_call_operand.vmem [shape: bf16[512,16], index: 5, kind: output, shape index: {}]
  %s6 = sld [smem:[#allocation0]]
  $region30: #{yolo_nas_csp_layer.7} parent=0
    _
  %s8 = ssub.s32 1, %s6
  %s9 = scalar_select 0, %s8, %s6
  // Predicated region
  $region2: #{yolo_nas_csp_layer.7} parent=0 // pred_check
    _
  $region3: #{yolo_nas_csp_layer.7} parent=0 // pred_check_branch
    %11 = sbr.rel (0) target = $region5
  $region4: #{yolo_nas_csp_layer.7} parent=0 // pred_region
    _
  $region5: #{yolo_nas_csp_layer.7} parent=0 // pred_fallthru
    _
  // Predicated region
  $region6: #{yolo_nas_csp_layer.7} parent=0 // pred_check
    _
  $region7: #{yolo_nas_csp_layer.7} parent=0 // pred_check_branch
    %13 = sbr.rel (0) target = $region9
  $region8: #{yolo_nas_csp_layer.7} parent=0 // pred_region
    _
  $region9: #{yolo_nas_csp_layer.7} parent=0 // pred_fallthru
    _
  // Predicated region
  $region10: #{yolo_nas_csp_layer.7} parent=0 // pred_check
    _
  $region11: #{yolo_nas_csp_layer.7} parent=0 // pred_check_branch
    %15 = sbr.rel (0) target = $region13
  $region12: #{yolo_nas_csp_layer.7} parent=0 // pred_region
    _
  $region13: #{yolo_nas_csp_layer.7} parent=0 // pred_fallthru
    _
  // Predicated region
  $region14: #{yolo_nas_csp_layer.7} parent=0 // pred_check
    _
  $region15: #{yolo_nas_csp_layer.7} parent=0 // pred_check_branch
    %17 = sbr.rel (0) target = $region17
  $region16: #{yolo_nas_csp_layer.7} parent=0 // pred_region
    _
  $region17: #{yolo_nas_csp_layer.7} parent=0 // pred_fallthru
    _
  // Predicated region
  $region18: #{yolo_nas_csp_layer.7} parent=0 // pred_check
    _
  $region19: #{yolo_nas_csp_layer.7} parent=0 // pred_check_branch
    %19 = sbr.rel (0) target = $region21
  $region20: #{yolo_nas_csp_layer.7} parent=0 // pred_region
    _
  $region21: #{yolo_nas_csp_layer.7} parent=0 // pred_fallthru
    _
  %v21 = vld [vmem:[%s0] sm:$0xf]
  %v22 = vld [vmem:[%s0 + $0x4] sm:$0xf]
  %v23 = vld [vmem:[%s0 + $0x8] sm:$0xf]
  %v24 = vld [vmem:[%s0 + $0xc] sm:$0xf]
  %v25 = vld [vmem:[%s0 + $0x10] sm:$0xf]
  %v26 = vld [vmem:[%s0 + $0x14] sm:$0xf]
  %v27 = vld [vmem:[%s0 + $0x18] sm:$0xf]
  %v28 = vld [vmem:[%s0 + $0x1c] sm:$0xf]
  %v29 = vld [vmem:[%s0 + $0x20] sm:$0xf]
  %v30 = vld [vmem:[%s0 + $0x24] sm:$0xf]
  %v31 = vld [vmem:[%s0 + $0x28] sm:$0xf]
  %v32 = vld [vmem:[%s0 + $0x2c] sm:$0xf]
  %v33 = vld [vmem:[%s0 + $0x30] sm:$0xf]
  %v34 = vld [vmem:[%s0 + $0x34] sm:$0xf]
  %v35 = vld [vmem:[%s0 + $0x38] sm:$0xf]
  %v36 = vld [vmem:[%s0 + $0x3c] sm:$0xf]
  %v37 = vld [vmem:[%s0 + $0x40] sm:$0xf]
  %v38 = vld [vmem:[%s0 + $0x44] sm:$0xf]
  %v39 = vld [vmem:[%s0 + $0x48] sm:$0xf]
  %v40 = vld [vmem:[%s0 + $0x4c] sm:$0xf]
  %v41 = vld [vmem:[%s0 + $0x50] sm:$0xf]
  %v42 = vld [vmem:[%s0 + $0x54] sm:$0xf]
  %v43 = vld [vmem:[%s0 + $0x58] sm:$0xf]
  %v44 = vld [vmem:[%s0 + $0x5c] sm:$0xf]
  %v45 = vld [vmem:[%s0 + $0x60] sm:$0xf]
  %v46 = vld [vmem:[%s0 + $0x64] sm:$0xf]
  %v47 = vld [vmem:[%s0 + $0x68] sm:$0xf]
  %v48 = vld [vmem:[%s0 + $0x6c] sm:$0xf]
  %v49 = vld [vmem:[%s0 + $0x70] sm:$0xf]
  %v50 = vld [vmem:[%s0 + $0x74] sm:$0xf]
  %v51 = vld [vmem:[%s0 + $0x78] sm:$0xf]
  %v52 = vld [vmem:[%s0 + $0x7c] sm:$0xf]
  %v53 = vld [vmem:[%s0 + $0x80] sm:$0xf]
  %v54 = vld [vmem:[%s0 + $0x84] sm:$0xf]
  %v55 = vld [vmem:[%s0 + $0x88] sm:$0xf]
  %v56 = vld [vmem:[%s0 + $0x8c] sm:$0xf]
  %v57 = vld [vmem:[%s0 + $0x90] sm:$0xf]
  %v58 = vld [vmem:[%s0 + $0x94] sm:$0xf]
  %v59 = vld [vmem:[%s0 + $0x98] sm:$0xf]
  %v60 = vld [vmem:[%s0 + $0x9c] sm:$0xf]
  %v61 = vld [vmem:[%s0 + $0xa0] sm:$0xf]
  %v62 = vld [vmem:[%s0 + $0xa4] sm:$0xf]
  %v63 = vld [vmem:[%s0 + $0xa8] sm:$0xf]
  %v64 = vld [vmem:[%s0 + $0xac] sm:$0xf]
  %v65 = vld [vmem:[%s0 + $0xb0] sm:$0xf]
  %v66 = vld [vmem:[%s0 + $0xb4] sm:$0xf]
  %v67 = vld [vmem:[%s0 + $0xb8] sm:$0xf]
  %v68 = vld [vmem:[%s0 + $0xbc] sm:$0xf]
  %v69 = vld [vmem:[%s0 + $0xc0] sm:$0xf]
  %v70 = vld [vmem:[%s0 + $0xc4] sm:$0xf]
  %v71 = vld [vmem:[%s0 + $0xc8] sm:$0xf]
  %v72 = vld [vmem:[%s0 + $0xcc] sm:$0xf]
  %v73 = vld [vmem:[%s0 + $0xd0] sm:$0xf]
  %v74 = vld [vmem:[%s0 + $0xd4] sm:$0xf]
  %v75 = vld [vmem:[%s0 + $0xd8] sm:$0xf]
  %v76 = vld [vmem:[%s0 + $0xdc] sm:$0xf]
  %v77 = vld [vmem:[%s0 + $0xe0] sm:$0xf]
  %v78 = vld [vmem:[%s0 + $0xe4] sm:$0xf]
  %v79 = vld [vmem:[%s0 + $0xe8] sm:$0xf]
  %v80 = vld [vmem:[%s0 + $0xec] sm:$0xf]
  %v81 = vld [vmem:[%s0 + $0xf0] sm:$0xf]
  %v82 = vld [vmem:[%s0 + $0xf4] sm:$0xf]
  %v83 = vld [vmem:[%s0 + $0xf8] sm:$0xf]
  %v84 = vld [vmem:[%s0 + $0xfc] sm:$0xf]
  %v85 = vld [vmem:[%s2] sm:$0xf]
  %v86 = vld [vmem:[%s1] sm:$0xf]
  %v87 = vld [vmem:[%s1 + $0x4] sm:$0xf]
  %v88 = vld [vmem:[%s1 + $0x8] sm:$0xf]
  %v89 = vld [vmem:[%s1 + $0xc] sm:$0xf]
  %v90 = vld [vmem:[%s1 + $0x10] sm:$0xf]
  %v91 = vld [vmem:[%s1 + $0x14] sm:$0xf]
  %v92 = vld [vmem:[%s1 + $0x18] sm:$0xf]
  %v93 = vld [vmem:[%s1 + $0x1c] sm:$0xf]
  %v94 = vld [vmem:[%s1 + $0x20] sm:$0xf]
  %v95 = vld [vmem:[%s1 + $0x24] sm:$0xf]
  %v96 = vld [vmem:[%s1 + $0x28] sm:$0xf]
  %v97 = vld [vmem:[%s1 + $0x2c] sm:$0xf]
  %v98 = vld [vmem:[%s1 + $0x30] sm:$0xf]
  %v99 = vld [vmem:[%s1 + $0x34] sm:$0xf]
  %v100 = vld [vmem:[%s1 + $0x38] sm:$0xf]
  %v101 = vld [vmem:[%s1 + $0x3c] sm:$0xf]
  %v102 = vld [vmem:[%s1 + $0x40] sm:$0xf]
  %v103 = vld [vmem:[%s1 + $0x44] sm:$0xf]
  %v104 = vld [vmem:[%s1 + $0x48] sm:$0xf]
  %v105 = vld [vmem:[%s1 + $0x4c] sm:$0xf]
  %v106 = vld [vmem:[%s1 + $0x50] sm:$0xf]
  %v107 = vld [vmem:[%s1 + $0x54] sm:$0xf]
  %v108 = vld [vmem:[%s1 + $0x58] sm:$0xf]
  %v109 = vld [vmem:[%s1 + $0x5c] sm:$0xf]
  %v110 = vld [vmem:[%s1 + $0x60] sm:$0xf]
  %v111 = vld [vmem:[%s1 + $0x64] sm:$0xf]
  %v112 = vld [vmem:[%s1 + $0x68] sm:$0xf]
  %v113 = vld [vmem:[%s1 + $0x6c] sm:$0xf]
  %v114 = vld [vmem:[%s1 + $0x70] sm:$0xf]
  %v115 = vld [vmem:[%s1 + $0x74] sm:$0xf]
  %v116 = vld [vmem:[%s1 + $0x78] sm:$0xf]
  %v117 = vld [vmem:[%s1 + $0x7c] sm:$0xf]
  %v118 = vld [vmem:[%s1 + $0x80] sm:$0xf]
  %v119 = vld [vmem:[%s1 + $0x84] sm:$0xf]
  %v120 = vld [vmem:[%s1 + $0x88] sm:$0xf]
  %v121 = vld [vmem:[%s1 + $0x8c] sm:$0xf]
  %v122 = vld [vmem:[%s1 + $0x90] sm:$0xf]
  %v123 = vld [vmem:[%s1 + $0x94] sm:$0xf]
  %v124 = vld [vmem:[%s1 + $0x98] sm:$0xf]
  %v125 = vld [vmem:[%s1 + $0x9c] sm:$0xf]
  %v126 = vld [vmem:[%s1 + $0xa0] sm:$0xf]
  %v127 = vld [vmem:[%s1 + $0xa4] sm:$0xf]
  %v128 = vld [vmem:[%s1 + $0xa8] sm:$0xf]
  %v129 = vld [vmem:[%s1 + $0xac] sm:$0xf]
  %v130 = vld [vmem:[%s1 + $0xb0] sm:$0xf]
  %v131 = vld [vmem:[%s1 + $0xb4] sm:$0xf]
  %v132 = vld [vmem:[%s1 + $0xb8] sm:$0xf]
  %v133 = vld [vmem:[%s1 + $0xbc] sm:$0xf]
  %v134 = vld [vmem:[%s1 + $0xc0] sm:$0xf]
  %v135 = vld [vmem:[%s1 + $0xc4] sm:$0xf]
  %v136 = vld [vmem:[%s1 + $0xc8] sm:$0xf]
  %v137 = vld [vmem:[%s1 + $0xcc] sm:$0xf]
  %v138 = vld [vmem:[%s1 + $0xd0] sm:$0xf]
  %v139 = vld [vmem:[%s1 + $0xd4] sm:$0xf]
  %v140 = vld [vmem:[%s1 + $0xd8] sm:$0xf]
  %v141 = vld [vmem:[%s1 + $0xdc] sm:$0xf]
  %v142 = vld [vmem:[%s1 + $0xe0] sm:$0xf]
  %v143 = vld [vmem:[%s1 + $0xe4] sm:$0xf]
  %v144 = vld [vmem:[%s1 + $0xe8] sm:$0xf]
  %v145 = vld [vmem:[%s1 + $0xec] sm:$0xf]
  %v146 = vld [vmem:[%s1 + $0xf0] sm:$0xf]
  %v147 = vld [vmem:[%s1 + $0xf4] sm:$0xf]
  %v148 = vld [vmem:[%s1 + $0xf8] sm:$0xf]
  %v149 = vld [vmem:[%s1 + $0xfc] sm:$0xf]
  %v150 = vld [vmem:[%s3] sm:$0xf]
  %v215 = vunpack.c.l.b16 %v86
  %v216 = vunpack.c.l.b16 %v87
  %v217 = vunpack.c.l.b16 %v88
  %v218 = vunpack.c.l.b16 %v89
  %v219 = vunpack.c.l.b16 %v90
  %v220 = vunpack.c.l.b16 %v91
  %v221 = vunpack.c.l.b16 %v92
  %v222 = vunpack.c.l.b16 %v93
  %v223 = vunpack.c.l.b16 %v94
  %v224 = vunpack.c.l.b16 %v95
  %v225 = vunpack.c.l.b16 %v96
  %v226 = vunpack.c.l.b16 %v97
  %v227 = vunpack.c.l.b16 %v98
  %v228 = vunpack.c.l.b16 %v99
  %v229 = vunpack.c.l.b16 %v100
  %v230 = vunpack.c.l.b16 %v101
  %v231 = vunpack.c.l.b16 %v102
  %v232 = vunpack.c.l.b16 %v103
  %v233 = vunpack.c.l.b16 %v104
  %v234 = vunpack.c.l.b16 %v105
  %v235 = vunpack.c.l.b16 %v106
  %v236 = vunpack.c.l.b16 %v107
  %v237 = vunpack.c.l.b16 %v108
  %v238 = vunpack.c.l.b16 %v109
  %v239 = vunpack.c.l.b16 %v110
  %v240 = vunpack.c.l.b16 %v111
  %v241 = vunpack.c.l.b16 %v112
  %v242 = vunpack.c.l.b16 %v113
  %v243 = vunpack.c.l.b16 %v114
  %v244 = vunpack.c.l.b16 %v115
  %v245 = vunpack.c.l.b16 %v116
  %v246 = vunpack.c.l.b16 %v117
  %v247 = vunpack.c.l.b16 %v118
  %v248 = vunpack.c.l.b16 %v119
  %v249 = vunpack.c.l.b16 %v120
  %v250 = vunpack.c.l.b16 %v121
  %v251 = vunpack.c.l.b16 %v122
  %v252 = vunpack.c.l.b16 %v123
  %v253 = vunpack.c.l.b16 %v124
  %v254 = vunpack.c.l.b16 %v125
  %v255 = vunpack.c.l.b16 %v126
  %v256 = vunpack.c.l.b16 %v127
  %v257 = vunpack.c.l.b16 %v128
  %v258 = vunpack.c.l.b16 %v129
  %v259 = vunpack.c.l.b16 %v130
  %v260 = vunpack.c.l.b16 %v131
  %v261 = vunpack.c.l.b16 %v132
  %v262 = vunpack.c.l.b16 %v133
  %v263 = vunpack.c.l.b16 %v134
  %v264 = vunpack.c.l.b16 %v135
  %v265 = vunpack.c.l.b16 %v136
  %v266 = vunpack.c.l.b16 %v137
  %v267 = vunpack.c.l.b16 %v138
  %v268 = vunpack.c.l.b16 %v139
  %v269 = vunpack.c.l.b16 %v140
  %v270 = vunpack.c.l.b16 %v141
  %v271 = vunpack.c.l.b16 %v142
  %v272 = vunpack.c.l.b16 %v143
  %v273 = vunpack.c.l.b16 %v144
  %v274 = vunpack.c.l.b16 %v145
  %v275 = vunpack.c.l.b16 %v146
  %v276 = vunpack.c.l.b16 %v147
  %v277 = vunpack.c.l.b16 %v148
  %v278 = vunpack.c.l.b16 %v149
  %v279 = vpack.c.b16 %v216, %v215
  %v280 = vpack.c.b16 %v218, %v217
  %v281 = vpack.c.b16 %v220, %v219
  %v282 = vpack.c.b16 %v222, %v221
  %v283 = vpack.c.b16 %v224, %v223
  %v284 = vpack.c.b16 %v226, %v225
  %v285 = vpack.c.b16 %v228, %v227
  %v286 = vpack.c.b16 %v230, %v229
  %v287 = vpack.c.b16 %v232, %v231
  %v288 = vpack.c.b16 %v234, %v233
  %v289 = vpack.c.b16 %v236, %v235
  %v290 = vpack.c.b16 %v238, %v237
  %v291 = vpack.c.b16 %v240, %v239
  %v292 = vpack.c.b16 %v242, %v241
  %v293 = vpack.c.b16 %v244, %v243
  %v294 = vpack.c.b16 %v246, %v245
  %v295 = vpack.c.b16 %v248, %v247
  %v296 = vpack.c.b16 %v250, %v249
  %v297 = vpack.c.b16 %v252, %v251
  %v298 = vpack.c.b16 %v254, %v253
  %v299 = vpack.c.b16 %v256, %v255
  %v300 = vpack.c.b16 %v258, %v257
  %v301 = vpack.c.b16 %v260, %v259
  %v302 = vpack.c.b16 %v262, %v261
  %v303 = vpack.c.b16 %v264, %v263
  %v304 = vpack.c.b16 %v266, %v265
  %v305 = vpack.c.b16 %v268, %v267
  %v306 = vpack.c.b16 %v270, %v269
  %v307 = vpack.c.b16 %v272, %v271
  %v308 = vpack.c.b16 %v274, %v273
  %v309 = vpack.c.b16 %v276, %v275
  %v310 = vpack.c.b16 %v278, %v277
  %vm311 = vcmask 64512
  %v313 = vsel %vm311, %v279, 0
  %v316 = vsel %vm311, %v280, 0
  %v319 = vsel %vm311, %v281, 0
  %v322 = vsel %vm311, %v282, 0
  %v325 = vsel %vm311, %v283, 0
  %v328 = vsel %vm311, %v284, 0
  %v331 = vsel %vm311, %v285, 0
  %v334 = vsel %vm311, %v286, 0
  %v337 = vsel %vm311, %v287, 0
  %v340 = vsel %vm311, %v288, 0
  %v343 = vsel %vm311, %v289, 0
  %v346 = vsel %vm311, %v290, 0
  %v349 = vsel %vm311, %v291, 0
  %v352 = vsel %vm311, %v292, 0
  %v355 = vsel %vm311, %v293, 0
  %v358 = vsel %vm311, %v294, 0
  %v361 = vsel %vm311, %v295, 0
  %v364 = vsel %vm311, %v296, 0
  %v367 = vsel %vm311, %v297, 0
  %v370 = vsel %vm311, %v298, 0
  %v373 = vsel %vm311, %v299, 0
  %v376 = vsel %vm311, %v300, 0
  %v379 = vsel %vm311, %v301, 0
  %v382 = vsel %vm311, %v302, 0
  %v385 = vsel %vm311, %v303, 0
  %v388 = vsel %vm311, %v304, 0
  %v391 = vsel %vm311, %v305, 0
  %v394 = vsel %vm311, %v306, 0
  %v397 = vsel %vm311, %v307, 0
  %v400 = vsel %vm311, %v308, 0
  %v403 = vsel %vm311, %v309, 0
  %v406 = vsel %vm311, %v310, 0
  %vm408 = vcmask 1043456
  %v410 = vsel %vm408, %v150, 0
  %412 = vmatprep.subr.bf16.mxu0 0
  %413 = vmatpush1.bf16.msra.mxu0 0
  %414 = vmatprep.subr.bf16.mxu0 0
  %415 = vmatpush1.bf16.msra.mxu0 0
  %416 = vmatprep.subr.bf16.mxu0 0
  %417 = vmatpush1.bf16.msra.mxu0 0
  %418 = vmatprep.subr.bf16.mxu0 0
  %419 = vmatpush1.bf16.msra.mxu0 0
  %420 = vmatprep.subr.bf16.mxu0 0
  %421 = vmatpush1.bf16.msra.mxu0 0
  %422 = vmatprep.subr.bf16.mxu0 0
  %423 = vmatpush1.bf16.msra.mxu0 0
  %424 = vmatprep.subr.bf16.mxu0 0
  %425 = vmatpush1.bf16.msra.mxu0 0
  %426 = vmatprep.subr.bf16.mxu0 0
  %427 = vmatpush1.bf16.msra.mxu0 %v410
  %428 = vmatprep.subr.bf16.mxu0 0
  %429 = vmatpush2.bf16.msra.mxu0 0
  %430 = vmatprep.subr.bf16.mxu0 0
  %431 = vmatpush2.bf16.msra.mxu0 0
  %432 = vmatprep.subr.bf16.mxu0 0
  %433 = vmatpush2.bf16.msra.mxu0 0
  %434 = vmatprep.subr.bf16.mxu0 0
  %435 = vmatpush2.bf16.msra.mxu0 0
  %436 = vmatprep.subr.bf16.mxu0 0
  %437 = vmatpush2.bf16.msra.mxu0 0
  %438 = vmatprep.subr.bf16.mxu0 0
  %439 = vmatpush2.bf16.msra.mxu0 0
  %440 = vmatprep.subr.bf16.mxu0 0
  %441 = vmatpush2.bf16.msra.mxu0 0
  %442 = vmatprep.subr.bf16.mxu0 0
  %443 = vmatpush2.bf16.msra.mxu0 0
  %444 = vmatprep.mubr.bf16.mxu0 0
  %445 = vmatmul.mubr.bf16.gmra.mxu0 %v313
  %v446 = vpop.f32.mrf.mxu0
  %v447 = vadd.f32 0.0, %v446
  %v448 = vpop.f32.mrf.mxu0
  %v449 = vpop.f32.mrf.mxu0
  %v450 = vadd.f32 0.0, %v449
  %v451 = vpop.f32.mrf.mxu0
  %452 = vmatprep.mubr.bf16.mxu0 0
  %453 = vmatmul.mubr.bf16.gmra.mxu0 %v316
  %v454 = vpop.f32.mrf.mxu0
  %v455 = vadd.f32 0.0, %v454
  %v456 = vpop.f32.mrf.mxu0
  %v457 = vpop.f32.mrf.mxu0
  %v458 = vadd.f32 0.0, %v457
  %v459 = vpop.f32.mrf.mxu0
  %460 = vmatprep.mubr.bf16.mxu0 0
  %461 = vmatmul.mubr.bf16.gmra.mxu0 %v319
  %v462 = vpop.f32.mrf.mxu0
  %v463 = vadd.f32 0.0, %v462
  %v464 = vpop.f32.mrf.mxu0
  %v465 = vpop.f32.mrf.mxu0
  %v466 = vadd.f32 0.0, %v465
  %v467 = vpop.f32.mrf.mxu0
  %468 = vmatprep.mubr.bf16.mxu0 0
  %469 = vmatmul.mubr.bf16.gmra.mxu0 %v322
  %v470 = vpop.f32.mrf.mxu0
  %v471 = vadd.f32 0.0, %v470
  %v472 = vpop.f32.mrf.mxu0
  %v473 = vpop.f32.mrf.mxu0
  %v474 = vadd.f32 0.0, %v473
  %v475 = vpop.f32.mrf.mxu0
  %476 = vmatprep.mubr.bf16.mxu0 0
  %477 = vmatmul.mubr.bf16.gmra.mxu0 %v325
  %v478 = vpop.f32.mrf.mxu0
  %v479 = vadd.f32 0.0, %v478
  %v480 = vpop.f32.mrf.mxu0
  %v481 = vpop.f32.mrf.mxu0
  %v482 = vadd.f32 0.0, %v481
  %v483 = vpop.f32.mrf.mxu0
  %484 = vmatprep.mubr.bf16.mxu0 0
  %485 = vmatmul.mubr.bf16.gmra.mxu0 %v328
  %v486 = vpop.f32.mrf.mxu0
  %v487 = vadd.f32 0.0, %v486
  %v488 = vpop.f32.mrf.mxu0
  %v489 = vpop.f32.mrf.mxu0
  %v490 = vadd.f32 0.0, %v489
  %v491 = vpop.f32.mrf.mxu0
  %492 = vmatprep.mubr.bf16.mxu0 0
  %493 = vmatmul.mubr.bf16.gmra.mxu0 %v331
  %v494 = vpop.f32.mrf.mxu0
  %v495 = vadd.f32 0.0, %v494
  %v496 = vpop.f32.mrf.mxu0
  %v497 = vpop.f32.mrf.mxu0
  %v498 = vadd.f32 0.0, %v497
  %v499 = vpop.f32.mrf.mxu0
  %500 = vmatprep.mubr.bf16.mxu0 0
  %501 = vmatmul.mubr.bf16.gmra.mxu0 %v334
  %v502 = vpop.f32.mrf.mxu0
  %v503 = vadd.f32 0.0, %v502
  %v504 = vpop.f32.mrf.mxu0
  %v505 = vpop.f32.mrf.mxu0
  %v506 = vadd.f32 0.0, %v505
  %v507 = vpop.f32.mrf.mxu0
  %508 = vmatprep.mubr.bf16.mxu0 0
  %509 = vmatmul.mubr.bf16.gmra.mxu0 %v337
  %v510 = vpop.f32.mrf.mxu0
  %v511 = vadd.f32 0.0, %v510
  %v512 = vpop.f32.mrf.mxu0
  %v513 = vpop.f32.mrf.mxu0
  %v514 = vadd.f32 0.0, %v513
  %v515 = vpop.f32.mrf.mxu0
  %516 = vmatprep.mubr.bf16.mxu0 0
  %517 = vmatmul.mubr.bf16.gmra.mxu0 %v340
  %v518 = vpop.f32.mrf.mxu0
  %v519 = vadd.f32 0.0, %v518
  %v520 = vpop.f32.mrf.mxu0
  %v521 = vpop.f32.mrf.mxu0
  %v522 = vadd.f32 0.0, %v521
  %v523 = vpop.f32.mrf.mxu0
  %524 = vmatprep.mubr.bf16.mxu0 0
  %525 = vmatmul.mubr.bf16.gmra.mxu0 %v343
  %v526 = vpop.f32.mrf.mxu0
  %v527 = vadd.f32 0.0, %v526
  %v528 = vpop.f32.mrf.mxu0
  %v529 = vpop.f32.mrf.mxu0
  %v530 = vadd.f32 0.0, %v529
  %v531 = vpop.f32.mrf.mxu0
  %532 = vmatprep.mubr.bf16.mxu0 0
  %533 = vmatmul.mubr.bf16.gmra.mxu0 %v346
  %v534 = vpop.f32.mrf.mxu0
  %v535 = vadd.f32 0.0, %v534
  %v536 = vpop.f32.mrf.mxu0
  %v537 = vpop.f32.mrf.mxu0
  %v538 = vadd.f32 0.0, %v537
  %v539 = vpop.f32.mrf.mxu0
  %540 = vmatprep.mubr.bf16.mxu0 0
  %541 = vmatmul.mubr.bf16.gmra.mxu0 %v349
  %v542 = vpop.f32.mrf.mxu0
  %v543 = vadd.f32 0.0, %v542
  %v544 = vpop.f32.mrf.mxu0
  %v545 = vpop.f32.mrf.mxu0
  %v546 = vadd.f32 0.0, %v545
  %v547 = vpop.f32.mrf.mxu0
  %548 = vmatprep.mubr.bf16.mxu0 0
  %549 = vmatmul.mubr.bf16.gmra.mxu0 %v352
  %v550 = vpop.f32.mrf.mxu0
  %v551 = vadd.f32 0.0, %v550
  %v552 = vpop.f32.mrf.mxu0
  %v553 = vpop.f32.mrf.mxu0
  %v554 = vadd.f32 0.0, %v553
  %v555 = vpop.f32.mrf.mxu0
  %556 = vmatprep.mubr.bf16.mxu0 0
  %557 = vmatmul.mubr.bf16.gmra.mxu0 %v355
  %v558 = vpop.f32.mrf.mxu0
  %v559 = vadd.f32 0.0, %v558
  %v560 = vpop.f32.mrf.mxu0
  %v561 = vpop.f32.mrf.mxu0
  %v562 = vadd.f32 0.0, %v561
  %v563 = vpop.f32.mrf.mxu0
  %564 = vmatprep.mubr.bf16.mxu0 0
  %565 = vmatmul.mubr.bf16.gmra.mxu0 %v358
  %v566 = vpop.f32.mrf.mxu0
  %v567 = vadd.f32 0.0, %v566
  %v568 = vpop.f32.mrf.mxu0
  %v569 = vpop.f32.mrf.mxu0
  %v570 = vadd.f32 0.0, %v569
  %v571 = vpop.f32.mrf.mxu0
  %572 = vmatprep.mubr.bf16.mxu0 0
  %573 = vmatmul.mubr.bf16.gmra.mxu0 %v361
  %v574 = vpop.f32.mrf.mxu0
  %v575 = vadd.f32 0.0, %v574
  %v576 = vpop.f32.mrf.mxu0
  %v577 = vpop.f32.mrf.mxu0
  %v578 = vadd.f32 0.0, %v577
  %v579 = vpop.f32.mrf.mxu0
  %580 = vmatprep.mubr.bf16.mxu0 0
  %581 = vmatmul.mubr.bf16.gmra.mxu0 %v364
  %v582 = vpop.f32.mrf.mxu0
  %v583 = vadd.f32 0.0, %v582
  %v584 = vpop.f32.mrf.mxu0
  %v585 = vpop.f32.mrf.mxu0
  %v586 = vadd.f32 0.0, %v585
  %v587 = vpop.f32.mrf.mxu0
  %588 = vmatprep.mubr.bf16.mxu0 0
  %589 = vmatmul.mubr.bf16.gmra.mxu0 %v367
  %v590 = vpop.f32.mrf.mxu0
  %v591 = vadd.f32 0.0, %v590
  %v592 = vpop.f32.mrf.mxu0
  %v593 = vpop.f32.mrf.mxu0
  %v594 = vadd.f32 0.0, %v593
  %v595 = vpop.f32.mrf.mxu0
  %596 = vmatprep.mubr.bf16.mxu0 0
  %597 = vmatmul.mubr.bf16.gmra.mxu0 %v370
  %v598 = vpop.f32.mrf.mxu0
  %v599 = vadd.f32 0.0, %v598
  %v600 = vpop.f32.mrf.mxu0
  %v601 = vpop.f32.mrf.mxu0
  %v602 = vadd.f32 0.0, %v601
  %v603 = vpop.f32.mrf.mxu0
  %604 = vmatprep.mubr.bf16.mxu0 0
  %605 = vmatmul.mubr.bf16.gmra.mxu0 %v373
  %v606 = vpop.f32.mrf.mxu0
  %v607 = vadd.f32 0.0, %v606
  %v608 = vpop.f32.mrf.mxu0
  %v609 = vpop.f32.mrf.mxu0
  %v610 = vadd.f32 0.0, %v609
  %v611 = vpop.f32.mrf.mxu0
  %612 = vmatprep.mubr.bf16.mxu0 0
  %613 = vmatmul.mubr.bf16.gmra.mxu0 %v376
  %v614 = vpop.f32.mrf.mxu0
  %v615 = vadd.f32 0.0, %v614
  %v616 = vpop.f32.mrf.mxu0
  %v617 = vpop.f32.mrf.mxu0
  %v618 = vadd.f32 0.0, %v617
  %v619 = vpop.f32.mrf.mxu0
  %620 = vmatprep.mubr.bf16.mxu0 0
  %621 = vmatmul.mubr.bf16.gmra.mxu0 %v379
  %v622 = vpop.f32.mrf.mxu0
  %v623 = vadd.f32 0.0, %v622
  %v624 = vpop.f32.mrf.mxu0
  %v625 = vpop.f32.mrf.mxu0
  %v626 = vadd.f32 0.0, %v625
  %v627 = vpop.f32.mrf.mxu0
  %628 = vmatprep.mubr.bf16.mxu0 0
  %629 = vmatmul.mubr.bf16.gmra.mxu0 %v382
  %v630 = vpop.f32.mrf.mxu0
  %v631 = vadd.f32 0.0, %v630
  %v632 = vpop.f32.mrf.mxu0
  %v633 = vpop.f32.mrf.mxu0
  %v634 = vadd.f32 0.0, %v633
  %v635 = vpop.f32.mrf.mxu0
  %636 = vmatprep.mubr.bf16.mxu0 0
  %637 = vmatmul.mubr.bf16.gmra.mxu0 %v385
  %v638 = vpop.f32.mrf.mxu0
  %v639 = vadd.f32 0.0, %v638
  %v640 = vpop.f32.mrf.mxu0
  %v641 = vpop.f32.mrf.mxu0
  %v642 = vadd.f32 0.0, %v641
  %v643 = vpop.f32.mrf.mxu0
  %644 = vmatprep.mubr.bf16.mxu0 0
  %645 = vmatmul.mubr.bf16.gmra.mxu0 %v388
  %v646 = vpop.f32.mrf.mxu0
  %v647 = vadd.f32 0.0, %v646
  %v648 = vpop.f32.mrf.mxu0
  %v649 = vpop.f32.mrf.mxu0
  %v650 = vadd.f32 0.0, %v649
  %v651 = vpop.f32.mrf.mxu0
  %652 = vmatprep.mubr.bf16.mxu0 0
  %653 = vmatmul.mubr.bf16.gmra.mxu0 %v391
  %v654 = vpop.f32.mrf.mxu0
  %v655 = vadd.f32 0.0, %v654
  %v656 = vpop.f32.mrf.mxu0
  %v657 = vpop.f32.mrf.mxu0
  %v658 = vadd.f32 0.0, %v657
  %v659 = vpop.f32.mrf.mxu0
  %660 = vmatprep.mubr.bf16.mxu0 0
  %661 = vmatmul.mubr.bf16.gmra.mxu0 %v394
  %v662 = vpop.f32.mrf.mxu0
  %v663 = vadd.f32 0.0, %v662
  %v664 = vpop.f32.mrf.mxu0
  %v665 = vpop.f32.mrf.mxu0
  %v666 = vadd.f32 0.0, %v665
  %v667 = vpop.f32.mrf.mxu0
  %668 = vmatprep.mubr.bf16.mxu0 0
  %669 = vmatmul.mubr.bf16.gmra.mxu0 %v397
  %v670 = vpop.f32.mrf.mxu0
  %v671 = vadd.f32 0.0, %v670
  %v672 = vpop.f32.mrf.mxu0
  %v673 = vpop.f32.mrf.mxu0
  %v674 = vadd.f32 0.0, %v673
  %v675 = vpop.f32.mrf.mxu0
  %676 = vmatprep.mubr.bf16.mxu0 0
  %677 = vmatmul.mubr.bf16.gmra.mxu0 %v400
  %v678 = vpop.f32.mrf.mxu0
  %v679 = vadd.f32 0.0, %v678
  %v680 = vpop.f32.mrf.mxu0
  %v681 = vpop.f32.mrf.mxu0
  %v682 = vadd.f32 0.0, %v681
  %v683 = vpop.f32.mrf.mxu0
  %684 = vmatprep.mubr.bf16.mxu0 0
  %685 = vmatmul.mubr.bf16.gmra.mxu0 %v403
  %v686 = vpop.f32.mrf.mxu0
  %v687 = vadd.f32 0.0, %v686
  %v688 = vpop.f32.mrf.mxu0
  %v689 = vpop.f32.mrf.mxu0
  %v690 = vadd.f32 0.0, %v689
  %v691 = vpop.f32.mrf.mxu0
  %692 = vmatprep.mubr.bf16.mxu0 0
  %693 = vmatmul.mubr.bf16.gmra.mxu0 %v406
  %v694 = vpop.f32.mrf.mxu0
  %v695 = vadd.f32 0.0, %v694
  %v696 = vpop.f32.mrf.mxu0
  %v697 = vpop.f32.mrf.mxu0
  %v698 = vadd.f32 0.0, %v697
  %v699 = vpop.f32.mrf.mxu0
  %700 = vdwg.mxu0
  %v765 = vunpack.c.l.b16 %v21
  %v766 = vunpack.c.l.b16 %v22
  %v767 = vunpack.c.l.b16 %v23
  %v768 = vunpack.c.l.b16 %v24
  %v769 = vunpack.c.l.b16 %v25
  %v770 = vunpack.c.l.b16 %v26
  %v771 = vunpack.c.l.b16 %v27
  %v772 = vunpack.c.l.b16 %v28
  %v773 = vunpack.c.l.b16 %v29
  %v774 = vunpack.c.l.b16 %v30
  %v775 = vunpack.c.l.b16 %v31
  %v776 = vunpack.c.l.b16 %v32
  %v777 = vunpack.c.l.b16 %v33
  %v778 = vunpack.c.l.b16 %v34
  %v779 = vunpack.c.l.b16 %v35
  %v780 = vunpack.c.l.b16 %v36
  %v781 = vunpack.c.l.b16 %v37
  %v782 = vunpack.c.l.b16 %v38
  %v783 = vunpack.c.l.b16 %v39
  %v784 = vunpack.c.l.b16 %v40
  %v785 = vunpack.c.l.b16 %v41
  %v786 = vunpack.c.l.b16 %v42
  %v787 = vunpack.c.l.b16 %v43
  %v788 = vunpack.c.l.b16 %v44
  %v789 = vunpack.c.l.b16 %v45
  %v790 = vunpack.c.l.b16 %v46
  %v791 = vunpack.c.l.b16 %v47
  %v792 = vunpack.c.l.b16 %v48
  %v793 = vunpack.c.l.b16 %v49
  %v794 = vunpack.c.l.b16 %v50
  %v795 = vunpack.c.l.b16 %v51
  %v796 = vunpack.c.l.b16 %v52
  %v797 = vunpack.c.l.b16 %v53
  %v798 = vunpack.c.l.b16 %v54
  %v799 = vunpack.c.l.b16 %v55
  %v800 = vunpack.c.l.b16 %v56
  %v801 = vunpack.c.l.b16 %v57
  %v802 = vunpack.c.l.b16 %v58
  %v803 = vunpack.c.l.b16 %v59
  %v804 = vunpack.c.l.b16 %v60
  %v805 = vunpack.c.l.b16 %v61
  %v806 = vunpack.c.l.b16 %v62
  %v807 = vunpack.c.l.b16 %v63
  %v808 = vunpack.c.l.b16 %v64
  %v809 = vunpack.c.l.b16 %v65
  %v810 = vunpack.c.l.b16 %v66
  %v811 = vunpack.c.l.b16 %v67
  %v812 = vunpack.c.l.b16 %v68
  %v813 = vunpack.c.l.b16 %v69
  %v814 = vunpack.c.l.b16 %v70
  %v815 = vunpack.c.l.b16 %v71
  %v816 = vunpack.c.l.b16 %v72
  %v817 = vunpack.c.l.b16 %v73
  %v818 = vunpack.c.l.b16 %v74
  %v819 = vunpack.c.l.b16 %v75
  %v820 = vunpack.c.l.b16 %v76
  %v821 = vunpack.c.l.b16 %v77
  %v822 = vunpack.c.l.b16 %v78
  %v823 = vunpack.c.l.b16 %v79
  %v824 = vunpack.c.l.b16 %v80
  %v825 = vunpack.c.l.b16 %v81
  %v826 = vunpack.c.l.b16 %v82
  %v827 = vunpack.c.l.b16 %v83
  %v828 = vunpack.c.l.b16 %v84
  %v829 = vpack.c.b16 %v766, %v765
  %v830 = vpack.c.b16 %v768, %v767
  %v831 = vpack.c.b16 %v770, %v769
  %v832 = vpack.c.b16 %v772, %v771
  %v833 = vpack.c.b16 %v774, %v773
  %v834 = vpack.c.b16 %v776, %v775
  %v835 = vpack.c.b16 %v778, %v777
  %v836 = vpack.c.b16 %v780, %v779
  %v837 = vpack.c.b16 %v782, %v781
  %v838 = vpack.c.b16 %v784, %v783
  %v839 = vpack.c.b16 %v786, %v785
  %v840 = vpack.c.b16 %v788, %v787
  %v841 = vpack.c.b16 %v790, %v789
  %v842 = vpack.c.b16 %v792, %v791
  %v843 = vpack.c.b16 %v794, %v793
  %v844 = vpack.c.b16 %v796, %v795
  %v845 = vpack.c.b16 %v798, %v797
  %v846 = vpack.c.b16 %v800, %v799
  %v847 = vpack.c.b16 %v802, %v801
  %v848 = vpack.c.b16 %v804, %v803
  %v849 = vpack.c.b16 %v806, %v805
  %v850 = vpack.c.b16 %v808, %v807
  %v851 = vpack.c.b16 %v810, %v809
  %v852 = vpack.c.b16 %v812, %v811
  %v853 = vpack.c.b16 %v814, %v813
  %v854 = vpack.c.b16 %v816, %v815
  %v855 = vpack.c.b16 %v818, %v817
  %v856 = vpack.c.b16 %v820, %v819
  %v857 = vpack.c.b16 %v822, %v821
  %v858 = vpack.c.b16 %v824, %v823
  %v859 = vpack.c.b16 %v826, %v825
  %v860 = vpack.c.b16 %v828, %v827
  %v862 = vsel %vm311, %v829, 0
  %v865 = vsel %vm311, %v830, 0
  %v868 = vsel %vm311, %v831, 0
  %v871 = vsel %vm311, %v832, 0
  %v874 = vsel %vm311, %v833, 0
  %v877 = vsel %vm311, %v834, 0
  %v880 = vsel %vm311, %v835, 0
  %v883 = vsel %vm311, %v836, 0
  %v886 = vsel %vm311, %v837, 0
  %v889 = vsel %vm311, %v838, 0
  %v892 = vsel %vm311, %v839, 0
  %v895 = vsel %vm311, %v840, 0
  %v898 = vsel %vm311, %v841, 0
  %v901 = vsel %vm311, %v842, 0
  %v904 = vsel %vm311, %v843, 0
  %v907 = vsel %vm311, %v844, 0
  %v910 = vsel %vm311, %v845, 0
  %v913 = vsel %vm311, %v846, 0
  %v916 = vsel %vm311, %v847, 0
  %v919 = vsel %vm311, %v848, 0
  %v922 = vsel %vm311, %v849, 0
  %v925 = vsel %vm311, %v850, 0
  %v928 = vsel %vm311, %v851, 0
  %v931 = vsel %vm311, %v852, 0
  %v934 = vsel %vm311, %v853, 0
  %v937 = vsel %vm311, %v854, 0
  %v940 = vsel %vm311, %v855, 0
  %v943 = vsel %vm311, %v856, 0
  %v946 = vsel %vm311, %v857, 0
  %v949 = vsel %vm311, %v858, 0
  %v952 = vsel %vm311, %v859, 0
  %v955 = vsel %vm311, %v860, 0
  %v958 = vsel %vm408, %v85, 0
  %960 = vmatprep.subr.bf16.mxu0 0
  %961 = vmatpush1.bf16.msra.mxu0 0
  %962 = vmatprep.subr.bf16.mxu0 0
  %963 = vmatpush1.bf16.msra.mxu0 0
  %964 = vmatprep.subr.bf16.mxu0 0
  %965 = vmatpush1.bf16.msra.mxu0 0
  %966 = vmatprep.subr.bf16.mxu0 0
  %967 = vmatpush1.bf16.msra.mxu0 0
  %968 = vmatprep.subr.bf16.mxu0 0
  %969 = vmatpush1.bf16.msra.mxu0 0
  %970 = vmatprep.subr.bf16.mxu0 0
  %971 = vmatpush1.bf16.msra.mxu0 0
  %972 = vmatprep.subr.bf16.mxu0 0
  %973 = vmatpush1.bf16.msra.mxu0 0
  %974 = vmatprep.subr.bf16.mxu0 0
  %975 = vmatpush1.bf16.msra.mxu0 %v958
  %976 = vmatprep.subr.bf16.mxu0 0
  %977 = vmatpush2.bf16.msra.mxu0 0
  %978 = vmatprep.subr.bf16.mxu0 0
  %979 = vmatpush2.bf16.msra.mxu0 0
  %980 = vmatprep.subr.bf16.mxu0 0
  %981 = vmatpush2.bf16.msra.mxu0 0
  %982 = vmatprep.subr.bf16.mxu0 0
  %983 = vmatpush2.bf16.msra.mxu0 0
  %984 = vmatprep.subr.bf16.mxu0 0
  %985 = vmatpush2.bf16.msra.mxu0 0
  %986 = vmatprep.subr.bf16.mxu0 0
  %987 = vmatpush2.bf16.msra.mxu0 0
  %988 = vmatprep.subr.bf16.mxu0 0
  %989 = vmatpush2.bf16.msra.mxu0 0
  %990 = vmatprep.subr.bf16.mxu0 0
  %991 = vmatpush2.bf16.msra.mxu0 0
  %992 = vmatprep.mubr.bf16.mxu0 0
  %993 = vmatmul.mubr.bf16.gmra.mxu0 %v862
  %v994 = vpop.f32.mrf.mxu0
  %v995 = vadd.f32 %v447, %v994
  %v996 = vpop.f32.mrf.mxu0
  %v997 = vpop.f32.mrf.mxu0
  %v998 = vadd.f32 %v450, %v997
  %v999 = vpop.f32.mrf.mxu0
  %1000 = vmatprep.mubr.bf16.mxu0 0
  %1001 = vmatmul.mubr.bf16.gmra.mxu0 %v865
  %v1002 = vpop.f32.mrf.mxu0
  %v1003 = vadd.f32 %v455, %v1002
  %v1004 = vpop.f32.mrf.mxu0
  %v1005 = vpop.f32.mrf.mxu0
  %v1006 = vadd.f32 %v458, %v1005
  %v1007 = vpop.f32.mrf.mxu0
  %1008 = vmatprep.mubr.bf16.mxu0 0
  %1009 = vmatmul.mubr.bf16.gmra.mxu0 %v868
  %v1010 = vpop.f32.mrf.mxu0
  %v1011 = vadd.f32 %v463, %v1010
  %v1012 = vpop.f32.mrf.mxu0
  %v1013 = vpop.f32.mrf.mxu0
  %v1014 = vadd.f32 %v466, %v1013
  %v1015 = vpop.f32.mrf.mxu0
  %1016 = vmatprep.mubr.bf16.mxu0 0
  %1017 = vmatmul.mubr.bf16.gmra.mxu0 %v871
  %v1018 = vpop.f32.mrf.mxu0
  %v1019 = vadd.f32 %v471, %v1018
  %v1020 = vpop.f32.mrf.mxu0
  %v1021 = vpop.f32.mrf.mxu0
  %v1022 = vadd.f32 %v474, %v1021
  %v1023 = vpop.f32.mrf.mxu0
  %1024 = vmatprep.mubr.bf16.mxu0 0
  %1025 = vmatmul.mubr.bf16.gmra.mxu0 %v874
  %v1026 = vpop.f32.mrf.mxu0
  %v1027 = vadd.f32 %v479, %v1026
  %v1028 = vpop.f32.mrf.mxu0
  %v1029 = vpop.f32.mrf.mxu0
  %v1030 = vadd.f32 %v482, %v1029
  %v1031 = vpop.f32.mrf.mxu0
  %1032 = vmatprep.mubr.bf16.mxu0 0
  %1033 = vmatmul.mubr.bf16.gmra.mxu0 %v877
  %v1034 = vpop.f32.mrf.mxu0
  %v1035 = vadd.f32 %v487, %v1034
  %v1036 = vpop.f32.mrf.mxu0
  %v1037 = vpop.f32.mrf.mxu0
  %v1038 = vadd.f32 %v490, %v1037
  %v1039 = vpop.f32.mrf.mxu0
  %1040 = vmatprep.mubr.bf16.mxu0 0
  %1041 = vmatmul.mubr.bf16.gmra.mxu0 %v880
  %v1042 = vpop.f32.mrf.mxu0
  %v1043 = vadd.f32 %v495, %v1042
  %v1044 = vpop.f32.mrf.mxu0
  %v1045 = vpop.f32.mrf.mxu0
  %v1046 = vadd.f32 %v498, %v1045
  %v1047 = vpop.f32.mrf.mxu0
  %1048 = vmatprep.mubr.bf16.mxu0 0
  %1049 = vmatmul.mubr.bf16.gmra.mxu0 %v883
  %v1050 = vpop.f32.mrf.mxu0
  %v1051 = vadd.f32 %v503, %v1050
  %v1052 = vpop.f32.mrf.mxu0
  %v1053 = vpop.f32.mrf.mxu0
  %v1054 = vadd.f32 %v506, %v1053
  %v1055 = vpop.f32.mrf.mxu0
  %1056 = vmatprep.mubr.bf16.mxu0 0
  %1057 = vmatmul.mubr.bf16.gmra.mxu0 %v886
  %v1058 = vpop.f32.mrf.mxu0
  %v1059 = vadd.f32 %v511, %v1058
  %v1060 = vpop.f32.mrf.mxu0
  %v1061 = vpop.f32.mrf.mxu0
  %v1062 = vadd.f32 %v514, %v1061
  %v1063 = vpop.f32.mrf.mxu0
  %1064 = vmatprep.mubr.bf16.mxu0 0
  %1065 = vmatmul.mubr.bf16.gmra.mxu0 %v889
  %v1066 = vpop.f32.mrf.mxu0
  %v1067 = vadd.f32 %v519, %v1066
  %v1068 = vpop.f32.mrf.mxu0
  %v1069 = vpop.f32.mrf.mxu0
  %v1070 = vadd.f32 %v522, %v1069
  %v1071 = vpop.f32.mrf.mxu0
  %1072 = vmatprep.mubr.bf16.mxu0 0
  %1073 = vmatmul.mubr.bf16.gmra.mxu0 %v892
  %v1074 = vpop.f32.mrf.mxu0
  %v1075 = vadd.f32 %v527, %v1074
  %v1076 = vpop.f32.mrf.mxu0
  %v1077 = vpop.f32.mrf.mxu0
  %v1078 = vadd.f32 %v530, %v1077
  %v1079 = vpop.f32.mrf.mxu0
  %1080 = vmatprep.mubr.bf16.mxu0 0
  %1081 = vmatmul.mubr.bf16.gmra.mxu0 %v895
  %v1082 = vpop.f32.mrf.mxu0
  %v1083 = vadd.f32 %v535, %v1082
  %v1084 = vpop.f32.mrf.mxu0
  %v1085 = vpop.f32.mrf.mxu0
  %v1086 = vadd.f32 %v538, %v1085
  %v1087 = vpop.f32.mrf.mxu0
  %1088 = vmatprep.mubr.bf16.mxu0 0
  %1089 = vmatmul.mubr.bf16.gmra.mxu0 %v898
  %v1090 = vpop.f32.mrf.mxu0
  %v1091 = vadd.f32 %v543, %v1090
  %v1092 = vpop.f32.mrf.mxu0
  %v1093 = vpop.f32.mrf.mxu0
  %v1094 = vadd.f32 %v546, %v1093
  %v1095 = vpop.f32.mrf.mxu0
  %1096 = vmatprep.mubr.bf16.mxu0 0
  %1097 = vmatmul.mubr.bf16.gmra.mxu0 %v901
  %v1098 = vpop.f32.mrf.mxu0
  %v1099 = vadd.f32 %v551, %v1098
  %v1100 = vpop.f32.mrf.mxu0
  %v1101 = vpop.f32.mrf.mxu0
  %v1102 = vadd.f32 %v554, %v1101
  %v1103 = vpop.f32.mrf.mxu0
  %1104 = vmatprep.mubr.bf16.mxu0 0
  %1105 = vmatmul.mubr.bf16.gmra.mxu0 %v904
  %v1106 = vpop.f32.mrf.mxu0
  %v1107 = vadd.f32 %v559, %v1106
  %v1108 = vpop.f32.mrf.mxu0
  %v1109 = vpop.f32.mrf.mxu0
  %v1110 = vadd.f32 %v562, %v1109
  %v1111 = vpop.f32.mrf.mxu0
  %1112 = vmatprep.mubr.bf16.mxu0 0
  %1113 = vmatmul.mubr.bf16.gmra.mxu0 %v907
  %v1114 = vpop.f32.mrf.mxu0
  %v1115 = vadd.f32 %v567, %v1114
  %v1116 = vpop.f32.mrf.mxu0
  %v1117 = vpop.f32.mrf.mxu0
  %v1118 = vadd.f32 %v570, %v1117
  %v1119 = vpop.f32.mrf.mxu0
  %1120 = vmatprep.mubr.bf16.mxu0 0
  %1121 = vmatmul.mubr.bf16.gmra.mxu0 %v910
  %v1122 = vpop.f32.mrf.mxu0
  %v1123 = vadd.f32 %v575, %v1122
  %v1124 = vpop.f32.mrf.mxu0
  %v1125 = vpop.f32.mrf.mxu0
  %v1126 = vadd.f32 %v578, %v1125
  %v1127 = vpop.f32.mrf.mxu0
  %1128 = vmatprep.mubr.bf16.mxu0 0
  %1129 = vmatmul.mubr.bf16.gmra.mxu0 %v913
  %v1130 = vpop.f32.mrf.mxu0
  %v1131 = vadd.f32 %v583, %v1130
  %v1132 = vpop.f32.mrf.mxu0
  %v1133 = vpop.f32.mrf.mxu0
  %v1134 = vadd.f32 %v586, %v1133
  %v1135 = vpop.f32.mrf.mxu0
  %1136 = vmatprep.mubr.bf16.mxu0 0
  %1137 = vmatmul.mubr.bf16.gmra.mxu0 %v916
  %v1138 = vpop.f32.mrf.mxu0
  %v1139 = vadd.f32 %v591, %v1138
  %v1140 = vpop.f32.mrf.mxu0
  %v1141 = vpop.f32.mrf.mxu0
  %v1142 = vadd.f32 %v594, %v1141
  %v1143 = vpop.f32.mrf.mxu0
  %1144 = vmatprep.mubr.bf16.mxu0 0
  %1145 = vmatmul.mubr.bf16.gmra.mxu0 %v919
  %v1146 = vpop.f32.mrf.mxu0
  %v1147 = vadd.f32 %v599, %v1146
  %v1148 = vpop.f32.mrf.mxu0
  %v1149 = vpop.f32.mrf.mxu0
  %v1150 = vadd.f32 %v602, %v1149
  %v1151 = vpop.f32.mrf.mxu0
  %1152 = vmatprep.mubr.bf16.mxu0 0
  %1153 = vmatmul.mubr.bf16.gmra.mxu0 %v922
  %v1154 = vpop.f32.mrf.mxu0
  %v1155 = vadd.f32 %v607, %v1154
  %v1156 = vpop.f32.mrf.mxu0
  %v1157 = vpop.f32.mrf.mxu0
  %v1158 = vadd.f32 %v610, %v1157
  %v1159 = vpop.f32.mrf.mxu0
  %1160 = vmatprep.mubr.bf16.mxu0 0
  %1161 = vmatmul.mubr.bf16.gmra.mxu0 %v925
  %v1162 = vpop.f32.mrf.mxu0
  %v1163 = vadd.f32 %v615, %v1162
  %v1164 = vpop.f32.mrf.mxu0
  %v1165 = vpop.f32.mrf.mxu0
  %v1166 = vadd.f32 %v618, %v1165
  %v1167 = vpop.f32.mrf.mxu0
  %1168 = vmatprep.mubr.bf16.mxu0 0
  %1169 = vmatmul.mubr.bf16.gmra.mxu0 %v928
  %v1170 = vpop.f32.mrf.mxu0
  %v1171 = vadd.f32 %v623, %v1170
  %v1172 = vpop.f32.mrf.mxu0
  %v1173 = vpop.f32.mrf.mxu0
  %v1174 = vadd.f32 %v626, %v1173
  %v1175 = vpop.f32.mrf.mxu0
  %1176 = vmatprep.mubr.bf16.mxu0 0
  %1177 = vmatmul.mubr.bf16.gmra.mxu0 %v931
  %v1178 = vpop.f32.mrf.mxu0
  %v1179 = vadd.f32 %v631, %v1178
  %v1180 = vpop.f32.mrf.mxu0
  %v1181 = vpop.f32.mrf.mxu0
  %v1182 = vadd.f32 %v634, %v1181
  %v1183 = vpop.f32.mrf.mxu0
  %1184 = vmatprep.mubr.bf16.mxu0 0
  %1185 = vmatmul.mubr.bf16.gmra.mxu0 %v934
  %v1186 = vpop.f32.mrf.mxu0
  %v1187 = vadd.f32 %v639, %v1186
  %v1188 = vpop.f32.mrf.mxu0
  %v1189 = vpop.f32.mrf.mxu0
  %v1190 = vadd.f32 %v642, %v1189
  %v1191 = vpop.f32.mrf.mxu0
  %1192 = vmatprep.mubr.bf16.mxu0 0
  %1193 = vmatmul.mubr.bf16.gmra.mxu0 %v937
  %v1194 = vpop.f32.mrf.mxu0
  %v1195 = vadd.f32 %v647, %v1194
  %v1196 = vpop.f32.mrf.mxu0
  %v1197 = vpop.f32.mrf.mxu0
  %v1198 = vadd.f32 %v650, %v1197
  %v1199 = vpop.f32.mrf.mxu0
  %1200 = vmatprep.mubr.bf16.mxu0 0
  %1201 = vmatmul.mubr.bf16.gmra.mxu0 %v940
  %v1202 = vpop.f32.mrf.mxu0
  %v1203 = vadd.f32 %v655, %v1202
  %v1204 = vpop.f32.mrf.mxu0
  %v1205 = vpop.f32.mrf.mxu0
  %v1206 = vadd.f32 %v658, %v1205
  %v1207 = vpop.f32.mrf.mxu0
  %1208 = vmatprep.mubr.bf16.mxu0 0
  %1209 = vmatmul.mubr.bf16.gmra.mxu0 %v943
  %v1210 = vpop.f32.mrf.mxu0
  %v1211 = vadd.f32 %v663, %v1210
  %v1212 = vpop.f32.mrf.mxu0
  %v1213 = vpop.f32.mrf.mxu0
  %v1214 = vadd.f32 %v666, %v1213
  %v1215 = vpop.f32.mrf.mxu0
  %1216 = vmatprep.mubr.bf16.mxu0 0
  %1217 = vmatmul.mubr.bf16.gmra.mxu0 %v946
  %v1218 = vpop.f32.mrf.mxu0
  %v1219 = vadd.f32 %v671, %v1218
  %v1220 = vpop.f32.mrf.mxu0
  %v1221 = vpop.f32.mrf.mxu0
  %v1222 = vadd.f32 %v674, %v1221
  %v1223 = vpop.f32.mrf.mxu0
  %1224 = vmatprep.mubr.bf16.mxu0 0
  %1225 = vmatmul.mubr.bf16.gmra.mxu0 %v949
  %v1226 = vpop.f32.mrf.mxu0
  %v1227 = vadd.f32 %v679, %v1226
  %v1228 = vpop.f32.mrf.mxu0
  %v1229 = vpop.f32.mrf.mxu0
  %v1230 = vadd.f32 %v682, %v1229
  %v1231 = vpop.f32.mrf.mxu0
  %1232 = vmatprep.mubr.bf16.mxu0 0
  %1233 = vmatmul.mubr.bf16.gmra.mxu0 %v952
  %v1234 = vpop.f32.mrf.mxu0
  %v1235 = vadd.f32 %v687, %v1234
  %v1236 = vpop.f32.mrf.mxu0
  %v1237 = vpop.f32.mrf.mxu0
  %v1238 = vadd.f32 %v690, %v1237
  %v1239 = vpop.f32.mrf.mxu0
  %1240 = vmatprep.mubr.bf16.mxu0 0
  %1241 = vmatmul.mubr.bf16.gmra.mxu0 %v955
  %v1242 = vpop.f32.mrf.mxu0
  %v1243 = vadd.f32 %v695, %v1242
  %v1244 = vpop.f32.mrf.mxu0
  %v1245 = vpop.f32.mrf.mxu0
  %v1246 = vadd.f32 %v698, %v1245
  %v1247 = vpop.f32.mrf.mxu0
  %1248 = vdwg.mxu0
  %v1249 = vld [vmem:[%s4] sm:$0x1]
  %v1251 = vlaneseq
  %v1252 = vshrl.u32 %v1251, 7
  %v1253 = vsub.s32 0, %v1252
  %v1254 = vrot.slane %v1249, %v1253
  %v1256 = vadd.f32 %v995, %v1254
  %v1257 = vadd.f32 %v998, %v1254
  %v1258 = vadd.f32 %v1003, %v1254
  %v1259 = vadd.f32 %v1006, %v1254
  %v1260 = vadd.f32 %v1011, %v1254
  %v1261 = vadd.f32 %v1014, %v1254
  %v1262 = vadd.f32 %v1019, %v1254
  %v1263 = vadd.f32 %v1022, %v1254
  %v1264 = vadd.f32 %v1027, %v1254
  %v1265 = vadd.f32 %v1030, %v1254
  %v1266 = vadd.f32 %v1035, %v1254
  %v1267 = vadd.f32 %v1038, %v1254
  %v1268 = vadd.f32 %v1043, %v1254
  %v1269 = vadd.f32 %v1046, %v1254
  %v1270 = vadd.f32 %v1051, %v1254
  %v1271 = vadd.f32 %v1054, %v1254
  %v1272 = vadd.f32 %v1059, %v1254
  %v1273 = vadd.f32 %v1062, %v1254
  %v1274 = vadd.f32 %v1067, %v1254
  %v1275 = vadd.f32 %v1070, %v1254
  %v1276 = vadd.f32 %v1075, %v1254
  %v1277 = vadd.f32 %v1078, %v1254
  %v1278 = vadd.f32 %v1083, %v1254
  %v1279 = vadd.f32 %v1086, %v1254
  %v1280 = vadd.f32 %v1091, %v1254
  %v1281 = vadd.f32 %v1094, %v1254
  %v1282 = vadd.f32 %v1099, %v1254
  %v1283 = vadd.f32 %v1102, %v1254
  %v1284 = vadd.f32 %v1107, %v1254
  %v1285 = vadd.f32 %v1110, %v1254
  %v1286 = vadd.f32 %v1115, %v1254
  %v1287 = vadd.f32 %v1118, %v1254
  %v1288 = vadd.f32 %v1123, %v1254
  %v1289 = vadd.f32 %v1126, %v1254
  %v1290 = vadd.f32 %v1131, %v1254
  %v1291 = vadd.f32 %v1134, %v1254
  %v1292 = vadd.f32 %v1139, %v1254
  %v1293 = vadd.f32 %v1142, %v1254
  %v1294 = vadd.f32 %v1147, %v1254
  %v1295 = vadd.f32 %v1150, %v1254
  %v1296 = vadd.f32 %v1155, %v1254
  %v1297 = vadd.f32 %v1158, %v1254
  %v1298 = vadd.f32 %v1163, %v1254
  %v1299 = vadd.f32 %v1166, %v1254
  %v1300 = vadd.f32 %v1171, %v1254
  %v1301 = vadd.f32 %v1174, %v1254
  %v1302 = vadd.f32 %v1179, %v1254
  %v1303 = vadd.f32 %v1182, %v1254
  %v1304 = vadd.f32 %v1187, %v1254
  %v1305 = vadd.f32 %v1190, %v1254
  %v1306 = vadd.f32 %v1195, %v1254
  %v1307 = vadd.f32 %v1198, %v1254
  %v1308 = vadd.f32 %v1203, %v1254
  %v1309 = vadd.f32 %v1206, %v1254
  %v1310 = vadd.f32 %v1211, %v1254
  %v1311 = vadd.f32 %v1214, %v1254
  %v1312 = vadd.f32 %v1219, %v1254
  %v1313 = vadd.f32 %v1222, %v1254
  %v1314 = vadd.f32 %v1227, %v1254
  %v1315 = vadd.f32 %v1230, %v1254
  %v1316 = vadd.f32 %v1235, %v1254
  %v1317 = vadd.f32 %v1238, %v1254
  %v1318 = vadd.f32 %v1243, %v1254
  %v1319 = vadd.f32 %v1246, %v1254
  %v1320 = vmax.f32 %v1256, 0.0
  %v1321 = vmax.f32 %v1257, 0.0
  %v1322 = vmax.f32 %v1258, 0.0
  %v1323 = vmax.f32 %v1259, 0.0
  %v1324 = vmax.f32 %v1260, 0.0
  %v1325 = vmax.f32 %v1261, 0.0
  %v1326 = vmax.f32 %v1262, 0.0
  %v1327 = vmax.f32 %v1263, 0.0
  %v1328 = vmax.f32 %v1264, 0.0
  %v1329 = vmax.f32 %v1265, 0.0
  %v1330 = vmax.f32 %v1266, 0.0
  %v1331 = vmax.f32 %v1267, 0.0
  %v1332 = vmax.f32 %v1268, 0.0
  %v1333 = vmax.f32 %v1269, 0.0
  %v1334 = vmax.f32 %v1270, 0.0
  %v1335 = vmax.f32 %v1271, 0.0
  %v1336 = vmax.f32 %v1272, 0.0
  %v1337 = vmax.f32 %v1273, 0.0
  %v1338 = vmax.f32 %v1274, 0.0
  %v1339 = vmax.f32 %v1275, 0.0
  %v1340 = vmax.f32 %v1276, 0.0
  %v1341 = vmax.f32 %v1277, 0.0
  %v1342 = vmax.f32 %v1278, 0.0
  %v1343 = vmax.f32 %v1279, 0.0
  %v1344 = vmax.f32 %v1280, 0.0
  %v1345 = vmax.f32 %v1281, 0.0
  %v1346 = vmax.f32 %v1282, 0.0
  %v1347 = vmax.f32 %v1283, 0.0
  %v1348 = vmax.f32 %v1284, 0.0
  %v1349 = vmax.f32 %v1285, 0.0
  %v1350 = vmax.f32 %v1286, 0.0
  %v1351 = vmax.f32 %v1287, 0.0
  %v1352 = vmax.f32 %v1288, 0.0
  %v1353 = vmax.f32 %v1289, 0.0
  %v1354 = vmax.f32 %v1290, 0.0
  %v1355 = vmax.f32 %v1291, 0.0
  %v1356 = vmax.f32 %v1292, 0.0
  %v1357 = vmax.f32 %v1293, 0.0
  %v1358 = vmax.f32 %v1294, 0.0
  %v1359 = vmax.f32 %v1295, 0.0
  %v1360 = vmax.f32 %v1296, 0.0
  %v1361 = vmax.f32 %v1297, 0.0
  %v1362 = vmax.f32 %v1298, 0.0
  %v1363 = vmax.f32 %v1299, 0.0
  %v1364 = vmax.f32 %v1300, 0.0
  %v1365 = vmax.f32 %v1301, 0.0
  %v1366 = vmax.f32 %v1302, 0.0
  %v1367 = vmax.f32 %v1303, 0.0
  %v1368 = vmax.f32 %v1304, 0.0
  %v1369 = vmax.f32 %v1305, 0.0
  %v1370 = vmax.f32 %v1306, 0.0
  %v1371 = vmax.f32 %v1307, 0.0
  %v1372 = vmax.f32 %v1308, 0.0
  %v1373 = vmax.f32 %v1309, 0.0
  %v1374 = vmax.f32 %v1310, 0.0
  %v1375 = vmax.f32 %v1311, 0.0
  %v1376 = vmax.f32 %v1312, 0.0
  %v1377 = vmax.f32 %v1313, 0.0
  %v1378 = vmax.f32 %v1314, 0.0
  %v1379 = vmax.f32 %v1315, 0.0
  %v1380 = vmax.f32 %v1316, 0.0
  %v1381 = vmax.f32 %v1317, 0.0
  %v1382 = vmax.f32 %v1318, 0.0
  %v1383 = vmax.f32 %v1319, 0.0
  %v1384 = vpack.c.bf16 %v1321, %v1320
  %v1385 = vpack.c.bf16 %v1323, %v1322
  %v1386 = vpack.c.bf16 %v1325, %v1324
  %v1387 = vpack.c.bf16 %v1327, %v1326
  %v1388 = vpack.c.bf16 %v1329, %v1328
  %v1389 = vpack.c.bf16 %v1331, %v1330
  %v1390 = vpack.c.bf16 %v1333, %v1332
  %v1391 = vpack.c.bf16 %v1335, %v1334
  %v1392 = vpack.c.bf16 %v1337, %v1336
  %v1393 = vpack.c.bf16 %v1339, %v1338
  %v1394 = vpack.c.bf16 %v1341, %v1340
  %v1395 = vpack.c.bf16 %v1343, %v1342
  %v1396 = vpack.c.bf16 %v1345, %v1344
  %v1397 = vpack.c.bf16 %v1347, %v1346
  %v1398 = vpack.c.bf16 %v1349, %v1348
  %v1399 = vpack.c.bf16 %v1351, %v1350
  %v1400 = vpack.c.bf16 %v1353, %v1352
  %v1401 = vpack.c.bf16 %v1355, %v1354
  %v1402 = vpack.c.bf16 %v1357, %v1356
  %v1403 = vpack.c.bf16 %v1359, %v1358
  %v1404 = vpack.c.bf16 %v1361, %v1360
  %v1405 = vpack.c.bf16 %v1363, %v1362
  %v1406 = vpack.c.bf16 %v1365, %v1364
  %v1407 = vpack.c.bf16 %v1367, %v1366
  %v1408 = vpack.c.bf16 %v1369, %v1368
  %v1409 = vpack.c.bf16 %v1371, %v1370
  %v1410 = vpack.c.bf16 %v1373, %v1372
  %v1411 = vpack.c.bf16 %v1375, %v1374
  %v1412 = vpack.c.bf16 %v1377, %v1376
  %v1413 = vpack.c.bf16 %v1379, %v1378
  %v1414 = vpack.c.bf16 %v1381, %v1380
  %v1415 = vpack.c.bf16 %v1383, %v1382
  %v1448 = vunpack.c.l.b16 %v1384
  %v1449 = vunpack.c.h.b16 %v1384
  %v1450 = vunpack.c.l.b16 %v1385
  %v1451 = vunpack.c.h.b16 %v1385
  %v1452 = vunpack.c.l.b16 %v1386
  %v1453 = vunpack.c.h.b16 %v1386
  %v1454 = vunpack.c.l.b16 %v1387
  %v1455 = vunpack.c.h.b16 %v1387
  %v1456 = vunpack.c.l.b16 %v1388
  %v1457 = vunpack.c.h.b16 %v1388
  %v1458 = vunpack.c.l.b16 %v1389
  %v1459 = vunpack.c.h.b16 %v1389
  %v1460 = vunpack.c.l.b16 %v1390
  %v1461 = vunpack.c.h.b16 %v1390
  %v1462 = vunpack.c.l.b16 %v1391
  %v1463 = vunpack.c.h.b16 %v1391
  %v1464 = vunpack.c.l.b16 %v1392
  %v1465 = vunpack.c.h.b16 %v1392
  %v1466 = vunpack.c.l.b16 %v1393
  %v1467 = vunpack.c.h.b16 %v1393
  %v1468 = vunpack.c.l.b16 %v1394
  %v1469 = vunpack.c.h.b16 %v1394
  %v1470 = vunpack.c.l.b16 %v1395
  %v1471 = vunpack.c.h.b16 %v1395
  %v1472 = vunpack.c.l.b16 %v1396
  %v1473 = vunpack.c.h.b16 %v1396
  %v1474 = vunpack.c.l.b16 %v1397
  %v1475 = vunpack.c.h.b16 %v1397
  %v1476 = vunpack.c.l.b16 %v1398
  %v1477 = vunpack.c.h.b16 %v1398
  %v1478 = vunpack.c.l.b16 %v1399
  %v1479 = vunpack.c.h.b16 %v1399
  %v1480 = vunpack.c.l.b16 %v1400
  %v1481 = vunpack.c.h.b16 %v1400
  %v1482 = vunpack.c.l.b16 %v1401
  %v1483 = vunpack.c.h.b16 %v1401
  %v1484 = vunpack.c.l.b16 %v1402
  %v1485 = vunpack.c.h.b16 %v1402
  %v1486 = vunpack.c.l.b16 %v1403
  %v1487 = vunpack.c.h.b16 %v1403
  %v1488 = vunpack.c.l.b16 %v1404
  %v1489 = vunpack.c.h.b16 %v1404
  %v1490 = vunpack.c.l.b16 %v1405
  %v1491 = vunpack.c.h.b16 %v1405
  %v1492 = vunpack.c.l.b16 %v1406
  %v1493 = vunpack.c.h.b16 %v1406
  %v1494 = vunpack.c.l.b16 %v1407
  %v1495 = vunpack.c.h.b16 %v1407
  %v1496 = vunpack.c.l.b16 %v1408
  %v1497 = vunpack.c.h.b16 %v1408
  %v1498 = vunpack.c.l.b16 %v1409
  %v1499 = vunpack.c.h.b16 %v1409
  %v1500 = vunpack.c.l.b16 %v1410
  %v1501 = vunpack.c.h.b16 %v1410
  %v1502 = vunpack.c.l.b16 %v1411
  %v1503 = vunpack.c.h.b16 %v1411
  %v1504 = vunpack.c.l.b16 %v1412
  %v1505 = vunpack.c.h.b16 %v1412
  %v1506 = vunpack.c.l.b16 %v1413
  %v1507 = vunpack.c.h.b16 %v1413
  %v1508 = vunpack.c.l.b16 %v1414
  %v1509 = vunpack.c.h.b16 %v1414
  %v1510 = vunpack.c.l.b16 %v1415
  %v1511 = vunpack.c.h.b16 %v1415
  %v1512 = vpack.c.b16 %v1448, %v1448
  %v1513 = vpack.c.b16 %v1449, %v1449
  %v1514 = vpack.c.b16 %v1450, %v1450
  %v1515 = vpack.c.b16 %v1451, %v1451
  %v1516 = vpack.c.b16 %v1452, %v1452
  %v1517 = vpack.c.b16 %v1453, %v1453
  %v1518 = vpack.c.b16 %v1454, %v1454
  %v1519 = vpack.c.b16 %v1455, %v1455
  %v1520 = vpack.c.b16 %v1456, %v1456
  %v1521 = vpack.c.b16 %v1457, %v1457
  %v1522 = vpack.c.b16 %v1458, %v1458
  %v1523 = vpack.c.b16 %v1459, %v1459
  %v1524 = vpack.c.b16 %v1460, %v1460
  %v1525 = vpack.c.b16 %v1461, %v1461
  %v1526 = vpack.c.b16 %v1462, %v1462
  %v1527 = vpack.c.b16 %v1463, %v1463
  %v1528 = vpack.c.b16 %v1464, %v1464
  %v1529 = vpack.c.b16 %v1465, %v1465
  %v1530 = vpack.c.b16 %v1466, %v1466
  %v1531 = vpack.c.b16 %v1467, %v1467
  %v1532 = vpack.c.b16 %v1468, %v1468
  %v1533 = vpack.c.b16 %v1469, %v1469
  %v1534 = vpack.c.b16 %v1470, %v1470
  %v1535 = vpack.c.b16 %v1471, %v1471
  %v1536 = vpack.c.b16 %v1472, %v1472
  %v1537 = vpack.c.b16 %v1473, %v1473
  %v1538 = vpack.c.b16 %v1474, %v1474
  %v1539 = vpack.c.b16 %v1475, %v1475
  %v1540 = vpack.c.b16 %v1476, %v1476
  %v1541 = vpack.c.b16 %v1477, %v1477
  %v1542 = vpack.c.b16 %v1478, %v1478
  %v1543 = vpack.c.b16 %v1479, %v1479
  %v1544 = vpack.c.b16 %v1480, %v1480
  %v1545 = vpack.c.b16 %v1481, %v1481
  %v1546 = vpack.c.b16 %v1482, %v1482
  %v1547 = vpack.c.b16 %v1483, %v1483
  %v1548 = vpack.c.b16 %v1484, %v1484
  %v1549 = vpack.c.b16 %v1485, %v1485
  %v1550 = vpack.c.b16 %v1486, %v1486
  %v1551 = vpack.c.b16 %v1487, %v1487
  %v1552 = vpack.c.b16 %v1488, %v1488
  %v1553 = vpack.c.b16 %v1489, %v1489
  %v1554 = vpack.c.b16 %v1490, %v1490
  %v1555 = vpack.c.b16 %v1491, %v1491
  %v1556 = vpack.c.b16 %v1492, %v1492
  %v1557 = vpack.c.b16 %v1493, %v1493
  %v1558 = vpack.c.b16 %v1494, %v1494
  %v1559 = vpack.c.b16 %v1495, %v1495
  %v1560 = vpack.c.b16 %v1496, %v1496
  %v1561 = vpack.c.b16 %v1497, %v1497
  %v1562 = vpack.c.b16 %v1498, %v1498
  %v1563 = vpack.c.b16 %v1499, %v1499
  %v1564 = vpack.c.b16 %v1500, %v1500
  %v1565 = vpack.c.b16 %v1501, %v1501
  %v1566 = vpack.c.b16 %v1502, %v1502
  %v1567 = vpack.c.b16 %v1503, %v1503
  %v1568 = vpack.c.b16 %v1504, %v1504
  %v1569 = vpack.c.b16 %v1505, %v1505
  %v1570 = vpack.c.b16 %v1506, %v1506
  %v1571 = vpack.c.b16 %v1507, %v1507
  %v1572 = vpack.c.b16 %v1508, %v1508
  %v1573 = vpack.c.b16 %v1509, %v1509
  %v1574 = vpack.c.b16 %v1510, %v1510
  %v1575 = vpack.c.b16 %v1511, %v1511
  %vm1640 = vcmask 125952
  %1641 = vst.msk [vmem:[%s5] sm:$0xf] %vm1640, %v1512
  %1642 = vst.msk [vmem:[%s5 + $0x4] sm:$0xf] %vm1640, %v1513
  %1643 = vst.msk [vmem:[%s5 + $0x8] sm:$0xf] %vm1640, %v1514
  %1644 = vst.msk [vmem:[%s5 + $0xc] sm:$0xf] %vm1640, %v1515
  %1645 = vst.msk [vmem:[%s5 + $0x10] sm:$0xf] %vm1640, %v1516
  %1646 = vst.msk [vmem:[%s5 + $0x14] sm:$0xf] %vm1640, %v1517
  %1647 = vst.msk [vmem:[%s5 + $0x18] sm:$0xf] %vm1640, %v1518
  %1648 = vst.msk [vmem:[%s5 + $0x1c] sm:$0xf] %vm1640, %v1519
  %1649 = vst.msk [vmem:[%s5 + $0x20] sm:$0xf] %vm1640, %v1520
  %1650 = vst.msk [vmem:[%s5 + $0x24] sm:$0xf] %vm1640, %v1521
  %1651 = vst.msk [vmem:[%s5 + $0x28] sm:$0xf] %vm1640, %v1522
  %1652 = vst.msk [vmem:[%s5 + $0x2c] sm:$0xf] %vm1640, %v1523
  %1653 = vst.msk [vmem:[%s5 + $0x30] sm:$0xf] %vm1640, %v1524
  %1654 = vst.msk [vmem:[%s5 + $0x34] sm:$0xf] %vm1640, %v1525
  %1655 = vst.msk [vmem:[%s5 + $0x38] sm:$0xf] %vm1640, %v1526
  %1656 = vst.msk [vmem:[%s5 + $0x3c] sm:$0xf] %vm1640, %v1527
  %1657 = vst.msk [vmem:[%s5 + $0x40] sm:$0xf] %vm1640, %v1528
  %1658 = vst.msk [vmem:[%s5 + $0x44] sm:$0xf] %vm1640, %v1529
  %1659 = vst.msk [vmem:[%s5 + $0x48] sm:$0xf] %vm1640, %v1530
  %1660 = vst.msk [vmem:[%s5 + $0x4c] sm:$0xf] %vm1640, %v1531
  %1661 = vst.msk [vmem:[%s5 + $0x50] sm:$0xf] %vm1640, %v1532
  %1662 = vst.msk [vmem:[%s5 + $0x54] sm:$0xf] %vm1640, %v1533
  %1663 = vst.msk [vmem:[%s5 + $0x58] sm:$0xf] %vm1640, %v1534
  %1664 = vst.msk [vmem:[%s5 + $0x5c] sm:$0xf] %vm1640, %v1535
  %1665 = vst.msk [vmem:[%s5 + $0x60] sm:$0xf] %vm1640, %v1536
  %1666 = vst.msk [vmem:[%s5 + $0x64] sm:$0xf] %vm1640, %v1537
  %1667 = vst.msk [vmem:[%s5 + $0x68] sm:$0xf] %vm1640, %v1538
  %1668 = vst.msk [vmem:[%s5 + $0x6c] sm:$0xf] %vm1640, %v1539
  %1669 = vst.msk [vmem:[%s5 + $0x70] sm:$0xf] %vm1640, %v1540
  %1670 = vst.msk [vmem:[%s5 + $0x74] sm:$0xf] %vm1640, %v1541
  %1671 = vst.msk [vmem:[%s5 + $0x78] sm:$0xf] %vm1640, %v1542
  %1672 = vst.msk [vmem:[%s5 + $0x7c] sm:$0xf] %vm1640, %v1543
  %1673 = vst.msk [vmem:[%s5 + $0x80] sm:$0xf] %vm1640, %v1544
  %1674 = vst.msk [vmem:[%s5 + $0x84] sm:$0xf] %vm1640, %v1545
  %1675 = vst.msk [vmem:[%s5 + $0x88] sm:$0xf] %vm1640, %v1546
  %1676 = vst.msk [vmem:[%s5 + $0x8c] sm:$0xf] %vm1640, %v1547
  %1677 = vst.msk [vmem:[%s5 + $0x90] sm:$0xf] %vm1640, %v1548
  %1678 = vst.msk [vmem:[%s5 + $0x94] sm:$0xf] %vm1640, %v1549
  %1679 = vst.msk [vmem:[%s5 + $0x98] sm:$0xf] %vm1640, %v1550
  %1680 = vst.msk [vmem:[%s5 + $0x9c] sm:$0xf] %vm1640, %v1551
  %1681 = vst.msk [vmem:[%s5 + $0xa0] sm:$0xf] %vm1640, %v1552
  %1682 = vst.msk [vmem:[%s5 + $0xa4] sm:$0xf] %vm1640, %v1553
  %1683 = vst.msk [vmem:[%s5 + $0xa8] sm:$0xf] %vm1640, %v1554
  %1684 = vst.msk [vmem:[%s5 + $0xac] sm:$0xf] %vm1640, %v1555
  %1685 = vst.msk [vmem:[%s5 + $0xb0] sm:$0xf] %vm1640, %v1556
  %1686 = vst.msk [vmem:[%s5 + $0xb4] sm:$0xf] %vm1640, %v1557
  %1687 = vst.msk [vmem:[%s5 + $0xb8] sm:$0xf] %vm1640, %v1558
  %1688 = vst.msk [vmem:[%s5 + $0xbc] sm:$0xf] %vm1640, %v1559
  %1689 = vst.msk [vmem:[%s5 + $0xc0] sm:$0xf] %vm1640, %v1560
  %1690 = vst.msk [vmem:[%s5 + $0xc4] sm:$0xf] %vm1640, %v1561
  %1691 = vst.msk [vmem:[%s5 + $0xc8] sm:$0xf] %vm1640, %v1562
  %1692 = vst.msk [vmem:[%s5 + $0xcc] sm:$0xf] %vm1640, %v1563
  %1693 = vst.msk [vmem:[%s5 + $0xd0] sm:$0xf] %vm1640, %v1564
  %1694 = vst.msk [vmem:[%s5 + $0xd4] sm:$0xf] %vm1640, %v1565
  %1695 = vst.msk [vmem:[%s5 + $0xd8] sm:$0xf] %vm1640, %v1566
  %1696 = vst.msk [vmem:[%s5 + $0xdc] sm:$0xf] %vm1640, %v1567
  %1697 = vst.msk [vmem:[%s5 + $0xe0] sm:$0xf] %vm1640, %v1568
  %1698 = vst.msk [vmem:[%s5 + $0xe4] sm:$0xf] %vm1640, %v1569
  %1699 = vst.msk [vmem:[%s5 + $0xe8] sm:$0xf] %vm1640, %v1570
  %1700 = vst.msk [vmem:[%s5 + $0xec] sm:$0xf] %vm1640, %v1571
  %1701 = vst.msk [vmem:[%s5 + $0xf0] sm:$0xf] %vm1640, %v1572
  %1702 = vst.msk [vmem:[%s5 + $0xf4] sm:$0xf] %vm1640, %v1573
  %1703 = vst.msk [vmem:[%s5 + $0xf8] sm:$0xf] %vm1640, %v1574
  %1704 = vst.msk [vmem:[%s5 + $0xfc] sm:$0xf] %vm1640, %v1575
  // Predicated region
  $region22: #{yolo_nas_csp_layer.7} parent=0 // pred_check
    _
  $region23: #{yolo_nas_csp_layer.7} parent=0 // pred_check_branch
    %1706 = sbr.rel (0) target = $region25
  $region24: #{yolo_nas_csp_layer.7} parent=0 // pred_region
    _
  $region25: #{yolo_nas_csp_layer.7} parent=0 // pred_fallthru
    _
  // Predicated region
  $region26: #{yolo_nas_csp_layer.7} parent=0 // pred_check
    _
  $region27: #{yolo_nas_csp_layer.7} parent=0 // pred_check_branch
    %1708 = sbr.rel (0) target = $region29
  $region28: #{yolo_nas_csp_layer.7} parent=0 // pred_region
    _
  $region29: #{yolo_nas_csp_layer.7} parent=0 // pred_fallthru
    _

// kernel: yolo_nas_csp_layer.4
$region0: #{yolo_nas_csp_layer.4}
  #allocation0 [shape = 'u32[]', space=smem, size = 0x4, offset = 0x4, fixed_abs, tag = 'smem constant byte address 0x4 - core index']
  #allocation1 [shape = 'u32[144,128]{1,0:T(1,128)}', space=vmem, size = 0x12000, scoped, tag = 'internal scratch']
  %s0 = inlined_call_operand.vmem [shape: bf16[512,16], index: 0, kind: input, shape index: {}]
  %s1 = inlined_call_operand.vmem [shape: bf16[16,8], index: 1, kind: input, shape index: {}]
  %s2 = inlined_call_operand.vmem [shape: f32[1,8], index: 2, kind: input, shape index: {}]
  %s3 = inlined_call_operand.vmem [shape: bf16[16,8], index: 3, kind: input, shape index: {}]
  %s4 = inlined_call_operand.vmem [shape: f32[1,8], index: 4, kind: input, shape index: {}]
  %s5 = inlined_call_operand.vmem [shape: bf16[512,8], index: 5, kind: output, shape index: {0}]
  %s6 = inlined_call_operand.vmem [shape: bf16[512,8], index: 6, kind: output, shape index: {1}]
  %7 = xla_tuple %s5, %s6
  %s8 = sld [smem:[#allocation0]]
  $region38: #{yolo_nas_csp_layer.4} parent=0
    _
  %s10 = ssub.s32 1, %s8
  %s11 = scalar_select 0, %s10, %s8
  // Predicated region
  $region2: #{yolo_nas_csp_layer.4} parent=0 // pred_check
    _
  $region3: #{yolo_nas_csp_layer.4} parent=0 // pred_check_branch
    %13 = sbr.rel (0) target = $region5
  $region4: #{yolo_nas_csp_layer.4} parent=0 // pred_region
    _
  $region5: #{yolo_nas_csp_layer.4} parent=0 // pred_fallthru
    _
  // Predicated region
  $region6: #{yolo_nas_csp_layer.4} parent=0 // pred_check
    _
  $region7: #{yolo_nas_csp_layer.4} parent=0 // pred_check_branch
    %15 = sbr.rel (0) target = $region9
  $region8: #{yolo_nas_csp_layer.4} parent=0 // pred_region
    _
  $region9: #{yolo_nas_csp_layer.4} parent=0 // pred_fallthru
    _
  // Predicated region
  $region10: #{yolo_nas_csp_layer.4} parent=0 // pred_check
    _
  $region11: #{yolo_nas_csp_layer.4} parent=0 // pred_check_branch
    %17 = sbr.rel (0) target = $region13
  $region12: #{yolo_nas_csp_layer.4} parent=0 // pred_region
    _
  $region13: #{yolo_nas_csp_layer.4} parent=0 // pred_fallthru
    _
  // Predicated region
  $region14: #{yolo_nas_csp_layer.4} parent=0 // pred_check
    _
  $region15: #{yolo_nas_csp_layer.4} parent=0 // pred_check_branch
    %19 = sbr.rel (0) target = $region17
  $region16: #{yolo_nas_csp_layer.4} parent=0 // pred_region
    _
  $region17: #{yolo_nas_csp_layer.4} parent=0 // pred_fallthru
    _
  // Predicated region
  $region18: #{yolo_nas_csp_layer.4} parent=0 // pred_check
    _
  $region19: #{yolo_nas_csp_layer.4} parent=0 // pred_check_branch
    %21 = sbr.rel (0) target = $region21
  $region20: #{yolo_nas_csp_layer.4} parent=0 // pred_region
    _
  $region21: #{yolo_nas_csp_layer.4} parent=0 // pred_fallthru
    _
  %v23 = vld [vmem:[%s0] sm:$0xf]
  %v24 = vld [vmem:[%s0 + $0x4] sm:$0xf]
  %v25 = vld [vmem:[%s0 + $0x8] sm:$0xf]
  %v26 = vld [vmem:[%s0 + $0xc] sm:$0xf]
  %v27 = vld [vmem:[%s0 + $0x10] sm:$0xf]
  %v28 = vld [vmem:[%s0 + $0x14] sm:$0xf]
  %v29 = vld [vmem:[%s0 + $0x18] sm:$0xf]
  %v30 = vld [vmem:[%s0 + $0x1c] sm:$0xf]
  %v31 = vld [vmem:[%s0 + $0x20] sm:$0xf]
  %v32 = vld [vmem:[%s0 + $0x24] sm:$0xf]
  %v33 = vld [vmem:[%s0 + $0x28] sm:$0xf]
  %v34 = vld [vmem:[%s0 + $0x2c] sm:$0xf]
  %v35 = vld [vmem:[%s0 + $0x30] sm:$0xf]
  %v36 = vld [vmem:[%s0 + $0x34] sm:$0xf]
  %v37 = vld [vmem:[%s0 + $0x38] sm:$0xf]
  %v38 = vld [vmem:[%s0 + $0x3c] sm:$0xf]
  %v39 = vld [vmem:[%s0 + $0x40] sm:$0xf]
  %v40 = vld [vmem:[%s0 + $0x44] sm:$0xf]
  %v41 = vld [vmem:[%s0 + $0x48] sm:$0xf]
  %v42 = vld [vmem:[%s0 + $0x4c] sm:$0xf]
  %v43 = vld [vmem:[%s0 + $0x50] sm:$0xf]
  %v44 = vld [vmem:[%s0 + $0x54] sm:$0xf]
  %v45 = vld [vmem:[%s0 + $0x58] sm:$0xf]
  %v46 = vld [vmem:[%s0 + $0x5c] sm:$0xf]
  %v47 = vld [vmem:[%s0 + $0x60] sm:$0xf]
  %v48 = vld [vmem:[%s0 + $0x64] sm:$0xf]
  %v49 = vld [vmem:[%s0 + $0x68] sm:$0xf]
  %v50 = vld [vmem:[%s0 + $0x6c] sm:$0xf]
  %v51 = vld [vmem:[%s0 + $0x70] sm:$0xf]
  %v52 = vld [vmem:[%s0 + $0x74] sm:$0xf]
  %v53 = vld [vmem:[%s0 + $0x78] sm:$0xf]
  %v54 = vld [vmem:[%s0 + $0x7c] sm:$0xf]
  %v55 = vld [vmem:[%s0 + $0x80] sm:$0xf]
  %v56 = vld [vmem:[%s0 + $0x84] sm:$0xf]
  %v57 = vld [vmem:[%s0 + $0x88] sm:$0xf]
  %v58 = vld [vmem:[%s0 + $0x8c] sm:$0xf]
  %v59 = vld [vmem:[%s0 + $0x90] sm:$0xf]
  %v60 = vld [vmem:[%s0 + $0x94] sm:$0xf]
  %v61 = vld [vmem:[%s0 + $0x98] sm:$0xf]
  %v62 = vld [vmem:[%s0 + $0x9c] sm:$0xf]
  %v63 = vld [vmem:[%s0 + $0xa0] sm:$0xf]
  %v64 = vld [vmem:[%s0 + $0xa4] sm:$0xf]
  %v65 = vld [vmem:[%s0 + $0xa8] sm:$0xf]
  %v66 = vld [vmem:[%s0 + $0xac] sm:$0xf]
  %v67 = vld [vmem:[%s0 + $0xb0] sm:$0xf]
  %v68 = vld [vmem:[%s0 + $0xb4] sm:$0xf]
  %v69 = vld [vmem:[%s0 + $0xb8] sm:$0xf]
  %v70 = vld [vmem:[%s0 + $0xbc] sm:$0xf]
  %v71 = vld [vmem:[%s0 + $0xc0] sm:$0xf]
  %v72 = vld [vmem:[%s0 + $0xc4] sm:$0xf]
  %v73 = vld [vmem:[%s0 + $0xc8] sm:$0xf]
  %v74 = vld [vmem:[%s0 + $0xcc] sm:$0xf]
  %v75 = vld [vmem:[%s0 + $0xd0] sm:$0xf]
  %v76 = vld [vmem:[%s0 + $0xd4] sm:$0xf]
  %v77 = vld [vmem:[%s0 + $0xd8] sm:$0xf]
  %v78 = vld [vmem:[%s0 + $0xdc] sm:$0xf]
  %v79 = vld [vmem:[%s0 + $0xe0] sm:$0xf]
  %v80 = vld [vmem:[%s0 + $0xe4] sm:$0xf]
  %v81 = vld [vmem:[%s0 + $0xe8] sm:$0xf]
  %v82 = vld [vmem:[%s0 + $0xec] sm:$0xf]
  %v83 = vld [vmem:[%s0 + $0xf0] sm:$0xf]
  %v84 = vld [vmem:[%s0 + $0xf4] sm:$0xf]
  %v85 = vld [vmem:[%s0 + $0xf8] sm:$0xf]
  %v86 = vld [vmem:[%s0 + $0xfc] sm:$0xf]
  %v87 = vld [vmem:[%s1] sm:$0xf]
  %v88 = vld [vmem:[%s1 + $0x4] sm:$0xf]
  %v89 = vld [vmem:[%s3] sm:$0xf]
  %v90 = vld [vmem:[%s3 + $0x4] sm:$0xf]
  %v91 = vld [vmem:[%s2] sm:$0x1]
  %v93 = vlaneseq
  %v94 = vshrl.u32 %v93, 7
  %v95 = vsub.s32 0, %v94
  %v96 = vrot.slane %v91, %v95
  %v162 = vunpack.c.l.b16 %v23
  %v163 = vunpack.c.l.b16 %v24
  %v164 = vunpack.c.l.b16 %v25
  %v165 = vunpack.c.l.b16 %v26
  %v166 = vunpack.c.l.b16 %v27
  %v167 = vunpack.c.l.b16 %v28
  %v168 = vunpack.c.l.b16 %v29
  %v169 = vunpack.c.l.b16 %v30
  %v170 = vunpack.c.l.b16 %v31
  %v171 = vunpack.c.l.b16 %v32
  %v172 = vunpack.c.l.b16 %v33
  %v173 = vunpack.c.l.b16 %v34
  %v174 = vunpack.c.l.b16 %v35
  %v175 = vunpack.c.l.b16 %v36
  %v176 = vunpack.c.l.b16 %v37
  %v177 = vunpack.c.l.b16 %v38
  %v178 = vunpack.c.l.b16 %v39
  %v179 = vunpack.c.l.b16 %v40
  %v180 = vunpack.c.l.b16 %v41
  %v181 = vunpack.c.l.b16 %v42
  %v182 = vunpack.c.l.b16 %v43
  %v183 = vunpack.c.l.b16 %v44
  %v184 = vunpack.c.l.b16 %v45
  %v185 = vunpack.c.l.b16 %v46
  %v186 = vunpack.c.l.b16 %v47
  %v187 = vunpack.c.l.b16 %v48
  %v188 = vunpack.c.l.b16 %v49
  %v189 = vunpack.c.l.b16 %v50
  %v190 = vunpack.c.l.b16 %v51
  %v191 = vunpack.c.l.b16 %v52
  %v192 = vunpack.c.l.b16 %v53
  %v193 = vunpack.c.l.b16 %v54
  %v194 = vunpack.c.l.b16 %v55
  %v195 = vunpack.c.l.b16 %v56
  %v196 = vunpack.c.l.b16 %v57
  %v197 = vunpack.c.l.b16 %v58
  %v198 = vunpack.c.l.b16 %v59
  %v199 = vunpack.c.l.b16 %v60
  %v200 = vunpack.c.l.b16 %v61
  %v201 = vunpack.c.l.b16 %v62
  %v202 = vunpack.c.l.b16 %v63
  %v203 = vunpack.c.l.b16 %v64
  %v204 = vunpack.c.l.b16 %v65
  %v205 = vunpack.c.l.b16 %v66
  %v206 = vunpack.c.l.b16 %v67
  %v207 = vunpack.c.l.b16 %v68
  %v208 = vunpack.c.l.b16 %v69
  %v209 = vunpack.c.l.b16 %v70
  %v210 = vunpack.c.l.b16 %v71
  %v211 = vunpack.c.l.b16 %v72
  %v212 = vunpack.c.l.b16 %v73
  %v213 = vunpack.c.l.b16 %v74
  %v214 = vunpack.c.l.b16 %v75
  %v215 = vunpack.c.l.b16 %v76
  %v216 = vunpack.c.l.b16 %v77
  %v217 = vunpack.c.l.b16 %v78
  %v218 = vunpack.c.l.b16 %v79
  %v219 = vunpack.c.l.b16 %v80
  %v220 = vunpack.c.l.b16 %v81
  %v221 = vunpack.c.l.b16 %v82
  %v222 = vunpack.c.l.b16 %v83
  %v223 = vunpack.c.l.b16 %v84
  %v224 = vunpack.c.l.b16 %v85
  %v225 = vunpack.c.l.b16 %v86
  %v226 = vpack.c.b16 %v163, %v162
  %v227 = vpack.c.b16 %v165, %v164
  %v228 = vpack.c.b16 %v167, %v166
  %v229 = vpack.c.b16 %v169, %v168
  %v230 = vpack.c.b16 %v171, %v170
  %v231 = vpack.c.b16 %v173, %v172
  %v232 = vpack.c.b16 %v175, %v174
  %v233 = vpack.c.b16 %v177, %v176
  %v234 = vpack.c.b16 %v179, %v178
  %v235 = vpack.c.b16 %v181, %v180
  %v236 = vpack.c.b16 %v183, %v182
  %v237 = vpack.c.b16 %v185, %v184
  %v238 = vpack.c.b16 %v187, %v186
  %v239 = vpack.c.b16 %v189, %v188
  %v240 = vpack.c.b16 %v191, %v190
  %v241 = vpack.c.b16 %v193, %v192
  %v242 = vpack.c.b16 %v195, %v194
  %v243 = vpack.c.b16 %v197, %v196
  %v244 = vpack.c.b16 %v199, %v198
  %v245 = vpack.c.b16 %v201, %v200
  %v246 = vpack.c.b16 %v203, %v202
  %v247 = vpack.c.b16 %v205, %v204
  %v248 = vpack.c.b16 %v207, %v206
  %v249 = vpack.c.b16 %v209, %v208
  %v250 = vpack.c.b16 %v211, %v210
  %v251 = vpack.c.b16 %v213, %v212
  %v252 = vpack.c.b16 %v215, %v214
  %v253 = vpack.c.b16 %v217, %v216
  %v254 = vpack.c.b16 %v219, %v218
  %v255 = vpack.c.b16 %v221, %v220
  %v256 = vpack.c.b16 %v223, %v222
  %v257 = vpack.c.b16 %v225, %v224
  %v260 = vunpack.c.l.b16 %v87
  %v261 = vunpack.c.l.b16 %v88
  %v262 = vpack.c.b16 %v261, %v260
  %vm264 = vcmask 130048
  %v266 = vsel %vm264, %v226, 0
  %v269 = vsel %vm264, %v227, 0
  %v272 = vsel %vm264, %v228, 0
  %v275 = vsel %vm264, %v229, 0
  %v278 = vsel %vm264, %v230, 0
  %v281 = vsel %vm264, %v231, 0
  %v284 = vsel %vm264, %v232, 0
  %v287 = vsel %vm264, %v233, 0
  %v290 = vsel %vm264, %v234, 0
  %v293 = vsel %vm264, %v235, 0
  %v296 = vsel %vm264, %v236, 0
  %v299 = vsel %vm264, %v237, 0
  %v302 = vsel %vm264, %v238, 0
  %v305 = vsel %vm264, %v239, 0
  %v308 = vsel %vm264, %v240, 0
  %v311 = vsel %vm264, %v241, 0
  %v314 = vsel %vm264, %v242, 0
  %v317 = vsel %vm264, %v243, 0
  %v320 = vsel %vm264, %v244, 0
  %v323 = vsel %vm264, %v245, 0
  %v326 = vsel %vm264, %v246, 0
  %v329 = vsel %vm264, %v247, 0
  %v332 = vsel %vm264, %v248, 0
  %v335 = vsel %vm264, %v249, 0
  %v338 = vsel %vm264, %v250, 0
  %v341 = vsel %vm264, %v251, 0
  %v344 = vsel %vm264, %v252, 0
  %v347 = vsel %vm264, %v253, 0
  %v350 = vsel %vm264, %v254, 0
  %v353 = vsel %vm264, %v255, 0
  %v356 = vsel %vm264, %v256, 0
  %v359 = vsel %vm264, %v257, 0
  %361 = vmatprep.subr.bf16.mxu0 0
  %362 = vmatpush1.bf16.msra.mxu0 0
  %363 = vmatprep.subr.bf16.mxu0 0
  %364 = vmatpush1.bf16.msra.mxu0 0
  %365 = vmatprep.subr.bf16.mxu0 0
  %366 = vmatpush1.bf16.msra.mxu0 0
  %367 = vmatprep.subr.bf16.mxu0 0
  %368 = vmatpush1.bf16.msra.mxu0 0
  %369 = vmatprep.subr.bf16.mxu0 0
  %370 = vmatpush1.bf16.msra.mxu0 0
  %371 = vmatprep.subr.bf16.mxu0 0
  %372 = vmatpush1.bf16.msra.mxu0 0
  %373 = vmatprep.subr.bf16.mxu0 0
  %374 = vmatpush1.bf16.msra.mxu0 0
  %375 = vmatprep.subr.bf16.mxu0 0
  %376 = vmatpush1.bf16.msra.mxu0 %v262
  %377 = vmatprep.subr.bf16.mxu0 0
  %378 = vmatpush2.bf16.msra.mxu0 0
  %379 = vmatprep.subr.bf16.mxu0 0
  %380 = vmatpush2.bf16.msra.mxu0 0
  %381 = vmatprep.subr.bf16.mxu0 0
  %382 = vmatpush2.bf16.msra.mxu0 0
  %383 = vmatprep.subr.bf16.mxu0 0
  %384 = vmatpush2.bf16.msra.mxu0 0
  %385 = vmatprep.subr.bf16.mxu0 0
  %386 = vmatpush2.bf16.msra.mxu0 0
  %387 = vmatprep.subr.bf16.mxu0 0
  %388 = vmatpush2.bf16.msra.mxu0 0
  %389 = vmatprep.subr.bf16.mxu0 0
  %390 = vmatpush2.bf16.msra.mxu0 0
  %391 = vmatprep.subr.bf16.mxu0 0
  %392 = vmatpush2.bf16.msra.mxu0 0
  %393 = vmatprep.mubr.bf16.mxu0 0
  %394 = vmatmul.mubr.bf16.gmra.mxu0 %v266
  %v395 = vpop.f32.mrf.mxu0
  %v396 = vadd.f32 %v96, %v395
  %v397 = vpop.f32.mrf.mxu0
  %v398 = vpop.f32.mrf.mxu0
  %v399 = vadd.f32 %v96, %v398
  %v400 = vpop.f32.mrf.mxu0
  %401 = vmatprep.mubr.bf16.mxu0 0
  %402 = vmatmul.mubr.bf16.gmra.mxu0 %v269
  %v403 = vpop.f32.mrf.mxu0
  %v404 = vadd.f32 %v96, %v403
  %v405 = vpop.f32.mrf.mxu0
  %v406 = vpop.f32.mrf.mxu0
  %v407 = vadd.f32 %v96, %v406
  %v408 = vpop.f32.mrf.mxu0
  %409 = vmatprep.mubr.bf16.mxu0 0
  %410 = vmatmul.mubr.bf16.gmra.mxu0 %v272
  %v411 = vpop.f32.mrf.mxu0
  %v412 = vadd.f32 %v96, %v411
  %v413 = vpop.f32.mrf.mxu0
  %v414 = vpop.f32.mrf.mxu0
  %v415 = vadd.f32 %v96, %v414
  %v416 = vpop.f32.mrf.mxu0
  %417 = vmatprep.mubr.bf16.mxu0 0
  %418 = vmatmul.mubr.bf16.gmra.mxu0 %v275
  %v419 = vpop.f32.mrf.mxu0
  %v420 = vadd.f32 %v96, %v419
  %v421 = vpop.f32.mrf.mxu0
  %v422 = vpop.f32.mrf.mxu0
  %v423 = vadd.f32 %v96, %v422
  %v424 = vpop.f32.mrf.mxu0
  %425 = vmatprep.mubr.bf16.mxu0 0
  %426 = vmatmul.mubr.bf16.gmra.mxu0 %v278
  %v427 = vpop.f32.mrf.mxu0
  %v428 = vadd.f32 %v96, %v427
  %v429 = vpop.f32.mrf.mxu0
  %v430 = vpop.f32.mrf.mxu0
  %v431 = vadd.f32 %v96, %v430
  %v432 = vpop.f32.mrf.mxu0
  %433 = vmatprep.mubr.bf16.mxu0 0
  %434 = vmatmul.mubr.bf16.gmra.mxu0 %v281
  %v435 = vpop.f32.mrf.mxu0
  %v436 = vadd.f32 %v96, %v435
  %v437 = vpop.f32.mrf.mxu0
  %v438 = vpop.f32.mrf.mxu0
  %v439 = vadd.f32 %v96, %v438
  %v440 = vpop.f32.mrf.mxu0
  %441 = vmatprep.mubr.bf16.mxu0 0
  %442 = vmatmul.mubr.bf16.gmra.mxu0 %v284
  %v443 = vpop.f32.mrf.mxu0
  %v444 = vadd.f32 %v96, %v443
  %v445 = vpop.f32.mrf.mxu0
  %v446 = vpop.f32.mrf.mxu0
  %v447 = vadd.f32 %v96, %v446
  %v448 = vpop.f32.mrf.mxu0
  %449 = vmatprep.mubr.bf16.mxu0 0
  %450 = vmatmul.mubr.bf16.gmra.mxu0 %v287
  %v451 = vpop.f32.mrf.mxu0
  %v452 = vadd.f32 %v96, %v451
  %v453 = vpop.f32.mrf.mxu0
  %v454 = vpop.f32.mrf.mxu0
  %v455 = vadd.f32 %v96, %v454
  %v456 = vpop.f32.mrf.mxu0
  %457 = vmatprep.mubr.bf16.mxu0 0
  %458 = vmatmul.mubr.bf16.gmra.mxu0 %v290
  %v459 = vpop.f32.mrf.mxu0
  %v460 = vadd.f32 %v96, %v459
  %v461 = vpop.f32.mrf.mxu0
  %v462 = vpop.f32.mrf.mxu0
  %v463 = vadd.f32 %v96, %v462
  %v464 = vpop.f32.mrf.mxu0
  %465 = vmatprep.mubr.bf16.mxu0 0
  %466 = vmatmul.mubr.bf16.gmra.mxu0 %v293
  %v467 = vpop.f32.mrf.mxu0
  %v468 = vadd.f32 %v96, %v467
  %v469 = vpop.f32.mrf.mxu0
  %v470 = vpop.f32.mrf.mxu0
  %v471 = vadd.f32 %v96, %v470
  %v472 = vpop.f32.mrf.mxu0
  %473 = vmatprep.mubr.bf16.mxu0 0
  %474 = vmatmul.mubr.bf16.gmra.mxu0 %v296
  %v475 = vpop.f32.mrf.mxu0
  %v476 = vadd.f32 %v96, %v475
  %v477 = vpop.f32.mrf.mxu0
  %v478 = vpop.f32.mrf.mxu0
  %v479 = vadd.f32 %v96, %v478
  %v480 = vpop.f32.mrf.mxu0
  %481 = vmatprep.mubr.bf16.mxu0 0
  %482 = vmatmul.mubr.bf16.gmra.mxu0 %v299
  %v483 = vpop.f32.mrf.mxu0
  %v484 = vadd.f32 %v96, %v483
  %v485 = vpop.f32.mrf.mxu0
  %v486 = vpop.f32.mrf.mxu0
  %v487 = vadd.f32 %v96, %v486
  %v488 = vpop.f32.mrf.mxu0
  %489 = vmatprep.mubr.bf16.mxu0 0
  %490 = vmatmul.mubr.bf16.gmra.mxu0 %v302
  %v491 = vpop.f32.mrf.mxu0
  %v492 = vadd.f32 %v96, %v491
  %v493 = vpop.f32.mrf.mxu0
  %v494 = vpop.f32.mrf.mxu0
  %v495 = vadd.f32 %v96, %v494
  %v496 = vpop.f32.mrf.mxu0
  %497 = vmatprep.mubr.bf16.mxu0 0
  %498 = vmatmul.mubr.bf16.gmra.mxu0 %v305
  %v499 = vpop.f32.mrf.mxu0
  %v500 = vadd.f32 %v96, %v499
  %v501 = vpop.f32.mrf.mxu0
  %v502 = vpop.f32.mrf.mxu0
  %v503 = vadd.f32 %v96, %v502
  %v504 = vpop.f32.mrf.mxu0
  %505 = vmatprep.mubr.bf16.mxu0 0
  %506 = vmatmul.mubr.bf16.gmra.mxu0 %v308
  %v507 = vpop.f32.mrf.mxu0
  %v508 = vadd.f32 %v96, %v507
  %v509 = vpop.f32.mrf.mxu0
  %v510 = vpop.f32.mrf.mxu0
  %v511 = vadd.f32 %v96, %v510
  %v512 = vpop.f32.mrf.mxu0
  %513 = vmatprep.mubr.bf16.mxu0 0
  %514 = vmatmul.mubr.bf16.gmra.mxu0 %v311
  %v515 = vpop.f32.mrf.mxu0
  %v516 = vadd.f32 %v96, %v515
  %v517 = vpop.f32.mrf.mxu0
  %v518 = vpop.f32.mrf.mxu0
  %v519 = vadd.f32 %v96, %v518
  %v520 = vpop.f32.mrf.mxu0
  %521 = vmatprep.mubr.bf16.mxu0 0
  %522 = vmatmul.mubr.bf16.gmra.mxu0 %v314
  %v523 = vpop.f32.mrf.mxu0
  %v524 = vadd.f32 %v96, %v523
  %v525 = vpop.f32.mrf.mxu0
  %v526 = vpop.f32.mrf.mxu0
  %v527 = vadd.f32 %v96, %v526
  %v528 = vpop.f32.mrf.mxu0
  %529 = vmatprep.mubr.bf16.mxu0 0
  %530 = vmatmul.mubr.bf16.gmra.mxu0 %v317
  %v531 = vpop.f32.mrf.mxu0
  %v532 = vadd.f32 %v96, %v531
  %v533 = vpop.f32.mrf.mxu0
  %v534 = vpop.f32.mrf.mxu0
  %v535 = vadd.f32 %v96, %v534
  %v536 = vpop.f32.mrf.mxu0
  %537 = vmatprep.mubr.bf16.mxu0 0
  %538 = vmatmul.mubr.bf16.gmra.mxu0 %v320
  %v539 = vpop.f32.mrf.mxu0
  %v540 = vadd.f32 %v96, %v539
  %v541 = vpop.f32.mrf.mxu0
  %v542 = vpop.f32.mrf.mxu0
  %v543 = vadd.f32 %v96, %v542
  %v544 = vpop.f32.mrf.mxu0
  %545 = vmatprep.mubr.bf16.mxu0 0
  %546 = vmatmul.mubr.bf16.gmra.mxu0 %v323
  %v547 = vpop.f32.mrf.mxu0
  %v548 = vadd.f32 %v96, %v547
  %v549 = vpop.f32.mrf.mxu0
  %v550 = vpop.f32.mrf.mxu0
  %v551 = vadd.f32 %v96, %v550
  %v552 = vpop.f32.mrf.mxu0
  %553 = vmatprep.mubr.bf16.mxu0 0
  %554 = vmatmul.mubr.bf16.gmra.mxu0 %v326
  %v555 = vpop.f32.mrf.mxu0
  %v556 = vadd.f32 %v96, %v555
  %v557 = vpop.f32.mrf.mxu0
  %v558 = vpop.f32.mrf.mxu0
  %v559 = vadd.f32 %v96, %v558
  %v560 = vpop.f32.mrf.mxu0
  %561 = vmatprep.mubr.bf16.mxu0 0
  %562 = vmatmul.mubr.bf16.gmra.mxu0 %v329
  %v563 = vpop.f32.mrf.mxu0
  %v564 = vadd.f32 %v96, %v563
  %v565 = vpop.f32.mrf.mxu0
  %v566 = vpop.f32.mrf.mxu0
  %v567 = vadd.f32 %v96, %v566
  %v568 = vpop.f32.mrf.mxu0
  %569 = vmatprep.mubr.bf16.mxu0 0
  %570 = vmatmul.mubr.bf16.gmra.mxu0 %v332
  %v571 = vpop.f32.mrf.mxu0
  %v572 = vadd.f32 %v96, %v571
  %v573 = vpop.f32.mrf.mxu0
  %v574 = vpop.f32.mrf.mxu0
  %v575 = vadd.f32 %v96, %v574
  %v576 = vpop.f32.mrf.mxu0
  %577 = vmatprep.mubr.bf16.mxu0 0
  %578 = vmatmul.mubr.bf16.gmra.mxu0 %v335
  %v579 = vpop.f32.mrf.mxu0
  %v580 = vadd.f32 %v96, %v579
  %v581 = vpop.f32.mrf.mxu0
  %v582 = vpop.f32.mrf.mxu0
  %v583 = vadd.f32 %v96, %v582
  %v584 = vpop.f32.mrf.mxu0
  %585 = vmatprep.mubr.bf16.mxu0 0
  %586 = vmatmul.mubr.bf16.gmra.mxu0 %v338
  %v587 = vpop.f32.mrf.mxu0
  %v588 = vadd.f32 %v96, %v587
  %v589 = vpop.f32.mrf.mxu0
  %v590 = vpop.f32.mrf.mxu0
  %v591 = vadd.f32 %v96, %v590
  %v592 = vpop.f32.mrf.mxu0
  %593 = vmatprep.mubr.bf16.mxu0 0
  %594 = vmatmul.mubr.bf16.gmra.mxu0 %v341
  %v595 = vpop.f32.mrf.mxu0
  %v596 = vadd.f32 %v96, %v595
  %v597 = vpop.f32.mrf.mxu0
  %v598 = vpop.f32.mrf.mxu0
  %v599 = vadd.f32 %v96, %v598
  %v600 = vpop.f32.mrf.mxu0
  %601 = vmatprep.mubr.bf16.mxu0 0
  %602 = vmatmul.mubr.bf16.gmra.mxu0 %v344
  %v603 = vpop.f32.mrf.mxu0
  %v604 = vadd.f32 %v96, %v603
  %v605 = vpop.f32.mrf.mxu0
  %v606 = vpop.f32.mrf.mxu0
  %v607 = vadd.f32 %v96, %v606
  %v608 = vpop.f32.mrf.mxu0
  %609 = vmatprep.mubr.bf16.mxu0 0
  %610 = vmatmul.mubr.bf16.gmra.mxu0 %v347
  %v611 = vpop.f32.mrf.mxu0
  %v612 = vadd.f32 %v96, %v611
  %v613 = vpop.f32.mrf.mxu0
  %v614 = vpop.f32.mrf.mxu0
  %v615 = vadd.f32 %v96, %v614
  %v616 = vpop.f32.mrf.mxu0
  %617 = vmatprep.mubr.bf16.mxu0 0
  %618 = vmatmul.mubr.bf16.gmra.mxu0 %v350
  %v619 = vpop.f32.mrf.mxu0
  %v620 = vadd.f32 %v96, %v619
  %v621 = vpop.f32.mrf.mxu0
  %v622 = vpop.f32.mrf.mxu0
  %v623 = vadd.f32 %v96, %v622
  %v624 = vpop.f32.mrf.mxu0
  %625 = vmatprep.mubr.bf16.mxu0 0
  %626 = vmatmul.mubr.bf16.gmra.mxu0 %v353
  %v627 = vpop.f32.mrf.mxu0
  %v628 = vadd.f32 %v96, %v627
  %v629 = vpop.f32.mrf.mxu0
  %v630 = vpop.f32.mrf.mxu0
  %v631 = vadd.f32 %v96, %v630
  %v632 = vpop.f32.mrf.mxu0
  %633 = vmatprep.mubr.bf16.mxu0 0
  %634 = vmatmul.mubr.bf16.gmra.mxu0 %v356
  %v635 = vpop.f32.mrf.mxu0
  %v636 = vadd.f32 %v96, %v635
  %v637 = vpop.f32.mrf.mxu0
  %v638 = vpop.f32.mrf.mxu0
  %v639 = vadd.f32 %v96, %v638
  %v640 = vpop.f32.mrf.mxu0
  %641 = vmatprep.mubr.bf16.mxu0 0
  %642 = vmatmul.mubr.bf16.gmra.mxu0 %v359
  %v643 = vpop.f32.mrf.mxu0
  %v644 = vadd.f32 %v96, %v643
  %v645 = vpop.f32.mrf.mxu0
  %v646 = vpop.f32.mrf.mxu0
  %v647 = vadd.f32 %v96, %v646
  %v648 = vpop.f32.mrf.mxu0
  %649 = vdwg.mxu0
  %v650 = vmax.f32 %v396, 0.0
  %v651 = vmax.f32 %v399, 0.0
  %v652 = vmax.f32 %v404, 0.0
  %v653 = vmax.f32 %v407, 0.0
  %v654 = vmax.f32 %v412, 0.0
  %v655 = vmax.f32 %v415, 0.0
  %v656 = vmax.f32 %v420, 0.0
  %v657 = vmax.f32 %v423, 0.0
  %v658 = vmax.f32 %v428, 0.0
  %v659 = vmax.f32 %v431, 0.0
  %v660 = vmax.f32 %v436, 0.0
  %v661 = vmax.f32 %v439, 0.0
  %v662 = vmax.f32 %v444, 0.0
  %v663 = vmax.f32 %v447, 0.0
  %v664 = vmax.f32 %v452, 0.0
  %v665 = vmax.f32 %v455, 0.0
  %v666 = vmax.f32 %v460, 0.0
  %v667 = vmax.f32 %v463, 0.0
  %v668 = vmax.f32 %v468, 0.0
  %v669 = vmax.f32 %v471, 0.0
  %v670 = vmax.f32 %v476, 0.0
  %v671 = vmax.f32 %v479, 0.0
  %v672 = vmax.f32 %v484, 0.0
  %v673 = vmax.f32 %v487, 0.0
  %v674 = vmax.f32 %v492, 0.0
  %v675 = vmax.f32 %v495, 0.0
  %v676 = vmax.f32 %v500, 0.0
  %v677 = vmax.f32 %v503, 0.0
  %v678 = vmax.f32 %v508, 0.0
  %v679 = vmax.f32 %v511, 0.0
  %v680 = vmax.f32 %v516, 0.0
  %v681 = vmax.f32 %v519, 0.0
  %v682 = vmax.f32 %v524, 0.0
  %v683 = vmax.f32 %v527, 0.0
  %v684 = vmax.f32 %v532, 0.0
  %v685 = vmax.f32 %v535, 0.0
  %v686 = vmax.f32 %v540, 0.0
  %v687 = vmax.f32 %v543, 0.0
  %v688 = vmax.f32 %v548, 0.0
  %v689 = vmax.f32 %v551, 0.0
  %v690 = vmax.f32 %v556, 0.0
  %v691 = vmax.f32 %v559, 0.0
  %v692 = vmax.f32 %v564, 0.0
  %v693 = vmax.f32 %v567, 0.0
  %v694 = vmax.f32 %v572, 0.0
  %v695 = vmax.f32 %v575, 0.0
  %v696 = vmax.f32 %v580, 0.0
  %v697 = vmax.f32 %v583, 0.0
  %v698 = vmax.f32 %v588, 0.0
  %v699 = vmax.f32 %v591, 0.0
  %v700 = vmax.f32 %v596, 0.0
  %v701 = vmax.f32 %v599, 0.0
  %v702 = vmax.f32 %v604, 0.0
  %v703 = vmax.f32 %v607, 0.0
  %v704 = vmax.f32 %v612, 0.0
  %v705 = vmax.f32 %v615, 0.0
  %v706 = vmax.f32 %v620, 0.0
  %v707 = vmax.f32 %v623, 0.0
  %v708 = vmax.f32 %v628, 0.0
  %v709 = vmax.f32 %v631, 0.0
  %v710 = vmax.f32 %v636, 0.0
  %v711 = vmax.f32 %v639, 0.0
  %v712 = vmax.f32 %v644, 0.0
  %v713 = vmax.f32 %v647, 0.0
  %v714 = vpack.c.bf16 %v651, %v650
  %v715 = vpack.c.bf16 %v653, %v652
  %v716 = vpack.c.bf16 %v655, %v654
  %v717 = vpack.c.bf16 %v657, %v656
  %v718 = vpack.c.bf16 %v659, %v658
  %v719 = vpack.c.bf16 %v661, %v660
  %v720 = vpack.c.bf16 %v663, %v662
  %v721 = vpack.c.bf16 %v665, %v664
  %v722 = vpack.c.bf16 %v667, %v666
  %v723 = vpack.c.bf16 %v669, %v668
  %v724 = vpack.c.bf16 %v671, %v670
  %v725 = vpack.c.bf16 %v673, %v672
  %v726 = vpack.c.bf16 %v675, %v674
  %v727 = vpack.c.bf16 %v677, %v676
  %v728 = vpack.c.bf16 %v679, %v678
  %v729 = vpack.c.bf16 %v681, %v680
  %v730 = vpack.c.bf16 %v683, %v682
  %v731 = vpack.c.bf16 %v685, %v684
  %v732 = vpack.c.bf16 %v687, %v686
  %v733 = vpack.c.bf16 %v689, %v688
  %v734 = vpack.c.bf16 %v691, %v690
  %v735 = vpack.c.bf16 %v693, %v692
  %v736 = vpack.c.bf16 %v695, %v694
  %v737 = vpack.c.bf16 %v697, %v696
  %v738 = vpack.c.bf16 %v699, %v698
  %v739 = vpack.c.bf16 %v701, %v700
  %v740 = vpack.c.bf16 %v703, %v702
  %v741 = vpack.c.bf16 %v705, %v704
  %v742 = vpack.c.bf16 %v707, %v706
  %v743 = vpack.c.bf16 %v709, %v708
  %v744 = vpack.c.bf16 %v711, %v710
  %v745 = vpack.c.bf16 %v713, %v712
  %v778 = vunpack.c.l.b16 %v714
  %v779 = vunpack.c.h.b16 %v714
  %v780 = vunpack.c.l.b16 %v715
  %v781 = vunpack.c.h.b16 %v715
  %v782 = vunpack.c.l.b16 %v716
  %v783 = vunpack.c.h.b16 %v716
  %v784 = vunpack.c.l.b16 %v717
  %v785 = vunpack.c.h.b16 %v717
  %v786 = vunpack.c.l.b16 %v718
  %v787 = vunpack.c.h.b16 %v718
  %v788 = vunpack.c.l.b16 %v719
  %v789 = vunpack.c.h.b16 %v719
  %v790 = vunpack.c.l.b16 %v720
  %v791 = vunpack.c.h.b16 %v720
  %v792 = vunpack.c.l.b16 %v721
  %v793 = vunpack.c.h.b16 %v721
  %v794 = vunpack.c.l.b16 %v722
  %v795 = vunpack.c.h.b16 %v722
  %v796 = vunpack.c.l.b16 %v723
  %v797 = vunpack.c.h.b16 %v723
  %v798 = vunpack.c.l.b16 %v724
  %v799 = vunpack.c.h.b16 %v724
  %v800 = vunpack.c.l.b16 %v725
  %v801 = vunpack.c.h.b16 %v725
  %v802 = vunpack.c.l.b16 %v726
  %v803 = vunpack.c.h.b16 %v726
  %v804 = vunpack.c.l.b16 %v727
  %v805 = vunpack.c.h.b16 %v727
  %v806 = vunpack.c.l.b16 %v728
  %v807 = vunpack.c.h.b16 %v728
  %v808 = vunpack.c.l.b16 %v729
  %v809 = vunpack.c.h.b16 %v729
  %v810 = vunpack.c.l.b16 %v730
  %v811 = vunpack.c.h.b16 %v730
  %v812 = vunpack.c.l.b16 %v731
  %v813 = vunpack.c.h.b16 %v731
  %v814 = vunpack.c.l.b16 %v732
  %v815 = vunpack.c.h.b16 %v732
  %v816 = vunpack.c.l.b16 %v733
  %v817 = vunpack.c.h.b16 %v733
  %v818 = vunpack.c.l.b16 %v734
  %v819 = vunpack.c.h.b16 %v734
  %v820 = vunpack.c.l.b16 %v735
  %v821 = vunpack.c.h.b16 %v735
  %v822 = vunpack.c.l.b16 %v736
  %v823 = vunpack.c.h.b16 %v736
  %v824 = vunpack.c.l.b16 %v737
  %v825 = vunpack.c.h.b16 %v737
  %v826 = vunpack.c.l.b16 %v738
  %v827 = vunpack.c.h.b16 %v738
  %v828 = vunpack.c.l.b16 %v739
  %v829 = vunpack.c.h.b16 %v739
  %v830 = vunpack.c.l.b16 %v740
  %v831 = vunpack.c.h.b16 %v740
  %v832 = vunpack.c.l.b16 %v741
  %v833 = vunpack.c.h.b16 %v741
  %v834 = vunpack.c.l.b16 %v742
  %v835 = vunpack.c.h.b16 %v742
  %v836 = vunpack.c.l.b16 %v743
  %v837 = vunpack.c.h.b16 %v743
  %v838 = vunpack.c.l.b16 %v744
  %v839 = vunpack.c.h.b16 %v744
  %v840 = vunpack.c.l.b16 %v745
  %v841 = vunpack.c.h.b16 %v745
  %v842 = vpack.c.b16 %v778, %v778
  %v843 = vpack.c.b16 %v779, %v779
  %v844 = vpack.c.b16 %v780, %v780
  %v845 = vpack.c.b16 %v781, %v781
  %v846 = vpack.c.b16 %v782, %v782
  %v847 = vpack.c.b16 %v783, %v783
  %v848 = vpack.c.b16 %v784, %v784
  %v849 = vpack.c.b16 %v785, %v785
  %v850 = vpack.c.b16 %v786, %v786
  %v851 = vpack.c.b16 %v787, %v787
  %v852 = vpack.c.b16 %v788, %v788
  %v853 = vpack.c.b16 %v789, %v789
  %v854 = vpack.c.b16 %v790, %v790
  %v855 = vpack.c.b16 %v791, %v791
  %v856 = vpack.c.b16 %v792, %v792
  %v857 = vpack.c.b16 %v793, %v793
  %v858 = vpack.c.b16 %v794, %v794
  %v859 = vpack.c.b16 %v795, %v795
  %v860 = vpack.c.b16 %v796, %v796
  %v861 = vpack.c.b16 %v797, %v797
  %v862 = vpack.c.b16 %v798, %v798
  %v863 = vpack.c.b16 %v799, %v799
  %v864 = vpack.c.b16 %v800, %v800
  %v865 = vpack.c.b16 %v801, %v801
  %v866 = vpack.c.b16 %v802, %v802
  %v867 = vpack.c.b16 %v803, %v803
  %v868 = vpack.c.b16 %v804, %v804
  %v869 = vpack.c.b16 %v805, %v805
  %v870 = vpack.c.b16 %v806, %v806
  %v871 = vpack.c.b16 %v807, %v807
  %v872 = vpack.c.b16 %v808, %v808
  %v873 = vpack.c.b16 %v809, %v809
  %v874 = vpack.c.b16 %v810, %v810
  %v875 = vpack.c.b16 %v811, %v811
  %v876 = vpack.c.b16 %v812, %v812
  %v877 = vpack.c.b16 %v813, %v813
  %v878 = vpack.c.b16 %v814, %v814
  %v879 = vpack.c.b16 %v815, %v815
  %v880 = vpack.c.b16 %v816, %v816
  %v881 = vpack.c.b16 %v817, %v817
  %v882 = vpack.c.b16 %v818, %v818
  %v883 = vpack.c.b16 %v819, %v819
  %v884 = vpack.c.b16 %v820, %v820
  %v885 = vpack.c.b16 %v821, %v821
  %v886 = vpack.c.b16 %v822, %v822
  %v887 = vpack.c.b16 %v823, %v823
  %v888 = vpack.c.b16 %v824, %v824
  %v889 = vpack.c.b16 %v825, %v825
  %v890 = vpack.c.b16 %v826, %v826
  %v891 = vpack.c.b16 %v827, %v827
  %v892 = vpack.c.b16 %v828, %v828
  %v893 = vpack.c.b16 %v829, %v829
  %v894 = vpack.c.b16 %v830, %v830
  %v895 = vpack.c.b16 %v831, %v831
  %v896 = vpack.c.b16 %v832, %v832
  %v897 = vpack.c.b16 %v833, %v833
  %v898 = vpack.c.b16 %v834, %v834
  %v899 = vpack.c.b16 %v835, %v835
  %v900 = vpack.c.b16 %v836, %v836
  %v901 = vpack.c.b16 %v837, %v837
  %v902 = vpack.c.b16 %v838, %v838
  %v903 = vpack.c.b16 %v839, %v839
  %v904 = vpack.c.b16 %v840, %v840
  %v905 = vpack.c.b16 %v841, %v841
  %vm970 = vcmask 60416
  %971 = vst.msk [vmem:[%s5] sm:$0xf] %vm970, %v842
  %972 = vst.msk [vmem:[%s5 + $0x4] sm:$0xf] %vm970, %v843
  %973 = vst.msk [vmem:[%s5 + $0x8] sm:$0xf] %vm970, %v844
  %974 = vst.msk [vmem:[%s5 + $0xc] sm:$0xf] %vm970, %v845
  %975 = vst.msk [vmem:[%s5 + $0x10] sm:$0xf] %vm970, %v846
  %976 = vst.msk [vmem:[%s5 + $0x14] sm:$0xf] %vm970, %v847
  %977 = vst.msk [vmem:[%s5 + $0x18] sm:$0xf] %vm970, %v848
  %978 = vst.msk [vmem:[%s5 + $0x1c] sm:$0xf] %vm970, %v849
  %979 = vst.msk [vmem:[%s5 + $0x20] sm:$0xf] %vm970, %v850
  %980 = vst.msk [vmem:[%s5 + $0x24] sm:$0xf] %vm970, %v851
  %981 = vst.msk [vmem:[%s5 + $0x28] sm:$0xf] %vm970, %v852
  %982 = vst.msk [vmem:[%s5 + $0x2c] sm:$0xf] %vm970, %v853
  %983 = vst.msk [vmem:[%s5 + $0x30] sm:$0xf] %vm970, %v854
  %984 = vst.msk [vmem:[%s5 + $0x34] sm:$0xf] %vm970, %v855
  %985 = vst.msk [vmem:[%s5 + $0x38] sm:$0xf] %vm970, %v856
  %986 = vst.msk [vmem:[%s5 + $0x3c] sm:$0xf] %vm970, %v857
  %987 = vst.msk [vmem:[%s5 + $0x40] sm:$0xf] %vm970, %v858
  %988 = vst.msk [vmem:[%s5 + $0x44] sm:$0xf] %vm970, %v859
  %989 = vst.msk [vmem:[%s5 + $0x48] sm:$0xf] %vm970, %v860
  %990 = vst.msk [vmem:[%s5 + $0x4c] sm:$0xf] %vm970, %v861
  %991 = vst.msk [vmem:[%s5 + $0x50] sm:$0xf] %vm970, %v862
  %992 = vst.msk [vmem:[%s5 + $0x54] sm:$0xf] %vm970, %v863
  %993 = vst.msk [vmem:[%s5 + $0x58] sm:$0xf] %vm970, %v864
  %994 = vst.msk [vmem:[%s5 + $0x5c] sm:$0xf] %vm970, %v865
  %995 = vst.msk [vmem:[%s5 + $0x60] sm:$0xf] %vm970, %v866
  %996 = vst.msk [vmem:[%s5 + $0x64] sm:$0xf] %vm970, %v867
  %997 = vst.msk [vmem:[%s5 + $0x68] sm:$0xf] %vm970, %v868
  %998 = vst.msk [vmem:[%s5 + $0x6c] sm:$0xf] %vm970, %v869
  %999 = vst.msk [vmem:[%s5 + $0x70] sm:$0xf] %vm970, %v870
  %1000 = vst.msk [vmem:[%s5 + $0x74] sm:$0xf] %vm970, %v871
  %1001 = vst.msk [vmem:[%s5 + $0x78] sm:$0xf] %vm970, %v872
  %1002 = vst.msk [vmem:[%s5 + $0x7c] sm:$0xf] %vm970, %v873
  %1003 = vst.msk [vmem:[%s5 + $0x80] sm:$0xf] %vm970, %v874
  %1004 = vst.msk [vmem:[%s5 + $0x84] sm:$0xf] %vm970, %v875
  %1005 = vst.msk [vmem:[%s5 + $0x88] sm:$0xf] %vm970, %v876
  %1006 = vst.msk [vmem:[%s5 + $0x8c] sm:$0xf] %vm970, %v877
  %1007 = vst.msk [vmem:[%s5 + $0x90] sm:$0xf] %vm970, %v878
  %1008 = vst.msk [vmem:[%s5 + $0x94] sm:$0xf] %vm970, %v879
  %1009 = vst.msk [vmem:[%s5 + $0x98] sm:$0xf] %vm970, %v880
  %1010 = vst.msk [vmem:[%s5 + $0x9c] sm:$0xf] %vm970, %v881
  %1011 = vst.msk [vmem:[%s5 + $0xa0] sm:$0xf] %vm970, %v882
  %1012 = vst.msk [vmem:[%s5 + $0xa4] sm:$0xf] %vm970, %v883
  %1013 = vst.msk [vmem:[%s5 + $0xa8] sm:$0xf] %vm970, %v884
  %1014 = vst.msk [vmem:[%s5 + $0xac] sm:$0xf] %vm970, %v885
  %1015 = vst.msk [vmem:[%s5 + $0xb0] sm:$0xf] %vm970, %v886
  %1016 = vst.msk [vmem:[%s5 + $0xb4] sm:$0xf] %vm970, %v887
  %1017 = vst.msk [vmem:[%s5 + $0xb8] sm:$0xf] %vm970, %v888
  %1018 = vst.msk [vmem:[%s5 + $0xbc] sm:$0xf] %vm970, %v889
  %1019 = vst.msk [vmem:[%s5 + $0xc0] sm:$0xf] %vm970, %v890
  %1020 = vst.msk [vmem:[%s5 + $0xc4] sm:$0xf] %vm970, %v891
  %1021 = vst.msk [vmem:[%s5 + $0xc8] sm:$0xf] %vm970, %v892
  %1022 = vst.msk [vmem:[%s5 + $0xcc] sm:$0xf] %vm970, %v893
  %1023 = vst.msk [vmem:[%s5 + $0xd0] sm:$0xf] %vm970, %v894
  %1024 = vst.msk [vmem:[%s5 + $0xd4] sm:$0xf] %vm970, %v895
  %1025 = vst.msk [vmem:[%s5 + $0xd8] sm:$0xf] %vm970, %v896
  %1026 = vst.msk [vmem:[%s5 + $0xdc] sm:$0xf] %vm970, %v897
  %1027 = vst.msk [vmem:[%s5 + $0xe0] sm:$0xf] %vm970, %v898
  %1028 = vst.msk [vmem:[%s5 + $0xe4] sm:$0xf] %vm970, %v899
  %1029 = vst.msk [vmem:[%s5 + $0xe8] sm:$0xf] %vm970, %v900
  %1030 = vst.msk [vmem:[%s5 + $0xec] sm:$0xf] %vm970, %v901
  %1031 = vst.msk [vmem:[%s5 + $0xf0] sm:$0xf] %vm970, %v902
  %1032 = vst.msk [vmem:[%s5 + $0xf4] sm:$0xf] %vm970, %v903
  %1033 = vst.msk [vmem:[%s5 + $0xf8] sm:$0xf] %vm970, %v904
  %1034 = vst.msk [vmem:[%s5 + $0xfc] sm:$0xf] %vm970, %v905
  %v1035 = vld [vmem:[%s4] sm:$0x1]
  %v1037 = vlaneseq
  %v1038 = vshrl.u32 %v1037, 7
  %v1039 = vsub.s32 0, %v1038
  %v1040 = vrot.slane %v1035, %v1039
  %v1044 = vunpack.c.l.b16 %v89
  %v1045 = vunpack.c.l.b16 %v90
  %v1046 = vpack.c.b16 %v1045, %v1044
  %1048 = vmatprep.subr.bf16.mxu0 0
  %1049 = vmatpush1.bf16.msra.mxu0 0
  %1050 = vmatprep.subr.bf16.mxu0 0
  %1051 = vmatpush1.bf16.msra.mxu0 0
  %1052 = vmatprep.subr.bf16.mxu0 0
  %1053 = vmatpush1.bf16.msra.mxu0 0
  %1054 = vmatprep.subr.bf16.mxu0 0
  %1055 = vmatpush1.bf16.msra.mxu0 0
  %1056 = vmatprep.subr.bf16.mxu0 0
  %1057 = vmatpush1.bf16.msra.mxu0 0
  %1058 = vmatprep.subr.bf16.mxu0 0
  %1059 = vmatpush1.bf16.msra.mxu0 0
  %1060 = vmatprep.subr.bf16.mxu0 0
  %1061 = vmatpush1.bf16.msra.mxu0 0
  %1062 = vmatprep.subr.bf16.mxu0 0
  %1063 = vmatpush1.bf16.msra.mxu0 %v1046
  %1064 = vmatprep.subr.bf16.mxu0 0
  %1065 = vmatpush2.bf16.msra.mxu0 0
  %1066 = vmatprep.subr.bf16.mxu0 0
  %1067 = vmatpush2.bf16.msra.mxu0 0
  %1068 = vmatprep.subr.bf16.mxu0 0
  %1069 = vmatpush2.bf16.msra.mxu0 0
  %1070 = vmatprep.subr.bf16.mxu0 0
  %1071 = vmatpush2.bf16.msra.mxu0 0
  %1072 = vmatprep.subr.bf16.mxu0 0
  %1073 = vmatpush2.bf16.msra.mxu0 0
  %1074 = vmatprep.subr.bf16.mxu0 0
  %1075 = vmatpush2.bf16.msra.mxu0 0
  %1076 = vmatprep.subr.bf16.mxu0 0
  %1077 = vmatpush2.bf16.msra.mxu0 0
  %1078 = vmatprep.subr.bf16.mxu0 0
  %1079 = vmatpush2.bf16.msra.mxu0 0
  %1080 = vmatprep.mubr.bf16.mxu0 0
  %1081 = vmatmul.mubr.bf16.gmra.mxu0 %v266
  %v1082 = vpop.f32.mrf.mxu0
  %v1083 = vadd.f32 %v1040, %v1082
  %v1084 = vpop.f32.mrf.mxu0
  %v1085 = vpop.f32.mrf.mxu0
  %v1086 = vadd.f32 %v1040, %v1085
  %v1087 = vpop.f32.mrf.mxu0
  %1088 = vmatprep.mubr.bf16.mxu0 0
  %1089 = vmatmul.mubr.bf16.gmra.mxu0 %v269
  %v1090 = vpop.f32.mrf.mxu0
  %v1091 = vadd.f32 %v1040, %v1090
  %v1092 = vpop.f32.mrf.mxu0
  %v1093 = vpop.f32.mrf.mxu0
  %v1094 = vadd.f32 %v1040, %v1093
  %v1095 = vpop.f32.mrf.mxu0
  %1096 = vmatprep.mubr.bf16.mxu0 0
  %1097 = vmatmul.mubr.bf16.gmra.mxu0 %v272
  %v1098 = vpop.f32.mrf.mxu0
  %v1099 = vadd.f32 %v1040, %v1098
  %v1100 = vpop.f32.mrf.mxu0
  %v1101 = vpop.f32.mrf.mxu0
  %v1102 = vadd.f32 %v1040, %v1101
  %v1103 = vpop.f32.mrf.mxu0
  %1104 = vmatprep.mubr.bf16.mxu0 0
  %1105 = vmatmul.mubr.bf16.gmra.mxu0 %v275
  %v1106 = vpop.f32.mrf.mxu0
  %v1107 = vadd.f32 %v1040, %v1106
  %v1108 = vpop.f32.mrf.mxu0
  %v1109 = vpop.f32.mrf.mxu0
  %v1110 = vadd.f32 %v1040, %v1109
  %v1111 = vpop.f32.mrf.mxu0
  %1112 = vmatprep.mubr.bf16.mxu0 0
  %1113 = vmatmul.mubr.bf16.gmra.mxu0 %v278
  %v1114 = vpop.f32.mrf.mxu0
  %v1115 = vadd.f32 %v1040, %v1114
  %v1116 = vpop.f32.mrf.mxu0
  %v1117 = vpop.f32.mrf.mxu0
  %v1118 = vadd.f32 %v1040, %v1117
  %v1119 = vpop.f32.mrf.mxu0
  %1120 = vmatprep.mubr.bf16.mxu0 0
  %1121 = vmatmul.mubr.bf16.gmra.mxu0 %v281
  %v1122 = vpop.f32.mrf.mxu0
  %v1123 = vadd.f32 %v1040, %v1122
  %v1124 = vpop.f32.mrf.mxu0
  %v1125 = vpop.f32.mrf.mxu0
  %v1126 = vadd.f32 %v1040, %v1125
  %v1127 = vpop.f32.mrf.mxu0
  %1128 = vmatprep.mubr.bf16.mxu0 0
  %1129 = vmatmul.mubr.bf16.gmra.mxu0 %v284
  %v1130 = vpop.f32.mrf.mxu0
  %v1131 = vadd.f32 %v1040, %v1130
  %v1132 = vpop.f32.mrf.mxu0
  %v1133 = vpop.f32.mrf.mxu0
  %v1134 = vadd.f32 %v1040, %v1133
  %v1135 = vpop.f32.mrf.mxu0
  %1136 = vmatprep.mubr.bf16.mxu0 0
  %1137 = vmatmul.mubr.bf16.gmra.mxu0 %v287
  %v1138 = vpop.f32.mrf.mxu0
  %v1139 = vadd.f32 %v1040, %v1138
  %v1140 = vpop.f32.mrf.mxu0
  %v1141 = vpop.f32.mrf.mxu0
  %v1142 = vadd.f32 %v1040, %v1141
  %v1143 = vpop.f32.mrf.mxu0
  %1144 = vmatprep.mubr.bf16.mxu0 0
  %1145 = vmatmul.mubr.bf16.gmra.mxu0 %v290
  %v1146 = vpop.f32.mrf.mxu0
  %v1147 = vadd.f32 %v1040, %v1146
  %v1148 = vpop.f32.mrf.mxu0
  %v1149 = vpop.f32.mrf.mxu0
  %v1150 = vadd.f32 %v1040, %v1149
  %v1151 = vpop.f32.mrf.mxu0
  %1152 = vmatprep.mubr.bf16.mxu0 0
  %1153 = vmatmul.mubr.bf16.gmra.mxu0 %v293
  %v1154 = vpop.f32.mrf.mxu0
  %v1155 = vadd.f32 %v1040, %v1154
  %v1156 = vpop.f32.mrf.mxu0
  %v1157 = vpop.f32.mrf.mxu0
  %v1158 = vadd.f32 %v1040, %v1157
  %v1159 = vpop.f32.mrf.mxu0
  %1160 = vmatprep.mubr.bf16.mxu0 0
  %1161 = vmatmul.mubr.bf16.gmra.mxu0 %v296
  %v1162 = vpop.f32.mrf.mxu0
  %v1163 = vadd.f32 %v1040, %v1162
  %v1164 = vpop.f32.mrf.mxu0
  %v1165 = vpop.f32.mrf.mxu0
  %v1166 = vadd.f32 %v1040, %v1165
  %v1167 = vpop.f32.mrf.mxu0
  %1168 = vmatprep.mubr.bf16.mxu0 0
  %1169 = vmatmul.mubr.bf16.gmra.mxu0 %v299
  %v1170 = vpop.f32.mrf.mxu0
  %v1171 = vadd.f32 %v1040, %v1170
  %v1172 = vpop.f32.mrf.mxu0
  %v1173 = vpop.f32.mrf.mxu0
  %v1174 = vadd.f32 %v1040, %v1173
  %v1175 = vpop.f32.mrf.mxu0
  %1176 = vmatprep.mubr.bf16.mxu0 0
  %1177 = vmatmul.mubr.bf16.gmra.mxu0 %v302
  %v1178 = vpop.f32.mrf.mxu0
  %v1179 = vadd.f32 %v1040, %v1178
  %v1180 = vpop.f32.mrf.mxu0
  %v1181 = vpop.f32.mrf.mxu0
  %v1182 = vadd.f32 %v1040, %v1181
  %v1183 = vpop.f32.mrf.mxu0
  %1184 = vmatprep.mubr.bf16.mxu0 0
  %1185 = vmatmul.mubr.bf16.gmra.mxu0 %v305
  %v1186 = vpop.f32.mrf.mxu0
  %v1187 = vadd.f32 %v1040, %v1186
  %v1188 = vpop.f32.mrf.mxu0
  %v1189 = vpop.f32.mrf.mxu0
  %v1190 = vadd.f32 %v1040, %v1189
  %v1191 = vpop.f32.mrf.mxu0
  %1192 = vmatprep.mubr.bf16.mxu0 0
  %1193 = vmatmul.mubr.bf16.gmra.mxu0 %v308
  %v1194 = vpop.f32.mrf.mxu0
  %v1195 = vadd.f32 %v1040, %v1194
  %v1196 = vpop.f32.mrf.mxu0
  %v1197 = vpop.f32.mrf.mxu0
  %v1198 = vadd.f32 %v1040, %v1197
  %v1199 = vpop.f32.mrf.mxu0
  %1200 = vmatprep.mubr.bf16.mxu0 0
  %1201 = vmatmul.mubr.bf16.gmra.mxu0 %v311
  %v1202 = vpop.f32.mrf.mxu0
  %v1203 = vadd.f32 %v1040, %v1202
  %v1204 = vpop.f32.mrf.mxu0
  %v1205 = vpop.f32.mrf.mxu0
  %v1206 = vadd.f32 %v1040, %v1205
  %v1207 = vpop.f32.mrf.mxu0
  %1208 = vmatprep.mubr.bf16.mxu0 0
  %1209 = vmatmul.mubr.bf16.gmra.mxu0 %v314
  %v1210 = vpop.f32.mrf.mxu0
  %v1211 = vadd.f32 %v1040, %v1210
  %v1212 = vpop.f32.mrf.mxu0
  %v1213 = vpop.f32.mrf.mxu0
  %v1214 = vadd.f32 %v1040, %v1213
  %v1215 = vpop.f32.mrf.mxu0
  %1216 = vmatprep.mubr.bf16.mxu0 0
  %1217 = vmatmul.mubr.bf16.gmra.mxu0 %v317
  %v1218 = vpop.f32.mrf.mxu0
  %v1219 = vadd.f32 %v1040, %v1218
  %v1220 = vpop.f32.mrf.mxu0
  %v1221 = vpop.f32.mrf.mxu0
  %v1222 = vadd.f32 %v1040, %v1221
  %v1223 = vpop.f32.mrf.mxu0
  %1224 = vmatprep.mubr.bf16.mxu0 0
  %1225 = vmatmul.mubr.bf16.gmra.mxu0 %v320
  %v1226 = vpop.f32.mrf.mxu0
  %v1227 = vadd.f32 %v1040, %v1226
  %v1228 = vpop.f32.mrf.mxu0
  %v1229 = vpop.f32.mrf.mxu0
  %v1230 = vadd.f32 %v1040, %v1229
  %v1231 = vpop.f32.mrf.mxu0
  %1232 = vmatprep.mubr.bf16.mxu0 0
  %1233 = vmatmul.mubr.bf16.gmra.mxu0 %v323
  %v1234 = vpop.f32.mrf.mxu0
  %v1235 = vadd.f32 %v1040, %v1234
  %v1236 = vpop.f32.mrf.mxu0
  %v1237 = vpop.f32.mrf.mxu0
  %v1238 = vadd.f32 %v1040, %v1237
  %v1239 = vpop.f32.mrf.mxu0
  %1240 = vmatprep.mubr.bf16.mxu0 0
  %1241 = vmatmul.mubr.bf16.gmra.mxu0 %v326
  %v1242 = vpop.f32.mrf.mxu0
  %v1243 = vadd.f32 %v1040, %v1242
  %v1244 = vpop.f32.mrf.mxu0
  %v1245 = vpop.f32.mrf.mxu0
  %v1246 = vadd.f32 %v1040, %v1245
  %v1247 = vpop.f32.mrf.mxu0
  %1248 = vmatprep.mubr.bf16.mxu0 0
  %1249 = vmatmul.mubr.bf16.gmra.mxu0 %v329
  %v1250 = vpop.f32.mrf.mxu0
  %v1251 = vadd.f32 %v1040, %v1250
  %v1252 = vpop.f32.mrf.mxu0
  %v1253 = vpop.f32.mrf.mxu0
  %v1254 = vadd.f32 %v1040, %v1253
  %v1255 = vpop.f32.mrf.mxu0
  %1256 = vmatprep.mubr.bf16.mxu0 0
  %1257 = vmatmul.mubr.bf16.gmra.mxu0 %v332
  %v1258 = vpop.f32.mrf.mxu0
  %v1259 = vadd.f32 %v1040, %v1258
  %v1260 = vpop.f32.mrf.mxu0
  %v1261 = vpop.f32.mrf.mxu0
  %v1262 = vadd.f32 %v1040, %v1261
  %v1263 = vpop.f32.mrf.mxu0
  %1264 = vmatprep.mubr.bf16.mxu0 0
  %1265 = vmatmul.mubr.bf16.gmra.mxu0 %v335
  %v1266 = vpop.f32.mrf.mxu0
  %v1267 = vadd.f32 %v1040, %v1266
  %v1268 = vpop.f32.mrf.mxu0
  %v1269 = vpop.f32.mrf.mxu0
  %v1270 = vadd.f32 %v1040, %v1269
  %v1271 = vpop.f32.mrf.mxu0
  %1272 = vmatprep.mubr.bf16.mxu0 0
  %1273 = vmatmul.mubr.bf16.gmra.mxu0 %v338
  %v1274 = vpop.f32.mrf.mxu0
  %v1275 = vadd.f32 %v1040, %v1274
  %v1276 = vpop.f32.mrf.mxu0
  %v1277 = vpop.f32.mrf.mxu0
  %v1278 = vadd.f32 %v1040, %v1277
  %v1279 = vpop.f32.mrf.mxu0
  %1280 = vmatprep.mubr.bf16.mxu0 0
  %1281 = vmatmul.mubr.bf16.gmra.mxu0 %v341
  %v1282 = vpop.f32.mrf.mxu0
  %v1283 = vadd.f32 %v1040, %v1282
  %v1284 = vpop.f32.mrf.mxu0
  %v1285 = vpop.f32.mrf.mxu0
  %v1286 = vadd.f32 %v1040, %v1285
  %v1287 = vpop.f32.mrf.mxu0
  %1288 = vmatprep.mubr.bf16.mxu0 0
  %1289 = vmatmul.mubr.bf16.gmra.mxu0 %v344
  %v1290 = vpop.f32.mrf.mxu0
  %v1291 = vadd.f32 %v1040, %v1290
  %v1292 = vpop.f32.mrf.mxu0
  %v1293 = vpop.f32.mrf.mxu0
  %v1294 = vadd.f32 %v1040, %v1293
  %v1295 = vpop.f32.mrf.mxu0
  %1296 = vmatprep.mubr.bf16.mxu0 0
  %1297 = vmatmul.mubr.bf16.gmra.mxu0 %v347
  %v1298 = vpop.f32.mrf.mxu0
  %v1299 = vadd.f32 %v1040, %v1298
  %v1300 = vpop.f32.mrf.mxu0
  %v1301 = vpop.f32.mrf.mxu0
  %v1302 = vadd.f32 %v1040, %v1301
  %v1303 = vpop.f32.mrf.mxu0
  %1304 = vmatprep.mubr.bf16.mxu0 0
  %1305 = vmatmul.mubr.bf16.gmra.mxu0 %v350
  %v1306 = vpop.f32.mrf.mxu0
  %v1307 = vadd.f32 %v1040, %v1306
  %v1308 = vpop.f32.mrf.mxu0
  %v1309 = vpop.f32.mrf.mxu0
  %v1310 = vadd.f32 %v1040, %v1309
  %v1311 = vpop.f32.mrf.mxu0
  %1312 = vmatprep.mubr.bf16.mxu0 0
  %1313 = vmatmul.mubr.bf16.gmra.mxu0 %v353
  %v1314 = vpop.f32.mrf.mxu0
  %v1315 = vadd.f32 %v1040, %v1314
  %v1316 = vpop.f32.mrf.mxu0
  %v1317 = vpop.f32.mrf.mxu0
  %v1318 = vadd.f32 %v1040, %v1317
  %v1319 = vpop.f32.mrf.mxu0
  %1320 = vmatprep.mubr.bf16.mxu0 0
  %1321 = vmatmul.mubr.bf16.gmra.mxu0 %v356
  %v1322 = vpop.f32.mrf.mxu0
  %v1323 = vadd.f32 %v1040, %v1322
  %v1324 = vpop.f32.mrf.mxu0
  %v1325 = vpop.f32.mrf.mxu0
  %v1326 = vadd.f32 %v1040, %v1325
  %v1327 = vpop.f32.mrf.mxu0
  %1328 = vmatprep.mubr.bf16.mxu0 0
  %1329 = vmatmul.mubr.bf16.gmra.mxu0 %v359
  %v1330 = vpop.f32.mrf.mxu0
  %v1331 = vadd.f32 %v1040, %v1330
  %v1332 = vpop.f32.mrf.mxu0
  %v1333 = vpop.f32.mrf.mxu0
  %v1334 = vadd.f32 %v1040, %v1333
  %v1335 = vpop.f32.mrf.mxu0
  %1336 = vdwg.mxu0
  %v1337 = vmax.f32 %v1083, 0.0
  %v1338 = vmax.f32 %v1086, 0.0
  %v1339 = vmax.f32 %v1091, 0.0
  %v1340 = vmax.f32 %v1094, 0.0
  %v1341 = vmax.f32 %v1099, 0.0
  %v1342 = vmax.f32 %v1102, 0.0
  %v1343 = vmax.f32 %v1107, 0.0
  %v1344 = vmax.f32 %v1110, 0.0
  %v1345 = vmax.f32 %v1115, 0.0
  %v1346 = vmax.f32 %v1118, 0.0
  %v1347 = vmax.f32 %v1123, 0.0
  %v1348 = vmax.f32 %v1126, 0.0
  %v1349 = vmax.f32 %v1131, 0.0
  %v1350 = vmax.f32 %v1134, 0.0
  %v1351 = vmax.f32 %v1139, 0.0
  %v1352 = vmax.f32 %v1142, 0.0
  %v1353 = vmax.f32 %v1147, 0.0
  %v1354 = vmax.f32 %v1150, 0.0
  %v1355 = vmax.f32 %v1155, 0.0
  %v1356 = vmax.f32 %v1158, 0.0
  %v1357 = vmax.f32 %v1163, 0.0
  %v1358 = vmax.f32 %v1166, 0.0
  %v1359 = vmax.f32 %v1171, 0.0
  %v1360 = vmax.f32 %v1174, 0.0
  %v1361 = vmax.f32 %v1179, 0.0
  %v1362 = vmax.f32 %v1182, 0.0
  %v1363 = vmax.f32 %v1187, 0.0
  %v1364 = vmax.f32 %v1190, 0.0
  %v1365 = vmax.f32 %v1195, 0.0
  %v1366 = vmax.f32 %v1198, 0.0
  %v1367 = vmax.f32 %v1203, 0.0
  %v1368 = vmax.f32 %v1206, 0.0
  %v1369 = vmax.f32 %v1211, 0.0
  %v1370 = vmax.f32 %v1214, 0.0
  %v1371 = vmax.f32 %v1219, 0.0
  %v1372 = vmax.f32 %v1222, 0.0
  %v1373 = vmax.f32 %v1227, 0.0
  %v1374 = vmax.f32 %v1230, 0.0
  %v1375 = vmax.f32 %v1235, 0.0
  %v1376 = vmax.f32 %v1238, 0.0
  %v1377 = vmax.f32 %v1243, 0.0
  %v1378 = vmax.f32 %v1246, 0.0
  %v1379 = vmax.f32 %v1251, 0.0
  %v1380 = vmax.f32 %v1254, 0.0
  %v1381 = vmax.f32 %v1259, 0.0
  %v1382 = vmax.f32 %v1262, 0.0
  %v1383 = vmax.f32 %v1267, 0.0
  %v1384 = vmax.f32 %v1270, 0.0
  %v1385 = vmax.f32 %v1275, 0.0
  %v1386 = vmax.f32 %v1278, 0.0
  %v1387 = vmax.f32 %v1283, 0.0
  %v1388 = vmax.f32 %v1286, 0.0
  %v1389 = vmax.f32 %v1291, 0.0
  %v1390 = vmax.f32 %v1294, 0.0
  %v1391 = vmax.f32 %v1299, 0.0
  %v1392 = vmax.f32 %v1302, 0.0
  %v1393 = vmax.f32 %v1307, 0.0
  %v1394 = vmax.f32 %v1310, 0.0
  %v1395 = vmax.f32 %v1315, 0.0
  %v1396 = vmax.f32 %v1318, 0.0
  %v1397 = vmax.f32 %v1323, 0.0
  %v1398 = vmax.f32 %v1326, 0.0
  %v1399 = vmax.f32 %v1331, 0.0
  %v1400 = vmax.f32 %v1334, 0.0
  %v1401 = vpack.c.bf16 %v1338, %v1337
  %v1402 = vpack.c.bf16 %v1340, %v1339
  %v1403 = vpack.c.bf16 %v1342, %v1341
  %v1404 = vpack.c.bf16 %v1344, %v1343
  %v1405 = vpack.c.bf16 %v1346, %v1345
  %v1406 = vpack.c.bf16 %v1348, %v1347
  %v1407 = vpack.c.bf16 %v1350, %v1349
  %v1408 = vpack.c.bf16 %v1352, %v1351
  %v1409 = vpack.c.bf16 %v1354, %v1353
  %v1410 = vpack.c.bf16 %v1356, %v1355
  %v1411 = vpack.c.bf16 %v1358, %v1357
  %v1412 = vpack.c.bf16 %v1360, %v1359
  %v1413 = vpack.c.bf16 %v1362, %v1361
  %v1414 = vpack.c.bf16 %v1364, %v1363
  %v1415 = vpack.c.bf16 %v1366, %v1365
  %v1416 = vpack.c.bf16 %v1368, %v1367
  %v1417 = vpack.c.bf16 %v1370, %v1369
  %v1418 = vpack.c.bf16 %v1372, %v1371
  %v1419 = vpack.c.bf16 %v1374, %v1373
  %v1420 = vpack.c.bf16 %v1376, %v1375
  %v1421 = vpack.c.bf16 %v1378, %v1377
  %v1422 = vpack.c.bf16 %v1380, %v1379
  %v1423 = vpack.c.bf16 %v1382, %v1381
  %v1424 = vpack.c.bf16 %v1384, %v1383
  %v1425 = vpack.c.bf16 %v1386, %v1385
  %v1426 = vpack.c.bf16 %v1388, %v1387
  %v1427 = vpack.c.bf16 %v1390, %v1389
  %v1428 = vpack.c.bf16 %v1392, %v1391
  %v1429 = vpack.c.bf16 %v1394, %v1393
  %v1430 = vpack.c.bf16 %v1396, %v1395
  %v1431 = vpack.c.bf16 %v1398, %v1397
  %v1432 = vpack.c.bf16 %v1400, %v1399
  %v1465 = vunpack.c.l.b16 %v1401
  %v1466 = vunpack.c.h.b16 %v1401
  %v1467 = vunpack.c.l.b16 %v1402
  %v1468 = vunpack.c.h.b16 %v1402
  %v1469 = vunpack.c.l.b16 %v1403
  %v1470 = vunpack.c.h.b16 %v1403
  %v1471 = vunpack.c.l.b16 %v1404
  %v1472 = vunpack.c.h.b16 %v1404
  %v1473 = vunpack.c.l.b16 %v1405
  %v1474 = vunpack.c.h.b16 %v1405
  %v1475 = vunpack.c.l.b16 %v1406
  %v1476 = vunpack.c.h.b16 %v1406
  %v1477 = vunpack.c.l.b16 %v1407
  %v1478 = vunpack.c.h.b16 %v1407
  %v1479 = vunpack.c.l.b16 %v1408
  %v1480 = vunpack.c.h.b16 %v1408
  %v1481 = vunpack.c.l.b16 %v1409
  %v1482 = vunpack.c.h.b16 %v1409
  %v1483 = vunpack.c.l.b16 %v1410
  %v1484 = vunpack.c.h.b16 %v1410
  %v1485 = vunpack.c.l.b16 %v1411
  %v1486 = vunpack.c.h.b16 %v1411
  %v1487 = vunpack.c.l.b16 %v1412
  %v1488 = vunpack.c.h.b16 %v1412
  %v1489 = vunpack.c.l.b16 %v1413
  %v1490 = vunpack.c.h.b16 %v1413
  %v1491 = vunpack.c.l.b16 %v1414
  %v1492 = vunpack.c.h.b16 %v1414
  %v1493 = vunpack.c.l.b16 %v1415
  %v1494 = vunpack.c.h.b16 %v1415
  %v1495 = vunpack.c.l.b16 %v1416
  %v1496 = vunpack.c.h.b16 %v1416
  %v1497 = vunpack.c.l.b16 %v1417
  %v1498 = vunpack.c.h.b16 %v1417
  %v1499 = vunpack.c.l.b16 %v1418
  %v1500 = vunpack.c.h.b16 %v1418
  %v1501 = vunpack.c.l.b16 %v1419
  %v1502 = vunpack.c.h.b16 %v1419
  %v1503 = vunpack.c.l.b16 %v1420
  %v1504 = vunpack.c.h.b16 %v1420
  %v1505 = vunpack.c.l.b16 %v1421
  %v1506 = vunpack.c.h.b16 %v1421
  %v1507 = vunpack.c.l.b16 %v1422
  %v1508 = vunpack.c.h.b16 %v1422
  %v1509 = vunpack.c.l.b16 %v1423
  %v1510 = vunpack.c.h.b16 %v1423
  %v1511 = vunpack.c.l.b16 %v1424
  %v1512 = vunpack.c.h.b16 %v1424
  %v1513 = vunpack.c.l.b16 %v1425
  %v1514 = vunpack.c.h.b16 %v1425
  %v1515 = vunpack.c.l.b16 %v1426
  %v1516 = vunpack.c.h.b16 %v1426
  %v1517 = vunpack.c.l.b16 %v1427
  %v1518 = vunpack.c.h.b16 %v1427
  %v1519 = vunpack.c.l.b16 %v1428
  %v1520 = vunpack.c.h.b16 %v1428
  %v1521 = vunpack.c.l.b16 %v1429
  %v1522 = vunpack.c.h.b16 %v1429
  %v1523 = vunpack.c.l.b16 %v1430
  %v1524 = vunpack.c.h.b16 %v1430
  %v1525 = vunpack.c.l.b16 %v1431
  %v1526 = vunpack.c.h.b16 %v1431
  %v1527 = vunpack.c.l.b16 %v1432
  %v1528 = vunpack.c.h.b16 %v1432
  %v1529 = vpack.c.b16 %v1465, %v1465
  %v1530 = vpack.c.b16 %v1466, %v1466
  %v1531 = vpack.c.b16 %v1467, %v1467
  %v1532 = vpack.c.b16 %v1468, %v1468
  %v1533 = vpack.c.b16 %v1469, %v1469
  %v1534 = vpack.c.b16 %v1470, %v1470
  %v1535 = vpack.c.b16 %v1471, %v1471
  %v1536 = vpack.c.b16 %v1472, %v1472
  %v1537 = vpack.c.b16 %v1473, %v1473
  %v1538 = vpack.c.b16 %v1474, %v1474
  %v1539 = vpack.c.b16 %v1475, %v1475
  %v1540 = vpack.c.b16 %v1476, %v1476
  %v1541 = vpack.c.b16 %v1477, %v1477
  %v1542 = vpack.c.b16 %v1478, %v1478
  %v1543 = vpack.c.b16 %v1479, %v1479
  %v1544 = vpack.c.b16 %v1480, %v1480
  %v1545 = vpack.c.b16 %v1481, %v1481
  %v1546 = vpack.c.b16 %v1482, %v1482
  %v1547 = vpack.c.b16 %v1483, %v1483
  %v1548 = vpack.c.b16 %v1484, %v1484
  %v1549 = vpack.c.b16 %v1485, %v1485
  %v1550 = vpack.c.b16 %v1486, %v1486
  %v1551 = vpack.c.b16 %v1487, %v1487
  %v1552 = vpack.c.b16 %v1488, %v1488
  %v1553 = vpack.c.b16 %v1489, %v1489
  %v1554 = vpack.c.b16 %v1490, %v1490
  %v1555 = vpack.c.b16 %v1491, %v1491
  %v1556 = vpack.c.b16 %v1492, %v1492
  %v1557 = vpack.c.b16 %v1493, %v1493
  %v1558 = vpack.c.b16 %v1494, %v1494
  %v1559 = vpack.c.b16 %v1495, %v1495
  %v1560 = vpack.c.b16 %v1496, %v1496
  %v1561 = vpack.c.b16 %v1497, %v1497
  %v1562 = vpack.c.b16 %v1498, %v1498
  %v1563 = vpack.c.b16 %v1499, %v1499
  %v1564 = vpack.c.b16 %v1500, %v1500
  %v1565 = vpack.c.b16 %v1501, %v1501
  %v1566 = vpack.c.b16 %v1502, %v1502
  %v1567 = vpack.c.b16 %v1503, %v1503
  %v1568 = vpack.c.b16 %v1504, %v1504
  %v1569 = vpack.c.b16 %v1505, %v1505
  %v1570 = vpack.c.b16 %v1506, %v1506
  %v1571 = vpack.c.b16 %v1507, %v1507
  %v1572 = vpack.c.b16 %v1508, %v1508
  %v1573 = vpack.c.b16 %v1509, %v1509
  %v1574 = vpack.c.b16 %v1510, %v1510
  %v1575 = vpack.c.b16 %v1511, %v1511
  %v1576 = vpack.c.b16 %v1512, %v1512
  %v1577 = vpack.c.b16 %v1513, %v1513
  %v1578 = vpack.c.b16 %v1514, %v1514
  %v1579 = vpack.c.b16 %v1515, %v1515
  %v1580 = vpack.c.b16 %v1516, %v1516
  %v1581 = vpack.c.b16 %v1517, %v1517
  %v1582 = vpack.c.b16 %v1518, %v1518
  %v1583 = vpack.c.b16 %v1519, %v1519
  %v1584 = vpack.c.b16 %v1520, %v1520
  %v1585 = vpack.c.b16 %v1521, %v1521
  %v1586 = vpack.c.b16 %v1522, %v1522
  %v1587 = vpack.c.b16 %v1523, %v1523
  %v1588 = vpack.c.b16 %v1524, %v1524
  %v1589 = vpack.c.b16 %v1525, %v1525
  %v1590 = vpack.c.b16 %v1526, %v1526
  %v1591 = vpack.c.b16 %v1527, %v1527
  %v1592 = vpack.c.b16 %v1528, %v1528
  %1657 = vst.msk [vmem:[%s6] sm:$0xf] %vm970, %v1529
  %1658 = vst.msk [vmem:[%s6 + $0x4] sm:$0xf] %vm970, %v1530
  %1659 = vst.msk [vmem:[%s6 + $0x8] sm:$0xf] %vm970, %v1531
  %1660 = vst.msk [vmem:[%s6 + $0xc] sm:$0xf] %vm970, %v1532
  %1661 = vst.msk [vmem:[%s6 + $0x10] sm:$0xf] %vm970, %v1533
  %1662 = vst.msk [vmem:[%s6 + $0x14] sm:$0xf] %vm970, %v1534
  %1663 = vst.msk [vmem:[%s6 + $0x18] sm:$0xf] %vm970, %v1535
  %1664 = vst.msk [vmem:[%s6 + $0x1c] sm:$0xf] %vm970, %v1536
  %1665 = vst.msk [vmem:[%s6 + $0x20] sm:$0xf] %vm970, %v1537
  %1666 = vst.msk [vmem:[%s6 + $0x24] sm:$0xf] %vm970, %v1538
  %1667 = vst.msk [vmem:[%s6 + $0x28] sm:$0xf] %vm970, %v1539
  %1668 = vst.msk [vmem:[%s6 + $0x2c] sm:$0xf] %vm970, %v1540
  %1669 = vst.msk [vmem:[%s6 + $0x30] sm:$0xf] %vm970, %v1541
  %1670 = vst.msk [vmem:[%s6 + $0x34] sm:$0xf] %vm970, %v1542
  %1671 = vst.msk [vmem:[%s6 + $0x38] sm:$0xf] %vm970, %v1543
  %1672 = vst.msk [vmem:[%s6 + $0x3c] sm:$0xf] %vm970, %v1544
  %1673 = vst.msk [vmem:[%s6 + $0x40] sm:$0xf] %vm970, %v1545
  %1674 = vst.msk [vmem:[%s6 + $0x44] sm:$0xf] %vm970, %v1546
  %1675 = vst.msk [vmem:[%s6 + $0x48] sm:$0xf] %vm970, %v1547
  %1676 = vst.msk [vmem:[%s6 + $0x4c] sm:$0xf] %vm970, %v1548
  %1677 = vst.msk [vmem:[%s6 + $0x50] sm:$0xf] %vm970, %v1549
  %1678 = vst.msk [vmem:[%s6 + $0x54] sm:$0xf] %vm970, %v1550
  %1679 = vst.msk [vmem:[%s6 + $0x58] sm:$0xf] %vm970, %v1551
  %1680 = vst.msk [vmem:[%s6 + $0x5c] sm:$0xf] %vm970, %v1552
  %1681 = vst.msk [vmem:[%s6 + $0x60] sm:$0xf] %vm970, %v1553
  %1682 = vst.msk [vmem:[%s6 + $0x64] sm:$0xf] %vm970, %v1554
  %1683 = vst.msk [vmem:[%s6 + $0x68] sm:$0xf] %vm970, %v1555
  %1684 = vst.msk [vmem:[%s6 + $0x6c] sm:$0xf] %vm970, %v1556
  %1685 = vst.msk [vmem:[%s6 + $0x70] sm:$0xf] %vm970, %v1557
  %1686 = vst.msk [vmem:[%s6 + $0x74] sm:$0xf] %vm970, %v1558
  %1687 = vst.msk [vmem:[%s6 + $0x78] sm:$0xf] %vm970, %v1559
  %1688 = vst.msk [vmem:[%s6 + $0x7c] sm:$0xf] %vm970, %v1560
  %1689 = vst.msk [vmem:[%s6 + $0x80] sm:$0xf] %vm970, %v1561
  %1690 = vst.msk [vmem:[%s6 + $0x84] sm:$0xf] %vm970, %v1562
  %1691 = vst.msk [vmem:[%s6 + $0x88] sm:$0xf] %vm970, %v1563
  %1692 = vst.msk [vmem:[%s6 + $0x8c] sm:$0xf] %vm970, %v1564
  %1693 = vst.msk [vmem:[%s6 + $0x90] sm:$0xf] %vm970, %v1565
  %1694 = vst.msk [vmem:[%s6 + $0x94] sm:$0xf] %vm970, %v1566
  %1695 = vst.msk [vmem:[%s6 + $0x98] sm:$0xf] %vm970, %v1567
  %1696 = vst.msk [vmem:[%s6 + $0x9c] sm:$0xf] %vm970, %v1568
  %1697 = vst.msk [vmem:[%s6 + $0xa0] sm:$0xf] %vm970, %v1569
  %1698 = vst.msk [vmem:[%s6 + $0xa4] sm:$0xf] %vm970, %v1570
  %1699 = vst.msk [vmem:[%s6 + $0xa8] sm:$0xf] %vm970, %v1571
  %1700 = vst.msk [vmem:[%s6 + $0xac] sm:$0xf] %vm970, %v1572
  %1701 = vst.msk [vmem:[%s6 + $0xb0] sm:$0xf] %vm970, %v1573
  %1702 = vst.msk [vmem:[%s6 + $0xb4] sm:$0xf] %vm970, %v1574
  %1703 = vst.msk [vmem:[%s6 + $0xb8] sm:$0xf] %vm970, %v1575
  %1704 = vst.msk [vmem:[%s6 + $0xbc] sm:$0xf] %vm970, %v1576
  %1705 = vst.msk [vmem:[%s6 + $0xc0] sm:$0xf] %vm970, %v1577
  %1706 = vst.msk [vmem:[%s6 + $0xc4] sm:$0xf] %vm970, %v1578
  %1707 = vst.msk [vmem:[%s6 + $0xc8] sm:$0xf] %vm970, %v1579
  %1708 = vst.msk [vmem:[%s6 + $0xcc] sm:$0xf] %vm970, %v1580
  %1709 = vst.msk [vmem:[%s6 + $0xd0] sm:$0xf] %vm970, %v1581
  %1710 = vst.msk [vmem:[%s6 + $0xd4] sm:$0xf] %vm970, %v1582
  %1711 = vst.msk [vmem:[%s6 + $0xd8] sm:$0xf] %vm970, %v1583
  %1712 = vst.msk [vmem:[%s6 + $0xdc] sm:$0xf] %vm970, %v1584
  %1713 = vst.msk [vmem:[%s6 + $0xe0] sm:$0xf] %vm970, %v1585
  %1714 = vst.msk [vmem:[%s6 + $0xe4] sm:$0xf] %vm970, %v1586
  %1715 = vst.msk [vmem:[%s6 + $0xe8] sm:$0xf] %vm970, %v1587
  %1716 = vst.msk [vmem:[%s6 + $0xec] sm:$0xf] %vm970, %v1588
  %1717 = vst.msk [vmem:[%s6 + $0xf0] sm:$0xf] %vm970, %v1589
  %1718 = vst.msk [vmem:[%s6 + $0xf4] sm:$0xf] %vm970, %v1590
  %1719 = vst.msk [vmem:[%s6 + $0xf8] sm:$0xf] %vm970, %v1591
  %1720 = vst.msk [vmem:[%s6 + $0xfc] sm:$0xf] %vm970, %v1592
  // Predicated region
  $region22: #{yolo_nas_csp_layer.4} parent=0 // pred_check
    _
  $region23: #{yolo_nas_csp_layer.4} parent=0 // pred_check_branch
    %1722 = sbr.rel (0) target = $region25
  $region24: #{yolo_nas_csp_layer.4} parent=0 // pred_region
    _
  $region25: #{yolo_nas_csp_layer.4} parent=0 // pred_fallthru
    _
  // Predicated region
  $region26: #{yolo_nas_csp_layer.4} parent=0 // pred_check
    _
  $region27: #{yolo_nas_csp_layer.4} parent=0 // pred_check_branch
    %1724 = sbr.rel (0) target = $region29
  $region28: #{yolo_nas_csp_layer.4} parent=0 // pred_region
    _
  $region29: #{yolo_nas_csp_layer.4} parent=0 // pred_fallthru
    _
  // Predicated region
  $region30: #{yolo_nas_csp_layer.4} parent=0 // pred_check
    _
  $region31: #{yolo_nas_csp_layer.4} parent=0 // pred_check_branch
    %1726 = sbr.rel (0) target = $region33
  $region32: #{yolo_nas_csp_layer.4} parent=0 // pred_region
    _
  $region33: #{yolo_nas_csp_layer.4} parent=0 // pred_fallthru
    _
  // Predicated region
  $region34: #{yolo_nas_csp_layer.4} parent=0 // pred_check
    _
  $region35: #{yolo_nas_csp_layer.4} parent=0 // pred_check_branch
    %1728 = sbr.rel (0) target = $region37
  $region36: #{yolo_nas_csp_layer.4} parent=0 // pred_region
    _
  $region37: #{yolo_nas_csp_layer.4} parent=0 // pred_fallthru
    _

// kernel: yolo_nas_csp_layer.5
$region0: #{yolo_nas_csp_layer.5}
  #allocation0 [shape = 'u32[]', space=smem, size = 0x4, offset = 0x4, fixed_abs, tag = 'smem constant byte address 0x4 - core index']
  #allocation1 [shape = 'u32[144,128]{1,0:T(1,128)}', space=vmem, size = 0x12000, scoped, tag = 'internal scratch']
  #allocation2 [shape = 'bf16[12,18,8]{2,1,0:T(8,128)(2,1)}', space=vmem, size = 0x12000, scoped, tag = 'scratch operand']
  #allocation3 [shape = 'f32[1]{0:T(128)S(6)}', space=smem, size = 0x200, scoped, tag = 'scoped memory for yolo_nas_csp_layer.5']
  %s0 = inlined_call_operand.vmem [shape: bf16[2,16,16,8], index: 0, kind: input, shape index: {}, may-alias: {0,1,2}]
  %s1 = inlined_call_operand.vmem [shape: bf16[2,16,16,8], index: 1, kind: input, shape index: {}, may-alias: {0,1,2}]
  %s2 = inlined_call_operand.vmem [shape: bf16[2,16,16,8], index: 2, kind: input, shape index: {}, may-alias: {0,1,2}]
  %s3 = inlined_call_operand.vmem [shape: bf16[9,8,8], index: 3, kind: input, shape index: {}]
  %s4 = inlined_call_operand.vmem [shape: f32[1,8], index: 4, kind: input, shape index: {}]
  %s5 = inlined_call_operand.vmem [shape: bf16[9,8,8], index: 5, kind: input, shape index: {}]
  %s6 = inlined_call_operand.vmem [shape: f32[1,8], index: 6, kind: input, shape index: {}]
  %s7 = inlined_call_operand.<no memory space> [shape: f32[1], index: 7, kind: input, shape index: {}]
  %s8 = inlined_call_operand.vmem [shape: bf16[2,16,16,8], index: 8, kind: output, shape index: {}]
  %s9 = sld [smem:[#allocation0]]
  $region65: #{yolo_nas_csp_layer.5} parent=0
    _
  %s11 = ssub.s32 1, %s9
  %s12 = scalar_select 0, %s11, %s9
  %13 = sst [smem:[#allocation3]] %s7
  loop: start=0, step=1, limit=6
  $region2: #{yolo_nas_csp_layer.5} parent=0 // loop_pre_header
    _
  $region3: #{yolo_nas_csp_layer.5} parent=0 // loop_header
    %s15 = sphi 0, %s19
    %p16 = scmp.ge.s32.totalorder %s15, 6
    %s22 = sphi 0, %s34
    %s23 = sphi 0, %s30
    %s24 = sphi 0, %s22
    %s25 = sphi 0, %s23
    %s26 = sphi 0, %s24
    %s27 = sphi 0, %s25
    %s47 = sphi 0, %s49
    %s50 = sphi 0, %s47
    %s51 = sphi 0, %s50
    %s67 = sphi 0, %s51
    %s75 = sphi 0, %s77
    %s78 = sphi 0, %s75
    %s79 = sphi 0, %s78
    %s95 = sphi 0, %s79
    %s111 = sphi 0, %s113
    %s114 = sphi 0, %s111
    %s115 = sphi 0, %s114
    %s131 = sphi 0, %s115
    %s135 = sphi 0, %s135
    %s137 = sphi 0, %s135
    %s138 = sphi 0, %s137
    %s152 = sphi 0, %s138
    %s156 = sphi 0, %s156
    %s158 = sphi 0, %s156
    %s159 = sphi 0, %s158
    %s173 = sphi 0, %s159
    %s177 = sphi 0, %s177
    %s179 = sphi 0, %s177
    %s180 = sphi 0, %s179
    %s194 = sphi 0, %s180
    %s198 = sphi 0, %s198
    %s200 = sphi 0, %s198
    %s201 = sphi 0, %s200
    %s215 = sphi 0, %s201
    %s219 = sphi 0, %s219
    %s221 = sphi 0, %s219
    %s222 = sphi 0, %s221
    %s236 = sphi 0, %s222
    %s244 = sphi 0, %s246
    %s247 = sphi 0, %s244
    %s248 = sphi 0, %s247
    %s264 = sphi 0, %s248
  $region4: #{yolo_nas_csp_layer.5} parent=0 // loop_header_branch
    %18 = sbr.rel (%p16) target = $region8
  $region5: #{yolo_nas_csp_layer.5} parent=0 // loop_body
    %s20 = ssub.s32 %s15, 1
    %s21 = ssub.s32 %s15, 2
    %s28 = sadd.s32 1, %s23
    %p29 = scmp.ge.s32.totalorder %s28, 2
    %s30 = scalar_select %p29, 0, %s28
    %s31 = sadd.s32 1, %s22
    %s32 = scalar_select %p29, %s31, %s22
    %p33 = scmp.ge.s32.totalorder %s32, 2
    %s34 = scalar_select %p33, 0, %s32
    %s35 = smul.u32 %s23, 4
    %s36 = ssub.s32 %s35, 1
    %p37 = scmp.gt.s32.totalorder %s36, 0
    %s38 = scalar_select %p37, %s36, 0
    %s39 = smul.u32 %s30, 4
    %s40 = ssub.s32 %s39, 1
    %p41 = scmp.gt.s32.totalorder %s40, 0
    %s42 = scalar_select %p41, %s40, 0
    %s43 = ssub.s32 %s22, %s34
    %s44 = ssub.s32 %s38, %s42
    %s45 = sor.u32 %s43, %s44
    %p46 = scmp.eq.s32.totalorder %s45, 0
    %s48 = sadd.s32 %s47, 1
    %s49 = scalar_select %p46, %s47, %s48
    %p52 = pneg %p46
    %p53 = scmp.eq.s32.totalorder %s15, 3
    %p54 = por %p52, %p53
    %p55 = scmp.ne.s32.totalorder %s47, %s50
    %p56 = scmp.eq.s32.totalorder %s15, 0
    %p57 = por %p55, %p56
    %p58 = scmp.ne.s32.totalorder %s47, %s50
    %p59 = scmp.eq.s32.totalorder %s20, 3
    %p60 = por %p58, %p59
    %p61 = scmp.ne.s32.totalorder %s50, %s51
    %p62 = scmp.eq.s32.totalorder %s20, 0
    %p63 = por %p61, %p62
    %p64 = scmp.ne.s32.totalorder %s50, %s51
    %p65 = scmp.eq.s32.totalorder %s21, 3
    %p66 = por %p64, %p65
    %p68 = scmp.ne.s32.totalorder %s51, %s67
    %p69 = scmp.eq.s32.totalorder %s21, 0
    %p70 = por %p68, %p69
    %s71 = ssub.s32 %s22, %s34
    %s72 = ssub.s32 %s23, %s30
    %s73 = sor.u32 %s71, %s72
    %p74 = scmp.eq.s32.totalorder %s73, 0
    %s76 = sadd.s32 %s75, 1
    %s77 = scalar_select %p74, %s75, %s76
    %p80 = pneg %p74
    %p81 = scmp.eq.s32.totalorder %s15, 3
    %p82 = por %p80, %p81
    %p83 = scmp.ne.s32.totalorder %s75, %s78
    %p84 = scmp.eq.s32.totalorder %s15, 0
    %p85 = por %p83, %p84
    %p86 = scmp.ne.s32.totalorder %s75, %s78
    %p87 = scmp.eq.s32.totalorder %s20, 3
    %p88 = por %p86, %p87
    %p89 = scmp.ne.s32.totalorder %s78, %s79
    %p90 = scmp.eq.s32.totalorder %s20, 0
    %p91 = por %p89, %p90
    %p92 = scmp.ne.s32.totalorder %s78, %s79
    %p93 = scmp.eq.s32.totalorder %s21, 3
    %p94 = por %p92, %p93
    %p96 = scmp.ne.s32.totalorder %s79, %s95
    %p97 = scmp.eq.s32.totalorder %s21, 0
    %p98 = por %p96, %p97
    %s99 = sadd.s32 %s23, 1
    %s100 = smul.u32 %s99, 4
    %p101 = scmp.lt.s32.totalorder %s100, 7
    %s102 = scalar_select %p101, %s100, 7
    %s103 = sadd.s32 %s30, 1
    %s104 = smul.u32 %s103, 4
    %p105 = scmp.lt.s32.totalorder %s104, 7
    %s106 = scalar_select %p105, %s104, 7
    %s107 = ssub.s32 %s22, %s34
    %s108 = ssub.s32 %s102, %s106
    %s109 = sor.u32 %s107, %s108
    %p110 = scmp.eq.s32.totalorder %s109, 0
    %s112 = sadd.s32 %s111, 1
    %s113 = scalar_select %p110, %s111, %s112
    %p116 = pneg %p110
    %p117 = scmp.eq.s32.totalorder %s15, 3
    %p118 = por %p116, %p117
    %p119 = scmp.ne.s32.totalorder %s111, %s114
    %p120 = scmp.eq.s32.totalorder %s15, 0
    %p121 = por %p119, %p120
    %p122 = scmp.ne.s32.totalorder %s111, %s114
    %p123 = scmp.eq.s32.totalorder %s20, 3
    %p124 = por %p122, %p123
    %p125 = scmp.ne.s32.totalorder %s114, %s115
    %p126 = scmp.eq.s32.totalorder %s20, 0
    %p127 = por %p125, %p126
    %p128 = scmp.ne.s32.totalorder %s114, %s115
    %p129 = scmp.eq.s32.totalorder %s21, 3
    %p130 = por %p128, %p129
    %p132 = scmp.ne.s32.totalorder %s115, %s131
    %p133 = scmp.eq.s32.totalorder %s21, 0
    %p134 = por %p132, %p133
    %s136 = sadd.s32 %s135, 1
    %p139 = scmp.eq.s32.totalorder %s15, 3
    %p140 = scmp.ne.s32.totalorder %s135, %s137
    %p141 = scmp.eq.s32.totalorder %s15, 0
    %p142 = por %p140, %p141
    %p143 = scmp.ne.s32.totalorder %s135, %s137
    %p144 = scmp.eq.s32.totalorder %s20, 3
    %p145 = por %p143, %p144
    %p146 = scmp.ne.s32.totalorder %s137, %s138
    %p147 = scmp.eq.s32.totalorder %s20, 0
    %p148 = por %p146, %p147
    %p149 = scmp.ne.s32.totalorder %s137, %s138
    %p150 = scmp.eq.s32.totalorder %s21, 3
    %p151 = por %p149, %p150
    %p153 = scmp.ne.s32.totalorder %s138, %s152
    %p154 = scmp.eq.s32.totalorder %s21, 0
    %p155 = por %p153, %p154
    %s157 = sadd.s32 %s156, 1
    %p160 = scmp.eq.s32.totalorder %s15, 3
    %p161 = scmp.ne.s32.totalorder %s156, %s158
    %p162 = scmp.eq.s32.totalorder %s15, 0
    %p163 = por %p161, %p162
    %p164 = scmp.ne.s32.totalorder %s156, %s158
    %p165 = scmp.eq.s32.totalorder %s20, 3
    %p166 = por %p164, %p165
    %p167 = scmp.ne.s32.totalorder %s158, %s159
    %p168 = scmp.eq.s32.totalorder %s20, 0
    %p169 = por %p167, %p168
    %p170 = scmp.ne.s32.totalorder %s158, %s159
    %p171 = scmp.eq.s32.totalorder %s21, 3
    %p172 = por %p170, %p171
    %p174 = scmp.ne.s32.totalorder %s159, %s173
    %p175 = scmp.eq.s32.totalorder %s21, 0
    %p176 = por %p174, %p175
    %s178 = sadd.s32 %s177, 1
    %p181 = scmp.eq.s32.totalorder %s15, 3
    %p182 = scmp.ne.s32.totalorder %s177, %s179
    %p183 = scmp.eq.s32.totalorder %s15, 0
    %p184 = por %p182, %p183
    %p185 = scmp.ne.s32.totalorder %s177, %s179
    %p186 = scmp.eq.s32.totalorder %s20, 3
    %p187 = por %p185, %p186
    %p188 = scmp.ne.s32.totalorder %s179, %s180
    %p189 = scmp.eq.s32.totalorder %s20, 0
    %p190 = por %p188, %p189
    %p191 = scmp.ne.s32.totalorder %s179, %s180
    %p192 = scmp.eq.s32.totalorder %s21, 3
    %p193 = por %p191, %p192
    %p195 = scmp.ne.s32.totalorder %s180, %s194
    %p196 = scmp.eq.s32.totalorder %s21, 0
    %p197 = por %p195, %p196
    %s199 = sadd.s32 %s198, 1
    %p202 = scmp.eq.s32.totalorder %s15, 3
    %p203 = scmp.ne.s32.totalorder %s198, %s200
    %p204 = scmp.eq.s32.totalorder %s15, 0
    %p205 = por %p203, %p204
    %p206 = scmp.ne.s32.totalorder %s198, %s200
    %p207 = scmp.eq.s32.totalorder %s20, 3
    %p208 = por %p206, %p207
    %p209 = scmp.ne.s32.totalorder %s200, %s201
    %p210 = scmp.eq.s32.totalorder %s20, 0
    %p211 = por %p209, %p210
    %p212 = scmp.ne.s32.totalorder %s200, %s201
    %p213 = scmp.eq.s32.totalorder %s21, 3
    %p214 = por %p212, %p213
    %p216 = scmp.ne.s32.totalorder %s201, %s215
    %p217 = scmp.eq.s32.totalorder %s21, 0
    %p218 = por %p216, %p217
    %s220 = sadd.s32 %s219, 1
    %p223 = scmp.eq.s32.totalorder %s15, 3
    %p224 = scmp.ne.s32.totalorder %s219, %s221
    %p225 = scmp.eq.s32.totalorder %s15, 0
    %p226 = por %p224, %p225
    %p227 = scmp.ne.s32.totalorder %s219, %s221
    %p228 = scmp.eq.s32.totalorder %s20, 3
    %p229 = por %p227, %p228
    %p230 = scmp.ne.s32.totalorder %s221, %s222
    %p231 = scmp.eq.s32.totalorder %s20, 0
    %p232 = por %p230, %p231
    %p233 = scmp.ne.s32.totalorder %s221, %s222
    %p234 = scmp.eq.s32.totalorder %s21, 3
    %p235 = por %p233, %p234
    %p237 = scmp.ne.s32.totalorder %s222, %s236
    %p238 = scmp.eq.s32.totalorder %s21, 0
    %p239 = por %p237, %p238
    %s240 = ssub.s32 %s22, %s34
    %s241 = ssub.s32 %s23, %s30
    %s242 = sor.u32 %s240, %s241
    %p243 = scmp.eq.s32.totalorder %s242, 0
    %s245 = sadd.s32 %s244, 1
    %s246 = scalar_select %p243, %s244, %s245
    %p249 = pneg %p243
    %p250 = scmp.eq.s32.totalorder %s15, 3
    %p251 = por %p249, %p250
    %p252 = scmp.ne.s32.totalorder %s244, %s247
    %p253 = scmp.eq.s32.totalorder %s15, 0
    %p254 = por %p252, %p253
    %p255 = scmp.ne.s32.totalorder %s244, %s247
    %p256 = scmp.eq.s32.totalorder %s20, 3
    %p257 = por %p255, %p256
    %p258 = scmp.ne.s32.totalorder %s247, %s248
    %p259 = scmp.eq.s32.totalorder %s20, 0
    %p260 = por %p258, %p259
    %p261 = scmp.ne.s32.totalorder %s247, %s248
    %p262 = scmp.eq.s32.totalorder %s21, 3
    %p263 = por %p261, %p262
    %p265 = scmp.ne.s32.totalorder %s248, %s264
    %p266 = scmp.eq.s32.totalorder %s21, 0
    %p267 = por %p265, %p266
    %p268 = scmp.le.s32.totalorder 1, %s15
    %p269 = scmp.lt.s32.totalorder %s15, 5
    %p270 = pnand %p268, %p269
    %p271 = pneg %p270
    // Predicated region
    $region9: #{yolo_nas_csp_layer.5} parent=5 // pred_check
      _
    $region10: #{yolo_nas_csp_layer.5} parent=5 // pred_check_branch
      %273 = sbr.rel (%p270) target = $region12
    $region11: #{yolo_nas_csp_layer.5} parent=5 // pred_region
      %s274 = ssub.s32 %s15, 1
      // Predicated region
      $region13: #{yolo_nas_csp_layer.5} parent=11 // pred_check
        %p275 = pneg %p148
      $region14: #{yolo_nas_csp_layer.5} parent=11 // pred_check_branch
        %277 = sbr.rel (%p275) target = $region16
      $region15: #{yolo_nas_csp_layer.5} parent=11 // pred_region
        _
      $region16: #{yolo_nas_csp_layer.5} parent=11 // pred_fallthru
        _
      // Predicated region
      $region17: #{yolo_nas_csp_layer.5} parent=11 // pred_check
        %p278 = pneg %p169
      $region18: #{yolo_nas_csp_layer.5} parent=11 // pred_check_branch
        %280 = sbr.rel (%p278) target = $region20
      $region19: #{yolo_nas_csp_layer.5} parent=11 // pred_region
        _
      $region20: #{yolo_nas_csp_layer.5} parent=11 // pred_fallthru
        _
      // Predicated region
      $region21: #{yolo_nas_csp_layer.5} parent=11 // pred_check
        %p281 = pneg %p190
      $region22: #{yolo_nas_csp_layer.5} parent=11 // pred_check_branch
        %283 = sbr.rel (%p281) target = $region24
      $region23: #{yolo_nas_csp_layer.5} parent=11 // pred_region
        _
      $region24: #{yolo_nas_csp_layer.5} parent=11 // pred_fallthru
        _
      // Predicated region
      $region25: #{yolo_nas_csp_layer.5} parent=11 // pred_check
        %p284 = pneg %p211
      $region26: #{yolo_nas_csp_layer.5} parent=11 // pred_check_branch
        %286 = sbr.rel (%p284) target = $region28
      $region27: #{yolo_nas_csp_layer.5} parent=11 // pred_region
        _
      $region28: #{yolo_nas_csp_layer.5} parent=11 // pred_fallthru
        _
      // Predicated region
      $region29: #{yolo_nas_csp_layer.5} parent=11 // pred_check
        %p287 = pneg %p232
      $region30: #{yolo_nas_csp_layer.5} parent=11 // pred_check_branch
        %289 = sbr.rel (%p287) target = $region32
      $region31: #{yolo_nas_csp_layer.5} parent=11 // pred_region
        _
      $region32: #{yolo_nas_csp_layer.5} parent=11 // pred_fallthru
        _
    $region12: #{yolo_nas_csp_layer.5} parent=5 // pred_fallthru
      _
    %p290 = scmp.lt.s32.totalorder %s15, 4
    // Predicated region
    $region33: #{yolo_nas_csp_layer.5} parent=5 // pred_check
      %p291 = pneg %p290
    $region34: #{yolo_nas_csp_layer.5} parent=5 // pred_check_branch
      %293 = sbr.rel (%p291) target = $region36
    $region35: #{yolo_nas_csp_layer.5} parent=5 // pred_region
      // Predicated region
      $region37: #{yolo_nas_csp_layer.5} parent=35 // pred_check
        %p294 = pneg %p57
      $region38: #{yolo_nas_csp_layer.5} parent=35 // pred_check_branch
        %296 = sbr.rel (%p294) target = $region40
      $region39: #{yolo_nas_csp_layer.5} parent=35 // pred_region
        %s297 = smul.u32 %s23, 4
        %s298 = ssub.s32 %s297, 1
        %p299 = scmp.gt.s32.totalorder %s298, 0
        %s300 = scalar_select %p299, %s298, 0
        %s301 = smul.u32 2, %s300
        %p302 = scmp.lt.s32.totalorder %s22, 1
        %s303 = scalar_select %p302, %s22, 1
        %p304 = scmp.lt.s32.totalorder %s301, 15
        %s305 = scalar_select %p304, %s301, 15
        %s306 = smul.addr %s305, 2
        %s307 = smul.addr %s303, 32
        %s308 = sadd.s32 %s306, %s307
        %s309 = smul.addr %s308, 4
        %s310 = scalar_lea.vmem %s0, %s309
        %s311 = smul.u32 %s23, 4
        %s312 = ssub.s32 %s311, 1
        %p313 = scmp.gt.s32.totalorder %s312, 0
        %s314 = scalar_select %p313, %s312, 0
        %s315 = smul.u32 2, %s314
      $region40: #{yolo_nas_csp_layer.5} parent=35 // pred_fallthru
        _
      // Predicated region
      $region41: #{yolo_nas_csp_layer.5} parent=35 // pred_check
        %p316 = pneg %p85
      $region42: #{yolo_nas_csp_layer.5} parent=35 // pred_check_branch
        %318 = sbr.rel (%p316) target = $region44
      $region43: #{yolo_nas_csp_layer.5} parent=35 // pred_region
        %s319 = smul.u32 8, %s23
        %p320 = scmp.lt.s32.totalorder %s22, 1
        %s321 = scalar_select %p320, %s22, 1
        %p322 = scmp.lt.s32.totalorder %s319, 15
        %s323 = scalar_select %p322, %s319, 15
        %s324 = smul.addr %s323, 2
        %s325 = smul.addr %s321, 32
        %s326 = sadd.s32 %s324, %s325
        %s327 = smul.addr %s326, 4
        %s328 = scalar_lea.vmem %s1, %s327
        %s329 = smul.u32 8, %s23
      $region44: #{yolo_nas_csp_layer.5} parent=35 // pred_fallthru
        _
      // Predicated region
      $region45: #{yolo_nas_csp_layer.5} parent=35 // pred_check
        %p330 = pneg %p121
      $region46: #{yolo_nas_csp_layer.5} parent=35 // pred_check_branch
        %332 = sbr.rel (%p330) target = $region48
      $region47: #{yolo_nas_csp_layer.5} parent=35 // pred_region
        %s333 = sadd.s32 %s23, 1
        %s334 = smul.u32 %s333, 4
        %p335 = scmp.lt.s32.totalorder %s334, 7
        %s336 = scalar_select %p335, %s334, 7
        %s337 = smul.u32 2, %s336
        %p338 = scmp.lt.s32.totalorder %s22, 1
        %s339 = scalar_select %p338, %s22, 1
        %p340 = scmp.lt.s32.totalorder %s337, 15
        %s341 = scalar_select %p340, %s337, 15
        %s342 = smul.addr %s341, 2
        %s343 = smul.addr %s339, 32
        %s344 = sadd.s32 %s342, %s343
        %s345 = smul.addr %s344, 4
        %s346 = scalar_lea.vmem %s2, %s345
        %s347 = sadd.s32 %s23, 1
        %s348 = smul.u32 %s347, 4
        %p349 = scmp.lt.s32.totalorder %s348, 7
        %s350 = scalar_select %p349, %s348, 7
        %s351 = smul.u32 2, %s350
      $region48: #{yolo_nas_csp_layer.5} parent=35 // pred_fallthru
        _
    $region36: #{yolo_nas_csp_layer.5} parent=5 // pred_fallthru
      _
    %p352 = scmp.le.s32.totalorder 1, %s15
    %p353 = scmp.lt.s32.totalorder %s15, 5
    %p354 = pnand %p352, %p353
    %p355 = pneg %p354
    // Predicated region
    $region49: #{yolo_nas_csp_layer.5} parent=5 // pred_check
      _
    $region50: #{yolo_nas_csp_layer.5} parent=5 // pred_check_branch
      %357 = sbr.rel (%p354) target = $region52
    $region51: #{yolo_nas_csp_layer.5} parent=5 // pred_region
      %s358 = ssub.s32 %s15, 1
      %s359 = smul.u32 %s25, 4
      %s360 = ssub.s32 %s359, 1
      %p361 = scmp.gt.s32.totalorder %s360, 0
      %s362 = scalar_select %p361, %s360, 0
      %s363 = smul.u32 2, %s362
      %p364 = scmp.lt.s32.totalorder %s24, 1
      %s365 = scalar_select %p364, %s24, 1
      %p366 = scmp.lt.s32.totalorder %s363, 15
      %s367 = scalar_select %p366, %s363, 15
      %s368 = smul.addr %s367, 2
      %s369 = smul.addr %s365, 32
      %s370 = sadd.s32 %s368, %s369
      %s371 = smul.addr %s370, 4
      %s372 = scalar_lea.vmem %s0, %s371
      %p373 = pneg %p63
      %p374 = pneg %p60
      %s375 = smul.u32 8, %s25
      %p376 = scmp.lt.s32.totalorder %s24, 1
      %s377 = scalar_select %p376, %s24, 1
      %p378 = scmp.lt.s32.totalorder %s375, 15
      %s379 = scalar_select %p378, %s375, 15
      %s380 = smul.addr %s379, 2
      %s381 = smul.addr %s377, 32
      %s382 = sadd.s32 %s380, %s381
      %s383 = smul.addr %s382, 4
      %s384 = scalar_lea.vmem %s1, %s383
      %p385 = pneg %p91
      %p386 = pneg %p88
      %s387 = sadd.s32 %s25, 1
      %s388 = smul.u32 %s387, 4
      %p389 = scmp.lt.s32.totalorder %s388, 7
      %s390 = scalar_select %p389, %s388, 7
      %s391 = smul.u32 2, %s390
      %p392 = scmp.lt.s32.totalorder %s24, 1
      %s393 = scalar_select %p392, %s24, 1
      %p394 = scmp.lt.s32.totalorder %s391, 15
      %s395 = scalar_select %p394, %s391, 15
      %s396 = smul.addr %s395, 2
      %s397 = smul.addr %s393, 32
      %s398 = sadd.s32 %s396, %s397
      %s399 = smul.addr %s398, 4
      %s400 = scalar_lea.vmem %s2, %s399
      %p401 = pneg %p127
      %p402 = pneg %p124
      %p403 = pneg %p148
      %p404 = pneg %p145
      %p405 = pneg %p169
      %p406 = pneg %p166
      %p407 = pneg %p190
      %p408 = pneg %p187
      %p409 = pneg %p211
      %p410 = pneg %p208
      %p411 = pneg %p232
      %p412 = pneg %p229
      %p413 = pneg %p260
      %p414 = pneg %p257
      %s415 = smul.u32 8, %s25
      %p416 = scmp.lt.s32.totalorder %s24, 1
      %s417 = scalar_select %p416, %s24, 1
      %p418 = scmp.lt.s32.totalorder %s415, 15
      %s419 = scalar_select %p418, %s415, 15
      %s420 = smul.addr %s419, 2
      %s421 = smul.addr %s417, 32
      %s422 = sadd.s32 %s420, %s421
      %s423 = smul.addr %s422, 4
      %s424 = scalar_lea.vmem %s8, %s423
      %s425 = smul.u32 %s25, 4
      %s426 = ssub.s32 %s425, 1
      %p427 = scmp.gt.s32.totalorder %s426, 0
      %s428 = scalar_select %p427, %s426, 0
      %s429 = smul.u32 2, %s428
      %p430 = scmp.lt.s32.totalorder %s24, 1
      %s431 = scalar_select %p430, %s24, 1
      %p432 = scmp.lt.s32.totalorder %s429, 15
      %s433 = scalar_select %p432, %s429, 15
      %s434 = smul.addr %s433, 2
      %s435 = smul.addr %s431, 32
      %s436 = sadd.s32 %s434, %s435
      %s437 = smul.addr %s436, 4
      %s438 = scalar_lea.vmem %s0, %s437
      %s439 = smul.u32 %s25, 4
      %s440 = ssub.s32 %s439, 1
      %p441 = scmp.gt.s32.totalorder %s440, 0
      %s442 = scalar_select %p441, %s440, 0
      %s443 = smul.u32 2, %s442
      %s444 = smul.u32 8, %s25
      %p445 = scmp.lt.s32.totalorder %s24, 1
      %s446 = scalar_select %p445, %s24, 1
      %p447 = scmp.lt.s32.totalorder %s444, 15
      %s448 = scalar_select %p447, %s444, 15
      %s449 = smul.addr %s448, 2
      %s450 = smul.addr %s446, 32
      %s451 = sadd.s32 %s449, %s450
      %s452 = smul.addr %s451, 4
      %s453 = scalar_lea.vmem %s1, %s452
      %s454 = smul.u32 8, %s25
      %s455 = sadd.s32 %s25, 1
      %s456 = smul.u32 %s455, 4
      %p457 = scmp.lt.s32.totalorder %s456, 7
      %s458 = scalar_select %p457, %s456, 7
      %s459 = smul.u32 2, %s458
      %p460 = scmp.lt.s32.totalorder %s24, 1
      %s461 = scalar_select %p460, %s24, 1
      %p462 = scmp.lt.s32.totalorder %s459, 15
      %s463 = scalar_select %p462, %s459, 15
      %s464 = smul.addr %s463, 2
      %s465 = smul.addr %s461, 32
      %s466 = sadd.s32 %s464, %s465
      %s467 = smul.addr %s466, 4
      %s468 = scalar_lea.vmem %s2, %s467
      %s469 = sadd.s32 %s25, 1
      %s470 = smul.u32 %s469, 4
      %p471 = scmp.lt.s32.totalorder %s470, 7
      %s472 = scalar_select %p471, %s470, 7
      %s473 = smul.u32 2, %s472
      %s474 = smul.u32 8, %s25
      %p475 = scmp.lt.s32.totalorder %s24, 1
      %s476 = scalar_select %p475, %s24, 1
      %p477 = scmp.lt.s32.totalorder %s474, 15
      %s478 = scalar_select %p477, %s474, 15
      %s479 = smul.addr %s478, 2
      %s480 = smul.addr %s476, 32
      %s481 = sadd.s32 %s479, %s480
      %s482 = smul.addr %s481, 4
      %s483 = scalar_lea.vmem %s8, %s482
      %s484 = smul.u32 8, %s25
      %p486 = scmp.eq.s32.totalorder %s25, 0
      %p487 = scmp.eq.s32.totalorder %s25, 1
      %vm488 = vcmask 57344
      %vm489 = vsmask.f32 256
      %vm490 = vmand %vm488, %vm489
      %v491 = vld [vmem:[#allocation2] sm:$0x1]
      %v492 = vsel %vm490, 0, %v491
      %493 = vst [vmem:[#allocation2] sm:$0x1] %v492
      %v494 = vld [vmem:[#allocation2 + $0xc] sm:$0x1]
      %v495 = vsel %vm490, 0, %v494
      %496 = vst [vmem:[#allocation2 + $0xc] sm:$0x1] %v495
      %v497 = vld [vmem:[#allocation2 + $0x18] sm:$0x1]
      %v498 = vsel %vm490, 0, %v497
      %499 = vst [vmem:[#allocation2 + $0x18] sm:$0x1] %v498
      %v500 = vld [vmem:[#allocation2 + $0x24] sm:$0x1]
      %v501 = vsel %vm490, 0, %v500
      %502 = vst [vmem:[#allocation2 + $0x24] sm:$0x1] %v501
      %v503 = vld [vmem:[#allocation2 + $0x30] sm:$0x1]
      %v504 = vsel %vm490, 0, %v503
      %505 = vst [vmem:[#allocation2 + $0x30] sm:$0x1] %v504
      %v506 = vld [vmem:[#allocation2 + $0x3c] sm:$0x1]
      %v507 = vsel %vm490, 0, %v506
      %508 = vst [vmem:[#allocation2 + $0x3c] sm:$0x1] %v507
      %v509 = vld [vmem:[#allocation2 + $0x48] sm:$0x1]
      %v510 = vsel %vm490, 0, %v509
      %511 = vst [vmem:[#allocation2 + $0x48] sm:$0x1] %v510
      %v512 = vld [vmem:[#allocation2 + $0x54] sm:$0x1]
      %v513 = vsel %vm490, 0, %v512
      %514 = vst [vmem:[#allocation2 + $0x54] sm:$0x1] %v513
      %v515 = vld [vmem:[#allocation2 + $0x60] sm:$0x1]
      %v516 = vsel %vm490, 0, %v515
      %517 = vst [vmem:[#allocation2 + $0x60] sm:$0x1] %v516
      %v518 = vld [vmem:[#allocation2 + $0x6c] sm:$0x1]
      %v519 = vsel %vm490, 0, %v518
      %520 = vst [vmem:[#allocation2 + $0x6c] sm:$0x1] %v519
      %v521 = vld [vmem:[#allocation2 + $0x78] sm:$0x1]
      %v522 = vsel %vm490, 0, %v521
      %523 = vst [vmem:[#allocation2 + $0x78] sm:$0x1] %v522
      %v524 = vld [vmem:[#allocation2 + $0x84] sm:$0x1]
      %v525 = vsel %vm490, 0, %v524
      %526 = vst [vmem:[#allocation2 + $0x84] sm:$0x1] %v525
      %vm527 = vsmask.f32 7938
      %vm528 = vmand %vm488, %vm527
      %v529 = vld [vmem:[#allocation2 + $0x8] sm:$0x1]
      %v530 = vsel %vm528, 0, %v529
      %531 = vst [vmem:[#allocation2 + $0x8] sm:$0x1] %v530
      %v532 = vld [vmem:[#allocation2 + $0x14] sm:$0x1]
      %v533 = vsel %vm528, 0, %v532
      %534 = vst [vmem:[#allocation2 + $0x14] sm:$0x1] %v533
      %v535 = vld [vmem:[#allocation2 + $0x20] sm:$0x1]
      %v536 = vsel %vm528, 0, %v535
      %537 = vst [vmem:[#allocation2 + $0x20] sm:$0x1] %v536
      %v538 = vld [vmem:[#allocation2 + $0x2c] sm:$0x1]
      %v539 = vsel %vm528, 0, %v538
      %540 = vst [vmem:[#allocation2 + $0x2c] sm:$0x1] %v539
      %v541 = vld [vmem:[#allocation2 + $0x38] sm:$0x1]
      %v542 = vsel %vm528, 0, %v541
      %543 = vst [vmem:[#allocation2 + $0x38] sm:$0x1] %v542
      %v544 = vld [vmem:[#allocation2 + $0x44] sm:$0x1]
      %v545 = vsel %vm528, 0, %v544
      %546 = vst [vmem:[#allocation2 + $0x44] sm:$0x1] %v545
      %v547 = vld [vmem:[#allocation2 + $0x50] sm:$0x1]
      %v548 = vsel %vm528, 0, %v547
      %549 = vst [vmem:[#allocation2 + $0x50] sm:$0x1] %v548
      %v550 = vld [vmem:[#allocation2 + $0x5c] sm:$0x1]
      %v551 = vsel %vm528, 0, %v550
      %552 = vst [vmem:[#allocation2 + $0x5c] sm:$0x1] %v551
      %v553 = vld [vmem:[#allocation2 + $0x68] sm:$0x1]
      %v554 = vsel %vm528, 0, %v553
      %555 = vst [vmem:[#allocation2 + $0x68] sm:$0x1] %v554
      %v556 = vld [vmem:[#allocation2 + $0x74] sm:$0x1]
      %v557 = vsel %vm528, 0, %v556
      %558 = vst [vmem:[#allocation2 + $0x74] sm:$0x1] %v557
      %v559 = vld [vmem:[#allocation2 + $0x80] sm:$0x1]
      %v560 = vsel %vm528, 0, %v559
      %561 = vst [vmem:[#allocation2 + $0x80] sm:$0x1] %v560
      %v562 = vld [vmem:[#allocation2 + $0x8c] sm:$0x1]
      %v563 = vsel %vm528, 0, %v562
      %564 = vst [vmem:[#allocation2 + $0x8c] sm:$0x1] %v563
      %v565 = vld [vmem:[%s438] sm:$0xf]
      %v566 = vld [vmem:[%s438 + $0x4] sm:$0xf]
      %v567 = vld [vmem:[%s438 + $0x8] sm:$0xf]
      %v568 = vld [vmem:[%s438 + $0xc] sm:$0xf]
      %s569 = scalar_select %p486, 1, 0
      %v570 = vstv %s569
      %vm571 = vcmp.eq.s32.totalorder %v570, 1
      %v572 = vsel %vm571, 0, %v565
      %v573 = vsel %vm571, 0, %v566
      %v574 = vsel %vm571, 0, %v567
      %v575 = vsel %vm571, 0, %v568
      %vm576 = vsmask.f32 4368
      %vm577 = vmor %vm489, %vm576
      %v579 = vshrl.u32 %v572, 16
      %v581 = vrot.slane %v579, 7
      %v582 = vshll.u32 %v572, 16
      %v584 = vor.u32 %v581, %v582
      %v585 = vrot.slane %v581, 4
      %v587 = vshrl.u32 %v573, 16
      %v589 = vrot.slane %v587, 7
      %v590 = vshll.u32 %v573, 16
      %v592 = vor.u32 %v589, %v590
      %v593 = vsel %vm577, %v585, %v592
      %v594 = vrot.slane %v589, 4
      %v596 = vshrl.u32 %v574, 16
      %v598 = vrot.slane %v596, 7
      %v599 = vshll.u32 %v574, 16
      %v601 = vor.u32 %v598, %v599
      %v602 = vrot.slane %v598, 4
      %v604 = vshrl.u32 %v575, 16
      %v606 = vrot.slane %v604, 7
      %v607 = vshll.u32 %v575, 16
      %v609 = vor.u32 %v606, %v607
      %v610 = vsel %vm577, %v602, %v609
      %v611 = vrot.slane %v606, 4
      %vm618 = vcmask 60416
      %vm619 = vmand %vm618, %vm527
      %v620 = vld [vmem:[#allocation2] sm:$0xf]
      %v621 = vsel %vm619, %v584, %v620
      %622 = vst [vmem:[#allocation2] sm:$0xf] %v621
      %vm623 = vcmask 60416
      %624 = vst.msk [vmem:[#allocation2 + $0x4] sm:$0xf] %vm623, %v593
      %v625 = vld [vmem:[#allocation2 + $0x8] sm:$0x1]
      %v626 = vsel %vm490, %v594, %v625
      %627 = vst [vmem:[#allocation2 + $0x8] sm:$0x1] %v626
      %v628 = vld [vmem:[#allocation2 + $0xc] sm:$0xf]
      %v629 = vsel %vm619, %v601, %v628
      %630 = vst [vmem:[#allocation2 + $0xc] sm:$0xf] %v629
      %631 = vst.msk [vmem:[#allocation2 + $0x10] sm:$0xf] %vm623, %v610
      %v632 = vld [vmem:[#allocation2 + $0x14] sm:$0x1]
      %v633 = vsel %vm490, %v611, %v632
      %634 = vst [vmem:[#allocation2 + $0x14] sm:$0x1] %v633
      %v635 = vld [vmem:[%s453] sm:$0xf]
      %v636 = vld [vmem:[%s453 + $0x4] sm:$0xf]
      %v637 = vld [vmem:[%s453 + $0x8] sm:$0xf]
      %v638 = vld [vmem:[%s453 + $0xc] sm:$0xf]
      %v639 = vld [vmem:[%s453 + $0x10] sm:$0xf]
      %v640 = vld [vmem:[%s453 + $0x14] sm:$0xf]
      %v641 = vld [vmem:[%s453 + $0x18] sm:$0xf]
      %v642 = vld [vmem:[%s453 + $0x1c] sm:$0xf]
      %v643 = vld [vmem:[%s453 + $0x20] sm:$0xf]
      %v644 = vld [vmem:[%s453 + $0x24] sm:$0xf]
      %v645 = vld [vmem:[%s453 + $0x28] sm:$0xf]
      %v646 = vld [vmem:[%s453 + $0x2c] sm:$0xf]
      %v647 = vld [vmem:[%s453 + $0x30] sm:$0xf]
      %v648 = vld [vmem:[%s453 + $0x34] sm:$0xf]
      %v649 = vld [vmem:[%s453 + $0x38] sm:$0xf]
      %v650 = vld [vmem:[%s453 + $0x3c] sm:$0xf]
      %v652 = vshrl.u32 %v635, 16
      %v654 = vrot.slane %v652, 7
      %v655 = vshll.u32 %v635, 16
      %v657 = vor.u32 %v654, %v655
      %v658 = vrot.slane %v654, 4
      %v660 = vshrl.u32 %v636, 16
      %v662 = vrot.slane %v660, 7
      %v663 = vshll.u32 %v636, 16
      %v665 = vor.u32 %v662, %v663
      %v666 = vsel %vm577, %v658, %v665
      %v667 = vrot.slane %v662, 4
      %v669 = vshrl.u32 %v637, 16
      %v671 = vrot.slane %v669, 7
      %v672 = vshll.u32 %v637, 16
      %v674 = vor.u32 %v671, %v672
      %v675 = vrot.slane %v671, 4
      %v677 = vshrl.u32 %v638, 16
      %v679 = vrot.slane %v677, 7
      %v680 = vshll.u32 %v638, 16
      %v682 = vor.u32 %v679, %v680
      %v683 = vsel %vm577, %v675, %v682
      %v684 = vrot.slane %v679, 4
      %v686 = vshrl.u32 %v639, 16
      %v688 = vrot.slane %v686, 7
      %v689 = vshll.u32 %v639, 16
      %v691 = vor.u32 %v688, %v689
      %v692 = vrot.slane %v688, 4
      %v694 = vshrl.u32 %v640, 16
      %v696 = vrot.slane %v694, 7
      %v697 = vshll.u32 %v640, 16
      %v699 = vor.u32 %v696, %v697
      %v700 = vsel %vm577, %v692, %v699
      %v701 = vrot.slane %v696, 4
      %v703 = vshrl.u32 %v641, 16
      %v705 = vrot.slane %v703, 7
      %v706 = vshll.u32 %v641, 16
      %v708 = vor.u32 %v705, %v706
      %v709 = vrot.slane %v705, 4
      %v711 = vshrl.u32 %v642, 16
      %v713 = vrot.slane %v711, 7
      %v714 = vshll.u32 %v642, 16
      %v716 = vor.u32 %v713, %v714
      %v717 = vsel %vm577, %v709, %v716
      %v718 = vrot.slane %v713, 4
      %v720 = vshrl.u32 %v643, 16
      %v722 = vrot.slane %v720, 7
      %v723 = vshll.u32 %v643, 16
      %v725 = vor.u32 %v722, %v723
      %v726 = vrot.slane %v722, 4
      %v728 = vshrl.u32 %v644, 16
      %v730 = vrot.slane %v728, 7
      %v731 = vshll.u32 %v644, 16
      %v733 = vor.u32 %v730, %v731
      %v734 = vsel %vm577, %v726, %v733
      %v735 = vrot.slane %v730, 4
      %v737 = vshrl.u32 %v645, 16
      %v739 = vrot.slane %v737, 7
      %v740 = vshll.u32 %v645, 16
      %v742 = vor.u32 %v739, %v740
      %v743 = vrot.slane %v739, 4
      %v745 = vshrl.u32 %v646, 16
      %v747 = vrot.slane %v745, 7
      %v748 = vshll.u32 %v646, 16
      %v750 = vor.u32 %v747, %v748
      %v751 = vsel %vm577, %v743, %v750
      %v752 = vrot.slane %v747, 4
      %v754 = vshrl.u32 %v647, 16
      %v756 = vrot.slane %v754, 7
      %v757 = vshll.u32 %v647, 16
      %v759 = vor.u32 %v756, %v757
      %v760 = vrot.slane %v756, 4
      %v762 = vshrl.u32 %v648, 16
      %v764 = vrot.slane %v762, 7
      %v765 = vshll.u32 %v648, 16
      %v767 = vor.u32 %v764, %v765
      %v768 = vsel %vm577, %v760, %v767
      %v769 = vrot.slane %v764, 4
      %v771 = vshrl.u32 %v649, 16
      %v773 = vrot.slane %v771, 7
      %v774 = vshll.u32 %v649, 16
      %v776 = vor.u32 %v773, %v774
      %v777 = vrot.slane %v773, 4
      %v779 = vshrl.u32 %v650, 16
      %v781 = vrot.slane %v779, 7
      %v782 = vshll.u32 %v650, 16
      %v784 = vor.u32 %v781, %v782
      %v785 = vsel %vm577, %v777, %v784
      %v786 = vrot.slane %v781, 4
      %s811 = scalar_lea.vmem [#allocation2], 24
      %v812 = vld [vmem:[%s811] sm:$0xf]
      %v813 = vsel %vm619, %v657, %v812
      %814 = vst [vmem:[%s811] sm:$0xf] %v813
      %815 = vst.msk [vmem:[%s811 + $0x4] sm:$0xf] %vm623, %v666
      %v816 = vld [vmem:[%s811 + $0x8] sm:$0x1]
      %v817 = vsel %vm490, %v667, %v816
      %818 = vst [vmem:[%s811 + $0x8] sm:$0x1] %v817
      %v819 = vld [vmem:[%s811 + $0xc] sm:$0xf]
      %v820 = vsel %vm619, %v674, %v819
      %821 = vst [vmem:[%s811 + $0xc] sm:$0xf] %v820
      %822 = vst.msk [vmem:[%s811 + $0x10] sm:$0xf] %vm623, %v683
      %v823 = vld [vmem:[%s811 + $0x14] sm:$0x1]
      %v824 = vsel %vm490, %v684, %v823
      %825 = vst [vmem:[%s811 + $0x14] sm:$0x1] %v824
      %v826 = vld [vmem:[%s811 + $0x18] sm:$0xf]
      %v827 = vsel %vm619, %v691, %v826
      %828 = vst [vmem:[%s811 + $0x18] sm:$0xf] %v827
      %829 = vst.msk [vmem:[%s811 + $0x1c] sm:$0xf] %vm623, %v700
      %v830 = vld [vmem:[%s811 + $0x20] sm:$0x1]
      %v831 = vsel %vm490, %v701, %v830
      %832 = vst [vmem:[%s811 + $0x20] sm:$0x1] %v831
      %v833 = vld [vmem:[%s811 + $0x24] sm:$0xf]
      %v834 = vsel %vm619, %v708, %v833
      %835 = vst [vmem:[%s811 + $0x24] sm:$0xf] %v834
      %836 = vst.msk [vmem:[%s811 + $0x28] sm:$0xf] %vm623, %v717
      %v837 = vld [vmem:[%s811 + $0x2c] sm:$0x1]
      %v838 = vsel %vm490, %v718, %v837
      %839 = vst [vmem:[%s811 + $0x2c] sm:$0x1] %v838
      %v840 = vld [vmem:[%s811 + $0x30] sm:$0xf]
      %v841 = vsel %vm619, %v725, %v840
      %842 = vst [vmem:[%s811 + $0x30] sm:$0xf] %v841
      %843 = vst.msk [vmem:[%s811 + $0x34] sm:$0xf] %vm623, %v734
      %v844 = vld [vmem:[%s811 + $0x38] sm:$0x1]
      %v845 = vsel %vm490, %v735, %v844
      %846 = vst [vmem:[%s811 + $0x38] sm:$0x1] %v845
      %v847 = vld [vmem:[%s811 + $0x3c] sm:$0xf]
      %v848 = vsel %vm619, %v742, %v847
      %849 = vst [vmem:[%s811 + $0x3c] sm:$0xf] %v848
      %850 = vst.msk [vmem:[%s811 + $0x40] sm:$0xf] %vm623, %v751
      %v851 = vld [vmem:[%s811 + $0x44] sm:$0x1]
      %v852 = vsel %vm490, %v752, %v851
      %853 = vst [vmem:[%s811 + $0x44] sm:$0x1] %v852
      %v854 = vld [vmem:[%s811 + $0x48] sm:$0xf]
      %v855 = vsel %vm619, %v759, %v854
      %856 = vst [vmem:[%s811 + $0x48] sm:$0xf] %v855
      %857 = vst.msk [vmem:[%s811 + $0x4c] sm:$0xf] %vm623, %v768
      %v858 = vld [vmem:[%s811 + $0x50] sm:$0x1]
      %v859 = vsel %vm490, %v769, %v858
      %860 = vst [vmem:[%s811 + $0x50] sm:$0x1] %v859
      %v861 = vld [vmem:[%s811 + $0x54] sm:$0xf]
      %v862 = vsel %vm619, %v776, %v861
      %863 = vst [vmem:[%s811 + $0x54] sm:$0xf] %v862
      %864 = vst.msk [vmem:[%s811 + $0x58] sm:$0xf] %vm623, %v785
      %v865 = vld [vmem:[%s811 + $0x5c] sm:$0x1]
      %v866 = vsel %vm490, %v786, %v865
      %867 = vst [vmem:[%s811 + $0x5c] sm:$0x1] %v866
      %v868 = vld [vmem:[%s468] sm:$0xf]
      %v869 = vld [vmem:[%s468 + $0x4] sm:$0xf]
      %v870 = vld [vmem:[%s468 + $0x8] sm:$0xf]
      %v871 = vld [vmem:[%s468 + $0xc] sm:$0xf]
      %s872 = scalar_select %p487, 1, 0
      %v873 = vstv %s872
      %vm874 = vcmp.eq.s32.totalorder %v873, 1
      %v875 = vsel %vm874, 0, %v868
      %v876 = vsel %vm874, 0, %v869
      %v877 = vsel %vm874, 0, %v870
      %v878 = vsel %vm874, 0, %v871
      %v880 = vshrl.u32 %v875, 16
      %v882 = vrot.slane %v880, 7
      %v883 = vshll.u32 %v875, 16
      %v885 = vor.u32 %v882, %v883
      %v886 = vrot.slane %v882, 4
      %v888 = vshrl.u32 %v876, 16
      %v890 = vrot.slane %v888, 7
      %v891 = vshll.u32 %v876, 16
      %v893 = vor.u32 %v890, %v891
      %v894 = vsel %vm577, %v886, %v893
      %v895 = vrot.slane %v890, 4
      %v897 = vshrl.u32 %v877, 16
      %v899 = vrot.slane %v897, 7
      %v900 = vshll.u32 %v877, 16
      %v902 = vor.u32 %v899, %v900
      %v903 = vrot.slane %v899, 4
      %v905 = vshrl.u32 %v878, 16
      %v907 = vrot.slane %v905, 7
      %v908 = vshll.u32 %v878, 16
      %v910 = vor.u32 %v907, %v908
      %v911 = vsel %vm577, %v903, %v910
      %v912 = vrot.slane %v907, 4
      %s919 = scalar_lea.vmem [#allocation2], 120
      %v920 = vld [vmem:[%s919] sm:$0xf]
      %v921 = vsel %vm619, %v885, %v920
      %922 = vst [vmem:[%s919] sm:$0xf] %v921
      %923 = vst.msk [vmem:[%s919 + $0x4] sm:$0xf] %vm623, %v894
      %v924 = vld [vmem:[%s919 + $0x8] sm:$0x1]
      %v925 = vsel %vm490, %v895, %v924
      %926 = vst [vmem:[%s919 + $0x8] sm:$0x1] %v925
      %v927 = vld [vmem:[%s919 + $0xc] sm:$0xf]
      %v928 = vsel %vm619, %v902, %v927
      %929 = vst [vmem:[%s919 + $0xc] sm:$0xf] %v928
      %930 = vst.msk [vmem:[%s919 + $0x10] sm:$0xf] %vm623, %v911
      %v931 = vld [vmem:[%s919 + $0x14] sm:$0x1]
      %v932 = vsel %vm490, %v912, %v931
      %933 = vst [vmem:[%s919 + $0x14] sm:$0x1] %v932
      %v934 = vld [vmem:[#allocation2] sm:$0xf]
      %v935 = vld [vmem:[#allocation2 + $0x4] sm:$0xf]
      %v936 = vld [vmem:[#allocation2 + $0xc] sm:$0xf]
      %v937 = vld [vmem:[#allocation2 + $0x10] sm:$0xf]
      %v938 = vld [vmem:[#allocation2 + $0x18] sm:$0xf]
      %v939 = vld [vmem:[#allocation2 + $0x1c] sm:$0xf]
      %v940 = vld [vmem:[#allocation2 + $0x24] sm:$0xf]
      %v941 = vld [vmem:[#allocation2 + $0x28] sm:$0xf]
      %v942 = vld [vmem:[#allocation2 + $0x30] sm:$0xf]
      %v943 = vld [vmem:[#allocation2 + $0x34] sm:$0xf]
      %v944 = vld [vmem:[#allocation2 + $0x3c] sm:$0xf]
      %v945 = vld [vmem:[#allocation2 + $0x40] sm:$0xf]
      %v946 = vld [vmem:[#allocation2 + $0x48] sm:$0xf]
      %v947 = vld [vmem:[#allocation2 + $0x4c] sm:$0xf]
      %v948 = vld [vmem:[#allocation2 + $0x54] sm:$0xf]
      %v949 = vld [vmem:[#allocation2 + $0x58] sm:$0xf]
      %v950 = vld [vmem:[#allocation2 + $0x60] sm:$0xf]
      %v951 = vld [vmem:[#allocation2 + $0x64] sm:$0xf]
      %v952 = vld [vmem:[#allocation2 + $0x6c] sm:$0xf]
      %v953 = vld [vmem:[#allocation2 + $0x70] sm:$0xf]
      %v954 = vld [vmem:[%s3] sm:$0xf]
      %v955 = vld [vmem:[#allocation2 + $0x8] sm:$0x1]
      %v956 = vld [vmem:[#allocation2 + $0x14] sm:$0x1]
      %v957 = vld [vmem:[#allocation2 + $0x20] sm:$0x1]
      %v958 = vld [vmem:[#allocation2 + $0x2c] sm:$0x1]
      %v959 = vld [vmem:[#allocation2 + $0x38] sm:$0x1]
      %v960 = vld [vmem:[#allocation2 + $0x44] sm:$0x1]
      %v961 = vld [vmem:[#allocation2 + $0x50] sm:$0x1]
      %v962 = vld [vmem:[#allocation2 + $0x5c] sm:$0x1]
      %v963 = vld [vmem:[#allocation2 + $0x68] sm:$0x1]
      %v964 = vld [vmem:[#allocation2 + $0x74] sm:$0x1]
      %vm965 = vsmask.f32 3328
      %vm966 = vsmask.f32 7440
      %vm967 = vmor %vm965, %vm966
      %v969 = vshrl.u32 %v934, 16
      %v971 = vrot.slane %v969, 4
      %v972 = vshll.u32 %v934, 16
      %v974 = vrot.slane %v972, 5
      %v975 = vor.u32 %v971, %v974
      %v976 = vrot.slane %v975, 4
      %v978 = vshll.u32 %v935, 16
      %v980 = vrot.slane %v978, 5
      %v981 = vsel %vm967, %v976, %v980
      %v982 = vshrl.u32 %v935, 16
      %v984 = vrot.slane %v982, 4
      %v985 = vor.u32 %v984, %v980
      %v986 = vrot.slane %v985, 4
      %v988 = vshll.u32 %v955, 16
      %v990 = vrot.slane %v988, 5
      %v991 = vsel %vm967, %v986, %v990
      %v993 = vshrl.u32 %v936, 16
      %v995 = vrot.slane %v993, 4
      %v996 = vshll.u32 %v936, 16
      %v998 = vrot.slane %v996, 5
      %v999 = vor.u32 %v995, %v998
      %v1000 = vrot.slane %v999, 4
      %v1002 = vshll.u32 %v937, 16
      %v1004 = vrot.slane %v1002, 5
      %v1005 = vsel %vm967, %v1000, %v1004
      %v1006 = vshrl.u32 %v937, 16
      %v1008 = vrot.slane %v1006, 4
      %v1009 = vor.u32 %v1008, %v1004
      %v1010 = vrot.slane %v1009, 4
      %v1012 = vshll.u32 %v956, 16
      %v1014 = vrot.slane %v1012, 5
      %v1015 = vsel %vm967, %v1010, %v1014
      %v1017 = vshrl.u32 %v938, 16
      %v1019 = vrot.slane %v1017, 4
      %v1020 = vshll.u32 %v938, 16
      %v1022 = vrot.slane %v1020, 5
      %v1023 = vor.u32 %v1019, %v1022
      %v1024 = vrot.slane %v1023, 4
      %v1026 = vshll.u32 %v939, 16
      %v1028 = vrot.slane %v1026, 5
      %v1029 = vsel %vm967, %v1024, %v1028
      %v1030 = vshrl.u32 %v939, 16
      %v1032 = vrot.slane %v1030, 4
      %v1033 = vor.u32 %v1032, %v1028
      %v1034 = vrot.slane %v1033, 4
      %v1036 = vshll.u32 %v957, 16
      %v1038 = vrot.slane %v1036, 5
      %v1039 = vsel %vm967, %v1034, %v1038
      %v1041 = vshrl.u32 %v940, 16
      %v1043 = vrot.slane %v1041, 4
      %v1044 = vshll.u32 %v940, 16
      %v1046 = vrot.slane %v1044, 5
      %v1047 = vor.u32 %v1043, %v1046
      %v1048 = vrot.slane %v1047, 4
      %v1050 = vshll.u32 %v941, 16
      %v1052 = vrot.slane %v1050, 5
      %v1053 = vsel %vm967, %v1048, %v1052
      %v1054 = vshrl.u32 %v941, 16
      %v1056 = vrot.slane %v1054, 4
      %v1057 = vor.u32 %v1056, %v1052
      %v1058 = vrot.slane %v1057, 4
      %v1060 = vshll.u32 %v958, 16
      %v1062 = vrot.slane %v1060, 5
      %v1063 = vsel %vm967, %v1058, %v1062
      %v1065 = vshrl.u32 %v942, 16
      %v1067 = vrot.slane %v1065, 4
      %v1068 = vshll.u32 %v942, 16
      %v1070 = vrot.slane %v1068, 5
      %v1071 = vor.u32 %v1067, %v1070
      %v1072 = vrot.slane %v1071, 4
      %v1074 = vshll.u32 %v943, 16
      %v1076 = vrot.slane %v1074, 5
      %v1077 = vsel %vm967, %v1072, %v1076
      %v1078 = vshrl.u32 %v943, 16
      %v1080 = vrot.slane %v1078, 4
      %v1081 = vor.u32 %v1080, %v1076
      %v1082 = vrot.slane %v1081, 4
      %v1084 = vshll.u32 %v959, 16
      %v1086 = vrot.slane %v1084, 5
      %v1087 = vsel %vm967, %v1082, %v1086
      %v1089 = vshrl.u32 %v944, 16
      %v1091 = vrot.slane %v1089, 4
      %v1092 = vshll.u32 %v944, 16
      %v1094 = vrot.slane %v1092, 5
      %v1095 = vor.u32 %v1091, %v1094
      %v1096 = vrot.slane %v1095, 4
      %v1098 = vshll.u32 %v945, 16
      %v1100 = vrot.slane %v1098, 5
      %v1101 = vsel %vm967, %v1096, %v1100
      %v1102 = vshrl.u32 %v945, 16
      %v1104 = vrot.slane %v1102, 4
      %v1105 = vor.u32 %v1104, %v1100
      %v1106 = vrot.slane %v1105, 4
      %v1108 = vshll.u32 %v960, 16
      %v1110 = vrot.slane %v1108, 5
      %v1111 = vsel %vm967, %v1106, %v1110
      %v1113 = vshrl.u32 %v946, 16
      %v1115 = vrot.slane %v1113, 4
      %v1116 = vshll.u32 %v946, 16
      %v1118 = vrot.slane %v1116, 5
      %v1119 = vor.u32 %v1115, %v1118
      %v1120 = vrot.slane %v1119, 4
      %v1122 = vshll.u32 %v947, 16
      %v1124 = vrot.slane %v1122, 5
      %v1125 = vsel %vm967, %v1120, %v1124
      %v1126 = vshrl.u32 %v947, 16
      %v1128 = vrot.slane %v1126, 4
      %v1129 = vor.u32 %v1128, %v1124
      %v1130 = vrot.slane %v1129, 4
      %v1132 = vshll.u32 %v961, 16
      %v1134 = vrot.slane %v1132, 5
      %v1135 = vsel %vm967, %v1130, %v1134
      %v1137 = vshrl.u32 %v948, 16
      %v1139 = vrot.slane %v1137, 4
      %v1140 = vshll.u32 %v948, 16
      %v1142 = vrot.slane %v1140, 5
      %v1143 = vor.u32 %v1139, %v1142
      %v1144 = vrot.slane %v1143, 4
      %v1146 = vshll.u32 %v949, 16
      %v1148 = vrot.slane %v1146, 5
      %v1149 = vsel %vm967, %v1144, %v1148
      %v1150 = vshrl.u32 %v949, 16
      %v1152 = vrot.slane %v1150, 4
      %v1153 = vor.u32 %v1152, %v1148
      %v1154 = vrot.slane %v1153, 4
      %v1156 = vshll.u32 %v962, 16
      %v1158 = vrot.slane %v1156, 5
      %v1159 = vsel %vm967, %v1154, %v1158
      %v1161 = vshrl.u32 %v950, 16
      %v1163 = vrot.slane %v1161, 4
      %v1164 = vshll.u32 %v950, 16
      %v1166 = vrot.slane %v1164, 5
      %v1167 = vor.u32 %v1163, %v1166
      %v1168 = vrot.slane %v1167, 4
      %v1170 = vshll.u32 %v951, 16
      %v1172 = vrot.slane %v1170, 5
      %v1173 = vsel %vm967, %v1168, %v1172
      %v1174 = vshrl.u32 %v951, 16
      %v1176 = vrot.slane %v1174, 4
      %v1177 = vor.u32 %v1176, %v1172
      %v1178 = vrot.slane %v1177, 4
      %v1180 = vshll.u32 %v963, 16
      %v1182 = vrot.slane %v1180, 5
      %v1183 = vsel %vm967, %v1178, %v1182
      %v1185 = vshrl.u32 %v952, 16
      %v1187 = vrot.slane %v1185, 4
      %v1188 = vshll.u32 %v952, 16
      %v1190 = vrot.slane %v1188, 5
      %v1191 = vor.u32 %v1187, %v1190
      %v1192 = vrot.slane %v1191, 4
      %v1194 = vshll.u32 %v953, 16
      %v1196 = vrot.slane %v1194, 5
      %v1197 = vsel %vm967, %v1192, %v1196
      %v1198 = vshrl.u32 %v953, 16
      %v1200 = vrot.slane %v1198, 4
      %v1201 = vor.u32 %v1200, %v1196
      %v1202 = vrot.slane %v1201, 4
      %v1204 = vshll.u32 %v964, 16
      %v1206 = vrot.slane %v1204, 5
      %v1207 = vsel %vm967, %v1202, %v1206
      %s1208 = scalar_lea.vmem %s3, 4
      %v1209 = vld [vmem:[%s1208] sm:$0xf]
      %v1210 = vunpack.c.l.b16 %v981
      %v1211 = vunpack.c.l.b16 %v991
      %v1212 = vunpack.c.l.b16 %v1005
      %v1213 = vunpack.c.l.b16 %v1015
      %v1214 = vunpack.c.l.b16 %v1029
      %v1215 = vunpack.c.l.b16 %v1039
      %v1216 = vunpack.c.l.b16 %v1053
      %v1217 = vunpack.c.l.b16 %v1063
      %v1218 = vunpack.c.l.b16 %v1077
      %v1219 = vunpack.c.l.b16 %v1087
      %v1220 = vunpack.c.l.b16 %v1101
      %v1221 = vunpack.c.l.b16 %v1111
      %v1222 = vunpack.c.l.b16 %v1125
      %v1223 = vunpack.c.l.b16 %v1135
      %v1224 = vunpack.c.l.b16 %v1149
      %v1225 = vunpack.c.l.b16 %v1159
      %v1226 = vunpack.c.l.b16 %v1173
      %v1227 = vunpack.c.l.b16 %v1183
      %v1228 = vunpack.c.l.b16 %v1197
      %v1229 = vunpack.c.l.b16 %v1207
      %v1230 = vpack.c.b16 %v1211, %v1210
      %v1231 = vpack.c.b16 %v1213, %v1212
      %v1232 = vpack.c.b16 %v1215, %v1214
      %v1233 = vpack.c.b16 %v1217, %v1216
      %v1234 = vpack.c.b16 %v1219, %v1218
      %v1235 = vpack.c.b16 %v1221, %v1220
      %v1236 = vpack.c.b16 %v1223, %v1222
      %v1237 = vpack.c.b16 %v1225, %v1224
      %v1238 = vpack.c.b16 %v1227, %v1226
      %v1239 = vpack.c.b16 %v1229, %v1228
      %vm1240 = vcmask 64512
      %v1242 = vsel %vm1240, %v1230, 0
      %v1245 = vsel %vm1240, %v1231, 0
      %v1248 = vsel %vm1240, %v1232, 0
      %v1251 = vsel %vm1240, %v1233, 0
      %v1254 = vsel %vm1240, %v1234, 0
      %v1257 = vsel %vm1240, %v1235, 0
      %v1260 = vsel %vm1240, %v1236, 0
      %v1263 = vsel %vm1240, %v1237, 0
      %v1266 = vsel %vm1240, %v1238, 0
      %v1269 = vsel %vm1240, %v1239, 0
      %vm1271 = vcmask 1043456
      %v1273 = vsel %vm1271, %v1209, 0
      %1275 = vmatprep.subr.bf16.mxu0 0
      %1276 = vmatpush1.bf16.msra.mxu0 0
      %1277 = vmatprep.subr.bf16.mxu0 0
      %1278 = vmatpush1.bf16.msra.mxu0 0
      %1279 = vmatprep.subr.bf16.mxu0 0
      %1280 = vmatpush1.bf16.msra.mxu0 0
      %1281 = vmatprep.subr.bf16.mxu0 0
      %1282 = vmatpush1.bf16.msra.mxu0 0
      %1283 = vmatprep.subr.bf16.mxu0 0
      %1284 = vmatpush1.bf16.msra.mxu0 0
      %1285 = vmatprep.subr.bf16.mxu0 0
      %1286 = vmatpush1.bf16.msra.mxu0 0
      %1287 = vmatprep.subr.bf16.mxu0 0
      %1288 = vmatpush1.bf16.msra.mxu0 0
      %1289 = vmatprep.subr.bf16.mxu0 0
      %1290 = vmatpush1.bf16.msra.mxu0 %v1273
      %1291 = vmatprep.subr.bf16.mxu0 0
      %1292 = vmatpush2.bf16.msra.mxu0 0
      %1293 = vmatprep.subr.bf16.mxu0 0
      %1294 = vmatpush2.bf16.msra.mxu0 0
      %1295 = vmatprep.subr.bf16.mxu0 0
      %1296 = vmatpush2.bf16.msra.mxu0 0
      %1297 = vmatprep.subr.bf16.mxu0 0
      %1298 = vmatpush2.bf16.msra.mxu0 0
      %1299 = vmatprep.subr.bf16.mxu0 0
      %1300 = vmatpush2.bf16.msra.mxu0 0
      %1301 = vmatprep.subr.bf16.mxu0 0
      %1302 = vmatpush2.bf16.msra.mxu0 0
      %1303 = vmatprep.subr.bf16.mxu0 0
      %1304 = vmatpush2.bf16.msra.mxu0 0
      %1305 = vmatprep.subr.bf16.mxu0 0
      %1306 = vmatpush2.bf16.msra.mxu0 0
      %1307 = vmatprep.mubr.bf16.mxu0 0
      %1308 = vmatmul.mubr.bf16.gmra.mxu0 %v1242
      %v1309 = vpop.f32.mrf.mxu0
      %v1310 = vadd.f32 0.0, %v1309
      %v1311 = vpop.f32.mrf.mxu0
      %v1312 = vpop.f32.mrf.mxu0
      %v1313 = vadd.f32 0.0, %v1312
      %v1314 = vpop.f32.mrf.mxu0
      %1315 = vmatprep.mubr.bf16.mxu0 0
      %1316 = vmatmul.mubr.bf16.gmra.mxu0 %v1245
      %v1317 = vpop.f32.mrf.mxu0
      %v1318 = vadd.f32 0.0, %v1317
      %v1319 = vpop.f32.mrf.mxu0
      %v1320 = vpop.f32.mrf.mxu0
      %v1321 = vadd.f32 0.0, %v1320
      %v1322 = vpop.f32.mrf.mxu0
      %1323 = vmatprep.mubr.bf16.mxu0 0
      %1324 = vmatmul.mubr.bf16.gmra.mxu0 %v1248
      %v1325 = vpop.f32.mrf.mxu0
      %v1326 = vadd.f32 0.0, %v1325
      %v1327 = vpop.f32.mrf.mxu0
      %v1328 = vpop.f32.mrf.mxu0
      %v1329 = vadd.f32 0.0, %v1328
      %v1330 = vpop.f32.mrf.mxu0
      %1331 = vmatprep.mubr.bf16.mxu0 0
      %1332 = vmatmul.mubr.bf16.gmra.mxu0 %v1251
      %v1333 = vpop.f32.mrf.mxu0
      %v1334 = vadd.f32 0.0, %v1333
      %v1335 = vpop.f32.mrf.mxu0
      %v1336 = vpop.f32.mrf.mxu0
      %v1337 = vadd.f32 0.0, %v1336
      %v1338 = vpop.f32.mrf.mxu0
      %1339 = vmatprep.mubr.bf16.mxu0 0
      %1340 = vmatmul.mubr.bf16.gmra.mxu0 %v1254
      %v1341 = vpop.f32.mrf.mxu0
      %v1342 = vadd.f32 0.0, %v1341
      %v1343 = vpop.f32.mrf.mxu0
      %v1344 = vpop.f32.mrf.mxu0
      %v1345 = vadd.f32 0.0, %v1344
      %v1346 = vpop.f32.mrf.mxu0
      %1347 = vmatprep.mubr.bf16.mxu0 0
      %1348 = vmatmul.mubr.bf16.gmra.mxu0 %v1257
      %v1349 = vpop.f32.mrf.mxu0
      %v1350 = vadd.f32 0.0, %v1349
      %v1351 = vpop.f32.mrf.mxu0
      %v1352 = vpop.f32.mrf.mxu0
      %v1353 = vadd.f32 0.0, %v1352
      %v1354 = vpop.f32.mrf.mxu0
      %1355 = vmatprep.mubr.bf16.mxu0 0
      %1356 = vmatmul.mubr.bf16.gmra.mxu0 %v1260
      %v1357 = vpop.f32.mrf.mxu0
      %v1358 = vadd.f32 0.0, %v1357
      %v1359 = vpop.f32.mrf.mxu0
      %v1360 = vpop.f32.mrf.mxu0
      %v1361 = vadd.f32 0.0, %v1360
      %v1362 = vpop.f32.mrf.mxu0
      %1363 = vmatprep.mubr.bf16.mxu0 0
      %1364 = vmatmul.mubr.bf16.gmra.mxu0 %v1263
      %v1365 = vpop.f32.mrf.mxu0
      %v1366 = vadd.f32 0.0, %v1365
      %v1367 = vpop.f32.mrf.mxu0
      %v1368 = vpop.f32.mrf.mxu0
      %v1369 = vadd.f32 0.0, %v1368
      %v1370 = vpop.f32.mrf.mxu0
      %1371 = vmatprep.mubr.bf16.mxu0 0
      %1372 = vmatmul.mubr.bf16.gmra.mxu0 %v1266
      %v1373 = vpop.f32.mrf.mxu0
      %v1374 = vadd.f32 0.0, %v1373
      %v1375 = vpop.f32.mrf.mxu0
      %v1376 = vpop.f32.mrf.mxu0
      %v1377 = vadd.f32 0.0, %v1376
      %v1378 = vpop.f32.mrf.mxu0
      %1379 = vmatprep.mubr.bf16.mxu0 0
      %1380 = vmatmul.mubr.bf16.gmra.mxu0 %v1269
      %v1381 = vpop.f32.mrf.mxu0
      %v1382 = vadd.f32 0.0, %v1381
      %v1383 = vpop.f32.mrf.mxu0
      %v1384 = vpop.f32.mrf.mxu0
      %v1385 = vadd.f32 0.0, %v1384
      %v1386 = vpop.f32.mrf.mxu0
      %1387 = vdwg.mxu0
      %v1408 = vunpack.c.l.b16 %v934
      %v1409 = vunpack.c.l.b16 %v935
      %v1410 = vunpack.c.l.b16 %v936
      %v1411 = vunpack.c.l.b16 %v937
      %v1412 = vunpack.c.l.b16 %v938
      %v1413 = vunpack.c.l.b16 %v939
      %v1414 = vunpack.c.l.b16 %v940
      %v1415 = vunpack.c.l.b16 %v941
      %v1416 = vunpack.c.l.b16 %v942
      %v1417 = vunpack.c.l.b16 %v943
      %v1418 = vunpack.c.l.b16 %v944
      %v1419 = vunpack.c.l.b16 %v945
      %v1420 = vunpack.c.l.b16 %v946
      %v1421 = vunpack.c.l.b16 %v947
      %v1422 = vunpack.c.l.b16 %v948
      %v1423 = vunpack.c.l.b16 %v949
      %v1424 = vunpack.c.l.b16 %v950
      %v1425 = vunpack.c.l.b16 %v951
      %v1426 = vunpack.c.l.b16 %v952
      %v1427 = vunpack.c.l.b16 %v953
      %v1428 = vpack.c.b16 %v1409, %v1408
      %v1429 = vpack.c.b16 %v1411, %v1410
      %v1430 = vpack.c.b16 %v1413, %v1412
      %v1431 = vpack.c.b16 %v1415, %v1414
      %v1432 = vpack.c.b16 %v1417, %v1416
      %v1433 = vpack.c.b16 %v1419, %v1418
      %v1434 = vpack.c.b16 %v1421, %v1420
      %v1435 = vpack.c.b16 %v1423, %v1422
      %v1436 = vpack.c.b16 %v1425, %v1424
      %v1437 = vpack.c.b16 %v1427, %v1426
      %v1439 = vsel %vm1240, %v1428, 0
      %v1442 = vsel %vm1240, %v1429, 0
      %v1445 = vsel %vm1240, %v1430, 0
      %v1448 = vsel %vm1240, %v1431, 0
      %v1451 = vsel %vm1240, %v1432, 0
      %v1454 = vsel %vm1240, %v1433, 0
      %v1457 = vsel %vm1240, %v1434, 0
      %v1460 = vsel %vm1240, %v1435, 0
      %v1463 = vsel %vm1240, %v1436, 0
      %v1466 = vsel %vm1240, %v1437, 0
      %v1469 = vsel %vm1271, %v954, 0
      %1471 = vmatprep.subr.bf16.mxu0 0
      %1472 = vmatpush1.bf16.msra.mxu0 0
      %1473 = vmatprep.subr.bf16.mxu0 0
      %1474 = vmatpush1.bf16.msra.mxu0 0
      %1475 = vmatprep.subr.bf16.mxu0 0
      %1476 = vmatpush1.bf16.msra.mxu0 0
      %1477 = vmatprep.subr.bf16.mxu0 0
      %1478 = vmatpush1.bf16.msra.mxu0 0
      %1479 = vmatprep.subr.bf16.mxu0 0
      %1480 = vmatpush1.bf16.msra.mxu0 0
      %1481 = vmatprep.subr.bf16.mxu0 0
      %1482 = vmatpush1.bf16.msra.mxu0 0
      %1483 = vmatprep.subr.bf16.mxu0 0
      %1484 = vmatpush1.bf16.msra.mxu0 0
      %1485 = vmatprep.subr.bf16.mxu0 0
      %1486 = vmatpush1.bf16.msra.mxu0 %v1469
      %1487 = vmatprep.subr.bf16.mxu0 0
      %1488 = vmatpush2.bf16.msra.mxu0 0
      %1489 = vmatprep.subr.bf16.mxu0 0
      %1490 = vmatpush2.bf16.msra.mxu0 0
      %1491 = vmatprep.subr.bf16.mxu0 0
      %1492 = vmatpush2.bf16.msra.mxu0 0
      %1493 = vmatprep.subr.bf16.mxu0 0
      %1494 = vmatpush2.bf16.msra.mxu0 0
      %1495 = vmatprep.subr.bf16.mxu0 0
      %1496 = vmatpush2.bf16.msra.mxu0 0
      %1497 = vmatprep.subr.bf16.mxu0 0
      %1498 = vmatpush2.bf16.msra.mxu0 0
      %1499 = vmatprep.subr.bf16.mxu0 0
      %1500 = vmatpush2.bf16.msra.mxu0 0
      %1501 = vmatprep.subr.bf16.mxu0 0
      %1502 = vmatpush2.bf16.msra.mxu0 0
      %1503 = vmatprep.mubr.bf16.mxu0 0
      %1504 = vmatmul.mubr.bf16.gmra.mxu0 %v1439
      %v1505 = vpop.f32.mrf.mxu0
      %v1506 = vadd.f32 %v1310, %v1505
      %v1507 = vpop.f32.mrf.mxu0
      %v1508 = vpop.f32.mrf.mxu0
      %v1509 = vadd.f32 %v1313, %v1508
      %v1510 = vpop.f32.mrf.mxu0
      %1511 = vmatprep.mubr.bf16.mxu0 0
      %1512 = vmatmul.mubr.bf16.gmra.mxu0 %v1442
      %v1513 = vpop.f32.mrf.mxu0
      %v1514 = vadd.f32 %v1318, %v1513
      %v1515 = vpop.f32.mrf.mxu0
      %v1516 = vpop.f32.mrf.mxu0
      %v1517 = vadd.f32 %v1321, %v1516
      %v1518 = vpop.f32.mrf.mxu0
      %1519 = vmatprep.mubr.bf16.mxu0 0
      %1520 = vmatmul.mubr.bf16.gmra.mxu0 %v1445
      %v1521 = vpop.f32.mrf.mxu0
      %v1522 = vadd.f32 %v1326, %v1521
      %v1523 = vpop.f32.mrf.mxu0
      %v1524 = vpop.f32.mrf.mxu0
      %v1525 = vadd.f32 %v1329, %v1524
      %v1526 = vpop.f32.mrf.mxu0
      %1527 = vmatprep.mubr.bf16.mxu0 0
      %1528 = vmatmul.mubr.bf16.gmra.mxu0 %v1448
      %v1529 = vpop.f32.mrf.mxu0
      %v1530 = vadd.f32 %v1334, %v1529
      %v1531 = vpop.f32.mrf.mxu0
      %v1532 = vpop.f32.mrf.mxu0
      %v1533 = vadd.f32 %v1337, %v1532
      %v1534 = vpop.f32.mrf.mxu0
      %1535 = vmatprep.mubr.bf16.mxu0 0
      %1536 = vmatmul.mubr.bf16.gmra.mxu0 %v1451
      %v1537 = vpop.f32.mrf.mxu0
      %v1538 = vadd.f32 %v1342, %v1537
      %v1539 = vpop.f32.mrf.mxu0
      %v1540 = vpop.f32.mrf.mxu0
      %v1541 = vadd.f32 %v1345, %v1540
      %v1542 = vpop.f32.mrf.mxu0
      %1543 = vmatprep.mubr.bf16.mxu0 0
      %1544 = vmatmul.mubr.bf16.gmra.mxu0 %v1454
      %v1545 = vpop.f32.mrf.mxu0
      %v1546 = vadd.f32 %v1350, %v1545
      %v1547 = vpop.f32.mrf.mxu0
      %v1548 = vpop.f32.mrf.mxu0
      %v1549 = vadd.f32 %v1353, %v1548
      %v1550 = vpop.f32.mrf.mxu0
      %1551 = vmatprep.mubr.bf16.mxu0 0
      %1552 = vmatmul.mubr.bf16.gmra.mxu0 %v1457
      %v1553 = vpop.f32.mrf.mxu0
      %v1554 = vadd.f32 %v1358, %v1553
      %v1555 = vpop.f32.mrf.mxu0
      %v1556 = vpop.f32.mrf.mxu0
      %v1557 = vadd.f32 %v1361, %v1556
      %v1558 = vpop.f32.mrf.mxu0
      %1559 = vmatprep.mubr.bf16.mxu0 0
      %1560 = vmatmul.mubr.bf16.gmra.mxu0 %v1460
      %v1561 = vpop.f32.mrf.mxu0
      %v1562 = vadd.f32 %v1366, %v1561
      %v1563 = vpop.f32.mrf.mxu0
      %v1564 = vpop.f32.mrf.mxu0
      %v1565 = vadd.f32 %v1369, %v1564
      %v1566 = vpop.f32.mrf.mxu0
      %1567 = vmatprep.mubr.bf16.mxu0 0
      %1568 = vmatmul.mubr.bf16.gmra.mxu0 %v1463
      %v1569 = vpop.f32.mrf.mxu0
      %v1570 = vadd.f32 %v1374, %v1569
      %v1571 = vpop.f32.mrf.mxu0
      %v1572 = vpop.f32.mrf.mxu0
      %v1573 = vadd.f32 %v1377, %v1572
      %v1574 = vpop.f32.mrf.mxu0
      %1575 = vmatprep.mubr.bf16.mxu0 0
      %1576 = vmatmul.mubr.bf16.gmra.mxu0 %v1466
      %v1577 = vpop.f32.mrf.mxu0
      %v1578 = vadd.f32 %v1382, %v1577
      %v1579 = vpop.f32.mrf.mxu0
      %v1580 = vpop.f32.mrf.mxu0
      %v1581 = vadd.f32 %v1385, %v1580
      %v1582 = vpop.f32.mrf.mxu0
      %1583 = vdwg.mxu0
      %v1584 = vld [vmem:[#allocation2] sm:$0xe]
      %v1585 = vld [vmem:[#allocation2 + $0xc] sm:$0xe]
      %v1586 = vld [vmem:[#allocation2 + $0x18] sm:$0xe]
      %v1587 = vld [vmem:[#allocation2 + $0x24] sm:$0xe]
      %v1588 = vld [vmem:[#allocation2 + $0x30] sm:$0xe]
      %v1589 = vld [vmem:[#allocation2 + $0x3c] sm:$0xe]
      %v1590 = vld [vmem:[#allocation2 + $0x48] sm:$0xe]
      %v1591 = vld [vmem:[#allocation2 + $0x54] sm:$0xe]
      %v1592 = vld [vmem:[#allocation2 + $0x60] sm:$0xe]
      %v1593 = vld [vmem:[#allocation2 + $0x6c] sm:$0xe]
      %vm1614 = vcmask 1042432
      %vm1615 = vcmask 1046532
      %vm1616 = vmor %vm1614, %vm1615
      %v1617 = vrot.slane %v1584, 5
      %v1618 = vrot.slane %v1617, 4
      %v1619 = vrot.slane %v935, 5
      %v1620 = vsel %vm1616, %v1618, %v1619
      %v1621 = vrot.slane %v1619, 4
      %v1622 = vrot.slane %v955, 5
      %v1623 = vsel %vm1616, %v1621, %v1622
      %v1624 = vrot.slane %v1585, 5
      %v1625 = vrot.slane %v1624, 4
      %v1626 = vrot.slane %v937, 5
      %v1627 = vsel %vm1616, %v1625, %v1626
      %v1628 = vrot.slane %v1626, 4
      %v1629 = vrot.slane %v956, 5
      %v1630 = vsel %vm1616, %v1628, %v1629
      %v1631 = vrot.slane %v1586, 5
      %v1632 = vrot.slane %v1631, 4
      %v1633 = vrot.slane %v939, 5
      %v1634 = vsel %vm1616, %v1632, %v1633
      %v1635 = vrot.slane %v1633, 4
      %v1636 = vrot.slane %v957, 5
      %v1637 = vsel %vm1616, %v1635, %v1636
      %v1638 = vrot.slane %v1587, 5
      %v1639 = vrot.slane %v1638, 4
      %v1640 = vrot.slane %v941, 5
      %v1641 = vsel %vm1616, %v1639, %v1640
      %v1642 = vrot.slane %v1640, 4
      %v1643 = vrot.slane %v958, 5
      %v1644 = vsel %vm1616, %v1642, %v1643
      %v1645 = vrot.slane %v1588, 5
      %v1646 = vrot.slane %v1645, 4
      %v1647 = vrot.slane %v943, 5
      %v1648 = vsel %vm1616, %v1646, %v1647
      %v1649 = vrot.slane %v1647, 4
      %v1650 = vrot.slane %v959, 5
      %v1651 = vsel %vm1616, %v1649, %v1650
      %v1652 = vrot.slane %v1589, 5
      %v1653 = vrot.slane %v1652, 4
      %v1654 = vrot.slane %v945, 5
      %v1655 = vsel %vm1616, %v1653, %v1654
      %v1656 = vrot.slane %v1654, 4
      %v1657 = vrot.slane %v960, 5
      %v1658 = vsel %vm1616, %v1656, %v1657
      %v1659 = vrot.slane %v1590, 5
      %v1660 = vrot.slane %v1659, 4
      %v1661 = vrot.slane %v947, 5
      %v1662 = vsel %vm1616, %v1660, %v1661
      %v1663 = vrot.slane %v1661, 4
      %v1664 = vrot.slane %v961, 5
      %v1665 = vsel %vm1616, %v1663, %v1664
      %v1666 = vrot.slane %v1591, 5
      %v1667 = vrot.slane %v1666, 4
      %v1668 = vrot.slane %v949, 5
      %v1669 = vsel %vm1616, %v1667, %v1668
      %v1670 = vrot.slane %v1668, 4
      %v1671 = vrot.slane %v962, 5
      %v1672 = vsel %vm1616, %v1670, %v1671
      %v1673 = vrot.slane %v1592, 5
      %v1674 = vrot.slane %v1673, 4
      %v1675 = vrot.slane %v951, 5
      %v1676 = vsel %vm1616, %v1674, %v1675
      %v1677 = vrot.slane %v1675, 4
      %v1678 = vrot.slane %v963, 5
      %v1679 = vsel %vm1616, %v1677, %v1678
      %v1680 = vrot.slane %v1593, 5
      %v1681 = vrot.slane %v1680, 4
      %v1682 = vrot.slane %v953, 5
      %v1683 = vsel %vm1616, %v1681, %v1682
      %v1684 = vrot.slane %v1682, 4
      %v1685 = vrot.slane %v964, 5
      %v1686 = vsel %vm1616, %v1684, %v1685
      %s1687 = scalar_lea.vmem %s3, 8
      %v1688 = vld [vmem:[%s1687] sm:$0xf]
      %v1689 = vunpack.c.l.b16 %v1620
      %v1690 = vunpack.c.l.b16 %v1623
      %v1691 = vunpack.c.l.b16 %v1627
      %v1692 = vunpack.c.l.b16 %v1630
      %v1693 = vunpack.c.l.b16 %v1634
      %v1694 = vunpack.c.l.b16 %v1637
      %v1695 = vunpack.c.l.b16 %v1641
      %v1696 = vunpack.c.l.b16 %v1644
      %v1697 = vunpack.c.l.b16 %v1648
      %v1698 = vunpack.c.l.b16 %v1651
      %v1699 = vunpack.c.l.b16 %v1655
      %v1700 = vunpack.c.l.b16 %v1658
      %v1701 = vunpack.c.l.b16 %v1662
      %v1702 = vunpack.c.l.b16 %v1665
      %v1703 = vunpack.c.l.b16 %v1669
      %v1704 = vunpack.c.l.b16 %v1672
      %v1705 = vunpack.c.l.b16 %v1676
      %v1706 = vunpack.c.l.b16 %v1679
      %v1707 = vunpack.c.l.b16 %v1683
      %v1708 = vunpack.c.l.b16 %v1686
      %v1709 = vpack.c.b16 %v1690, %v1689
      %v1710 = vpack.c.b16 %v1692, %v1691
      %v1711 = vpack.c.b16 %v1694, %v1693
      %v1712 = vpack.c.b16 %v1696, %v1695
      %v1713 = vpack.c.b16 %v1698, %v1697
      %v1714 = vpack.c.b16 %v1700, %v1699
      %v1715 = vpack.c.b16 %v1702, %v1701
      %v1716 = vpack.c.b16 %v1704, %v1703
      %v1717 = vpack.c.b16 %v1706, %v1705
      %v1718 = vpack.c.b16 %v1708, %v1707
      %v1720 = vsel %vm1240, %v1709, 0
      %v1723 = vsel %vm1240, %v1710, 0
      %v1726 = vsel %vm1240, %v1711, 0
      %v1729 = vsel %vm1240, %v1712, 0
      %v1732 = vsel %vm1240, %v1713, 0
      %v1735 = vsel %vm1240, %v1714, 0
      %v1738 = vsel %vm1240, %v1715, 0
      %v1741 = vsel %vm1240, %v1716, 0
      %v1744 = vsel %vm1240, %v1717, 0
      %v1747 = vsel %vm1240, %v1718, 0
      %v1750 = vsel %vm1271, %v1688, 0
      %1752 = vmatprep.subr.bf16.mxu0 0
      %1753 = vmatpush1.bf16.msra.mxu0 0
      %1754 = vmatprep.subr.bf16.mxu0 0
      %1755 = vmatpush1.bf16.msra.mxu0 0
      %1756 = vmatprep.subr.bf16.mxu0 0
      %1757 = vmatpush1.bf16.msra.mxu0 0
      %1758 = vmatprep.subr.bf16.mxu0 0
      %1759 = vmatpush1.bf16.msra.mxu0 0
      %1760 = vmatprep.subr.bf16.mxu0 0
      %1761 = vmatpush1.bf16.msra.mxu0 0
      %1762 = vmatprep.subr.bf16.mxu0 0
      %1763 = vmatpush1.bf16.msra.mxu0 0
      %1764 = vmatprep.subr.bf16.mxu0 0
      %1765 = vmatpush1.bf16.msra.mxu0 0
      %1766 = vmatprep.subr.bf16.mxu0 0
      %1767 = vmatpush1.bf16.msra.mxu0 %v1750
      %1768 = vmatprep.subr.bf16.mxu0 0
      %1769 = vmatpush2.bf16.msra.mxu0 0
      %1770 = vmatprep.subr.bf16.mxu0 0
      %1771 = vmatpush2.bf16.msra.mxu0 0
      %1772 = vmatprep.subr.bf16.mxu0 0
      %1773 = vmatpush2.bf16.msra.mxu0 0
      %1774 = vmatprep.subr.bf16.mxu0 0
      %1775 = vmatpush2.bf16.msra.mxu0 0
      %1776 = vmatprep.subr.bf16.mxu0 0
      %1777 = vmatpush2.bf16.msra.mxu0 0
      %1778 = vmatprep.subr.bf16.mxu0 0
      %1779 = vmatpush2.bf16.msra.mxu0 0
      %1780 = vmatprep.subr.bf16.mxu0 0
      %1781 = vmatpush2.bf16.msra.mxu0 0
      %1782 = vmatprep.subr.bf16.mxu0 0
      %1783 = vmatpush2.bf16.msra.mxu0 0
      %1784 = vmatprep.mubr.bf16.mxu0 0
      %1785 = vmatmul.mubr.bf16.gmra.mxu0 %v1720
      %v1786 = vpop.f32.mrf.mxu0
      %v1787 = vadd.f32 0.0, %v1786
      %v1788 = vpop.f32.mrf.mxu0
      %v1789 = vpop.f32.mrf.mxu0
      %v1790 = vadd.f32 0.0, %v1789
      %v1791 = vpop.f32.mrf.mxu0
      %1792 = vmatprep.mubr.bf16.mxu0 0
      %1793 = vmatmul.mubr.bf16.gmra.mxu0 %v1723
      %v1794 = vpop.f32.mrf.mxu0
      %v1795 = vadd.f32 0.0, %v1794
      %v1796 = vpop.f32.mrf.mxu0
      %v1797 = vpop.f32.mrf.mxu0
      %v1798 = vadd.f32 0.0, %v1797
      %v1799 = vpop.f32.mrf.mxu0
      %1800 = vmatprep.mubr.bf16.mxu0 0
      %1801 = vmatmul.mubr.bf16.gmra.mxu0 %v1726
      %v1802 = vpop.f32.mrf.mxu0
      %v1803 = vadd.f32 0.0, %v1802
      %v1804 = vpop.f32.mrf.mxu0
      %v1805 = vpop.f32.mrf.mxu0
      %v1806 = vadd.f32 0.0, %v1805
      %v1807 = vpop.f32.mrf.mxu0
      %1808 = vmatprep.mubr.bf16.mxu0 0
      %1809 = vmatmul.mubr.bf16.gmra.mxu0 %v1729
      %v1810 = vpop.f32.mrf.mxu0
      %v1811 = vadd.f32 0.0, %v1810
      %v1812 = vpop.f32.mrf.mxu0
      %v1813 = vpop.f32.mrf.mxu0
      %v1814 = vadd.f32 0.0, %v1813
      %v1815 = vpop.f32.mrf.mxu0
      %1816 = vmatprep.mubr.bf16.mxu0 0
      %1817 = vmatmul.mubr.bf16.gmra.mxu0 %v1732
      %v1818 = vpop.f32.mrf.mxu0
      %v1819 = vadd.f32 0.0, %v1818
      %v1820 = vpop.f32.mrf.mxu0
      %v1821 = vpop.f32.mrf.mxu0
      %v1822 = vadd.f32 0.0, %v1821
      %v1823 = vpop.f32.mrf.mxu0
      %1824 = vmatprep.mubr.bf16.mxu0 0
      %1825 = vmatmul.mubr.bf16.gmra.mxu0 %v1735
      %v1826 = vpop.f32.mrf.mxu0
      %v1827 = vadd.f32 0.0, %v1826
      %v1828 = vpop.f32.mrf.mxu0
      %v1829 = vpop.f32.mrf.mxu0
      %v1830 = vadd.f32 0.0, %v1829
      %v1831 = vpop.f32.mrf.mxu0
      %1832 = vmatprep.mubr.bf16.mxu0 0
      %1833 = vmatmul.mubr.bf16.gmra.mxu0 %v1738
      %v1834 = vpop.f32.mrf.mxu0
      %v1835 = vadd.f32 0.0, %v1834
      %v1836 = vpop.f32.mrf.mxu0
      %v1837 = vpop.f32.mrf.mxu0
      %v1838 = vadd.f32 0.0, %v1837
      %v1839 = vpop.f32.mrf.mxu0
      %1840 = vmatprep.mubr.bf16.mxu0 0
      %1841 = vmatmul.mubr.bf16.gmra.mxu0 %v1741
      %v1842 = vpop.f32.mrf.mxu0
      %v1843 = vadd.f32 0.0, %v1842
      %v1844 = vpop.f32.mrf.mxu0
      %v1845 = vpop.f32.mrf.mxu0
      %v1846 = vadd.f32 0.0, %v1845
      %v1847 = vpop.f32.mrf.mxu0
      %1848 = vmatprep.mubr.bf16.mxu0 0
      %1849 = vmatmul.mubr.bf16.gmra.mxu0 %v1744
      %v1850 = vpop.f32.mrf.mxu0
      %v1851 = vadd.f32 0.0, %v1850
      %v1852 = vpop.f32.mrf.mxu0
      %v1853 = vpop.f32.mrf.mxu0
      %v1854 = vadd.f32 0.0, %v1853
      %v1855 = vpop.f32.mrf.mxu0
      %1856 = vmatprep.mubr.bf16.mxu0 0
      %1857 = vmatmul.mubr.bf16.gmra.mxu0 %v1747
      %v1858 = vpop.f32.mrf.mxu0
      %v1859 = vadd.f32 0.0, %v1858
      %v1860 = vpop.f32.mrf.mxu0
      %v1861 = vpop.f32.mrf.mxu0
      %v1862 = vadd.f32 0.0, %v1861
      %v1863 = vpop.f32.mrf.mxu0
      %1864 = vdwg.mxu0
      %v1865 = vadd.f32 %v1506, %v1787
      %v1866 = vadd.f32 %v1509, %v1790
      %v1867 = vadd.f32 %v1514, %v1795
      %v1868 = vadd.f32 %v1517, %v1798
      %v1869 = vadd.f32 %v1522, %v1803
      %v1870 = vadd.f32 %v1525, %v1806
      %v1871 = vadd.f32 %v1530, %v1811
      %v1872 = vadd.f32 %v1533, %v1814
      %v1873 = vadd.f32 %v1538, %v1819
      %v1874 = vadd.f32 %v1541, %v1822
      %v1875 = vadd.f32 %v1546, %v1827
      %v1876 = vadd.f32 %v1549, %v1830
      %v1877 = vadd.f32 %v1554, %v1835
      %v1878 = vadd.f32 %v1557, %v1838
      %v1879 = vadd.f32 %v1562, %v1843
      %v1880 = vadd.f32 %v1565, %v1846
      %v1881 = vadd.f32 %v1570, %v1851
      %v1882 = vadd.f32 %v1573, %v1854
      %v1883 = vadd.f32 %v1578, %v1859
      %v1884 = vadd.f32 %v1581, %v1862
      %s1885 = scalar_lea.vmem [#allocation2], 12
      %v1886 = vld [vmem:[%s1885] sm:$0xf]
      %v1887 = vld [vmem:[%s1885 + $0x4] sm:$0xf]
      %v1888 = vld [vmem:[%s1885 + $0xc] sm:$0xf]
      %v1889 = vld [vmem:[%s1885 + $0x10] sm:$0xf]
      %v1890 = vld [vmem:[%s1885 + $0x18] sm:$0xf]
      %v1891 = vld [vmem:[%s1885 + $0x1c] sm:$0xf]
      %v1892 = vld [vmem:[%s1885 + $0x24] sm:$0xf]
      %v1893 = vld [vmem:[%s1885 + $0x28] sm:$0xf]
      %v1894 = vld [vmem:[%s1885 + $0x30] sm:$0xf]
      %v1895 = vld [vmem:[%s1885 + $0x34] sm:$0xf]
      %v1896 = vld [vmem:[%s1885 + $0x3c] sm:$0xf]
      %v1897 = vld [vmem:[%s1885 + $0x40] sm:$0xf]
      %v1898 = vld [vmem:[%s1885 + $0x48] sm:$0xf]
      %v1899 = vld [vmem:[%s1885 + $0x4c] sm:$0xf]
      %v1900 = vld [vmem:[%s1885 + $0x54] sm:$0xf]
      %v1901 = vld [vmem:[%s1885 + $0x58] sm:$0xf]
      %v1902 = vld [vmem:[%s1885 + $0x60] sm:$0xf]
      %v1903 = vld [vmem:[%s1885 + $0x64] sm:$0xf]
      %v1904 = vld [vmem:[%s1885 + $0x6c] sm:$0xf]
      %v1905 = vld [vmem:[%s1885 + $0x70] sm:$0xf]
      %s1906 = scalar_lea.vmem %s3, 12
      %v1907 = vld [vmem:[%s1906] sm:$0xf]
      %v1928 = vunpack.c.l.b16 %v1886
      %v1929 = vunpack.c.l.b16 %v1887
      %v1930 = vunpack.c.l.b16 %v1888
      %v1931 = vunpack.c.l.b16 %v1889
      %v1932 = vunpack.c.l.b16 %v1890
      %v1933 = vunpack.c.l.b16 %v1891
      %v1934 = vunpack.c.l.b16 %v1892
      %v1935 = vunpack.c.l.b16 %v1893
      %v1936 = vunpack.c.l.b16 %v1894
      %v1937 = vunpack.c.l.b16 %v1895
      %v1938 = vunpack.c.l.b16 %v1896
      %v1939 = vunpack.c.l.b16 %v1897
      %v1940 = vunpack.c.l.b16 %v1898
      %v1941 = vunpack.c.l.b16 %v1899
      %v1942 = vunpack.c.l.b16 %v1900
      %v1943 = vunpack.c.l.b16 %v1901
      %v1944 = vunpack.c.l.b16 %v1902
      %v1945 = vunpack.c.l.b16 %v1903
      %v1946 = vunpack.c.l.b16 %v1904
      %v1947 = vunpack.c.l.b16 %v1905
      %v1948 = vpack.c.b16 %v1929, %v1928
      %v1949 = vpack.c.b16 %v1931, %v1930
      %v1950 = vpack.c.b16 %v1933, %v1932
      %v1951 = vpack.c.b16 %v1935, %v1934
      %v1952 = vpack.c.b16 %v1937, %v1936
      %v1953 = vpack.c.b16 %v1939, %v1938
      %v1954 = vpack.c.b16 %v1941, %v1940
      %v1955 = vpack.c.b16 %v1943, %v1942
      %v1956 = vpack.c.b16 %v1945, %v1944
      %v1957 = vpack.c.b16 %v1947, %v1946
      %v1959 = vsel %vm1240, %v1948, 0
      %v1962 = vsel %vm1240, %v1949, 0
      %v1965 = vsel %vm1240, %v1950, 0
      %v1968 = vsel %vm1240, %v1951, 0
      %v1971 = vsel %vm1240, %v1952, 0
      %v1974 = vsel %vm1240, %v1953, 0
      %v1977 = vsel %vm1240, %v1954, 0
      %v1980 = vsel %vm1240, %v1955, 0
      %v1983 = vsel %vm1240, %v1956, 0
      %v1986 = vsel %vm1240, %v1957, 0
      %v1989 = vsel %vm1271, %v1907, 0
      %1991 = vmatprep.subr.bf16.mxu0 0
      %1992 = vmatpush1.bf16.msra.mxu0 0
      %1993 = vmatprep.subr.bf16.mxu0 0
      %1994 = vmatpush1.bf16.msra.mxu0 0
      %1995 = vmatprep.subr.bf16.mxu0 0
      %1996 = vmatpush1.bf16.msra.mxu0 0
      %1997 = vmatprep.subr.bf16.mxu0 0
      %1998 = vmatpush1.bf16.msra.mxu0 0
      %1999 = vmatprep.subr.bf16.mxu0 0
      %2000 = vmatpush1.bf16.msra.mxu0 0
      %2001 = vmatprep.subr.bf16.mxu0 0
      %2002 = vmatpush1.bf16.msra.mxu0 0
      %2003 = vmatprep.subr.bf16.mxu0 0
      %2004 = vmatpush1.bf16.msra.mxu0 0
      %2005 = vmatprep.subr.bf16.mxu0 0
      %2006 = vmatpush1.bf16.msra.mxu0 %v1989
      %2007 = vmatprep.subr.bf16.mxu0 0
      %2008 = vmatpush2.bf16.msra.mxu0 0
      %2009 = vmatprep.subr.bf16.mxu0 0
      %2010 = vmatpush2.bf16.msra.mxu0 0
      %2011 = vmatprep.subr.bf16.mxu0 0
      %2012 = vmatpush2.bf16.msra.mxu0 0
      %2013 = vmatprep.subr.bf16.mxu0 0
      %2014 = vmatpush2.bf16.msra.mxu0 0
      %2015 = vmatprep.subr.bf16.mxu0 0
      %2016 = vmatpush2.bf16.msra.mxu0 0
      %2017 = vmatprep.subr.bf16.mxu0 0
      %2018 = vmatpush2.bf16.msra.mxu0 0
      %2019 = vmatprep.subr.bf16.mxu0 0
      %2020 = vmatpush2.bf16.msra.mxu0 0
      %2021 = vmatprep.subr.bf16.mxu0 0
      %2022 = vmatpush2.bf16.msra.mxu0 0
      %2023 = vmatprep.mubr.bf16.mxu0 0
      %2024 = vmatmul.mubr.bf16.gmra.mxu0 %v1959
      %v2025 = vpop.f32.mrf.mxu0
      %v2026 = vadd.f32 0.0, %v2025
      %v2027 = vpop.f32.mrf.mxu0
      %v2028 = vpop.f32.mrf.mxu0
      %v2029 = vadd.f32 0.0, %v2028
      %v2030 = vpop.f32.mrf.mxu0
      %2031 = vmatprep.mubr.bf16.mxu0 0
      %2032 = vmatmul.mubr.bf16.gmra.mxu0 %v1962
      %v2033 = vpop.f32.mrf.mxu0
      %v2034 = vadd.f32 0.0, %v2033
      %v2035 = vpop.f32.mrf.mxu0
      %v2036 = vpop.f32.mrf.mxu0
      %v2037 = vadd.f32 0.0, %v2036
      %v2038 = vpop.f32.mrf.mxu0
      %2039 = vmatprep.mubr.bf16.mxu0 0
      %2040 = vmatmul.mubr.bf16.gmra.mxu0 %v1965
      %v2041 = vpop.f32.mrf.mxu0
      %v2042 = vadd.f32 0.0, %v2041
      %v2043 = vpop.f32.mrf.mxu0
      %v2044 = vpop.f32.mrf.mxu0
      %v2045 = vadd.f32 0.0, %v2044
      %v2046 = vpop.f32.mrf.mxu0
      %2047 = vmatprep.mubr.bf16.mxu0 0
      %2048 = vmatmul.mubr.bf16.gmra.mxu0 %v1968
      %v2049 = vpop.f32.mrf.mxu0
      %v2050 = vadd.f32 0.0, %v2049
      %v2051 = vpop.f32.mrf.mxu0
      %v2052 = vpop.f32.mrf.mxu0
      %v2053 = vadd.f32 0.0, %v2052
      %v2054 = vpop.f32.mrf.mxu0
      %2055 = vmatprep.mubr.bf16.mxu0 0
      %2056 = vmatmul.mubr.bf16.gmra.mxu0 %v1971
      %v2057 = vpop.f32.mrf.mxu0
      %v2058 = vadd.f32 0.0, %v2057
      %v2059 = vpop.f32.mrf.mxu0
      %v2060 = vpop.f32.mrf.mxu0
      %v2061 = vadd.f32 0.0, %v2060
      %v2062 = vpop.f32.mrf.mxu0
      %2063 = vmatprep.mubr.bf16.mxu0 0
      %2064 = vmatmul.mubr.bf16.gmra.mxu0 %v1974
      %v2065 = vpop.f32.mrf.mxu0
      %v2066 = vadd.f32 0.0, %v2065
      %v2067 = vpop.f32.mrf.mxu0
      %v2068 = vpop.f32.mrf.mxu0
      %v2069 = vadd.f32 0.0, %v2068
      %v2070 = vpop.f32.mrf.mxu0
      %2071 = vmatprep.mubr.bf16.mxu0 0
      %2072 = vmatmul.mubr.bf16.gmra.mxu0 %v1977
      %v2073 = vpop.f32.mrf.mxu0
      %v2074 = vadd.f32 0.0, %v2073
      %v2075 = vpop.f32.mrf.mxu0
      %v2076 = vpop.f32.mrf.mxu0
      %v2077 = vadd.f32 0.0, %v2076
      %v2078 = vpop.f32.mrf.mxu0
      %2079 = vmatprep.mubr.bf16.mxu0 0
      %2080 = vmatmul.mubr.bf16.gmra.mxu0 %v1980
      %v2081 = vpop.f32.mrf.mxu0
      %v2082 = vadd.f32 0.0, %v2081
      %v2083 = vpop.f32.mrf.mxu0
      %v2084 = vpop.f32.mrf.mxu0
      %v2085 = vadd.f32 0.0, %v2084
      %v2086 = vpop.f32.mrf.mxu0
      %2087 = vmatprep.mubr.bf16.mxu0 0
      %2088 = vmatmul.mubr.bf16.gmra.mxu0 %v1983
      %v2089 = vpop.f32.mrf.mxu0
      %v2090 = vadd.f32 0.0, %v2089
      %v2091 = vpop.f32.mrf.mxu0
      %v2092 = vpop.f32.mrf.mxu0
      %v2093 = vadd.f32 0.0, %v2092
      %v2094 = vpop.f32.mrf.mxu0
      %2095 = vmatprep.mubr.bf16.mxu0 0
      %2096 = vmatmul.mubr.bf16.gmra.mxu0 %v1986
      %v2097 = vpop.f32.mrf.mxu0
      %v2098 = vadd.f32 0.0, %v2097
      %v2099 = vpop.f32.mrf.mxu0
      %v2100 = vpop.f32.mrf.mxu0
      %v2101 = vadd.f32 0.0, %v2100
      %v2102 = vpop.f32.mrf.mxu0
      %2103 = vdwg.mxu0
      %v2104 = vadd.f32 %v1865, %v2026
      %v2105 = vadd.f32 %v1866, %v2029
      %v2106 = vadd.f32 %v1867, %v2034
      %v2107 = vadd.f32 %v1868, %v2037
      %v2108 = vadd.f32 %v1869, %v2042
      %v2109 = vadd.f32 %v1870, %v2045
      %v2110 = vadd.f32 %v1871, %v2050
      %v2111 = vadd.f32 %v1872, %v2053
      %v2112 = vadd.f32 %v1873, %v2058
      %v2113 = vadd.f32 %v1874, %v2061
      %v2114 = vadd.f32 %v1875, %v2066
      %v2115 = vadd.f32 %v1876, %v2069
      %v2116 = vadd.f32 %v1877, %v2074
      %v2117 = vadd.f32 %v1878, %v2077
      %v2118 = vadd.f32 %v1879, %v2082
      %v2119 = vadd.f32 %v1880, %v2085
      %v2120 = vadd.f32 %v1881, %v2090
      %v2121 = vadd.f32 %v1882, %v2093
      %v2122 = vadd.f32 %v1883, %v2098
      %v2123 = vadd.f32 %v1884, %v2101
      %v2124 = vld [vmem:[%s1885] sm:$0xf]
      %v2125 = vld [vmem:[%s1885 + $0x4] sm:$0xf]
      %v2126 = vld [vmem:[%s1885 + $0x8] sm:$0x1]
      %v2127 = vld [vmem:[%s1885 + $0xc] sm:$0xf]
      %v2128 = vld [vmem:[%s1885 + $0x10] sm:$0xf]
      %v2129 = vld [vmem:[%s1885 + $0x14] sm:$0x1]
      %v2130 = vld [vmem:[%s1885 + $0x18] sm:$0xf]
      %v2131 = vld [vmem:[%s1885 + $0x1c] sm:$0xf]
      %v2132 = vld [vmem:[%s1885 + $0x20] sm:$0x1]
      %v2133 = vld [vmem:[%s1885 + $0x24] sm:$0xf]
      %v2134 = vld [vmem:[%s1885 + $0x28] sm:$0xf]
      %v2135 = vld [vmem:[%s1885 + $0x2c] sm:$0x1]
      %v2136 = vld [vmem:[%s1885 + $0x30] sm:$0xf]
      %v2137 = vld [vmem:[%s1885 + $0x34] sm:$0xf]
      %v2138 = vld [vmem:[%s1885 + $0x38] sm:$0x1]
      %v2139 = vld [vmem:[%s1885 + $0x3c] sm:$0xf]
      %v2140 = vld [vmem:[%s1885 + $0x40] sm:$0xf]
      %v2141 = vld [vmem:[%s1885 + $0x44] sm:$0x1]
      %v2142 = vld [vmem:[%s1885 + $0x48] sm:$0xf]
      %v2143 = vld [vmem:[%s1885 + $0x4c] sm:$0xf]
      %v2144 = vld [vmem:[%s1885 + $0x50] sm:$0x1]
      %v2145 = vld [vmem:[%s1885 + $0x54] sm:$0xf]
      %v2146 = vld [vmem:[%s1885 + $0x58] sm:$0xf]
      %v2147 = vld [vmem:[%s1885 + $0x5c] sm:$0x1]
      %v2148 = vld [vmem:[%s1885 + $0x60] sm:$0xf]
      %v2149 = vld [vmem:[%s1885 + $0x64] sm:$0xf]
      %v2150 = vld [vmem:[%s1885 + $0x68] sm:$0x1]
      %v2151 = vld [vmem:[%s1885 + $0x6c] sm:$0xf]
      %v2152 = vld [vmem:[%s1885 + $0x70] sm:$0xf]
      %v2153 = vld [vmem:[%s1885 + $0x74] sm:$0x1]
      %v2155 = vshrl.u32 %v2124, 16
      %v2157 = vrot.slane %v2155, 4
      %v2158 = vshll.u32 %v2124, 16
      %v2160 = vrot.slane %v2158, 5
      %v2161 = vor.u32 %v2157, %v2160
      %v2162 = vrot.slane %v2161, 4
      %v2164 = vshll.u32 %v2125, 16
      %v2166 = vrot.slane %v2164, 5
      %v2167 = vsel %vm967, %v2162, %v2166
      %v2168 = vshrl.u32 %v2125, 16
      %v2170 = vrot.slane %v2168, 4
      %v2171 = vor.u32 %v2170, %v2166
      %v2172 = vrot.slane %v2171, 4
      %v2174 = vshll.u32 %v2126, 16
      %v2176 = vrot.slane %v2174, 5
      %v2177 = vsel %vm967, %v2172, %v2176
      %v2179 = vshrl.u32 %v2127, 16
      %v2181 = vrot.slane %v2179, 4
      %v2182 = vshll.u32 %v2127, 16
      %v2184 = vrot.slane %v2182, 5
      %v2185 = vor.u32 %v2181, %v2184
      %v2186 = vrot.slane %v2185, 4
      %v2188 = vshll.u32 %v2128, 16
      %v2190 = vrot.slane %v2188, 5
      %v2191 = vsel %vm967, %v2186, %v2190
      %v2192 = vshrl.u32 %v2128, 16
      %v2194 = vrot.slane %v2192, 4
      %v2195 = vor.u32 %v2194, %v2190
      %v2196 = vrot.slane %v2195, 4
      %v2198 = vshll.u32 %v2129, 16
      %v2200 = vrot.slane %v2198, 5
      %v2201 = vsel %vm967, %v2196, %v2200
      %v2203 = vshrl.u32 %v2130, 16
      %v2205 = vrot.slane %v2203, 4
      %v2206 = vshll.u32 %v2130, 16
      %v2208 = vrot.slane %v2206, 5
      %v2209 = vor.u32 %v2205, %v2208
      %v2210 = vrot.slane %v2209, 4
      %v2212 = vshll.u32 %v2131, 16
      %v2214 = vrot.slane %v2212, 5
      %v2215 = vsel %vm967, %v2210, %v2214
      %v2216 = vshrl.u32 %v2131, 16
      %v2218 = vrot.slane %v2216, 4
      %v2219 = vor.u32 %v2218, %v2214
      %v2220 = vrot.slane %v2219, 4
      %v2222 = vshll.u32 %v2132, 16
      %v2224 = vrot.slane %v2222, 5
      %v2225 = vsel %vm967, %v2220, %v2224
      %v2227 = vshrl.u32 %v2133, 16
      %v2229 = vrot.slane %v2227, 4
      %v2230 = vshll.u32 %v2133, 16
      %v2232 = vrot.slane %v2230, 5
      %v2233 = vor.u32 %v2229, %v2232
      %v2234 = vrot.slane %v2233, 4
      %v2236 = vshll.u32 %v2134, 16
      %v2238 = vrot.slane %v2236, 5
      %v2239 = vsel %vm967, %v2234, %v2238
      %v2240 = vshrl.u32 %v2134, 16
      %v2242 = vrot.slane %v2240, 4
      %v2243 = vor.u32 %v2242, %v2238
      %v2244 = vrot.slane %v2243, 4
      %v2246 = vshll.u32 %v2135, 16
      %v2248 = vrot.slane %v2246, 5
      %v2249 = vsel %vm967, %v2244, %v2248
      %v2251 = vshrl.u32 %v2136, 16
      %v2253 = vrot.slane %v2251, 4
      %v2254 = vshll.u32 %v2136, 16
      %v2256 = vrot.slane %v2254, 5
      %v2257 = vor.u32 %v2253, %v2256
      %v2258 = vrot.slane %v2257, 4
      %v2260 = vshll.u32 %v2137, 16
      %v2262 = vrot.slane %v2260, 5
      %v2263 = vsel %vm967, %v2258, %v2262
      %v2264 = vshrl.u32 %v2137, 16
      %v2266 = vrot.slane %v2264, 4
      %v2267 = vor.u32 %v2266, %v2262
      %v2268 = vrot.slane %v2267, 4
      %v2270 = vshll.u32 %v2138, 16
      %v2272 = vrot.slane %v2270, 5
      %v2273 = vsel %vm967, %v2268, %v2272
      %v2275 = vshrl.u32 %v2139, 16
      %v2277 = vrot.slane %v2275, 4
      %v2278 = vshll.u32 %v2139, 16
      %v2280 = vrot.slane %v2278, 5
      %v2281 = vor.u32 %v2277, %v2280
      %v2282 = vrot.slane %v2281, 4
      %v2284 = vshll.u32 %v2140, 16
      %v2286 = vrot.slane %v2284, 5
      %v2287 = vsel %vm967, %v2282, %v2286
      %v2288 = vshrl.u32 %v2140, 16
      %v2290 = vrot.slane %v2288, 4
      %v2291 = vor.u32 %v2290, %v2286
      %v2292 = vrot.slane %v2291, 4
      %v2294 = vshll.u32 %v2141, 16
      %v2296 = vrot.slane %v2294, 5
      %v2297 = vsel %vm967, %v2292, %v2296
      %v2299 = vshrl.u32 %v2142, 16
      %v2301 = vrot.slane %v2299, 4
      %v2302 = vshll.u32 %v2142, 16
      %v2304 = vrot.slane %v2302, 5
      %v2305 = vor.u32 %v2301, %v2304
      %v2306 = vrot.slane %v2305, 4
      %v2308 = vshll.u32 %v2143, 16
      %v2310 = vrot.slane %v2308, 5
      %v2311 = vsel %vm967, %v2306, %v2310
      %v2312 = vshrl.u32 %v2143, 16
      %v2314 = vrot.slane %v2312, 4
      %v2315 = vor.u32 %v2314, %v2310
      %v2316 = vrot.slane %v2315, 4
      %v2318 = vshll.u32 %v2144, 16
      %v2320 = vrot.slane %v2318, 5
      %v2321 = vsel %vm967, %v2316, %v2320
      %v2323 = vshrl.u32 %v2145, 16
      %v2325 = vrot.slane %v2323, 4
      %v2326 = vshll.u32 %v2145, 16
      %v2328 = vrot.slane %v2326, 5
      %v2329 = vor.u32 %v2325, %v2328
      %v2330 = vrot.slane %v2329, 4
      %v2332 = vshll.u32 %v2146, 16
      %v2334 = vrot.slane %v2332, 5
      %v2335 = vsel %vm967, %v2330, %v2334
      %v2336 = vshrl.u32 %v2146, 16
      %v2338 = vrot.slane %v2336, 4
      %v2339 = vor.u32 %v2338, %v2334
      %v2340 = vrot.slane %v2339, 4
      %v2342 = vshll.u32 %v2147, 16
      %v2344 = vrot.slane %v2342, 5
      %v2345 = vsel %vm967, %v2340, %v2344
      %v2347 = vshrl.u32 %v2148, 16
      %v2349 = vrot.slane %v2347, 4
      %v2350 = vshll.u32 %v2148, 16
      %v2352 = vrot.slane %v2350, 5
      %v2353 = vor.u32 %v2349, %v2352
      %v2354 = vrot.slane %v2353, 4
      %v2356 = vshll.u32 %v2149, 16
      %v2358 = vrot.slane %v2356, 5
      %v2359 = vsel %vm967, %v2354, %v2358
      %v2360 = vshrl.u32 %v2149, 16
      %v2362 = vrot.slane %v2360, 4
      %v2363 = vor.u32 %v2362, %v2358
      %v2364 = vrot.slane %v2363, 4
      %v2366 = vshll.u32 %v2150, 16
      %v2368 = vrot.slane %v2366, 5
      %v2369 = vsel %vm967, %v2364, %v2368
      %v2371 = vshrl.u32 %v2151, 16
      %v2373 = vrot.slane %v2371, 4
      %v2374 = vshll.u32 %v2151, 16
      %v2376 = vrot.slane %v2374, 5
      %v2377 = vor.u32 %v2373, %v2376
      %v2378 = vrot.slane %v2377, 4
      %v2380 = vshll.u32 %v2152, 16
      %v2382 = vrot.slane %v2380, 5
      %v2383 = vsel %vm967, %v2378, %v2382
      %v2384 = vshrl.u32 %v2152, 16
      %v2386 = vrot.slane %v2384, 4
      %v2387 = vor.u32 %v2386, %v2382
      %v2388 = vrot.slane %v2387, 4
      %v2390 = vshll.u32 %v2153, 16
      %v2392 = vrot.slane %v2390, 5
      %v2393 = vsel %vm967, %v2388, %v2392
      %s2394 = scalar_lea.vmem %s3, 16
      %v2395 = vld [vmem:[%s2394] sm:$0xf]
      %v2396 = vunpack.c.l.b16 %v2167
      %v2397 = vunpack.c.l.b16 %v2177
      %v2398 = vunpack.c.l.b16 %v2191
      %v2399 = vunpack.c.l.b16 %v2201
      %v2400 = vunpack.c.l.b16 %v2215
      %v2401 = vunpack.c.l.b16 %v2225
      %v2402 = vunpack.c.l.b16 %v2239
      %v2403 = vunpack.c.l.b16 %v2249
      %v2404 = vunpack.c.l.b16 %v2263
      %v2405 = vunpack.c.l.b16 %v2273
      %v2406 = vunpack.c.l.b16 %v2287
      %v2407 = vunpack.c.l.b16 %v2297
      %v2408 = vunpack.c.l.b16 %v2311
      %v2409 = vunpack.c.l.b16 %v2321
      %v2410 = vunpack.c.l.b16 %v2335
      %v2411 = vunpack.c.l.b16 %v2345
      %v2412 = vunpack.c.l.b16 %v2359
      %v2413 = vunpack.c.l.b16 %v2369
      %v2414 = vunpack.c.l.b16 %v2383
      %v2415 = vunpack.c.l.b16 %v2393
      %v2416 = vpack.c.b16 %v2397, %v2396
      %v2417 = vpack.c.b16 %v2399, %v2398
      %v2418 = vpack.c.b16 %v2401, %v2400
      %v2419 = vpack.c.b16 %v2403, %v2402
      %v2420 = vpack.c.b16 %v2405, %v2404
      %v2421 = vpack.c.b16 %v2407, %v2406
      %v2422 = vpack.c.b16 %v2409, %v2408
      %v2423 = vpack.c.b16 %v2411, %v2410
      %v2424 = vpack.c.b16 %v2413, %v2412
      %v2425 = vpack.c.b16 %v2415, %v2414
      %v2427 = vsel %vm1240, %v2416, 0
      %v2430 = vsel %vm1240, %v2417, 0
      %v2433 = vsel %vm1240, %v2418, 0
      %v2436 = vsel %vm1240, %v2419, 0
      %v2439 = vsel %vm1240, %v2420, 0
      %v2442 = vsel %vm1240, %v2421, 0
      %v2445 = vsel %vm1240, %v2422, 0
      %v2448 = vsel %vm1240, %v2423, 0
      %v2451 = vsel %vm1240, %v2424, 0
      %v2454 = vsel %vm1240, %v2425, 0
      %v2457 = vsel %vm1271, %v2395, 0
      %2459 = vmatprep.subr.bf16.mxu0 0
      %2460 = vmatpush1.bf16.msra.mxu0 0
      %2461 = vmatprep.subr.bf16.mxu0 0
      %2462 = vmatpush1.bf16.msra.mxu0 0
      %2463 = vmatprep.subr.bf16.mxu0 0
      %2464 = vmatpush1.bf16.msra.mxu0 0
      %2465 = vmatprep.subr.bf16.mxu0 0
      %2466 = vmatpush1.bf16.msra.mxu0 0
      %2467 = vmatprep.subr.bf16.mxu0 0
      %2468 = vmatpush1.bf16.msra.mxu0 0
      %2469 = vmatprep.subr.bf16.mxu0 0
      %2470 = vmatpush1.bf16.msra.mxu0 0
      %2471 = vmatprep.subr.bf16.mxu0 0
      %2472 = vmatpush1.bf16.msra.mxu0 0
      %2473 = vmatprep.subr.bf16.mxu0 0
      %2474 = vmatpush1.bf16.msra.mxu0 %v2457
      %2475 = vmatprep.subr.bf16.mxu0 0
      %2476 = vmatpush2.bf16.msra.mxu0 0
      %2477 = vmatprep.subr.bf16.mxu0 0
      %2478 = vmatpush2.bf16.msra.mxu0 0
      %2479 = vmatprep.subr.bf16.mxu0 0
      %2480 = vmatpush2.bf16.msra.mxu0 0
      %2481 = vmatprep.subr.bf16.mxu0 0
      %2482 = vmatpush2.bf16.msra.mxu0 0
      %2483 = vmatprep.subr.bf16.mxu0 0
      %2484 = vmatpush2.bf16.msra.mxu0 0
      %2485 = vmatprep.subr.bf16.mxu0 0
      %2486 = vmatpush2.bf16.msra.mxu0 0
      %2487 = vmatprep.subr.bf16.mxu0 0
      %2488 = vmatpush2.bf16.msra.mxu0 0
      %2489 = vmatprep.subr.bf16.mxu0 0
      %2490 = vmatpush2.bf16.msra.mxu0 0
      %2491 = vmatprep.mubr.bf16.mxu0 0
      %2492 = vmatmul.mubr.bf16.gmra.mxu0 %v2427
      %v2493 = vpop.f32.mrf.mxu0
      %v2494 = vadd.f32 0.0, %v2493
      %v2495 = vpop.f32.mrf.mxu0
      %v2496 = vpop.f32.mrf.mxu0
      %v2497 = vadd.f32 0.0, %v2496
      %v2498 = vpop.f32.mrf.mxu0
      %2499 = vmatprep.mubr.bf16.mxu0 0
      %2500 = vmatmul.mubr.bf16.gmra.mxu0 %v2430
      %v2501 = vpop.f32.mrf.mxu0
      %v2502 = vadd.f32 0.0, %v2501
      %v2503 = vpop.f32.mrf.mxu0
      %v2504 = vpop.f32.mrf.mxu0
      %v2505 = vadd.f32 0.0, %v2504
      %v2506 = vpop.f32.mrf.mxu0
      %2507 = vmatprep.mubr.bf16.mxu0 0
      %2508 = vmatmul.mubr.bf16.gmra.mxu0 %v2433
      %v2509 = vpop.f32.mrf.mxu0
      %v2510 = vadd.f32 0.0, %v2509
      %v2511 = vpop.f32.mrf.mxu0
      %v2512 = vpop.f32.mrf.mxu0
      %v2513 = vadd.f32 0.0, %v2512
      %v2514 = vpop.f32.mrf.mxu0
      %2515 = vmatprep.mubr.bf16.mxu0 0
      %2516 = vmatmul.mubr.bf16.gmra.mxu0 %v2436
      %v2517 = vpop.f32.mrf.mxu0
      %v2518 = vadd.f32 0.0, %v2517
      %v2519 = vpop.f32.mrf.mxu0
      %v2520 = vpop.f32.mrf.mxu0
      %v2521 = vadd.f32 0.0, %v2520
      %v2522 = vpop.f32.mrf.mxu0
      %2523 = vmatprep.mubr.bf16.mxu0 0
      %2524 = vmatmul.mubr.bf16.gmra.mxu0 %v2439
      %v2525 = vpop.f32.mrf.mxu0
      %v2526 = vadd.f32 0.0, %v2525
      %v2527 = vpop.f32.mrf.mxu0
      %v2528 = vpop.f32.mrf.mxu0
      %v2529 = vadd.f32 0.0, %v2528
      %v2530 = vpop.f32.mrf.mxu0
      %2531 = vmatprep.mubr.bf16.mxu0 0
      %2532 = vmatmul.mubr.bf16.gmra.mxu0 %v2442
      %v2533 = vpop.f32.mrf.mxu0
      %v2534 = vadd.f32 0.0, %v2533
      %v2535 = vpop.f32.mrf.mxu0
      %v2536 = vpop.f32.mrf.mxu0
      %v2537 = vadd.f32 0.0, %v2536
      %v2538 = vpop.f32.mrf.mxu0
      %2539 = vmatprep.mubr.bf16.mxu0 0
      %2540 = vmatmul.mubr.bf16.gmra.mxu0 %v2445
      %v2541 = vpop.f32.mrf.mxu0
      %v2542 = vadd.f32 0.0, %v2541
      %v2543 = vpop.f32.mrf.mxu0
      %v2544 = vpop.f32.mrf.mxu0
      %v2545 = vadd.f32 0.0, %v2544
      %v2546 = vpop.f32.mrf.mxu0
      %2547 = vmatprep.mubr.bf16.mxu0 0
      %2548 = vmatmul.mubr.bf16.gmra.mxu0 %v2448
      %v2549 = vpop.f32.mrf.mxu0
      %v2550 = vadd.f32 0.0, %v2549
      %v2551 = vpop.f32.mrf.mxu0
      %v2552 = vpop.f32.mrf.mxu0
      %v2553 = vadd.f32 0.0, %v2552
      %v2554 = vpop.f32.mrf.mxu0
      %2555 = vmatprep.mubr.bf16.mxu0 0
      %2556 = vmatmul.mubr.bf16.gmra.mxu0 %v2451
      %v2557 = vpop.f32.mrf.mxu0
      %v2558 = vadd.f32 0.0, %v2557
      %v2559 = vpop.f32.mrf.mxu0
      %v2560 = vpop.f32.mrf.mxu0
      %v2561 = vadd.f32 0.0, %v2560
      %v2562 = vpop.f32.mrf.mxu0
      %2563 = vmatprep.mubr.bf16.mxu0 0
      %2564 = vmatmul.mubr.bf16.gmra.mxu0 %v2454
      %v2565 = vpop.f32.mrf.mxu0
      %v2566 = vadd.f32 0.0, %v2565
      %v2567 = vpop.f32.mrf.mxu0
      %v2568 = vpop.f32.mrf.mxu0
      %v2569 = vadd.f32 0.0, %v2568
      %v2570 = vpop.f32.mrf.mxu0
      %2571 = vdwg.mxu0
      %v2572 = vadd.f32 %v2104, %v2494
      %v2573 = vadd.f32 %v2105, %v2497
      %v2574 = vadd.f32 %v2106, %v2502
      %v2575 = vadd.f32 %v2107, %v2505
      %v2576 = vadd.f32 %v2108, %v2510
      %v2577 = vadd.f32 %v2109, %v2513
      %v2578 = vadd.f32 %v2110, %v2518
      %v2579 = vadd.f32 %v2111, %v2521
      %v2580 = vadd.f32 %v2112, %v2526
      %v2581 = vadd.f32 %v2113, %v2529
      %v2582 = vadd.f32 %v2114, %v2534
      %v2583 = vadd.f32 %v2115, %v2537
      %v2584 = vadd.f32 %v2116, %v2542
      %v2585 = vadd.f32 %v2117, %v2545
      %v2586 = vadd.f32 %v2118, %v2550
      %v2587 = vadd.f32 %v2119, %v2553
      %v2588 = vadd.f32 %v2120, %v2558
      %v2589 = vadd.f32 %v2121, %v2561
      %v2590 = vadd.f32 %v2122, %v2566
      %v2591 = vadd.f32 %v2123, %v2569
      %v2592 = vld [vmem:[%s1885] sm:$0xe]
      %v2593 = vld [vmem:[%s1885 + $0xc] sm:$0xe]
      %v2594 = vld [vmem:[%s1885 + $0x18] sm:$0xe]
      %v2595 = vld [vmem:[%s1885 + $0x24] sm:$0xe]
      %v2596 = vld [vmem:[%s1885 + $0x30] sm:$0xe]
      %v2597 = vld [vmem:[%s1885 + $0x3c] sm:$0xe]
      %v2598 = vld [vmem:[%s1885 + $0x48] sm:$0xe]
      %v2599 = vld [vmem:[%s1885 + $0x54] sm:$0xe]
      %v2600 = vld [vmem:[%s1885 + $0x60] sm:$0xe]
      %v2601 = vld [vmem:[%s1885 + $0x6c] sm:$0xe]
      %v2632 = vrot.slane %v2592, 5
      %v2633 = vrot.slane %v2632, 4
      %v2634 = vrot.slane %v2125, 5
      %v2635 = vsel %vm1616, %v2633, %v2634
      %v2636 = vrot.slane %v2634, 4
      %v2637 = vrot.slane %v2126, 5
      %v2638 = vsel %vm1616, %v2636, %v2637
      %v2639 = vrot.slane %v2593, 5
      %v2640 = vrot.slane %v2639, 4
      %v2641 = vrot.slane %v2128, 5
      %v2642 = vsel %vm1616, %v2640, %v2641
      %v2643 = vrot.slane %v2641, 4
      %v2644 = vrot.slane %v2129, 5
      %v2645 = vsel %vm1616, %v2643, %v2644
      %v2646 = vrot.slane %v2594, 5
      %v2647 = vrot.slane %v2646, 4
      %v2648 = vrot.slane %v2131, 5
      %v2649 = vsel %vm1616, %v2647, %v2648
      %v2650 = vrot.slane %v2648, 4
      %v2651 = vrot.slane %v2132, 5
      %v2652 = vsel %vm1616, %v2650, %v2651
      %v2653 = vrot.slane %v2595, 5
      %v2654 = vrot.slane %v2653, 4
      %v2655 = vrot.slane %v2134, 5
      %v2656 = vsel %vm1616, %v2654, %v2655
      %v2657 = vrot.slane %v2655, 4
      %v2658 = vrot.slane %v2135, 5
      %v2659 = vsel %vm1616, %v2657, %v2658
      %v2660 = vrot.slane %v2596, 5
      %v2661 = vrot.slane %v2660, 4
      %v2662 = vrot.slane %v2137, 5
      %v2663 = vsel %vm1616, %v2661, %v2662
      %v2664 = vrot.slane %v2662, 4
      %v2665 = vrot.slane %v2138, 5
      %v2666 = vsel %vm1616, %v2664, %v2665
      %v2667 = vrot.slane %v2597, 5
      %v2668 = vrot.slane %v2667, 4
      %v2669 = vrot.slane %v2140, 5
      %v2670 = vsel %vm1616, %v2668, %v2669
      %v2671 = vrot.slane %v2669, 4
      %v2672 = vrot.slane %v2141, 5
      %v2673 = vsel %vm1616, %v2671, %v2672
      %v2674 = vrot.slane %v2598, 5
      %v2675 = vrot.slane %v2674, 4
      %v2676 = vrot.slane %v2143, 5
      %v2677 = vsel %vm1616, %v2675, %v2676
      %v2678 = vrot.slane %v2676, 4
      %v2679 = vrot.slane %v2144, 5
      %v2680 = vsel %vm1616, %v2678, %v2679
      %v2681 = vrot.slane %v2599, 5
      %v2682 = vrot.slane %v2681, 4
      %v2683 = vrot.slane %v2146, 5
      %v2684 = vsel %vm1616, %v2682, %v2683
      %v2685 = vrot.slane %v2683, 4
      %v2686 = vrot.slane %v2147, 5
      %v2687 = vsel %vm1616, %v2685, %v2686
      %v2688 = vrot.slane %v2600, 5
      %v2689 = vrot.slane %v2688, 4
      %v2690 = vrot.slane %v2149, 5
      %v2691 = vsel %vm1616, %v2689, %v2690
      %v2692 = vrot.slane %v2690, 4
      %v2693 = vrot.slane %v2150, 5
      %v2694 = vsel %vm1616, %v2692, %v2693
      %v2695 = vrot.slane %v2601, 5
      %v2696 = vrot.slane %v2695, 4
      %v2697 = vrot.slane %v2152, 5
      %v2698 = vsel %vm1616, %v2696, %v2697
      %v2699 = vrot.slane %v2697, 4
      %v2700 = vrot.slane %v2153, 5
      %v2701 = vsel %vm1616, %v2699, %v2700
      %s2702 = scalar_lea.vmem %s3, 20
      %v2703 = vld [vmem:[%s2702] sm:$0xf]
      %v2704 = vunpack.c.l.b16 %v2635
      %v2705 = vunpack.c.l.b16 %v2638
      %v2706 = vunpack.c.l.b16 %v2642
      %v2707 = vunpack.c.l.b16 %v2645
      %v2708 = vunpack.c.l.b16 %v2649
      %v2709 = vunpack.c.l.b16 %v2652
      %v2710 = vunpack.c.l.b16 %v2656
      %v2711 = vunpack.c.l.b16 %v2659
      %v2712 = vunpack.c.l.b16 %v2663
      %v2713 = vunpack.c.l.b16 %v2666
      %v2714 = vunpack.c.l.b16 %v2670
      %v2715 = vunpack.c.l.b16 %v2673
      %v2716 = vunpack.c.l.b16 %v2677
      %v2717 = vunpack.c.l.b16 %v2680
      %v2718 = vunpack.c.l.b16 %v2684
      %v2719 = vunpack.c.l.b16 %v2687
      %v2720 = vunpack.c.l.b16 %v2691
      %v2721 = vunpack.c.l.b16 %v2694
      %v2722 = vunpack.c.l.b16 %v2698
      %v2723 = vunpack.c.l.b16 %v2701
      %v2724 = vpack.c.b16 %v2705, %v2704
      %v2725 = vpack.c.b16 %v2707, %v2706
      %v2726 = vpack.c.b16 %v2709, %v2708
      %v2727 = vpack.c.b16 %v2711, %v2710
      %v2728 = vpack.c.b16 %v2713, %v2712
      %v2729 = vpack.c.b16 %v2715, %v2714
      %v2730 = vpack.c.b16 %v2717, %v2716
      %v2731 = vpack.c.b16 %v2719, %v2718
      %v2732 = vpack.c.b16 %v2721, %v2720
      %v2733 = vpack.c.b16 %v2723, %v2722
      %v2735 = vsel %vm1240, %v2724, 0
      %v2738 = vsel %vm1240, %v2725, 0
      %v2741 = vsel %vm1240, %v2726, 0
      %v2744 = vsel %vm1240, %v2727, 0
      %v2747 = vsel %vm1240, %v2728, 0
      %v2750 = vsel %vm1240, %v2729, 0
      %v2753 = vsel %vm1240, %v2730, 0
      %v2756 = vsel %vm1240, %v2731, 0
      %v2759 = vsel %vm1240, %v2732, 0
      %v2762 = vsel %vm1240, %v2733, 0
      %v2765 = vsel %vm1271, %v2703, 0
      %2767 = vmatprep.subr.bf16.mxu0 0
      %2768 = vmatpush1.bf16.msra.mxu0 0
      %2769 = vmatprep.subr.bf16.mxu0 0
      %2770 = vmatpush1.bf16.msra.mxu0 0
      %2771 = vmatprep.subr.bf16.mxu0 0
      %2772 = vmatpush1.bf16.msra.mxu0 0
      %2773 = vmatprep.subr.bf16.mxu0 0
      %2774 = vmatpush1.bf16.msra.mxu0 0
      %2775 = vmatprep.subr.bf16.mxu0 0
      %2776 = vmatpush1.bf16.msra.mxu0 0
      %2777 = vmatprep.subr.bf16.mxu0 0
      %2778 = vmatpush1.bf16.msra.mxu0 0
      %2779 = vmatprep.subr.bf16.mxu0 0
      %2780 = vmatpush1.bf16.msra.mxu0 0
      %2781 = vmatprep.subr.bf16.mxu0 0
      %2782 = vmatpush1.bf16.msra.mxu0 %v2765
      %2783 = vmatprep.subr.bf16.mxu0 0
      %2784 = vmatpush2.bf16.msra.mxu0 0
      %2785 = vmatprep.subr.bf16.mxu0 0
      %2786 = vmatpush2.bf16.msra.mxu0 0
      %2787 = vmatprep.subr.bf16.mxu0 0
      %2788 = vmatpush2.bf16.msra.mxu0 0
      %2789 = vmatprep.subr.bf16.mxu0 0
      %2790 = vmatpush2.bf16.msra.mxu0 0
      %2791 = vmatprep.subr.bf16.mxu0 0
      %2792 = vmatpush2.bf16.msra.mxu0 0
      %2793 = vmatprep.subr.bf16.mxu0 0
      %2794 = vmatpush2.bf16.msra.mxu0 0
      %2795 = vmatprep.subr.bf16.mxu0 0
      %2796 = vmatpush2.bf16.msra.mxu0 0
      %2797 = vmatprep.subr.bf16.mxu0 0
      %2798 = vmatpush2.bf16.msra.mxu0 0
      %2799 = vmatprep.mubr.bf16.mxu0 0
      %2800 = vmatmul.mubr.bf16.gmra.mxu0 %v2735
      %v2801 = vpop.f32.mrf.mxu0
      %v2802 = vadd.f32 0.0, %v2801
      %v2803 = vpop.f32.mrf.mxu0
      %v2804 = vpop.f32.mrf.mxu0
      %v2805 = vadd.f32 0.0, %v2804
      %v2806 = vpop.f32.mrf.mxu0
      %2807 = vmatprep.mubr.bf16.mxu0 0
      %2808 = vmatmul.mubr.bf16.gmra.mxu0 %v2738
      %v2809 = vpop.f32.mrf.mxu0
      %v2810 = vadd.f32 0.0, %v2809
      %v2811 = vpop.f32.mrf.mxu0
      %v2812 = vpop.f32.mrf.mxu0
      %v2813 = vadd.f32 0.0, %v2812
      %v2814 = vpop.f32.mrf.mxu0
      %2815 = vmatprep.mubr.bf16.mxu0 0
      %2816 = vmatmul.mubr.bf16.gmra.mxu0 %v2741
      %v2817 = vpop.f32.mrf.mxu0
      %v2818 = vadd.f32 0.0, %v2817
      %v2819 = vpop.f32.mrf.mxu0
      %v2820 = vpop.f32.mrf.mxu0
      %v2821 = vadd.f32 0.0, %v2820
      %v2822 = vpop.f32.mrf.mxu0
      %2823 = vmatprep.mubr.bf16.mxu0 0
      %2824 = vmatmul.mubr.bf16.gmra.mxu0 %v2744
      %v2825 = vpop.f32.mrf.mxu0
      %v2826 = vadd.f32 0.0, %v2825
      %v2827 = vpop.f32.mrf.mxu0
      %v2828 = vpop.f32.mrf.mxu0
      %v2829 = vadd.f32 0.0, %v2828
      %v2830 = vpop.f32.mrf.mxu0
      %2831 = vmatprep.mubr.bf16.mxu0 0
      %2832 = vmatmul.mubr.bf16.gmra.mxu0 %v2747
      %v2833 = vpop.f32.mrf.mxu0
      %v2834 = vadd.f32 0.0, %v2833
      %v2835 = vpop.f32.mrf.mxu0
      %v2836 = vpop.f32.mrf.mxu0
      %v2837 = vadd.f32 0.0, %v2836
      %v2838 = vpop.f32.mrf.mxu0
      %2839 = vmatprep.mubr.bf16.mxu0 0
      %2840 = vmatmul.mubr.bf16.gmra.mxu0 %v2750
      %v2841 = vpop.f32.mrf.mxu0
      %v2842 = vadd.f32 0.0, %v2841
      %v2843 = vpop.f32.mrf.mxu0
      %v2844 = vpop.f32.mrf.mxu0
      %v2845 = vadd.f32 0.0, %v2844
      %v2846 = vpop.f32.mrf.mxu0
      %2847 = vmatprep.mubr.bf16.mxu0 0
      %2848 = vmatmul.mubr.bf16.gmra.mxu0 %v2753
      %v2849 = vpop.f32.mrf.mxu0
      %v2850 = vadd.f32 0.0, %v2849
      %v2851 = vpop.f32.mrf.mxu0
      %v2852 = vpop.f32.mrf.mxu0
      %v2853 = vadd.f32 0.0, %v2852
      %v2854 = vpop.f32.mrf.mxu0
      %2855 = vmatprep.mubr.bf16.mxu0 0
      %2856 = vmatmul.mubr.bf16.gmra.mxu0 %v2756
      %v2857 = vpop.f32.mrf.mxu0
      %v2858 = vadd.f32 0.0, %v2857
      %v2859 = vpop.f32.mrf.mxu0
      %v2860 = vpop.f32.mrf.mxu0
      %v2861 = vadd.f32 0.0, %v2860
      %v2862 = vpop.f32.mrf.mxu0
      %2863 = vmatprep.mubr.bf16.mxu0 0
      %2864 = vmatmul.mubr.bf16.gmra.mxu0 %v2759
      %v2865 = vpop.f32.mrf.mxu0
      %v2866 = vadd.f32 0.0, %v2865
      %v2867 = vpop.f32.mrf.mxu0
      %v2868 = vpop.f32.mrf.mxu0
      %v2869 = vadd.f32 0.0, %v2868
      %v2870 = vpop.f32.mrf.mxu0
      %2871 = vmatprep.mubr.bf16.mxu0 0
      %2872 = vmatmul.mubr.bf16.gmra.mxu0 %v2762
      %v2873 = vpop.f32.mrf.mxu0
      %v2874 = vadd.f32 0.0, %v2873
      %v2875 = vpop.f32.mrf.mxu0
      %v2876 = vpop.f32.mrf.mxu0
      %v2877 = vadd.f32 0.0, %v2876
      %v2878 = vpop.f32.mrf.mxu0
      %2879 = vdwg.mxu0
      %v2880 = vadd.f32 %v2572, %v2802
      %v2881 = vadd.f32 %v2573, %v2805
      %v2882 = vadd.f32 %v2574, %v2810
      %v2883 = vadd.f32 %v2575, %v2813
      %v2884 = vadd.f32 %v2576, %v2818
      %v2885 = vadd.f32 %v2577, %v2821
      %v2886 = vadd.f32 %v2578, %v2826
      %v2887 = vadd.f32 %v2579, %v2829
      %v2888 = vadd.f32 %v2580, %v2834
      %v2889 = vadd.f32 %v2581, %v2837
      %v2890 = vadd.f32 %v2582, %v2842
      %v2891 = vadd.f32 %v2583, %v2845
      %v2892 = vadd.f32 %v2584, %v2850
      %v2893 = vadd.f32 %v2585, %v2853
      %v2894 = vadd.f32 %v2586, %v2858
      %v2895 = vadd.f32 %v2587, %v2861
      %v2896 = vadd.f32 %v2588, %v2866
      %v2897 = vadd.f32 %v2589, %v2869
      %v2898 = vadd.f32 %v2590, %v2874
      %v2899 = vadd.f32 %v2591, %v2877
      %v2900 = vld [vmem:[%s811] sm:$0xf]
      %v2901 = vld [vmem:[%s811 + $0x4] sm:$0xf]
      %v2902 = vld [vmem:[%s811 + $0xc] sm:$0xf]
      %v2903 = vld [vmem:[%s811 + $0x10] sm:$0xf]
      %v2904 = vld [vmem:[%s811 + $0x18] sm:$0xf]
      %v2905 = vld [vmem:[%s811 + $0x1c] sm:$0xf]
      %v2906 = vld [vmem:[%s811 + $0x24] sm:$0xf]
      %v2907 = vld [vmem:[%s811 + $0x28] sm:$0xf]
      %v2908 = vld [vmem:[%s811 + $0x30] sm:$0xf]
      %v2909 = vld [vmem:[%s811 + $0x34] sm:$0xf]
      %v2910 = vld [vmem:[%s811 + $0x3c] sm:$0xf]
      %v2911 = vld [vmem:[%s811 + $0x40] sm:$0xf]
      %v2912 = vld [vmem:[%s811 + $0x48] sm:$0xf]
      %v2913 = vld [vmem:[%s811 + $0x4c] sm:$0xf]
      %v2914 = vld [vmem:[%s811 + $0x54] sm:$0xf]
      %v2915 = vld [vmem:[%s811 + $0x58] sm:$0xf]
      %v2916 = vld [vmem:[%s811 + $0x60] sm:$0xf]
      %v2917 = vld [vmem:[%s811 + $0x64] sm:$0xf]
      %v2918 = vld [vmem:[%s811 + $0x6c] sm:$0xf]
      %v2919 = vld [vmem:[%s811 + $0x70] sm:$0xf]
      %s2920 = scalar_lea.vmem %s3, 24
      %v2921 = vld [vmem:[%s2920] sm:$0xf]
      %v2942 = vunpack.c.l.b16 %v2900
      %v2943 = vunpack.c.l.b16 %v2901
      %v2944 = vunpack.c.l.b16 %v2902
      %v2945 = vunpack.c.l.b16 %v2903
      %v2946 = vunpack.c.l.b16 %v2904
      %v2947 = vunpack.c.l.b16 %v2905
      %v2948 = vunpack.c.l.b16 %v2906
      %v2949 = vunpack.c.l.b16 %v2907
      %v2950 = vunpack.c.l.b16 %v2908
      %v2951 = vunpack.c.l.b16 %v2909
      %v2952 = vunpack.c.l.b16 %v2910
      %v2953 = vunpack.c.l.b16 %v2911
      %v2954 = vunpack.c.l.b16 %v2912
      %v2955 = vunpack.c.l.b16 %v2913
      %v2956 = vunpack.c.l.b16 %v2914
      %v2957 = vunpack.c.l.b16 %v2915
      %v2958 = vunpack.c.l.b16 %v2916
      %v2959 = vunpack.c.l.b16 %v2917
      %v2960 = vunpack.c.l.b16 %v2918
      %v2961 = vunpack.c.l.b16 %v2919
      %v2962 = vpack.c.b16 %v2943, %v2942
      %v2963 = vpack.c.b16 %v2945, %v2944
      %v2964 = vpack.c.b16 %v2947, %v2946
      %v2965 = vpack.c.b16 %v2949, %v2948
      %v2966 = vpack.c.b16 %v2951, %v2950
      %v2967 = vpack.c.b16 %v2953, %v2952
      %v2968 = vpack.c.b16 %v2955, %v2954
      %v2969 = vpack.c.b16 %v2957, %v2956
      %v2970 = vpack.c.b16 %v2959, %v2958
      %v2971 = vpack.c.b16 %v2961, %v2960
      %v2973 = vsel %vm1240, %v2962, 0
      %v2976 = vsel %vm1240, %v2963, 0
      %v2979 = vsel %vm1240, %v2964, 0
      %v2982 = vsel %vm1240, %v2965, 0
      %v2985 = vsel %vm1240, %v2966, 0
      %v2988 = vsel %vm1240, %v2967, 0
      %v2991 = vsel %vm1240, %v2968, 0
      %v2994 = vsel %vm1240, %v2969, 0
      %v2997 = vsel %vm1240, %v2970, 0
      %v3000 = vsel %vm1240, %v2971, 0
      %v3003 = vsel %vm1271, %v2921, 0
      %3005 = vmatprep.subr.bf16.mxu0 0
      %3006 = vmatpush1.bf16.msra.mxu0 0
      %3007 = vmatprep.subr.bf16.mxu0 0
      %3008 = vmatpush1.bf16.msra.mxu0 0
      %3009 = vmatprep.subr.bf16.mxu0 0
      %3010 = vmatpush1.bf16.msra.mxu0 0
      %3011 = vmatprep.subr.bf16.mxu0 0
      %3012 = vmatpush1.bf16.msra.mxu0 0
      %3013 = vmatprep.subr.bf16.mxu0 0
      %3014 = vmatpush1.bf16.msra.mxu0 0
      %3015 = vmatprep.subr.bf16.mxu0 0
      %3016 = vmatpush1.bf16.msra.mxu0 0
      %3017 = vmatprep.subr.bf16.mxu0 0
      %3018 = vmatpush1.bf16.msra.mxu0 0
      %3019 = vmatprep.subr.bf16.mxu0 0
      %3020 = vmatpush1.bf16.msra.mxu0 %v3003
      %3021 = vmatprep.subr.bf16.mxu0 0
      %3022 = vmatpush2.bf16.msra.mxu0 0
      %3023 = vmatprep.subr.bf16.mxu0 0
      %3024 = vmatpush2.bf16.msra.mxu0 0
      %3025 = vmatprep.subr.bf16.mxu0 0
      %3026 = vmatpush2.bf16.msra.mxu0 0
      %3027 = vmatprep.subr.bf16.mxu0 0
      %3028 = vmatpush2.bf16.msra.mxu0 0
      %3029 = vmatprep.subr.bf16.mxu0 0
      %3030 = vmatpush2.bf16.msra.mxu0 0
      %3031 = vmatprep.subr.bf16.mxu0 0
      %3032 = vmatpush2.bf16.msra.mxu0 0
      %3033 = vmatprep.subr.bf16.mxu0 0
      %3034 = vmatpush2.bf16.msra.mxu0 0
      %3035 = vmatprep.subr.bf16.mxu0 0
      %3036 = vmatpush2.bf16.msra.mxu0 0
      %3037 = vmatprep.mubr.bf16.mxu0 0
      %3038 = vmatmul.mubr.bf16.gmra.mxu0 %v2973
      %v3039 = vpop.f32.mrf.mxu0
      %v3040 = vadd.f32 0.0, %v3039
      %v3041 = vpop.f32.mrf.mxu0
      %v3042 = vpop.f32.mrf.mxu0
      %v3043 = vadd.f32 0.0, %v3042
      %v3044 = vpop.f32.mrf.mxu0
      %3045 = vmatprep.mubr.bf16.mxu0 0
      %3046 = vmatmul.mubr.bf16.gmra.mxu0 %v2976
      %v3047 = vpop.f32.mrf.mxu0
      %v3048 = vadd.f32 0.0, %v3047
      %v3049 = vpop.f32.mrf.mxu0
      %v3050 = vpop.f32.mrf.mxu0
      %v3051 = vadd.f32 0.0, %v3050
      %v3052 = vpop.f32.mrf.mxu0
      %3053 = vmatprep.mubr.bf16.mxu0 0
      %3054 = vmatmul.mubr.bf16.gmra.mxu0 %v2979
      %v3055 = vpop.f32.mrf.mxu0
      %v3056 = vadd.f32 0.0, %v3055
      %v3057 = vpop.f32.mrf.mxu0
      %v3058 = vpop.f32.mrf.mxu0
      %v3059 = vadd.f32 0.0, %v3058
      %v3060 = vpop.f32.mrf.mxu0
      %3061 = vmatprep.mubr.bf16.mxu0 0
      %3062 = vmatmul.mubr.bf16.gmra.mxu0 %v2982
      %v3063 = vpop.f32.mrf.mxu0
      %v3064 = vadd.f32 0.0, %v3063
      %v3065 = vpop.f32.mrf.mxu0
      %v3066 = vpop.f32.mrf.mxu0
      %v3067 = vadd.f32 0.0, %v3066
      %v3068 = vpop.f32.mrf.mxu0
      %3069 = vmatprep.mubr.bf16.mxu0 0
      %3070 = vmatmul.mubr.bf16.gmra.mxu0 %v2985
      %v3071 = vpop.f32.mrf.mxu0
      %v3072 = vadd.f32 0.0, %v3071
      %v3073 = vpop.f32.mrf.mxu0
      %v3074 = vpop.f32.mrf.mxu0
      %v3075 = vadd.f32 0.0, %v3074
      %v3076 = vpop.f32.mrf.mxu0
      %3077 = vmatprep.mubr.bf16.mxu0 0
      %3078 = vmatmul.mubr.bf16.gmra.mxu0 %v2988
      %v3079 = vpop.f32.mrf.mxu0
      %v3080 = vadd.f32 0.0, %v3079
      %v3081 = vpop.f32.mrf.mxu0
      %v3082 = vpop.f32.mrf.mxu0
      %v3083 = vadd.f32 0.0, %v3082
      %v3084 = vpop.f32.mrf.mxu0
      %3085 = vmatprep.mubr.bf16.mxu0 0
      %3086 = vmatmul.mubr.bf16.gmra.mxu0 %v2991
      %v3087 = vpop.f32.mrf.mxu0
      %v3088 = vadd.f32 0.0, %v3087
      %v3089 = vpop.f32.mrf.mxu0
      %v3090 = vpop.f32.mrf.mxu0
      %v3091 = vadd.f32 0.0, %v3090
      %v3092 = vpop.f32.mrf.mxu0
      %3093 = vmatprep.mubr.bf16.mxu0 0
      %3094 = vmatmul.mubr.bf16.gmra.mxu0 %v2994
      %v3095 = vpop.f32.mrf.mxu0
      %v3096 = vadd.f32 0.0, %v3095
      %v3097 = vpop.f32.mrf.mxu0
      %v3098 = vpop.f32.mrf.mxu0
      %v3099 = vadd.f32 0.0, %v3098
      %v3100 = vpop.f32.mrf.mxu0
      %3101 = vmatprep.mubr.bf16.mxu0 0
      %3102 = vmatmul.mubr.bf16.gmra.mxu0 %v2997
      %v3103 = vpop.f32.mrf.mxu0
      %v3104 = vadd.f32 0.0, %v3103
      %v3105 = vpop.f32.mrf.mxu0
      %v3106 = vpop.f32.mrf.mxu0
      %v3107 = vadd.f32 0.0, %v3106
      %v3108 = vpop.f32.mrf.mxu0
      %3109 = vmatprep.mubr.bf16.mxu0 0
      %3110 = vmatmul.mubr.bf16.gmra.mxu0 %v3000
      %v3111 = vpop.f32.mrf.mxu0
      %v3112 = vadd.f32 0.0, %v3111
      %v3113 = vpop.f32.mrf.mxu0
      %v3114 = vpop.f32.mrf.mxu0
      %v3115 = vadd.f32 0.0, %v3114
      %v3116 = vpop.f32.mrf.mxu0
      %3117 = vdwg.mxu0
      %v3118 = vadd.f32 %v2880, %v3040
      %v3119 = vadd.f32 %v2881, %v3043
      %v3120 = vadd.f32 %v2882, %v3048
      %v3121 = vadd.f32 %v2883, %v3051
      %v3122 = vadd.f32 %v2884, %v3056
      %v3123 = vadd.f32 %v2885, %v3059
      %v3124 = vadd.f32 %v2886, %v3064
      %v3125 = vadd.f32 %v2887, %v3067
      %v3126 = vadd.f32 %v2888, %v3072
      %v3127 = vadd.f32 %v2889, %v3075
      %v3128 = vadd.f32 %v2890, %v3080
      %v3129 = vadd.f32 %v2891, %v3083
      %v3130 = vadd.f32 %v2892, %v3088
      %v3131 = vadd.f32 %v2893, %v3091
      %v3132 = vadd.f32 %v2894, %v3096
      %v3133 = vadd.f32 %v2895, %v3099
      %v3134 = vadd.f32 %v2896, %v3104
      %v3135 = vadd.f32 %v2897, %v3107
      %v3136 = vadd.f32 %v2898, %v3112
      %v3137 = vadd.f32 %v2899, %v3115
      %v3138 = vld [vmem:[%s811] sm:$0xf]
      %v3139 = vld [vmem:[%s811 + $0x4] sm:$0xf]
      %v3140 = vld [vmem:[%s811 + $0x8] sm:$0x1]
      %v3141 = vld [vmem:[%s811 + $0xc] sm:$0xf]
      %v3142 = vld [vmem:[%s811 + $0x10] sm:$0xf]
      %v3143 = vld [vmem:[%s811 + $0x14] sm:$0x1]
      %v3144 = vld [vmem:[%s811 + $0x18] sm:$0xf]
      %v3145 = vld [vmem:[%s811 + $0x1c] sm:$0xf]
      %v3146 = vld [vmem:[%s811 + $0x20] sm:$0x1]
      %v3147 = vld [vmem:[%s811 + $0x24] sm:$0xf]
      %v3148 = vld [vmem:[%s811 + $0x28] sm:$0xf]
      %v3149 = vld [vmem:[%s811 + $0x2c] sm:$0x1]
      %v3150 = vld [vmem:[%s811 + $0x30] sm:$0xf]
      %v3151 = vld [vmem:[%s811 + $0x34] sm:$0xf]
      %v3152 = vld [vmem:[%s811 + $0x38] sm:$0x1]
      %v3153 = vld [vmem:[%s811 + $0x3c] sm:$0xf]
      %v3154 = vld [vmem:[%s811 + $0x40] sm:$0xf]
      %v3155 = vld [vmem:[%s811 + $0x44] sm:$0x1]
      %v3156 = vld [vmem:[%s811 + $0x48] sm:$0xf]
      %v3157 = vld [vmem:[%s811 + $0x4c] sm:$0xf]
      %v3158 = vld [vmem:[%s811 + $0x50] sm:$0x1]
      %v3159 = vld [vmem:[%s811 + $0x54] sm:$0xf]
      %v3160 = vld [vmem:[%s811 + $0x58] sm:$0xf]
      %v3161 = vld [vmem:[%s811 + $0x5c] sm:$0x1]
      %v3162 = vld [vmem:[%s811 + $0x60] sm:$0xf]
      %v3163 = vld [vmem:[%s811 + $0x64] sm:$0xf]
      %v3164 = vld [vmem:[%s811 + $0x68] sm:$0x1]
      %v3165 = vld [vmem:[%s811 + $0x6c] sm:$0xf]
      %v3166 = vld [vmem:[%s811 + $0x70] sm:$0xf]
      %v3167 = vld [vmem:[%s811 + $0x74] sm:$0x1]
      %v3169 = vshrl.u32 %v3138, 16
      %v3171 = vrot.slane %v3169, 4
      %v3172 = vshll.u32 %v3138, 16
      %v3174 = vrot.slane %v3172, 5
      %v3175 = vor.u32 %v3171, %v3174
      %v3176 = vrot.slane %v3175, 4
      %v3178 = vshll.u32 %v3139, 16
      %v3180 = vrot.slane %v3178, 5
      %v3181 = vsel %vm967, %v3176, %v3180
      %v3182 = vshrl.u32 %v3139, 16
      %v3184 = vrot.slane %v3182, 4
      %v3185 = vor.u32 %v3184, %v3180
      %v3186 = vrot.slane %v3185, 4
      %v3188 = vshll.u32 %v3140, 16
      %v3190 = vrot.slane %v3188, 5
      %v3191 = vsel %vm967, %v3186, %v3190
      %v3193 = vshrl.u32 %v3141, 16
      %v3195 = vrot.slane %v3193, 4
      %v3196 = vshll.u32 %v3141, 16
      %v3198 = vrot.slane %v3196, 5
      %v3199 = vor.u32 %v3195, %v3198
      %v3200 = vrot.slane %v3199, 4
      %v3202 = vshll.u32 %v3142, 16
      %v3204 = vrot.slane %v3202, 5
      %v3205 = vsel %vm967, %v3200, %v3204
      %v3206 = vshrl.u32 %v3142, 16
      %v3208 = vrot.slane %v3206, 4
      %v3209 = vor.u32 %v3208, %v3204
      %v3210 = vrot.slane %v3209, 4
      %v3212 = vshll.u32 %v3143, 16
      %v3214 = vrot.slane %v3212, 5
      %v3215 = vsel %vm967, %v3210, %v3214
      %v3217 = vshrl.u32 %v3144, 16
      %v3219 = vrot.slane %v3217, 4
      %v3220 = vshll.u32 %v3144, 16
      %v3222 = vrot.slane %v3220, 5
      %v3223 = vor.u32 %v3219, %v3222
      %v3224 = vrot.slane %v3223, 4
      %v3226 = vshll.u32 %v3145, 16
      %v3228 = vrot.slane %v3226, 5
      %v3229 = vsel %vm967, %v3224, %v3228
      %v3230 = vshrl.u32 %v3145, 16
      %v3232 = vrot.slane %v3230, 4
      %v3233 = vor.u32 %v3232, %v3228
      %v3234 = vrot.slane %v3233, 4
      %v3236 = vshll.u32 %v3146, 16
      %v3238 = vrot.slane %v3236, 5
      %v3239 = vsel %vm967, %v3234, %v3238
      %v3241 = vshrl.u32 %v3147, 16
      %v3243 = vrot.slane %v3241, 4
      %v3244 = vshll.u32 %v3147, 16
      %v3246 = vrot.slane %v3244, 5
      %v3247 = vor.u32 %v3243, %v3246
      %v3248 = vrot.slane %v3247, 4
      %v3250 = vshll.u32 %v3148, 16
      %v3252 = vrot.slane %v3250, 5
      %v3253 = vsel %vm967, %v3248, %v3252
      %v3254 = vshrl.u32 %v3148, 16
      %v3256 = vrot.slane %v3254, 4
      %v3257 = vor.u32 %v3256, %v3252
      %v3258 = vrot.slane %v3257, 4
      %v3260 = vshll.u32 %v3149, 16
      %v3262 = vrot.slane %v3260, 5
      %v3263 = vsel %vm967, %v3258, %v3262
      %v3265 = vshrl.u32 %v3150, 16
      %v3267 = vrot.slane %v3265, 4
      %v3268 = vshll.u32 %v3150, 16
      %v3270 = vrot.slane %v3268, 5
      %v3271 = vor.u32 %v3267, %v3270
      %v3272 = vrot.slane %v3271, 4
      %v3274 = vshll.u32 %v3151, 16
      %v3276 = vrot.slane %v3274, 5
      %v3277 = vsel %vm967, %v3272, %v3276
      %v3278 = vshrl.u32 %v3151, 16
      %v3280 = vrot.slane %v3278, 4
      %v3281 = vor.u32 %v3280, %v3276
      %v3282 = vrot.slane %v3281, 4
      %v3284 = vshll.u32 %v3152, 16
      %v3286 = vrot.slane %v3284, 5
      %v3287 = vsel %vm967, %v3282, %v3286
      %v3289 = vshrl.u32 %v3153, 16
      %v3291 = vrot.slane %v3289, 4
      %v3292 = vshll.u32 %v3153, 16
      %v3294 = vrot.slane %v3292, 5
      %v3295 = vor.u32 %v3291, %v3294
      %v3296 = vrot.slane %v3295, 4
      %v3298 = vshll.u32 %v3154, 16
      %v3300 = vrot.slane %v3298, 5
      %v3301 = vsel %vm967, %v3296, %v3300
      %v3302 = vshrl.u32 %v3154, 16
      %v3304 = vrot.slane %v3302, 4
      %v3305 = vor.u32 %v3304, %v3300
      %v3306 = vrot.slane %v3305, 4
      %v3308 = vshll.u32 %v3155, 16
      %v3310 = vrot.slane %v3308, 5
      %v3311 = vsel %vm967, %v3306, %v3310
      %v3313 = vshrl.u32 %v3156, 16
      %v3315 = vrot.slane %v3313, 4
      %v3316 = vshll.u32 %v3156, 16
      %v3318 = vrot.slane %v3316, 5
      %v3319 = vor.u32 %v3315, %v3318
      %v3320 = vrot.slane %v3319, 4
      %v3322 = vshll.u32 %v3157, 16
      %v3324 = vrot.slane %v3322, 5
      %v3325 = vsel %vm967, %v3320, %v3324
      %v3326 = vshrl.u32 %v3157, 16
      %v3328 = vrot.slane %v3326, 4
      %v3329 = vor.u32 %v3328, %v3324
      %v3330 = vrot.slane %v3329, 4
      %v3332 = vshll.u32 %v3158, 16
      %v3334 = vrot.slane %v3332, 5
      %v3335 = vsel %vm967, %v3330, %v3334
      %v3337 = vshrl.u32 %v3159, 16
      %v3339 = vrot.slane %v3337, 4
      %v3340 = vshll.u32 %v3159, 16
      %v3342 = vrot.slane %v3340, 5
      %v3343 = vor.u32 %v3339, %v3342
      %v3344 = vrot.slane %v3343, 4
      %v3346 = vshll.u32 %v3160, 16
      %v3348 = vrot.slane %v3346, 5
      %v3349 = vsel %vm967, %v3344, %v3348
      %v3350 = vshrl.u32 %v3160, 16
      %v3352 = vrot.slane %v3350, 4
      %v3353 = vor.u32 %v3352, %v3348
      %v3354 = vrot.slane %v3353, 4
      %v3356 = vshll.u32 %v3161, 16
      %v3358 = vrot.slane %v3356, 5
      %v3359 = vsel %vm967, %v3354, %v3358
      %v3361 = vshrl.u32 %v3162, 16
      %v3363 = vrot.slane %v3361, 4
      %v3364 = vshll.u32 %v3162, 16
      %v3366 = vrot.slane %v3364, 5
      %v3367 = vor.u32 %v3363, %v3366
      %v3368 = vrot.slane %v3367, 4
      %v3370 = vshll.u32 %v3163, 16
      %v3372 = vrot.slane %v3370, 5
      %v3373 = vsel %vm967, %v3368, %v3372
      %v3374 = vshrl.u32 %v3163, 16
      %v3376 = vrot.slane %v3374, 4
      %v3377 = vor.u32 %v3376, %v3372
      %v3378 = vrot.slane %v3377, 4
      %v3380 = vshll.u32 %v3164, 16
      %v3382 = vrot.slane %v3380, 5
      %v3383 = vsel %vm967, %v3378, %v3382
      %v3385 = vshrl.u32 %v3165, 16
      %v3387 = vrot.slane %v3385, 4
      %v3388 = vshll.u32 %v3165, 16
      %v3390 = vrot.slane %v3388, 5
      %v3391 = vor.u32 %v3387, %v3390
      %v3392 = vrot.slane %v3391, 4
      %v3394 = vshll.u32 %v3166, 16
      %v3396 = vrot.slane %v3394, 5
      %v3397 = vsel %vm967, %v3392, %v3396
      %v3398 = vshrl.u32 %v3166, 16
      %v3400 = vrot.slane %v3398, 4
      %v3401 = vor.u32 %v3400, %v3396
      %v3402 = vrot.slane %v3401, 4
      %v3404 = vshll.u32 %v3167, 16
      %v3406 = vrot.slane %v3404, 5
      %v3407 = vsel %vm967, %v3402, %v3406
      %s3408 = scalar_lea.vmem %s3, 28
      %v3409 = vld [vmem:[%s3408] sm:$0xf]
      %v3410 = vunpack.c.l.b16 %v3181
      %v3411 = vunpack.c.l.b16 %v3191
      %v3412 = vunpack.c.l.b16 %v3205
      %v3413 = vunpack.c.l.b16 %v3215
      %v3414 = vunpack.c.l.b16 %v3229
      %v3415 = vunpack.c.l.b16 %v3239
      %v3416 = vunpack.c.l.b16 %v3253
      %v3417 = vunpack.c.l.b16 %v3263
      %v3418 = vunpack.c.l.b16 %v3277
      %v3419 = vunpack.c.l.b16 %v3287
      %v3420 = vunpack.c.l.b16 %v3301
      %v3421 = vunpack.c.l.b16 %v3311
      %v3422 = vunpack.c.l.b16 %v3325
      %v3423 = vunpack.c.l.b16 %v3335
      %v3424 = vunpack.c.l.b16 %v3349
      %v3425 = vunpack.c.l.b16 %v3359
      %v3426 = vunpack.c.l.b16 %v3373
      %v3427 = vunpack.c.l.b16 %v3383
      %v3428 = vunpack.c.l.b16 %v3397
      %v3429 = vunpack.c.l.b16 %v3407
      %v3430 = vpack.c.b16 %v3411, %v3410
      %v3431 = vpack.c.b16 %v3413, %v3412
      %v3432 = vpack.c.b16 %v3415, %v3414
      %v3433 = vpack.c.b16 %v3417, %v3416
      %v3434 = vpack.c.b16 %v3419, %v3418
      %v3435 = vpack.c.b16 %v3421, %v3420
      %v3436 = vpack.c.b16 %v3423, %v3422
      %v3437 = vpack.c.b16 %v3425, %v3424
      %v3438 = vpack.c.b16 %v3427, %v3426
      %v3439 = vpack.c.b16 %v3429, %v3428
      %v3441 = vsel %vm1240, %v3430, 0
      %v3444 = vsel %vm1240, %v3431, 0
      %v3447 = vsel %vm1240, %v3432, 0
      %v3450 = vsel %vm1240, %v3433, 0
      %v3453 = vsel %vm1240, %v3434, 0
      %v3456 = vsel %vm1240, %v3435, 0
      %v3459 = vsel %vm1240, %v3436, 0
      %v3462 = vsel %vm1240, %v3437, 0
      %v3465 = vsel %vm1240, %v3438, 0
      %v3468 = vsel %vm1240, %v3439, 0
      %v3471 = vsel %vm1271, %v3409, 0
      %3473 = vmatprep.subr.bf16.mxu0 0
      %3474 = vmatpush1.bf16.msra.mxu0 0
      %3475 = vmatprep.subr.bf16.mxu0 0
      %3476 = vmatpush1.bf16.msra.mxu0 0
      %3477 = vmatprep.subr.bf16.mxu0 0
      %3478 = vmatpush1.bf16.msra.mxu0 0
      %3479 = vmatprep.subr.bf16.mxu0 0
      %3480 = vmatpush1.bf16.msra.mxu0 0
      %3481 = vmatprep.subr.bf16.mxu0 0
      %3482 = vmatpush1.bf16.msra.mxu0 0
      %3483 = vmatprep.subr.bf16.mxu0 0
      %3484 = vmatpush1.bf16.msra.mxu0 0
      %3485 = vmatprep.subr.bf16.mxu0 0
      %3486 = vmatpush1.bf16.msra.mxu0 0
      %3487 = vmatprep.subr.bf16.mxu0 0
      %3488 = vmatpush1.bf16.msra.mxu0 %v3471
      %3489 = vmatprep.subr.bf16.mxu0 0
      %3490 = vmatpush2.bf16.msra.mxu0 0
      %3491 = vmatprep.subr.bf16.mxu0 0
      %3492 = vmatpush2.bf16.msra.mxu0 0
      %3493 = vmatprep.subr.bf16.mxu0 0
      %3494 = vmatpush2.bf16.msra.mxu0 0
      %3495 = vmatprep.subr.bf16.mxu0 0
      %3496 = vmatpush2.bf16.msra.mxu0 0
      %3497 = vmatprep.subr.bf16.mxu0 0
      %3498 = vmatpush2.bf16.msra.mxu0 0
      %3499 = vmatprep.subr.bf16.mxu0 0
      %3500 = vmatpush2.bf16.msra.mxu0 0
      %3501 = vmatprep.subr.bf16.mxu0 0
      %3502 = vmatpush2.bf16.msra.mxu0 0
      %3503 = vmatprep.subr.bf16.mxu0 0
      %3504 = vmatpush2.bf16.msra.mxu0 0
      %3505 = vmatprep.mubr.bf16.mxu0 0
      %3506 = vmatmul.mubr.bf16.gmra.mxu0 %v3441
      %v3507 = vpop.f32.mrf.mxu0
      %v3508 = vadd.f32 0.0, %v3507
      %v3509 = vpop.f32.mrf.mxu0
      %v3510 = vpop.f32.mrf.mxu0
      %v3511 = vadd.f32 0.0, %v3510
      %v3512 = vpop.f32.mrf.mxu0
      %3513 = vmatprep.mubr.bf16.mxu0 0
      %3514 = vmatmul.mubr.bf16.gmra.mxu0 %v3444
      %v3515 = vpop.f32.mrf.mxu0
      %v3516 = vadd.f32 0.0, %v3515
      %v3517 = vpop.f32.mrf.mxu0
      %v3518 = vpop.f32.mrf.mxu0
      %v3519 = vadd.f32 0.0, %v3518
      %v3520 = vpop.f32.mrf.mxu0
      %3521 = vmatprep.mubr.bf16.mxu0 0
      %3522 = vmatmul.mubr.bf16.gmra.mxu0 %v3447
      %v3523 = vpop.f32.mrf.mxu0
      %v3524 = vadd.f32 0.0, %v3523
      %v3525 = vpop.f32.mrf.mxu0
      %v3526 = vpop.f32.mrf.mxu0
      %v3527 = vadd.f32 0.0, %v3526
      %v3528 = vpop.f32.mrf.mxu0
      %3529 = vmatprep.mubr.bf16.mxu0 0
      %3530 = vmatmul.mubr.bf16.gmra.mxu0 %v3450
      %v3531 = vpop.f32.mrf.mxu0
      %v3532 = vadd.f32 0.0, %v3531
      %v3533 = vpop.f32.mrf.mxu0
      %v3534 = vpop.f32.mrf.mxu0
      %v3535 = vadd.f32 0.0, %v3534
      %v3536 = vpop.f32.mrf.mxu0
      %3537 = vmatprep.mubr.bf16.mxu0 0
      %3538 = vmatmul.mubr.bf16.gmra.mxu0 %v3453
      %v3539 = vpop.f32.mrf.mxu0
      %v3540 = vadd.f32 0.0, %v3539
      %v3541 = vpop.f32.mrf.mxu0
      %v3542 = vpop.f32.mrf.mxu0
      %v3543 = vadd.f32 0.0, %v3542
      %v3544 = vpop.f32.mrf.mxu0
      %3545 = vmatprep.mubr.bf16.mxu0 0
      %3546 = vmatmul.mubr.bf16.gmra.mxu0 %v3456
      %v3547 = vpop.f32.mrf.mxu0
      %v3548 = vadd.f32 0.0, %v3547
      %v3549 = vpop.f32.mrf.mxu0
      %v3550 = vpop.f32.mrf.mxu0
      %v3551 = vadd.f32 0.0, %v3550
      %v3552 = vpop.f32.mrf.mxu0
      %3553 = vmatprep.mubr.bf16.mxu0 0
      %3554 = vmatmul.mubr.bf16.gmra.mxu0 %v3459
      %v3555 = vpop.f32.mrf.mxu0
      %v3556 = vadd.f32 0.0, %v3555
      %v3557 = vpop.f32.mrf.mxu0
      %v3558 = vpop.f32.mrf.mxu0
      %v3559 = vadd.f32 0.0, %v3558
      %v3560 = vpop.f32.mrf.mxu0
      %3561 = vmatprep.mubr.bf16.mxu0 0
      %3562 = vmatmul.mubr.bf16.gmra.mxu0 %v3462
      %v3563 = vpop.f32.mrf.mxu0
      %v3564 = vadd.f32 0.0, %v3563
      %v3565 = vpop.f32.mrf.mxu0
      %v3566 = vpop.f32.mrf.mxu0
      %v3567 = vadd.f32 0.0, %v3566
      %v3568 = vpop.f32.mrf.mxu0
      %3569 = vmatprep.mubr.bf16.mxu0 0
      %3570 = vmatmul.mubr.bf16.gmra.mxu0 %v3465
      %v3571 = vpop.f32.mrf.mxu0
      %v3572 = vadd.f32 0.0, %v3571
      %v3573 = vpop.f32.mrf.mxu0
      %v3574 = vpop.f32.mrf.mxu0
      %v3575 = vadd.f32 0.0, %v3574
      %v3576 = vpop.f32.mrf.mxu0
      %3577 = vmatprep.mubr.bf16.mxu0 0
      %3578 = vmatmul.mubr.bf16.gmra.mxu0 %v3468
      %v3579 = vpop.f32.mrf.mxu0
      %v3580 = vadd.f32 0.0, %v3579
      %v3581 = vpop.f32.mrf.mxu0
      %v3582 = vpop.f32.mrf.mxu0
      %v3583 = vadd.f32 0.0, %v3582
      %v3584 = vpop.f32.mrf.mxu0
      %3585 = vdwg.mxu0
      %v3586 = vadd.f32 %v3118, %v3508
      %v3587 = vadd.f32 %v3119, %v3511
      %v3588 = vadd.f32 %v3120, %v3516
      %v3589 = vadd.f32 %v3121, %v3519
      %v3590 = vadd.f32 %v3122, %v3524
      %v3591 = vadd.f32 %v3123, %v3527
      %v3592 = vadd.f32 %v3124, %v3532
      %v3593 = vadd.f32 %v3125, %v3535
      %v3594 = vadd.f32 %v3126, %v3540
      %v3595 = vadd.f32 %v3127, %v3543
      %v3596 = vadd.f32 %v3128, %v3548
      %v3597 = vadd.f32 %v3129, %v3551
      %v3598 = vadd.f32 %v3130, %v3556
      %v3599 = vadd.f32 %v3131, %v3559
      %v3600 = vadd.f32 %v3132, %v3564
      %v3601 = vadd.f32 %v3133, %v3567
      %v3602 = vadd.f32 %v3134, %v3572
      %v3603 = vadd.f32 %v3135, %v3575
      %v3604 = vadd.f32 %v3136, %v3580
      %v3605 = vadd.f32 %v3137, %v3583
      %v3606 = vld [vmem:[%s811] sm:$0xe]
      %v3607 = vld [vmem:[%s811 + $0xc] sm:$0xe]
      %v3608 = vld [vmem:[%s811 + $0x18] sm:$0xe]
      %v3609 = vld [vmem:[%s811 + $0x24] sm:$0xe]
      %v3610 = vld [vmem:[%s811 + $0x30] sm:$0xe]
      %v3611 = vld [vmem:[%s811 + $0x3c] sm:$0xe]
      %v3612 = vld [vmem:[%s811 + $0x48] sm:$0xe]
      %v3613 = vld [vmem:[%s811 + $0x54] sm:$0xe]
      %v3614 = vld [vmem:[%s811 + $0x60] sm:$0xe]
      %v3615 = vld [vmem:[%s811 + $0x6c] sm:$0xe]
      %v3646 = vrot.slane %v3606, 5
      %v3647 = vrot.slane %v3646, 4
      %v3648 = vrot.slane %v3139, 5
      %v3649 = vsel %vm1616, %v3647, %v3648
      %v3650 = vrot.slane %v3648, 4
      %v3651 = vrot.slane %v3140, 5
      %v3652 = vsel %vm1616, %v3650, %v3651
      %v3653 = vrot.slane %v3607, 5
      %v3654 = vrot.slane %v3653, 4
      %v3655 = vrot.slane %v3142, 5
      %v3656 = vsel %vm1616, %v3654, %v3655
      %v3657 = vrot.slane %v3655, 4
      %v3658 = vrot.slane %v3143, 5
      %v3659 = vsel %vm1616, %v3657, %v3658
      %v3660 = vrot.slane %v3608, 5
      %v3661 = vrot.slane %v3660, 4
      %v3662 = vrot.slane %v3145, 5
      %v3663 = vsel %vm1616, %v3661, %v3662
      %v3664 = vrot.slane %v3662, 4
      %v3665 = vrot.slane %v3146, 5
      %v3666 = vsel %vm1616, %v3664, %v3665
      %v3667 = vrot.slane %v3609, 5
      %v3668 = vrot.slane %v3667, 4
      %v3669 = vrot.slane %v3148, 5
      %v3670 = vsel %vm1616, %v3668, %v3669
      %v3671 = vrot.slane %v3669, 4
      %v3672 = vrot.slane %v3149, 5
      %v3673 = vsel %vm1616, %v3671, %v3672
      %v3674 = vrot.slane %v3610, 5
      %v3675 = vrot.slane %v3674, 4
      %v3676 = vrot.slane %v3151, 5
      %v3677 = vsel %vm1616, %v3675, %v3676
      %v3678 = vrot.slane %v3676, 4
      %v3679 = vrot.slane %v3152, 5
      %v3680 = vsel %vm1616, %v3678, %v3679
      %v3681 = vrot.slane %v3611, 5
      %v3682 = vrot.slane %v3681, 4
      %v3683 = vrot.slane %v3154, 5
      %v3684 = vsel %vm1616, %v3682, %v3683
      %v3685 = vrot.slane %v3683, 4
      %v3686 = vrot.slane %v3155, 5
      %v3687 = vsel %vm1616, %v3685, %v3686
      %v3688 = vrot.slane %v3612, 5
      %v3689 = vrot.slane %v3688, 4
      %v3690 = vrot.slane %v3157, 5
      %v3691 = vsel %vm1616, %v3689, %v3690
      %v3692 = vrot.slane %v3690, 4
      %v3693 = vrot.slane %v3158, 5
      %v3694 = vsel %vm1616, %v3692, %v3693
      %v3695 = vrot.slane %v3613, 5
      %v3696 = vrot.slane %v3695, 4
      %v3697 = vrot.slane %v3160, 5
      %v3698 = vsel %vm1616, %v3696, %v3697
      %v3699 = vrot.slane %v3697, 4
      %v3700 = vrot.slane %v3161, 5
      %v3701 = vsel %vm1616, %v3699, %v3700
      %v3702 = vrot.slane %v3614, 5
      %v3703 = vrot.slane %v3702, 4
      %v3704 = vrot.slane %v3163, 5
      %v3705 = vsel %vm1616, %v3703, %v3704
      %v3706 = vrot.slane %v3704, 4
      %v3707 = vrot.slane %v3164, 5
      %v3708 = vsel %vm1616, %v3706, %v3707
      %v3709 = vrot.slane %v3615, 5
      %v3710 = vrot.slane %v3709, 4
      %v3711 = vrot.slane %v3166, 5
      %v3712 = vsel %vm1616, %v3710, %v3711
      %v3713 = vrot.slane %v3711, 4
      %v3714 = vrot.slane %v3167, 5
      %v3715 = vsel %vm1616, %v3713, %v3714
      %s3716 = scalar_lea.vmem %s3, 32
      %v3717 = vld [vmem:[%s3716] sm:$0xf]
      %v3718 = vunpack.c.l.b16 %v3649
      %v3719 = vunpack.c.l.b16 %v3652
      %v3720 = vunpack.c.l.b16 %v3656
      %v3721 = vunpack.c.l.b16 %v3659
      %v3722 = vunpack.c.l.b16 %v3663
      %v3723 = vunpack.c.l.b16 %v3666
      %v3724 = vunpack.c.l.b16 %v3670
      %v3725 = vunpack.c.l.b16 %v3673
      %v3726 = vunpack.c.l.b16 %v3677
      %v3727 = vunpack.c.l.b16 %v3680
      %v3728 = vunpack.c.l.b16 %v3684
      %v3729 = vunpack.c.l.b16 %v3687
      %v3730 = vunpack.c.l.b16 %v3691
      %v3731 = vunpack.c.l.b16 %v3694
      %v3732 = vunpack.c.l.b16 %v3698
      %v3733 = vunpack.c.l.b16 %v3701
      %v3734 = vunpack.c.l.b16 %v3705
      %v3735 = vunpack.c.l.b16 %v3708
      %v3736 = vunpack.c.l.b16 %v3712
      %v3737 = vunpack.c.l.b16 %v3715
      %v3738 = vpack.c.b16 %v3719, %v3718
      %v3739 = vpack.c.b16 %v3721, %v3720
      %v3740 = vpack.c.b16 %v3723, %v3722
      %v3741 = vpack.c.b16 %v3725, %v3724
      %v3742 = vpack.c.b16 %v3727, %v3726
      %v3743 = vpack.c.b16 %v3729, %v3728
      %v3744 = vpack.c.b16 %v3731, %v3730
      %v3745 = vpack.c.b16 %v3733, %v3732
      %v3746 = vpack.c.b16 %v3735, %v3734
      %v3747 = vpack.c.b16 %v3737, %v3736
      %v3749 = vsel %vm1240, %v3738, 0
      %v3752 = vsel %vm1240, %v3739, 0
      %v3755 = vsel %vm1240, %v3740, 0
      %v3758 = vsel %vm1240, %v3741, 0
      %v3761 = vsel %vm1240, %v3742, 0
      %v3764 = vsel %vm1240, %v3743, 0
      %v3767 = vsel %vm1240, %v3744, 0
      %v3770 = vsel %vm1240, %v3745, 0
      %v3773 = vsel %vm1240, %v3746, 0
      %v3776 = vsel %vm1240, %v3747, 0
      %v3779 = vsel %vm1271, %v3717, 0
      %3781 = vmatprep.subr.bf16.mxu0 0
      %3782 = vmatpush1.bf16.msra.mxu0 0
      %3783 = vmatprep.subr.bf16.mxu0 0
      %3784 = vmatpush1.bf16.msra.mxu0 0
      %3785 = vmatprep.subr.bf16.mxu0 0
      %3786 = vmatpush1.bf16.msra.mxu0 0
      %3787 = vmatprep.subr.bf16.mxu0 0
      %3788 = vmatpush1.bf16.msra.mxu0 0
      %3789 = vmatprep.subr.bf16.mxu0 0
      %3790 = vmatpush1.bf16.msra.mxu0 0
      %3791 = vmatprep.subr.bf16.mxu0 0
      %3792 = vmatpush1.bf16.msra.mxu0 0
      %3793 = vmatprep.subr.bf16.mxu0 0
      %3794 = vmatpush1.bf16.msra.mxu0 0
      %3795 = vmatprep.subr.bf16.mxu0 0
      %3796 = vmatpush1.bf16.msra.mxu0 %v3779
      %3797 = vmatprep.subr.bf16.mxu0 0
      %3798 = vmatpush2.bf16.msra.mxu0 0
      %3799 = vmatprep.subr.bf16.mxu0 0
      %3800 = vmatpush2.bf16.msra.mxu0 0
      %3801 = vmatprep.subr.bf16.mxu0 0
      %3802 = vmatpush2.bf16.msra.mxu0 0
      %3803 = vmatprep.subr.bf16.mxu0 0
      %3804 = vmatpush2.bf16.msra.mxu0 0
      %3805 = vmatprep.subr.bf16.mxu0 0
      %3806 = vmatpush2.bf16.msra.mxu0 0
      %3807 = vmatprep.subr.bf16.mxu0 0
      %3808 = vmatpush2.bf16.msra.mxu0 0
      %3809 = vmatprep.subr.bf16.mxu0 0
      %3810 = vmatpush2.bf16.msra.mxu0 0
      %3811 = vmatprep.subr.bf16.mxu0 0
      %3812 = vmatpush2.bf16.msra.mxu0 0
      %3813 = vmatprep.mubr.bf16.mxu0 0
      %3814 = vmatmul.mubr.bf16.gmra.mxu0 %v3749
      %v3815 = vpop.f32.mrf.mxu0
      %v3816 = vadd.f32 0.0, %v3815
      %v3817 = vpop.f32.mrf.mxu0
      %v3818 = vpop.f32.mrf.mxu0
      %v3819 = vadd.f32 0.0, %v3818
      %v3820 = vpop.f32.mrf.mxu0
      %3821 = vmatprep.mubr.bf16.mxu0 0
      %3822 = vmatmul.mubr.bf16.gmra.mxu0 %v3752
      %v3823 = vpop.f32.mrf.mxu0
      %v3824 = vadd.f32 0.0, %v3823
      %v3825 = vpop.f32.mrf.mxu0
      %v3826 = vpop.f32.mrf.mxu0
      %v3827 = vadd.f32 0.0, %v3826
      %v3828 = vpop.f32.mrf.mxu0
      %3829 = vmatprep.mubr.bf16.mxu0 0
      %3830 = vmatmul.mubr.bf16.gmra.mxu0 %v3755
      %v3831 = vpop.f32.mrf.mxu0
      %v3832 = vadd.f32 0.0, %v3831
      %v3833 = vpop.f32.mrf.mxu0
      %v3834 = vpop.f32.mrf.mxu0
      %v3835 = vadd.f32 0.0, %v3834
      %v3836 = vpop.f32.mrf.mxu0
      %3837 = vmatprep.mubr.bf16.mxu0 0
      %3838 = vmatmul.mubr.bf16.gmra.mxu0 %v3758
      %v3839 = vpop.f32.mrf.mxu0
      %v3840 = vadd.f32 0.0, %v3839
      %v3841 = vpop.f32.mrf.mxu0
      %v3842 = vpop.f32.mrf.mxu0
      %v3843 = vadd.f32 0.0, %v3842
      %v3844 = vpop.f32.mrf.mxu0
      %3845 = vmatprep.mubr.bf16.mxu0 0
      %3846 = vmatmul.mubr.bf16.gmra.mxu0 %v3761
      %v3847 = vpop.f32.mrf.mxu0
      %v3848 = vadd.f32 0.0, %v3847
      %v3849 = vpop.f32.mrf.mxu0
      %v3850 = vpop.f32.mrf.mxu0
      %v3851 = vadd.f32 0.0, %v3850
      %v3852 = vpop.f32.mrf.mxu0
      %3853 = vmatprep.mubr.bf16.mxu0 0
      %3854 = vmatmul.mubr.bf16.gmra.mxu0 %v3764
      %v3855 = vpop.f32.mrf.mxu0
      %v3856 = vadd.f32 0.0, %v3855
      %v3857 = vpop.f32.mrf.mxu0
      %v3858 = vpop.f32.mrf.mxu0
      %v3859 = vadd.f32 0.0, %v3858
      %v3860 = vpop.f32.mrf.mxu0
      %3861 = vmatprep.mubr.bf16.mxu0 0
      %3862 = vmatmul.mubr.bf16.gmra.mxu0 %v3767
      %v3863 = vpop.f32.mrf.mxu0
      %v3864 = vadd.f32 0.0, %v3863
      %v3865 = vpop.f32.mrf.mxu0
      %v3866 = vpop.f32.mrf.mxu0
      %v3867 = vadd.f32 0.0, %v3866
      %v3868 = vpop.f32.mrf.mxu0
      %3869 = vmatprep.mubr.bf16.mxu0 0
      %3870 = vmatmul.mubr.bf16.gmra.mxu0 %v3770
      %v3871 = vpop.f32.mrf.mxu0
      %v3872 = vadd.f32 0.0, %v3871
      %v3873 = vpop.f32.mrf.mxu0
      %v3874 = vpop.f32.mrf.mxu0
      %v3875 = vadd.f32 0.0, %v3874
      %v3876 = vpop.f32.mrf.mxu0
      %3877 = vmatprep.mubr.bf16.mxu0 0
      %3878 = vmatmul.mubr.bf16.gmra.mxu0 %v3773
      %v3879 = vpop.f32.mrf.mxu0
      %v3880 = vadd.f32 0.0, %v3879
      %v3881 = vpop.f32.mrf.mxu0
      %v3882 = vpop.f32.mrf.mxu0
      %v3883 = vadd.f32 0.0, %v3882
      %v3884 = vpop.f32.mrf.mxu0
      %3885 = vmatprep.mubr.bf16.mxu0 0
      %3886 = vmatmul.mubr.bf16.gmra.mxu0 %v3776
      %v3887 = vpop.f32.mrf.mxu0
      %v3888 = vadd.f32 0.0, %v3887
      %v3889 = vpop.f32.mrf.mxu0
      %v3890 = vpop.f32.mrf.mxu0
      %v3891 = vadd.f32 0.0, %v3890
      %v3892 = vpop.f32.mrf.mxu0
      %3893 = vdwg.mxu0
      %v3894 = vadd.f32 %v3586, %v3816
      %v3895 = vadd.f32 %v3587, %v3819
      %v3896 = vadd.f32 %v3588, %v3824
      %v3897 = vadd.f32 %v3589, %v3827
      %v3898 = vadd.f32 %v3590, %v3832
      %v3899 = vadd.f32 %v3591, %v3835
      %v3900 = vadd.f32 %v3592, %v3840
      %v3901 = vadd.f32 %v3593, %v3843
      %v3902 = vadd.f32 %v3594, %v3848
      %v3903 = vadd.f32 %v3595, %v3851
      %v3904 = vadd.f32 %v3596, %v3856
      %v3905 = vadd.f32 %v3597, %v3859
      %v3906 = vadd.f32 %v3598, %v3864
      %v3907 = vadd.f32 %v3599, %v3867
      %v3908 = vadd.f32 %v3600, %v3872
      %v3909 = vadd.f32 %v3601, %v3875
      %v3910 = vadd.f32 %v3602, %v3880
      %v3911 = vadd.f32 %v3603, %v3883
      %v3912 = vadd.f32 %v3604, %v3888
      %v3913 = vadd.f32 %v3605, %v3891
      %v3914 = vld [vmem:[%s4] sm:$0x1]
      %v3916 = vlaneseq
      %v3917 = vshrl.u32 %v3916, 7
      %v3918 = vsub.s32 0, %v3917
      %v3919 = vrot.slane %v3914, %v3918
      %v3921 = vadd.f32 %v3894, %v3919
      %v3922 = vadd.f32 %v3895, %v3919
      %v3923 = vadd.f32 %v3896, %v3919
      %v3924 = vadd.f32 %v3897, %v3919
      %v3925 = vadd.f32 %v3898, %v3919
      %v3926 = vadd.f32 %v3899, %v3919
      %v3927 = vadd.f32 %v3900, %v3919
      %v3928 = vadd.f32 %v3901, %v3919
      %v3929 = vadd.f32 %v3902, %v3919
      %v3930 = vadd.f32 %v3903, %v3919
      %v3931 = vadd.f32 %v3904, %v3919
      %v3932 = vadd.f32 %v3905, %v3919
      %v3933 = vadd.f32 %v3906, %v3919
      %v3934 = vadd.f32 %v3907, %v3919
      %v3935 = vadd.f32 %v3908, %v3919
      %v3936 = vadd.f32 %v3909, %v3919
      %v3937 = vadd.f32 %v3910, %v3919
      %v3938 = vadd.f32 %v3911, %v3919
      %v3939 = vadd.f32 %v3912, %v3919
      %v3940 = vadd.f32 %v3913, %v3919
      %v3941 = vmax.f32 %v3921, 0.0
      %v3942 = vmax.f32 %v3922, 0.0
      %v3943 = vmax.f32 %v3923, 0.0
      %v3944 = vmax.f32 %v3924, 0.0
      %v3945 = vmax.f32 %v3925, 0.0
      %v3946 = vmax.f32 %v3926, 0.0
      %v3947 = vmax.f32 %v3927, 0.0
      %v3948 = vmax.f32 %v3928, 0.0
      %v3949 = vmax.f32 %v3929, 0.0
      %v3950 = vmax.f32 %v3930, 0.0
      %v3951 = vmax.f32 %v3931, 0.0
      %v3952 = vmax.f32 %v3932, 0.0
      %v3953 = vmax.f32 %v3933, 0.0
      %v3954 = vmax.f32 %v3934, 0.0
      %v3955 = vmax.f32 %v3935, 0.0
      %v3956 = vmax.f32 %v3936, 0.0
      %v3957 = vmax.f32 %v3937, 0.0
      %v3958 = vmax.f32 %v3938, 0.0
      %v3959 = vmax.f32 %v3939, 0.0
      %v3960 = vmax.f32 %v3940, 0.0
      %v3961 = vsel %vm571, 1, 0
      %v3962 = vsel %vm874, 1, 0
      %vm3963 = vcmp.eq.s32.totalorder %v3961, 1
      %vm3964 = vcmp.eq.s32.totalorder %v3962, 1
      %v3965 = vsel %vm3963, 0.0, %v3941
      %v3966 = vsel %vm3963, 0.0, %v3942
      %v3967 = vsel 0, 0.0, %v3943
      %v3968 = vsel 0, 0.0, %v3944
      %v3969 = vsel 0, 0.0, %v3945
      %v3970 = vsel 0, 0.0, %v3946
      %v3971 = vsel 0, 0.0, %v3947
      %v3972 = vsel 0, 0.0, %v3948
      %v3973 = vsel 0, 0.0, %v3949
      %v3974 = vsel 0, 0.0, %v3950
      %v3975 = vsel 0, 0.0, %v3951
      %v3976 = vsel 0, 0.0, %v3952
      %v3977 = vsel 0, 0.0, %v3953
      %v3978 = vsel 0, 0.0, %v3954
      %v3979 = vsel 0, 0.0, %v3955
      %v3980 = vsel 0, 0.0, %v3956
      %v3981 = vsel 0, 0.0, %v3957
      %v3982 = vsel 0, 0.0, %v3958
      %v3983 = vsel %vm3964, 0.0, %v3959
      %v3984 = vsel %vm3964, 0.0, %v3960
      %v3985 = vpack.c.bf16 %v3966, %v3965
      %v3986 = vpack.c.bf16 %v3968, %v3967
      %v3987 = vpack.c.bf16 %v3970, %v3969
      %v3988 = vpack.c.bf16 %v3972, %v3971
      %v3989 = vpack.c.bf16 %v3974, %v3973
      %v3990 = vpack.c.bf16 %v3976, %v3975
      %v3991 = vpack.c.bf16 %v3978, %v3977
      %v3992 = vpack.c.bf16 %v3980, %v3979
      %v3993 = vpack.c.bf16 %v3982, %v3981
      %v3994 = vpack.c.bf16 %v3984, %v3983
      %v4005 = vunpack.c.l.b16 %v3985
      %v4006 = vunpack.c.h.b16 %v3985
      %v4007 = vunpack.c.l.b16 %v3986
      %v4008 = vunpack.c.h.b16 %v3986
      %v4009 = vunpack.c.l.b16 %v3987
      %v4010 = vunpack.c.h.b16 %v3987
      %v4011 = vunpack.c.l.b16 %v3988
      %v4012 = vunpack.c.h.b16 %v3988
      %v4013 = vunpack.c.l.b16 %v3989
      %v4014 = vunpack.c.h.b16 %v3989
      %v4015 = vunpack.c.l.b16 %v3990
      %v4016 = vunpack.c.h.b16 %v3990
      %v4017 = vunpack.c.l.b16 %v3991
      %v4018 = vunpack.c.h.b16 %v3991
      %v4019 = vunpack.c.l.b16 %v3992
      %v4020 = vunpack.c.h.b16 %v3992
      %v4021 = vunpack.c.l.b16 %v3993
      %v4022 = vunpack.c.h.b16 %v3993
      %v4023 = vunpack.c.l.b16 %v3994
      %v4024 = vunpack.c.h.b16 %v3994
      %v4025 = vpack.c.b16 %v4005, %v4005
      %v4026 = vpack.c.b16 %v4006, %v4006
      %v4027 = vpack.c.b16 %v4007, %v4007
      %v4028 = vpack.c.b16 %v4008, %v4008
      %v4029 = vpack.c.b16 %v4009, %v4009
      %v4030 = vpack.c.b16 %v4010, %v4010
      %v4031 = vpack.c.b16 %v4011, %v4011
      %v4032 = vpack.c.b16 %v4012, %v4012
      %v4033 = vpack.c.b16 %v4013, %v4013
      %v4034 = vpack.c.b16 %v4014, %v4014
      %v4035 = vpack.c.b16 %v4015, %v4015
      %v4036 = vpack.c.b16 %v4016, %v4016
      %v4037 = vpack.c.b16 %v4017, %v4017
      %v4038 = vpack.c.b16 %v4018, %v4018
      %v4039 = vpack.c.b16 %v4019, %v4019
      %v4040 = vpack.c.b16 %v4020, %v4020
      %v4041 = vpack.c.b16 %v4021, %v4021
      %v4042 = vpack.c.b16 %v4022, %v4022
      %v4043 = vpack.c.b16 %v4023, %v4023
      %v4044 = vpack.c.b16 %v4024, %v4024
      %v4046 = vshrl.u32 %v4025, 16
      %v4048 = vrot.slane %v4046, 7
      %v4049 = vshll.u32 %v4025, 16
      %v4051 = vor.u32 %v4048, %v4049
      %v4052 = vrot.slane %v4048, 4
      %v4054 = vshrl.u32 %v4026, 16
      %v4056 = vrot.slane %v4054, 7
      %v4057 = vshll.u32 %v4026, 16
      %v4059 = vor.u32 %v4056, %v4057
      %v4060 = vsel %vm577, %v4052, %v4059
      %v4061 = vrot.slane %v4056, 4
      %v4063 = vshrl.u32 %v4027, 16
      %v4065 = vrot.slane %v4063, 7
      %v4066 = vshll.u32 %v4027, 16
      %v4068 = vor.u32 %v4065, %v4066
      %v4069 = vrot.slane %v4065, 4
      %v4071 = vshrl.u32 %v4028, 16
      %v4073 = vrot.slane %v4071, 7
      %v4074 = vshll.u32 %v4028, 16
      %v4076 = vor.u32 %v4073, %v4074
      %v4077 = vsel %vm577, %v4069, %v4076
      %v4078 = vrot.slane %v4073, 4
      %v4080 = vshrl.u32 %v4029, 16
      %v4082 = vrot.slane %v4080, 7
      %v4083 = vshll.u32 %v4029, 16
      %v4085 = vor.u32 %v4082, %v4083
      %v4086 = vrot.slane %v4082, 4
      %v4088 = vshrl.u32 %v4030, 16
      %v4090 = vrot.slane %v4088, 7
      %v4091 = vshll.u32 %v4030, 16
      %v4093 = vor.u32 %v4090, %v4091
      %v4094 = vsel %vm577, %v4086, %v4093
      %v4095 = vrot.slane %v4090, 4
      %v4097 = vshrl.u32 %v4031, 16
      %v4099 = vrot.slane %v4097, 7
      %v4100 = vshll.u32 %v4031, 16
      %v4102 = vor.u32 %v4099, %v4100
      %v4103 = vrot.slane %v4099, 4
      %v4105 = vshrl.u32 %v4032, 16
      %v4107 = vrot.slane %v4105, 7
      %v4108 = vshll.u32 %v4032, 16
      %v4110 = vor.u32 %v4107, %v4108
      %v4111 = vsel %vm577, %v4103, %v4110
      %v4112 = vrot.slane %v4107, 4
      %v4114 = vshrl.u32 %v4033, 16
      %v4116 = vrot.slane %v4114, 7
      %v4117 = vshll.u32 %v4033, 16
      %v4119 = vor.u32 %v4116, %v4117
      %v4120 = vrot.slane %v4116, 4
      %v4122 = vshrl.u32 %v4034, 16
      %v4124 = vrot.slane %v4122, 7
      %v4125 = vshll.u32 %v4034, 16
      %v4127 = vor.u32 %v4124, %v4125
      %v4128 = vsel %vm577, %v4120, %v4127
      %v4129 = vrot.slane %v4124, 4
      %v4131 = vshrl.u32 %v4035, 16
      %v4133 = vrot.slane %v4131, 7
      %v4134 = vshll.u32 %v4035, 16
      %v4136 = vor.u32 %v4133, %v4134
      %v4137 = vrot.slane %v4133, 4
      %v4139 = vshrl.u32 %v4036, 16
      %v4141 = vrot.slane %v4139, 7
      %v4142 = vshll.u32 %v4036, 16
      %v4144 = vor.u32 %v4141, %v4142
      %v4145 = vsel %vm577, %v4137, %v4144
      %v4146 = vrot.slane %v4141, 4
      %v4148 = vshrl.u32 %v4037, 16
      %v4150 = vrot.slane %v4148, 7
      %v4151 = vshll.u32 %v4037, 16
      %v4153 = vor.u32 %v4150, %v4151
      %v4154 = vrot.slane %v4150, 4
      %v4156 = vshrl.u32 %v4038, 16
      %v4158 = vrot.slane %v4156, 7
      %v4159 = vshll.u32 %v4038, 16
      %v4161 = vor.u32 %v4158, %v4159
      %v4162 = vsel %vm577, %v4154, %v4161
      %v4163 = vrot.slane %v4158, 4
      %v4165 = vshrl.u32 %v4039, 16
      %v4167 = vrot.slane %v4165, 7
      %v4168 = vshll.u32 %v4039, 16
      %v4170 = vor.u32 %v4167, %v4168
      %v4171 = vrot.slane %v4167, 4
      %v4173 = vshrl.u32 %v4040, 16
      %v4175 = vrot.slane %v4173, 7
      %v4176 = vshll.u32 %v4040, 16
      %v4178 = vor.u32 %v4175, %v4176
      %v4179 = vsel %vm577, %v4171, %v4178
      %v4180 = vrot.slane %v4175, 4
      %v4182 = vshrl.u32 %v4041, 16
      %v4184 = vrot.slane %v4182, 7
      %v4185 = vshll.u32 %v4041, 16
      %v4187 = vor.u32 %v4184, %v4185
      %v4188 = vrot.slane %v4184, 4
      %v4190 = vshrl.u32 %v4042, 16
      %v4192 = vrot.slane %v4190, 7
      %v4193 = vshll.u32 %v4042, 16
      %v4195 = vor.u32 %v4192, %v4193
      %v4196 = vsel %vm577, %v4188, %v4195
      %v4197 = vrot.slane %v4192, 4
      %v4199 = vshrl.u32 %v4043, 16
      %v4201 = vrot.slane %v4199, 7
      %v4202 = vshll.u32 %v4043, 16
      %v4204 = vor.u32 %v4201, %v4202
      %v4205 = vrot.slane %v4201, 4
      %v4207 = vshrl.u32 %v4044, 16
      %v4209 = vrot.slane %v4207, 7
      %v4210 = vshll.u32 %v4044, 16
      %v4212 = vor.u32 %v4209, %v4210
      %v4213 = vsel %vm577, %v4205, %v4212
      %v4214 = vrot.slane %v4209, 4
      %v4245 = vsel %vm619, %v4051, %v934
      %4246 = vst [vmem:[#allocation2] sm:$0xf] %v4245
      %4247 = vst.msk [vmem:[#allocation2 + $0x4] sm:$0xf] %vm623, %v4060
      %v4248 = vld [vmem:[#allocation2 + $0x8] sm:$0x1]
      %v4249 = vsel %vm490, %v4061, %v4248
      %4250 = vst [vmem:[#allocation2 + $0x8] sm:$0x1] %v4249
      %v4251 = vld [vmem:[#allocation2 + $0xc] sm:$0xf]
      %v4252 = vsel %vm619, %v4068, %v4251
      %4253 = vst [vmem:[#allocation2 + $0xc] sm:$0xf] %v4252
      %4254 = vst.msk [vmem:[#allocation2 + $0x10] sm:$0xf] %vm623, %v4077
      %v4255 = vld [vmem:[#allocation2 + $0x14] sm:$0x1]
      %v4256 = vsel %vm490, %v4078, %v4255
      %4257 = vst [vmem:[#allocation2 + $0x14] sm:$0x1] %v4256
      %v4258 = vld [vmem:[#allocation2 + $0x18] sm:$0xf]
      %v4259 = vsel %vm619, %v4085, %v4258
      %4260 = vst [vmem:[#allocation2 + $0x18] sm:$0xf] %v4259
      %4261 = vst.msk [vmem:[#allocation2 + $0x1c] sm:$0xf] %vm623, %v4094
      %v4262 = vld [vmem:[#allocation2 + $0x20] sm:$0x1]
      %v4263 = vsel %vm490, %v4095, %v4262
      %4264 = vst [vmem:[#allocation2 + $0x20] sm:$0x1] %v4263
      %v4265 = vld [vmem:[#allocation2 + $0x24] sm:$0xf]
      %v4266 = vsel %vm619, %v4102, %v4265
      %4267 = vst [vmem:[#allocation2 + $0x24] sm:$0xf] %v4266
      %4268 = vst.msk [vmem:[#allocation2 + $0x28] sm:$0xf] %vm623, %v4111
      %v4269 = vld [vmem:[#allocation2 + $0x2c] sm:$0x1]
      %v4270 = vsel %vm490, %v4112, %v4269
      %4271 = vst [vmem:[#allocation2 + $0x2c] sm:$0x1] %v4270
      %v4272 = vld [vmem:[#allocation2 + $0x30] sm:$0xf]
      %v4273 = vsel %vm619, %v4119, %v4272
      %4274 = vst [vmem:[#allocation2 + $0x30] sm:$0xf] %v4273
      %4275 = vst.msk [vmem:[#allocation2 + $0x34] sm:$0xf] %vm623, %v4128
      %v4276 = vld [vmem:[#allocation2 + $0x38] sm:$0x1]
      %v4277 = vsel %vm490, %v4129, %v4276
      %4278 = vst [vmem:[#allocation2 + $0x38] sm:$0x1] %v4277
      %v4279 = vld [vmem:[#allocation2 + $0x3c] sm:$0xf]
      %v4280 = vsel %vm619, %v4136, %v4279
      %4281 = vst [vmem:[#allocation2 + $0x3c] sm:$0xf] %v4280
      %4282 = vst.msk [vmem:[#allocation2 + $0x40] sm:$0xf] %vm623, %v4145
      %v4283 = vld [vmem:[#allocation2 + $0x44] sm:$0x1]
      %v4284 = vsel %vm490, %v4146, %v4283
      %4285 = vst [vmem:[#allocation2 + $0x44] sm:$0x1] %v4284
      %v4286 = vld [vmem:[#allocation2 + $0x48] sm:$0xf]
      %v4287 = vsel %vm619, %v4153, %v4286
      %4288 = vst [vmem:[#allocation2 + $0x48] sm:$0xf] %v4287
      %4289 = vst.msk [vmem:[#allocation2 + $0x4c] sm:$0xf] %vm623, %v4162
      %v4290 = vld [vmem:[#allocation2 + $0x50] sm:$0x1]
      %v4291 = vsel %vm490, %v4163, %v4290
      %4292 = vst [vmem:[#allocation2 + $0x50] sm:$0x1] %v4291
      %v4293 = vld [vmem:[#allocation2 + $0x54] sm:$0xf]
      %v4294 = vsel %vm619, %v4170, %v4293
      %4295 = vst [vmem:[#allocation2 + $0x54] sm:$0xf] %v4294
      %4296 = vst.msk [vmem:[#allocation2 + $0x58] sm:$0xf] %vm623, %v4179
      %v4297 = vld [vmem:[#allocation2 + $0x5c] sm:$0x1]
      %v4298 = vsel %vm490, %v4180, %v4297
      %4299 = vst [vmem:[#allocation2 + $0x5c] sm:$0x1] %v4298
      %v4300 = vld [vmem:[#allocation2 + $0x60] sm:$0xf]
      %v4301 = vsel %vm619, %v4187, %v4300
      %4302 = vst [vmem:[#allocation2 + $0x60] sm:$0xf] %v4301
      %4303 = vst.msk [vmem:[#allocation2 + $0x64] sm:$0xf] %vm623, %v4196
      %v4304 = vld [vmem:[#allocation2 + $0x68] sm:$0x1]
      %v4305 = vsel %vm490, %v4197, %v4304
      %4306 = vst [vmem:[#allocation2 + $0x68] sm:$0x1] %v4305
      %v4307 = vld [vmem:[#allocation2 + $0x6c] sm:$0xf]
      %v4308 = vsel %vm619, %v4204, %v4307
      %4309 = vst [vmem:[#allocation2 + $0x6c] sm:$0xf] %v4308
      %4310 = vst.msk [vmem:[#allocation2 + $0x70] sm:$0xf] %vm623, %v4213
      %v4311 = vld [vmem:[#allocation2 + $0x74] sm:$0x1]
      %v4312 = vsel %vm490, %v4214, %v4311
      %4313 = vst [vmem:[#allocation2 + $0x74] sm:$0x1] %v4312
      %v4314 = vld [vmem:[#allocation2] sm:$0xf]
      %v4315 = vld [vmem:[#allocation2 + $0x4] sm:$0xf]
      %v4316 = vld [vmem:[#allocation2 + $0xc] sm:$0xf]
      %v4317 = vld [vmem:[#allocation2 + $0x10] sm:$0xf]
      %v4318 = vld [vmem:[#allocation2 + $0x18] sm:$0xf]
      %v4319 = vld [vmem:[#allocation2 + $0x1c] sm:$0xf]
      %v4320 = vld [vmem:[#allocation2 + $0x24] sm:$0xf]
      %v4321 = vld [vmem:[#allocation2 + $0x28] sm:$0xf]
      %v4322 = vld [vmem:[#allocation2 + $0x30] sm:$0xf]
      %v4323 = vld [vmem:[#allocation2 + $0x34] sm:$0xf]
      %v4324 = vld [vmem:[#allocation2 + $0x3c] sm:$0xf]
      %v4325 = vld [vmem:[#allocation2 + $0x40] sm:$0xf]
      %v4326 = vld [vmem:[#allocation2 + $0x48] sm:$0xf]
      %v4327 = vld [vmem:[#allocation2 + $0x4c] sm:$0xf]
      %v4328 = vld [vmem:[#allocation2 + $0x54] sm:$0xf]
      %v4329 = vld [vmem:[#allocation2 + $0x58] sm:$0xf]
      %v4330 = vld [vmem:[%s5] sm:$0xf]
      %v4331 = vld [vmem:[#allocation2 + $0x8] sm:$0x1]
      %v4332 = vld [vmem:[#allocation2 + $0x14] sm:$0x1]
      %v4333 = vld [vmem:[#allocation2 + $0x20] sm:$0x1]
      %v4334 = vld [vmem:[#allocation2 + $0x2c] sm:$0x1]
      %v4335 = vld [vmem:[#allocation2 + $0x38] sm:$0x1]
      %v4336 = vld [vmem:[#allocation2 + $0x44] sm:$0x1]
      %v4337 = vld [vmem:[#allocation2 + $0x50] sm:$0x1]
      %v4338 = vld [vmem:[#allocation2 + $0x5c] sm:$0x1]
      %v4340 = vshrl.u32 %v4314, 16
      %v4342 = vrot.slane %v4340, 4
      %v4343 = vshll.u32 %v4314, 16
      %v4345 = vrot.slane %v4343, 5
      %v4346 = vor.u32 %v4342, %v4345
      %v4347 = vrot.slane %v4346, 4
      %v4349 = vshll.u32 %v4315, 16
      %v4351 = vrot.slane %v4349, 5
      %v4352 = vsel %vm967, %v4347, %v4351
      %v4353 = vshrl.u32 %v4315, 16
      %v4355 = vrot.slane %v4353, 4
      %v4356 = vor.u32 %v4355, %v4351
      %v4357 = vrot.slane %v4356, 4
      %v4359 = vshll.u32 %v4331, 16
      %v4361 = vrot.slane %v4359, 5
      %v4362 = vsel %vm967, %v4357, %v4361
      %v4364 = vshrl.u32 %v4316, 16
      %v4366 = vrot.slane %v4364, 4
      %v4367 = vshll.u32 %v4316, 16
      %v4369 = vrot.slane %v4367, 5
      %v4370 = vor.u32 %v4366, %v4369
      %v4371 = vrot.slane %v4370, 4
      %v4373 = vshll.u32 %v4317, 16
      %v4375 = vrot.slane %v4373, 5
      %v4376 = vsel %vm967, %v4371, %v4375
      %v4377 = vshrl.u32 %v4317, 16
      %v4379 = vrot.slane %v4377, 4
      %v4380 = vor.u32 %v4379, %v4375
      %v4381 = vrot.slane %v4380, 4
      %v4383 = vshll.u32 %v4332, 16
      %v4385 = vrot.slane %v4383, 5
      %v4386 = vsel %vm967, %v4381, %v4385
      %v4388 = vshrl.u32 %v4318, 16
      %v4390 = vrot.slane %v4388, 4
      %v4391 = vshll.u32 %v4318, 16
      %v4393 = vrot.slane %v4391, 5
      %v4394 = vor.u32 %v4390, %v4393
      %v4395 = vrot.slane %v4394, 4
      %v4397 = vshll.u32 %v4319, 16
      %v4399 = vrot.slane %v4397, 5
      %v4400 = vsel %vm967, %v4395, %v4399
      %v4401 = vshrl.u32 %v4319, 16
      %v4403 = vrot.slane %v4401, 4
      %v4404 = vor.u32 %v4403, %v4399
      %v4405 = vrot.slane %v4404, 4
      %v4407 = vshll.u32 %v4333, 16
      %v4409 = vrot.slane %v4407, 5
      %v4410 = vsel %vm967, %v4405, %v4409
      %v4412 = vshrl.u32 %v4320, 16
      %v4414 = vrot.slane %v4412, 4
      %v4415 = vshll.u32 %v4320, 16
      %v4417 = vrot.slane %v4415, 5
      %v4418 = vor.u32 %v4414, %v4417
      %v4419 = vrot.slane %v4418, 4
      %v4421 = vshll.u32 %v4321, 16
      %v4423 = vrot.slane %v4421, 5
      %v4424 = vsel %vm967, %v4419, %v4423
      %v4425 = vshrl.u32 %v4321, 16
      %v4427 = vrot.slane %v4425, 4
      %v4428 = vor.u32 %v4427, %v4423
      %v4429 = vrot.slane %v4428, 4
      %v4431 = vshll.u32 %v4334, 16
      %v4433 = vrot.slane %v4431, 5
      %v4434 = vsel %vm967, %v4429, %v4433
      %v4436 = vshrl.u32 %v4322, 16
      %v4438 = vrot.slane %v4436, 4
      %v4439 = vshll.u32 %v4322, 16
      %v4441 = vrot.slane %v4439, 5
      %v4442 = vor.u32 %v4438, %v4441
      %v4443 = vrot.slane %v4442, 4
      %v4445 = vshll.u32 %v4323, 16
      %v4447 = vrot.slane %v4445, 5
      %v4448 = vsel %vm967, %v4443, %v4447
      %v4449 = vshrl.u32 %v4323, 16
      %v4451 = vrot.slane %v4449, 4
      %v4452 = vor.u32 %v4451, %v4447
      %v4453 = vrot.slane %v4452, 4
      %v4455 = vshll.u32 %v4335, 16
      %v4457 = vrot.slane %v4455, 5
      %v4458 = vsel %vm967, %v4453, %v4457
      %v4460 = vshrl.u32 %v4324, 16
      %v4462 = vrot.slane %v4460, 4
      %v4463 = vshll.u32 %v4324, 16
      %v4465 = vrot.slane %v4463, 5
      %v4466 = vor.u32 %v4462, %v4465
      %v4467 = vrot.slane %v4466, 4
      %v4469 = vshll.u32 %v4325, 16
      %v4471 = vrot.slane %v4469, 5
      %v4472 = vsel %vm967, %v4467, %v4471
      %v4473 = vshrl.u32 %v4325, 16
      %v4475 = vrot.slane %v4473, 4
      %v4476 = vor.u32 %v4475, %v4471
      %v4477 = vrot.slane %v4476, 4
      %v4479 = vshll.u32 %v4336, 16
      %v4481 = vrot.slane %v4479, 5
      %v4482 = vsel %vm967, %v4477, %v4481
      %v4484 = vshrl.u32 %v4326, 16
      %v4486 = vrot.slane %v4484, 4
      %v4487 = vshll.u32 %v4326, 16
      %v4489 = vrot.slane %v4487, 5
      %v4490 = vor.u32 %v4486, %v4489
      %v4491 = vrot.slane %v4490, 4
      %v4493 = vshll.u32 %v4327, 16
      %v4495 = vrot.slane %v4493, 5
      %v4496 = vsel %vm967, %v4491, %v4495
      %v4497 = vshrl.u32 %v4327, 16
      %v4499 = vrot.slane %v4497, 4
      %v4500 = vor.u32 %v4499, %v4495
      %v4501 = vrot.slane %v4500, 4
      %v4503 = vshll.u32 %v4337, 16
      %v4505 = vrot.slane %v4503, 5
      %v4506 = vsel %vm967, %v4501, %v4505
      %v4508 = vshrl.u32 %v4328, 16
      %v4510 = vrot.slane %v4508, 4
      %v4511 = vshll.u32 %v4328, 16
      %v4513 = vrot.slane %v4511, 5
      %v4514 = vor.u32 %v4510, %v4513
      %v4515 = vrot.slane %v4514, 4
      %v4517 = vshll.u32 %v4329, 16
      %v4519 = vrot.slane %v4517, 5
      %v4520 = vsel %vm967, %v4515, %v4519
      %v4521 = vshrl.u32 %v4329, 16
      %v4523 = vrot.slane %v4521, 4
      %v4524 = vor.u32 %v4523, %v4519
      %v4525 = vrot.slane %v4524, 4
      %v4527 = vshll.u32 %v4338, 16
      %v4529 = vrot.slane %v4527, 5
      %v4530 = vsel %vm967, %v4525, %v4529
      %s4531 = scalar_lea.vmem %s5, 4
      %v4532 = vld [vmem:[%s4531] sm:$0xf]
      %v4533 = vunpack.c.l.b16 %v4352
      %v4534 = vunpack.c.l.b16 %v4362
      %v4535 = vunpack.c.l.b16 %v4376
      %v4536 = vunpack.c.l.b16 %v4386
      %v4537 = vunpack.c.l.b16 %v4400
      %v4538 = vunpack.c.l.b16 %v4410
      %v4539 = vunpack.c.l.b16 %v4424
      %v4540 = vunpack.c.l.b16 %v4434
      %v4541 = vunpack.c.l.b16 %v4448
      %v4542 = vunpack.c.l.b16 %v4458
      %v4543 = vunpack.c.l.b16 %v4472
      %v4544 = vunpack.c.l.b16 %v4482
      %v4545 = vunpack.c.l.b16 %v4496
      %v4546 = vunpack.c.l.b16 %v4506
      %v4547 = vunpack.c.l.b16 %v4520
      %v4548 = vunpack.c.l.b16 %v4530
      %v4549 = vpack.c.b16 %v4534, %v4533
      %v4550 = vpack.c.b16 %v4536, %v4535
      %v4551 = vpack.c.b16 %v4538, %v4537
      %v4552 = vpack.c.b16 %v4540, %v4539
      %v4553 = vpack.c.b16 %v4542, %v4541
      %v4554 = vpack.c.b16 %v4544, %v4543
      %v4555 = vpack.c.b16 %v4546, %v4545
      %v4556 = vpack.c.b16 %v4548, %v4547
      %v4558 = vsel %vm1240, %v4549, 0
      %v4561 = vsel %vm1240, %v4550, 0
      %v4564 = vsel %vm1240, %v4551, 0
      %v4567 = vsel %vm1240, %v4552, 0
      %v4570 = vsel %vm1240, %v4553, 0
      %v4573 = vsel %vm1240, %v4554, 0
      %v4576 = vsel %vm1240, %v4555, 0
      %v4579 = vsel %vm1240, %v4556, 0
      %v4582 = vsel %vm1271, %v4532, 0
      %4584 = vmatprep.subr.bf16.mxu0 0
      %4585 = vmatpush1.bf16.msra.mxu0 0
      %4586 = vmatprep.subr.bf16.mxu0 0
      %4587 = vmatpush1.bf16.msra.mxu0 0
      %4588 = vmatprep.subr.bf16.mxu0 0
      %4589 = vmatpush1.bf16.msra.mxu0 0
      %4590 = vmatprep.subr.bf16.mxu0 0
      %4591 = vmatpush1.bf16.msra.mxu0 0
      %4592 = vmatprep.subr.bf16.mxu0 0
      %4593 = vmatpush1.bf16.msra.mxu0 0
      %4594 = vmatprep.subr.bf16.mxu0 0
      %4595 = vmatpush1.bf16.msra.mxu0 0
      %4596 = vmatprep.subr.bf16.mxu0 0
      %4597 = vmatpush1.bf16.msra.mxu0 0
      %4598 = vmatprep.subr.bf16.mxu0 0
      %4599 = vmatpush1.bf16.msra.mxu0 %v4582
      %4600 = vmatprep.subr.bf16.mxu0 0
      %4601 = vmatpush2.bf16.msra.mxu0 0
      %4602 = vmatprep.subr.bf16.mxu0 0
      %4603 = vmatpush2.bf16.msra.mxu0 0
      %4604 = vmatprep.subr.bf16.mxu0 0
      %4605 = vmatpush2.bf16.msra.mxu0 0
      %4606 = vmatprep.subr.bf16.mxu0 0
      %4607 = vmatpush2.bf16.msra.mxu0 0
      %4608 = vmatprep.subr.bf16.mxu0 0
      %4609 = vmatpush2.bf16.msra.mxu0 0
      %4610 = vmatprep.subr.bf16.mxu0 0
      %4611 = vmatpush2.bf16.msra.mxu0 0
      %4612 = vmatprep.subr.bf16.mxu0 0
      %4613 = vmatpush2.bf16.msra.mxu0 0
      %4614 = vmatprep.subr.bf16.mxu0 0
      %4615 = vmatpush2.bf16.msra.mxu0 0
      %4616 = vmatprep.mubr.bf16.mxu0 0
      %4617 = vmatmul.mubr.bf16.gmra.mxu0 %v4558
      %v4618 = vpop.f32.mrf.mxu0
      %v4619 = vadd.f32 0.0, %v4618
      %v4620 = vpop.f32.mrf.mxu0
      %v4621 = vpop.f32.mrf.mxu0
      %v4622 = vadd.f32 0.0, %v4621
      %v4623 = vpop.f32.mrf.mxu0
      %4624 = vmatprep.mubr.bf16.mxu0 0
      %4625 = vmatmul.mubr.bf16.gmra.mxu0 %v4561
      %v4626 = vpop.f32.mrf.mxu0
      %v4627 = vadd.f32 0.0, %v4626
      %v4628 = vpop.f32.mrf.mxu0
      %v4629 = vpop.f32.mrf.mxu0
      %v4630 = vadd.f32 0.0, %v4629
      %v4631 = vpop.f32.mrf.mxu0
      %4632 = vmatprep.mubr.bf16.mxu0 0
      %4633 = vmatmul.mubr.bf16.gmra.mxu0 %v4564
      %v4634 = vpop.f32.mrf.mxu0
      %v4635 = vadd.f32 0.0, %v4634
      %v4636 = vpop.f32.mrf.mxu0
      %v4637 = vpop.f32.mrf.mxu0
      %v4638 = vadd.f32 0.0, %v4637
      %v4639 = vpop.f32.mrf.mxu0
      %4640 = vmatprep.mubr.bf16.mxu0 0
      %4641 = vmatmul.mubr.bf16.gmra.mxu0 %v4567
      %v4642 = vpop.f32.mrf.mxu0
      %v4643 = vadd.f32 0.0, %v4642
      %v4644 = vpop.f32.mrf.mxu0
      %v4645 = vpop.f32.mrf.mxu0
      %v4646 = vadd.f32 0.0, %v4645
      %v4647 = vpop.f32.mrf.mxu0
      %4648 = vmatprep.mubr.bf16.mxu0 0
      %4649 = vmatmul.mubr.bf16.gmra.mxu0 %v4570
      %v4650 = vpop.f32.mrf.mxu0
      %v4651 = vadd.f32 0.0, %v4650
      %v4652 = vpop.f32.mrf.mxu0
      %v4653 = vpop.f32.mrf.mxu0
      %v4654 = vadd.f32 0.0, %v4653
      %v4655 = vpop.f32.mrf.mxu0
      %4656 = vmatprep.mubr.bf16.mxu0 0
      %4657 = vmatmul.mubr.bf16.gmra.mxu0 %v4573
      %v4658 = vpop.f32.mrf.mxu0
      %v4659 = vadd.f32 0.0, %v4658
      %v4660 = vpop.f32.mrf.mxu0
      %v4661 = vpop.f32.mrf.mxu0
      %v4662 = vadd.f32 0.0, %v4661
      %v4663 = vpop.f32.mrf.mxu0
      %4664 = vmatprep.mubr.bf16.mxu0 0
      %4665 = vmatmul.mubr.bf16.gmra.mxu0 %v4576
      %v4666 = vpop.f32.mrf.mxu0
      %v4667 = vadd.f32 0.0, %v4666
      %v4668 = vpop.f32.mrf.mxu0
      %v4669 = vpop.f32.mrf.mxu0
      %v4670 = vadd.f32 0.0, %v4669
      %v4671 = vpop.f32.mrf.mxu0
      %4672 = vmatprep.mubr.bf16.mxu0 0
      %4673 = vmatmul.mubr.bf16.gmra.mxu0 %v4579
      %v4674 = vpop.f32.mrf.mxu0
      %v4675 = vadd.f32 0.0, %v4674
      %v4676 = vpop.f32.mrf.mxu0
      %v4677 = vpop.f32.mrf.mxu0
      %v4678 = vadd.f32 0.0, %v4677
      %v4679 = vpop.f32.mrf.mxu0
      %4680 = vdwg.mxu0
      %v4697 = vunpack.c.l.b16 %v4314
      %v4698 = vunpack.c.l.b16 %v4315
      %v4699 = vunpack.c.l.b16 %v4316
      %v4700 = vunpack.c.l.b16 %v4317
      %v4701 = vunpack.c.l.b16 %v4318
      %v4702 = vunpack.c.l.b16 %v4319
      %v4703 = vunpack.c.l.b16 %v4320
      %v4704 = vunpack.c.l.b16 %v4321
      %v4705 = vunpack.c.l.b16 %v4322
      %v4706 = vunpack.c.l.b16 %v4323
      %v4707 = vunpack.c.l.b16 %v4324
      %v4708 = vunpack.c.l.b16 %v4325
      %v4709 = vunpack.c.l.b16 %v4326
      %v4710 = vunpack.c.l.b16 %v4327
      %v4711 = vunpack.c.l.b16 %v4328
      %v4712 = vunpack.c.l.b16 %v4329
      %v4713 = vpack.c.b16 %v4698, %v4697
      %v4714 = vpack.c.b16 %v4700, %v4699
      %v4715 = vpack.c.b16 %v4702, %v4701
      %v4716 = vpack.c.b16 %v4704, %v4703
      %v4717 = vpack.c.b16 %v4706, %v4705
      %v4718 = vpack.c.b16 %v4708, %v4707
      %v4719 = vpack.c.b16 %v4710, %v4709
      %v4720 = vpack.c.b16 %v4712, %v4711
      %v4722 = vsel %vm1240, %v4713, 0
      %v4725 = vsel %vm1240, %v4714, 0
      %v4728 = vsel %vm1240, %v4715, 0
      %v4731 = vsel %vm1240, %v4716, 0
      %v4734 = vsel %vm1240, %v4717, 0
      %v4737 = vsel %vm1240, %v4718, 0
      %v4740 = vsel %vm1240, %v4719, 0
      %v4743 = vsel %vm1240, %v4720, 0
      %v4746 = vsel %vm1271, %v4330, 0
      %4748 = vmatprep.subr.bf16.mxu0 0
      %4749 = vmatpush1.bf16.msra.mxu0 0
      %4750 = vmatprep.subr.bf16.mxu0 0
      %4751 = vmatpush1.bf16.msra.mxu0 0
      %4752 = vmatprep.subr.bf16.mxu0 0
      %4753 = vmatpush1.bf16.msra.mxu0 0
      %4754 = vmatprep.subr.bf16.mxu0 0
      %4755 = vmatpush1.bf16.msra.mxu0 0
      %4756 = vmatprep.subr.bf16.mxu0 0
      %4757 = vmatpush1.bf16.msra.mxu0 0
      %4758 = vmatprep.subr.bf16.mxu0 0
      %4759 = vmatpush1.bf16.msra.mxu0 0
      %4760 = vmatprep.subr.bf16.mxu0 0
      %4761 = vmatpush1.bf16.msra.mxu0 0
      %4762 = vmatprep.subr.bf16.mxu0 0
      %4763 = vmatpush1.bf16.msra.mxu0 %v4746
      %4764 = vmatprep.subr.bf16.mxu0 0
      %4765 = vmatpush2.bf16.msra.mxu0 0
      %4766 = vmatprep.subr.bf16.mxu0 0
      %4767 = vmatpush2.bf16.msra.mxu0 0
      %4768 = vmatprep.subr.bf16.mxu0 0
      %4769 = vmatpush2.bf16.msra.mxu0 0
      %4770 = vmatprep.subr.bf16.mxu0 0
      %4771 = vmatpush2.bf16.msra.mxu0 0
      %4772 = vmatprep.subr.bf16.mxu0 0
      %4773 = vmatpush2.bf16.msra.mxu0 0
      %4774 = vmatprep.subr.bf16.mxu0 0
      %4775 = vmatpush2.bf16.msra.mxu0 0
      %4776 = vmatprep.subr.bf16.mxu0 0
      %4777 = vmatpush2.bf16.msra.mxu0 0
      %4778 = vmatprep.subr.bf16.mxu0 0
      %4779 = vmatpush2.bf16.msra.mxu0 0
      %4780 = vmatprep.mubr.bf16.mxu0 0
      %4781 = vmatmul.mubr.bf16.gmra.mxu0 %v4722
      %v4782 = vpop.f32.mrf.mxu0
      %v4783 = vadd.f32 %v4619, %v4782
      %v4784 = vpop.f32.mrf.mxu0
      %v4785 = vpop.f32.mrf.mxu0
      %v4786 = vadd.f32 %v4622, %v4785
      %v4787 = vpop.f32.mrf.mxu0
      %4788 = vmatprep.mubr.bf16.mxu0 0
      %4789 = vmatmul.mubr.bf16.gmra.mxu0 %v4725
      %v4790 = vpop.f32.mrf.mxu0
      %v4791 = vadd.f32 %v4627, %v4790
      %v4792 = vpop.f32.mrf.mxu0
      %v4793 = vpop.f32.mrf.mxu0
      %v4794 = vadd.f32 %v4630, %v4793
      %v4795 = vpop.f32.mrf.mxu0
      %4796 = vmatprep.mubr.bf16.mxu0 0
      %4797 = vmatmul.mubr.bf16.gmra.mxu0 %v4728
      %v4798 = vpop.f32.mrf.mxu0
      %v4799 = vadd.f32 %v4635, %v4798
      %v4800 = vpop.f32.mrf.mxu0
      %v4801 = vpop.f32.mrf.mxu0
      %v4802 = vadd.f32 %v4638, %v4801
      %v4803 = vpop.f32.mrf.mxu0
      %4804 = vmatprep.mubr.bf16.mxu0 0
      %4805 = vmatmul.mubr.bf16.gmra.mxu0 %v4731
      %v4806 = vpop.f32.mrf.mxu0
      %v4807 = vadd.f32 %v4643, %v4806
      %v4808 = vpop.f32.mrf.mxu0
      %v4809 = vpop.f32.mrf.mxu0
      %v4810 = vadd.f32 %v4646, %v4809
      %v4811 = vpop.f32.mrf.mxu0
      %4812 = vmatprep.mubr.bf16.mxu0 0
      %4813 = vmatmul.mubr.bf16.gmra.mxu0 %v4734
      %v4814 = vpop.f32.mrf.mxu0
      %v4815 = vadd.f32 %v4651, %v4814
      %v4816 = vpop.f32.mrf.mxu0
      %v4817 = vpop.f32.mrf.mxu0
      %v4818 = vadd.f32 %v4654, %v4817
      %v4819 = vpop.f32.mrf.mxu0
      %4820 = vmatprep.mubr.bf16.mxu0 0
      %4821 = vmatmul.mubr.bf16.gmra.mxu0 %v4737
      %v4822 = vpop.f32.mrf.mxu0
      %v4823 = vadd.f32 %v4659, %v4822
      %v4824 = vpop.f32.mrf.mxu0
      %v4825 = vpop.f32.mrf.mxu0
      %v4826 = vadd.f32 %v4662, %v4825
      %v4827 = vpop.f32.mrf.mxu0
      %4828 = vmatprep.mubr.bf16.mxu0 0
      %4829 = vmatmul.mubr.bf16.gmra.mxu0 %v4740
      %v4830 = vpop.f32.mrf.mxu0
      %v4831 = vadd.f32 %v4667, %v4830
      %v4832 = vpop.f32.mrf.mxu0
      %v4833 = vpop.f32.mrf.mxu0
      %v4834 = vadd.f32 %v4670, %v4833
      %v4835 = vpop.f32.mrf.mxu0
      %4836 = vmatprep.mubr.bf16.mxu0 0
      %4837 = vmatmul.mubr.bf16.gmra.mxu0 %v4743
      %v4838 = vpop.f32.mrf.mxu0
      %v4839 = vadd.f32 %v4675, %v4838
      %v4840 = vpop.f32.mrf.mxu0
      %v4841 = vpop.f32.mrf.mxu0
      %v4842 = vadd.f32 %v4678, %v4841
      %v4843 = vpop.f32.mrf.mxu0
      %4844 = vdwg.mxu0
      %v4845 = vld [vmem:[#allocation2] sm:$0xe]
      %v4846 = vld [vmem:[#allocation2 + $0xc] sm:$0xe]
      %v4847 = vld [vmem:[#allocation2 + $0x18] sm:$0xe]
      %v4848 = vld [vmem:[#allocation2 + $0x24] sm:$0xe]
      %v4849 = vld [vmem:[#allocation2 + $0x30] sm:$0xe]
      %v4850 = vld [vmem:[#allocation2 + $0x3c] sm:$0xe]
      %v4851 = vld [vmem:[#allocation2 + $0x48] sm:$0xe]
      %v4852 = vld [vmem:[#allocation2 + $0x54] sm:$0xe]
      %v4869 = vrot.slane %v4845, 5
      %v4870 = vrot.slane %v4869, 4
      %v4871 = vrot.slane %v4315, 5
      %v4872 = vsel %vm1616, %v4870, %v4871
      %v4873 = vrot.slane %v4871, 4
      %v4874 = vrot.slane %v4331, 5
      %v4875 = vsel %vm1616, %v4873, %v4874
      %v4876 = vrot.slane %v4846, 5
      %v4877 = vrot.slane %v4876, 4
      %v4878 = vrot.slane %v4317, 5
      %v4879 = vsel %vm1616, %v4877, %v4878
      %v4880 = vrot.slane %v4878, 4
      %v4881 = vrot.slane %v4332, 5
      %v4882 = vsel %vm1616, %v4880, %v4881
      %v4883 = vrot.slane %v4847, 5
      %v4884 = vrot.slane %v4883, 4
      %v4885 = vrot.slane %v4319, 5
      %v4886 = vsel %vm1616, %v4884, %v4885
      %v4887 = vrot.slane %v4885, 4
      %v4888 = vrot.slane %v4333, 5
      %v4889 = vsel %vm1616, %v4887, %v4888
      %v4890 = vrot.slane %v4848, 5
      %v4891 = vrot.slane %v4890, 4
      %v4892 = vrot.slane %v4321, 5
      %v4893 = vsel %vm1616, %v4891, %v4892
      %v4894 = vrot.slane %v4892, 4
      %v4895 = vrot.slane %v4334, 5
      %v4896 = vsel %vm1616, %v4894, %v4895
      %v4897 = vrot.slane %v4849, 5
      %v4898 = vrot.slane %v4897, 4
      %v4899 = vrot.slane %v4323, 5
      %v4900 = vsel %vm1616, %v4898, %v4899
      %v4901 = vrot.slane %v4899, 4
      %v4902 = vrot.slane %v4335, 5
      %v4903 = vsel %vm1616, %v4901, %v4902
      %v4904 = vrot.slane %v4850, 5
      %v4905 = vrot.slane %v4904, 4
      %v4906 = vrot.slane %v4325, 5
      %v4907 = vsel %vm1616, %v4905, %v4906
      %v4908 = vrot.slane %v4906, 4
      %v4909 = vrot.slane %v4336, 5
      %v4910 = vsel %vm1616, %v4908, %v4909
      %v4911 = vrot.slane %v4851, 5
      %v4912 = vrot.slane %v4911, 4
      %v4913 = vrot.slane %v4327, 5
      %v4914 = vsel %vm1616, %v4912, %v4913
      %v4915 = vrot.slane %v4913, 4
      %v4916 = vrot.slane %v4337, 5
      %v4917 = vsel %vm1616, %v4915, %v4916
      %v4918 = vrot.slane %v4852, 5
      %v4919 = vrot.slane %v4918, 4
      %v4920 = vrot.slane %v4329, 5
      %v4921 = vsel %vm1616, %v4919, %v4920
      %v4922 = vrot.slane %v4920, 4
      %v4923 = vrot.slane %v4338, 5
      %v4924 = vsel %vm1616, %v4922, %v4923
      %s4925 = scalar_lea.vmem %s5, 8
      %v4926 = vld [vmem:[%s4925] sm:$0xf]
      %v4927 = vunpack.c.l.b16 %v4872
      %v4928 = vunpack.c.l.b16 %v4875
      %v4929 = vunpack.c.l.b16 %v4879
      %v4930 = vunpack.c.l.b16 %v4882
      %v4931 = vunpack.c.l.b16 %v4886
      %v4932 = vunpack.c.l.b16 %v4889
      %v4933 = vunpack.c.l.b16 %v4893
      %v4934 = vunpack.c.l.b16 %v4896
      %v4935 = vunpack.c.l.b16 %v4900
      %v4936 = vunpack.c.l.b16 %v4903
      %v4937 = vunpack.c.l.b16 %v4907
      %v4938 = vunpack.c.l.b16 %v4910
      %v4939 = vunpack.c.l.b16 %v4914
      %v4940 = vunpack.c.l.b16 %v4917
      %v4941 = vunpack.c.l.b16 %v4921
      %v4942 = vunpack.c.l.b16 %v4924
      %v4943 = vpack.c.b16 %v4928, %v4927
      %v4944 = vpack.c.b16 %v4930, %v4929
      %v4945 = vpack.c.b16 %v4932, %v4931
      %v4946 = vpack.c.b16 %v4934, %v4933
      %v4947 = vpack.c.b16 %v4936, %v4935
      %v4948 = vpack.c.b16 %v4938, %v4937
      %v4949 = vpack.c.b16 %v4940, %v4939
      %v4950 = vpack.c.b16 %v4942, %v4941
      %v4952 = vsel %vm1240, %v4943, 0
      %v4955 = vsel %vm1240, %v4944, 0
      %v4958 = vsel %vm1240, %v4945, 0
      %v4961 = vsel %vm1240, %v4946, 0
      %v4964 = vsel %vm1240, %v4947, 0
      %v4967 = vsel %vm1240, %v4948, 0
      %v4970 = vsel %vm1240, %v4949, 0
      %v4973 = vsel %vm1240, %v4950, 0
      %v4976 = vsel %vm1271, %v4926, 0
      %4978 = vmatprep.subr.bf16.mxu0 0
      %4979 = vmatpush1.bf16.msra.mxu0 0
      %4980 = vmatprep.subr.bf16.mxu0 0
      %4981 = vmatpush1.bf16.msra.mxu0 0
      %4982 = vmatprep.subr.bf16.mxu0 0
      %4983 = vmatpush1.bf16.msra.mxu0 0
      %4984 = vmatprep.subr.bf16.mxu0 0
      %4985 = vmatpush1.bf16.msra.mxu0 0
      %4986 = vmatprep.subr.bf16.mxu0 0
      %4987 = vmatpush1.bf16.msra.mxu0 0
      %4988 = vmatprep.subr.bf16.mxu0 0
      %4989 = vmatpush1.bf16.msra.mxu0 0
      %4990 = vmatprep.subr.bf16.mxu0 0
      %4991 = vmatpush1.bf16.msra.mxu0 0
      %4992 = vmatprep.subr.bf16.mxu0 0
      %4993 = vmatpush1.bf16.msra.mxu0 %v4976
      %4994 = vmatprep.subr.bf16.mxu0 0
      %4995 = vmatpush2.bf16.msra.mxu0 0
      %4996 = vmatprep.subr.bf16.mxu0 0
      %4997 = vmatpush2.bf16.msra.mxu0 0
      %4998 = vmatprep.subr.bf16.mxu0 0
      %4999 = vmatpush2.bf16.msra.mxu0 0
      %5000 = vmatprep.subr.bf16.mxu0 0
      %5001 = vmatpush2.bf16.msra.mxu0 0
      %5002 = vmatprep.subr.bf16.mxu0 0
      %5003 = vmatpush2.bf16.msra.mxu0 0
      %5004 = vmatprep.subr.bf16.mxu0 0
      %5005 = vmatpush2.bf16.msra.mxu0 0
      %5006 = vmatprep.subr.bf16.mxu0 0
      %5007 = vmatpush2.bf16.msra.mxu0 0
      %5008 = vmatprep.subr.bf16.mxu0 0
      %5009 = vmatpush2.bf16.msra.mxu0 0
      %5010 = vmatprep.mubr.bf16.mxu0 0
      %5011 = vmatmul.mubr.bf16.gmra.mxu0 %v4952
      %v5012 = vpop.f32.mrf.mxu0
      %v5013 = vadd.f32 0.0, %v5012
      %v5014 = vpop.f32.mrf.mxu0
      %v5015 = vpop.f32.mrf.mxu0
      %v5016 = vadd.f32 0.0, %v5015
      %v5017 = vpop.f32.mrf.mxu0
      %5018 = vmatprep.mubr.bf16.mxu0 0
      %5019 = vmatmul.mubr.bf16.gmra.mxu0 %v4955
      %v5020 = vpop.f32.mrf.mxu0
      %v5021 = vadd.f32 0.0, %v5020
      %v5022 = vpop.f32.mrf.mxu0
      %v5023 = vpop.f32.mrf.mxu0
      %v5024 = vadd.f32 0.0, %v5023
      %v5025 = vpop.f32.mrf.mxu0
      %5026 = vmatprep.mubr.bf16.mxu0 0
      %5027 = vmatmul.mubr.bf16.gmra.mxu0 %v4958
      %v5028 = vpop.f32.mrf.mxu0
      %v5029 = vadd.f32 0.0, %v5028
      %v5030 = vpop.f32.mrf.mxu0
      %v5031 = vpop.f32.mrf.mxu0
      %v5032 = vadd.f32 0.0, %v5031
      %v5033 = vpop.f32.mrf.mxu0
      %5034 = vmatprep.mubr.bf16.mxu0 0
      %5035 = vmatmul.mubr.bf16.gmra.mxu0 %v4961
      %v5036 = vpop.f32.mrf.mxu0
      %v5037 = vadd.f32 0.0, %v5036
      %v5038 = vpop.f32.mrf.mxu0
      %v5039 = vpop.f32.mrf.mxu0
      %v5040 = vadd.f32 0.0, %v5039
      %v5041 = vpop.f32.mrf.mxu0
      %5042 = vmatprep.mubr.bf16.mxu0 0
      %5043 = vmatmul.mubr.bf16.gmra.mxu0 %v4964
      %v5044 = vpop.f32.mrf.mxu0
      %v5045 = vadd.f32 0.0, %v5044
      %v5046 = vpop.f32.mrf.mxu0
      %v5047 = vpop.f32.mrf.mxu0
      %v5048 = vadd.f32 0.0, %v5047
      %v5049 = vpop.f32.mrf.mxu0
      %5050 = vmatprep.mubr.bf16.mxu0 0
      %5051 = vmatmul.mubr.bf16.gmra.mxu0 %v4967
      %v5052 = vpop.f32.mrf.mxu0
      %v5053 = vadd.f32 0.0, %v5052
      %v5054 = vpop.f32.mrf.mxu0
      %v5055 = vpop.f32.mrf.mxu0
      %v5056 = vadd.f32 0.0, %v5055
      %v5057 = vpop.f32.mrf.mxu0
      %5058 = vmatprep.mubr.bf16.mxu0 0
      %5059 = vmatmul.mubr.bf16.gmra.mxu0 %v4970
      %v5060 = vpop.f32.mrf.mxu0
      %v5061 = vadd.f32 0.0, %v5060
      %v5062 = vpop.f32.mrf.mxu0
      %v5063 = vpop.f32.mrf.mxu0
      %v5064 = vadd.f32 0.0, %v5063
      %v5065 = vpop.f32.mrf.mxu0
      %5066 = vmatprep.mubr.bf16.mxu0 0
      %5067 = vmatmul.mubr.bf16.gmra.mxu0 %v4973
      %v5068 = vpop.f32.mrf.mxu0
      %v5069 = vadd.f32 0.0, %v5068
      %v5070 = vpop.f32.mrf.mxu0
      %v5071 = vpop.f32.mrf.mxu0
      %v5072 = vadd.f32 0.0, %v5071
      %v5073 = vpop.f32.mrf.mxu0
      %5074 = vdwg.mxu0
      %v5075 = vadd.f32 %v4783, %v5013
      %v5076 = vadd.f32 %v4786, %v5016
      %v5077 = vadd.f32 %v4791, %v5021
      %v5078 = vadd.f32 %v4794, %v5024
      %v5079 = vadd.f32 %v4799, %v5029
      %v5080 = vadd.f32 %v4802, %v5032
      %v5081 = vadd.f32 %v4807, %v5037
      %v5082 = vadd.f32 %v4810, %v5040
      %v5083 = vadd.f32 %v4815, %v5045
      %v5084 = vadd.f32 %v4818, %v5048
      %v5085 = vadd.f32 %v4823, %v5053
      %v5086 = vadd.f32 %v4826, %v5056
      %v5087 = vadd.f32 %v4831, %v5061
      %v5088 = vadd.f32 %v4834, %v5064
      %v5089 = vadd.f32 %v4839, %v5069
      %v5090 = vadd.f32 %v4842, %v5072
      %v5091 = vld [vmem:[%s1885] sm:$0xf]
      %v5092 = vld [vmem:[%s1885 + $0x4] sm:$0xf]
      %v5093 = vld [vmem:[%s1885 + $0xc] sm:$0xf]
      %v5094 = vld [vmem:[%s1885 + $0x10] sm:$0xf]
      %v5095 = vld [vmem:[%s1885 + $0x18] sm:$0xf]
      %v5096 = vld [vmem:[%s1885 + $0x1c] sm:$0xf]
      %v5097 = vld [vmem:[%s1885 + $0x24] sm:$0xf]
      %v5098 = vld [vmem:[%s1885 + $0x28] sm:$0xf]
      %v5099 = vld [vmem:[%s1885 + $0x30] sm:$0xf]
      %v5100 = vld [vmem:[%s1885 + $0x34] sm:$0xf]
      %v5101 = vld [vmem:[%s1885 + $0x3c] sm:$0xf]
      %v5102 = vld [vmem:[%s1885 + $0x40] sm:$0xf]
      %v5103 = vld [vmem:[%s1885 + $0x48] sm:$0xf]
      %v5104 = vld [vmem:[%s1885 + $0x4c] sm:$0xf]
      %v5105 = vld [vmem:[%s1885 + $0x54] sm:$0xf]
      %v5106 = vld [vmem:[%s1885 + $0x58] sm:$0xf]
      %s5107 = scalar_lea.vmem %s5, 12
      %v5108 = vld [vmem:[%s5107] sm:$0xf]
      %v5125 = vunpack.c.l.b16 %v5091
      %v5126 = vunpack.c.l.b16 %v5092
      %v5127 = vunpack.c.l.b16 %v5093
      %v5128 = vunpack.c.l.b16 %v5094
      %v5129 = vunpack.c.l.b16 %v5095
      %v5130 = vunpack.c.l.b16 %v5096
      %v5131 = vunpack.c.l.b16 %v5097
      %v5132 = vunpack.c.l.b16 %v5098
      %v5133 = vunpack.c.l.b16 %v5099
      %v5134 = vunpack.c.l.b16 %v5100
      %v5135 = vunpack.c.l.b16 %v5101
      %v5136 = vunpack.c.l.b16 %v5102
      %v5137 = vunpack.c.l.b16 %v5103
      %v5138 = vunpack.c.l.b16 %v5104
      %v5139 = vunpack.c.l.b16 %v5105
      %v5140 = vunpack.c.l.b16 %v5106
      %v5141 = vpack.c.b16 %v5126, %v5125
      %v5142 = vpack.c.b16 %v5128, %v5127
      %v5143 = vpack.c.b16 %v5130, %v5129
      %v5144 = vpack.c.b16 %v5132, %v5131
      %v5145 = vpack.c.b16 %v5134, %v5133
      %v5146 = vpack.c.b16 %v5136, %v5135
      %v5147 = vpack.c.b16 %v5138, %v5137
      %v5148 = vpack.c.b16 %v5140, %v5139
      %v5150 = vsel %vm1240, %v5141, 0
      %v5153 = vsel %vm1240, %v5142, 0
      %v5156 = vsel %vm1240, %v5143, 0
      %v5159 = vsel %vm1240, %v5144, 0
      %v5162 = vsel %vm1240, %v5145, 0
      %v5165 = vsel %vm1240, %v5146, 0
      %v5168 = vsel %vm1240, %v5147, 0
      %v5171 = vsel %vm1240, %v5148, 0
      %v5174 = vsel %vm1271, %v5108, 0
      %5176 = vmatprep.subr.bf16.mxu0 0
      %5177 = vmatpush1.bf16.msra.mxu0 0
      %5178 = vmatprep.subr.bf16.mxu0 0
      %5179 = vmatpush1.bf16.msra.mxu0 0
      %5180 = vmatprep.subr.bf16.mxu0 0
      %5181 = vmatpush1.bf16.msra.mxu0 0
      %5182 = vmatprep.subr.bf16.mxu0 0
      %5183 = vmatpush1.bf16.msra.mxu0 0
      %5184 = vmatprep.subr.bf16.mxu0 0
      %5185 = vmatpush1.bf16.msra.mxu0 0
      %5186 = vmatprep.subr.bf16.mxu0 0
      %5187 = vmatpush1.bf16.msra.mxu0 0
      %5188 = vmatprep.subr.bf16.mxu0 0
      %5189 = vmatpush1.bf16.msra.mxu0 0
      %5190 = vmatprep.subr.bf16.mxu0 0
      %5191 = vmatpush1.bf16.msra.mxu0 %v5174
      %5192 = vmatprep.subr.bf16.mxu0 0
      %5193 = vmatpush2.bf16.msra.mxu0 0
      %5194 = vmatprep.subr.bf16.mxu0 0
      %5195 = vmatpush2.bf16.msra.mxu0 0
      %5196 = vmatprep.subr.bf16.mxu0 0
      %5197 = vmatpush2.bf16.msra.mxu0 0
      %5198 = vmatprep.subr.bf16.mxu0 0
      %5199 = vmatpush2.bf16.msra.mxu0 0
      %5200 = vmatprep.subr.bf16.mxu0 0
      %5201 = vmatpush2.bf16.msra.mxu0 0
      %5202 = vmatprep.subr.bf16.mxu0 0
      %5203 = vmatpush2.bf16.msra.mxu0 0
      %5204 = vmatprep.subr.bf16.mxu0 0
      %5205 = vmatpush2.bf16.msra.mxu0 0
      %5206 = vmatprep.subr.bf16.mxu0 0
      %5207 = vmatpush2.bf16.msra.mxu0 0
      %5208 = vmatprep.mubr.bf16.mxu0 0
      %5209 = vmatmul.mubr.bf16.gmra.mxu0 %v5150
      %v5210 = vpop.f32.mrf.mxu0
      %v5211 = vadd.f32 0.0, %v5210
      %v5212 = vpop.f32.mrf.mxu0
      %v5213 = vpop.f32.mrf.mxu0
      %v5214 = vadd.f32 0.0, %v5213
      %v5215 = vpop.f32.mrf.mxu0
      %5216 = vmatprep.mubr.bf16.mxu0 0
      %5217 = vmatmul.mubr.bf16.gmra.mxu0 %v5153
      %v5218 = vpop.f32.mrf.mxu0
      %v5219 = vadd.f32 0.0, %v5218
      %v5220 = vpop.f32.mrf.mxu0
      %v5221 = vpop.f32.mrf.mxu0
      %v5222 = vadd.f32 0.0, %v5221
      %v5223 = vpop.f32.mrf.mxu0
      %5224 = vmatprep.mubr.bf16.mxu0 0
      %5225 = vmatmul.mubr.bf16.gmra.mxu0 %v5156
      %v5226 = vpop.f32.mrf.mxu0
      %v5227 = vadd.f32 0.0, %v5226
      %v5228 = vpop.f32.mrf.mxu0
      %v5229 = vpop.f32.mrf.mxu0
      %v5230 = vadd.f32 0.0, %v5229
      %v5231 = vpop.f32.mrf.mxu0
      %5232 = vmatprep.mubr.bf16.mxu0 0
      %5233 = vmatmul.mubr.bf16.gmra.mxu0 %v5159
      %v5234 = vpop.f32.mrf.mxu0
      %v5235 = vadd.f32 0.0, %v5234
      %v5236 = vpop.f32.mrf.mxu0
      %v5237 = vpop.f32.mrf.mxu0
      %v5238 = vadd.f32 0.0, %v5237
      %v5239 = vpop.f32.mrf.mxu0
      %5240 = vmatprep.mubr.bf16.mxu0 0
      %5241 = vmatmul.mubr.bf16.gmra.mxu0 %v5162
      %v5242 = vpop.f32.mrf.mxu0
      %v5243 = vadd.f32 0.0, %v5242
      %v5244 = vpop.f32.mrf.mxu0
      %v5245 = vpop.f32.mrf.mxu0
      %v5246 = vadd.f32 0.0, %v5245
      %v5247 = vpop.f32.mrf.mxu0
      %5248 = vmatprep.mubr.bf16.mxu0 0
      %5249 = vmatmul.mubr.bf16.gmra.mxu0 %v5165
      %v5250 = vpop.f32.mrf.mxu0
      %v5251 = vadd.f32 0.0, %v5250
      %v5252 = vpop.f32.mrf.mxu0
      %v5253 = vpop.f32.mrf.mxu0
      %v5254 = vadd.f32 0.0, %v5253
      %v5255 = vpop.f32.mrf.mxu0
      %5256 = vmatprep.mubr.bf16.mxu0 0
      %5257 = vmatmul.mubr.bf16.gmra.mxu0 %v5168
      %v5258 = vpop.f32.mrf.mxu0
      %v5259 = vadd.f32 0.0, %v5258
      %v5260 = vpop.f32.mrf.mxu0
      %v5261 = vpop.f32.mrf.mxu0
      %v5262 = vadd.f32 0.0, %v5261
      %v5263 = vpop.f32.mrf.mxu0
      %5264 = vmatprep.mubr.bf16.mxu0 0
      %5265 = vmatmul.mubr.bf16.gmra.mxu0 %v5171
      %v5266 = vpop.f32.mrf.mxu0
      %v5267 = vadd.f32 0.0, %v5266
      %v5268 = vpop.f32.mrf.mxu0
      %v5269 = vpop.f32.mrf.mxu0
      %v5270 = vadd.f32 0.0, %v5269
      %v5271 = vpop.f32.mrf.mxu0
      %5272 = vdwg.mxu0
      %v5273 = vadd.f32 %v5075, %v5211
      %v5274 = vadd.f32 %v5076, %v5214
      %v5275 = vadd.f32 %v5077, %v5219
      %v5276 = vadd.f32 %v5078, %v5222
      %v5277 = vadd.f32 %v5079, %v5227
      %v5278 = vadd.f32 %v5080, %v5230
      %v5279 = vadd.f32 %v5081, %v5235
      %v5280 = vadd.f32 %v5082, %v5238
      %v5281 = vadd.f32 %v5083, %v5243
      %v5282 = vadd.f32 %v5084, %v5246
      %v5283 = vadd.f32 %v5085, %v5251
      %v5284 = vadd.f32 %v5086, %v5254
      %v5285 = vadd.f32 %v5087, %v5259
      %v5286 = vadd.f32 %v5088, %v5262
      %v5287 = vadd.f32 %v5089, %v5267
      %v5288 = vadd.f32 %v5090, %v5270
      %v5289 = vld [vmem:[%s1885] sm:$0xf]
      %v5290 = vld [vmem:[%s1885 + $0x4] sm:$0xf]
      %v5291 = vld [vmem:[%s1885 + $0x8] sm:$0x1]
      %v5292 = vld [vmem:[%s1885 + $0xc] sm:$0xf]
      %v5293 = vld [vmem:[%s1885 + $0x10] sm:$0xf]
      %v5294 = vld [vmem:[%s1885 + $0x14] sm:$0x1]
      %v5295 = vld [vmem:[%s1885 + $0x18] sm:$0xf]
      %v5296 = vld [vmem:[%s1885 + $0x1c] sm:$0xf]
      %v5297 = vld [vmem:[%s1885 + $0x20] sm:$0x1]
      %v5298 = vld [vmem:[%s1885 + $0x24] sm:$0xf]
      %v5299 = vld [vmem:[%s1885 + $0x28] sm:$0xf]
      %v5300 = vld [vmem:[%s1885 + $0x2c] sm:$0x1]
      %v5301 = vld [vmem:[%s1885 + $0x30] sm:$0xf]
      %v5302 = vld [vmem:[%s1885 + $0x34] sm:$0xf]
      %v5303 = vld [vmem:[%s1885 + $0x38] sm:$0x1]
      %v5304 = vld [vmem:[%s1885 + $0x3c] sm:$0xf]
      %v5305 = vld [vmem:[%s1885 + $0x40] sm:$0xf]
      %v5306 = vld [vmem:[%s1885 + $0x44] sm:$0x1]
      %v5307 = vld [vmem:[%s1885 + $0x48] sm:$0xf]
      %v5308 = vld [vmem:[%s1885 + $0x4c] sm:$0xf]
      %v5309 = vld [vmem:[%s1885 + $0x50] sm:$0x1]
      %v5310 = vld [vmem:[%s1885 + $0x54] sm:$0xf]
      %v5311 = vld [vmem:[%s1885 + $0x58] sm:$0xf]
      %v5312 = vld [vmem:[%s1885 + $0x5c] sm:$0x1]
      %v5314 = vshrl.u32 %v5289, 16
      %v5316 = vrot.slane %v5314, 4
      %v5317 = vshll.u32 %v5289, 16
      %v5319 = vrot.slane %v5317, 5
      %v5320 = vor.u32 %v5316, %v5319
      %v5321 = vrot.slane %v5320, 4
      %v5323 = vshll.u32 %v5290, 16
      %v5325 = vrot.slane %v5323, 5
      %v5326 = vsel %vm967, %v5321, %v5325
      %v5327 = vshrl.u32 %v5290, 16
      %v5329 = vrot.slane %v5327, 4
      %v5330 = vor.u32 %v5329, %v5325
      %v5331 = vrot.slane %v5330, 4
      %v5333 = vshll.u32 %v5291, 16
      %v5335 = vrot.slane %v5333, 5
      %v5336 = vsel %vm967, %v5331, %v5335
      %v5338 = vshrl.u32 %v5292, 16
      %v5340 = vrot.slane %v5338, 4
      %v5341 = vshll.u32 %v5292, 16
      %v5343 = vrot.slane %v5341, 5
      %v5344 = vor.u32 %v5340, %v5343
      %v5345 = vrot.slane %v5344, 4
      %v5347 = vshll.u32 %v5293, 16
      %v5349 = vrot.slane %v5347, 5
      %v5350 = vsel %vm967, %v5345, %v5349
      %v5351 = vshrl.u32 %v5293, 16
      %v5353 = vrot.slane %v5351, 4
      %v5354 = vor.u32 %v5353, %v5349
      %v5355 = vrot.slane %v5354, 4
      %v5357 = vshll.u32 %v5294, 16
      %v5359 = vrot.slane %v5357, 5
      %v5360 = vsel %vm967, %v5355, %v5359
      %v5362 = vshrl.u32 %v5295, 16
      %v5364 = vrot.slane %v5362, 4
      %v5365 = vshll.u32 %v5295, 16
      %v5367 = vrot.slane %v5365, 5
      %v5368 = vor.u32 %v5364, %v5367
      %v5369 = vrot.slane %v5368, 4
      %v5371 = vshll.u32 %v5296, 16
      %v5373 = vrot.slane %v5371, 5
      %v5374 = vsel %vm967, %v5369, %v5373
      %v5375 = vshrl.u32 %v5296, 16
      %v5377 = vrot.slane %v5375, 4
      %v5378 = vor.u32 %v5377, %v5373
      %v5379 = vrot.slane %v5378, 4
      %v5381 = vshll.u32 %v5297, 16
      %v5383 = vrot.slane %v5381, 5
      %v5384 = vsel %vm967, %v5379, %v5383
      %v5386 = vshrl.u32 %v5298, 16
      %v5388 = vrot.slane %v5386, 4
      %v5389 = vshll.u32 %v5298, 16
      %v5391 = vrot.slane %v5389, 5
      %v5392 = vor.u32 %v5388, %v5391
      %v5393 = vrot.slane %v5392, 4
      %v5395 = vshll.u32 %v5299, 16
      %v5397 = vrot.slane %v5395, 5
      %v5398 = vsel %vm967, %v5393, %v5397
      %v5399 = vshrl.u32 %v5299, 16
      %v5401 = vrot.slane %v5399, 4
      %v5402 = vor.u32 %v5401, %v5397
      %v5403 = vrot.slane %v5402, 4
      %v5405 = vshll.u32 %v5300, 16
      %v5407 = vrot.slane %v5405, 5
      %v5408 = vsel %vm967, %v5403, %v5407
      %v5410 = vshrl.u32 %v5301, 16
      %v5412 = vrot.slane %v5410, 4
      %v5413 = vshll.u32 %v5301, 16
      %v5415 = vrot.slane %v5413, 5
      %v5416 = vor.u32 %v5412, %v5415
      %v5417 = vrot.slane %v5416, 4
      %v5419 = vshll.u32 %v5302, 16
      %v5421 = vrot.slane %v5419, 5
      %v5422 = vsel %vm967, %v5417, %v5421
      %v5423 = vshrl.u32 %v5302, 16
      %v5425 = vrot.slane %v5423, 4
      %v5426 = vor.u32 %v5425, %v5421
      %v5427 = vrot.slane %v5426, 4
      %v5429 = vshll.u32 %v5303, 16
      %v5431 = vrot.slane %v5429, 5
      %v5432 = vsel %vm967, %v5427, %v5431
      %v5434 = vshrl.u32 %v5304, 16
      %v5436 = vrot.slane %v5434, 4
      %v5437 = vshll.u32 %v5304, 16
      %v5439 = vrot.slane %v5437, 5
      %v5440 = vor.u32 %v5436, %v5439
      %v5441 = vrot.slane %v5440, 4
      %v5443 = vshll.u32 %v5305, 16
      %v5445 = vrot.slane %v5443, 5
      %v5446 = vsel %vm967, %v5441, %v5445
      %v5447 = vshrl.u32 %v5305, 16
      %v5449 = vrot.slane %v5447, 4
      %v5450 = vor.u32 %v5449, %v5445
      %v5451 = vrot.slane %v5450, 4
      %v5453 = vshll.u32 %v5306, 16
      %v5455 = vrot.slane %v5453, 5
      %v5456 = vsel %vm967, %v5451, %v5455
      %v5458 = vshrl.u32 %v5307, 16
      %v5460 = vrot.slane %v5458, 4
      %v5461 = vshll.u32 %v5307, 16
      %v5463 = vrot.slane %v5461, 5
      %v5464 = vor.u32 %v5460, %v5463
      %v5465 = vrot.slane %v5464, 4
      %v5467 = vshll.u32 %v5308, 16
      %v5469 = vrot.slane %v5467, 5
      %v5470 = vsel %vm967, %v5465, %v5469
      %v5471 = vshrl.u32 %v5308, 16
      %v5473 = vrot.slane %v5471, 4
      %v5474 = vor.u32 %v5473, %v5469
      %v5475 = vrot.slane %v5474, 4
      %v5477 = vshll.u32 %v5309, 16
      %v5479 = vrot.slane %v5477, 5
      %v5480 = vsel %vm967, %v5475, %v5479
      %v5482 = vshrl.u32 %v5310, 16
      %v5484 = vrot.slane %v5482, 4
      %v5485 = vshll.u32 %v5310, 16
      %v5487 = vrot.slane %v5485, 5
      %v5488 = vor.u32 %v5484, %v5487
      %v5489 = vrot.slane %v5488, 4
      %v5491 = vshll.u32 %v5311, 16
      %v5493 = vrot.slane %v5491, 5
      %v5494 = vsel %vm967, %v5489, %v5493
      %v5495 = vshrl.u32 %v5311, 16
      %v5497 = vrot.slane %v5495, 4
      %v5498 = vor.u32 %v5497, %v5493
      %v5499 = vrot.slane %v5498, 4
      %v5501 = vshll.u32 %v5312, 16
      %v5503 = vrot.slane %v5501, 5
      %v5504 = vsel %vm967, %v5499, %v5503
      %s5505 = scalar_lea.vmem %s5, 16
      %v5506 = vld [vmem:[%s5505] sm:$0xf]
      %v5507 = vunpack.c.l.b16 %v5326
      %v5508 = vunpack.c.l.b16 %v5336
      %v5509 = vunpack.c.l.b16 %v5350
      %v5510 = vunpack.c.l.b16 %v5360
      %v5511 = vunpack.c.l.b16 %v5374
      %v5512 = vunpack.c.l.b16 %v5384
      %v5513 = vunpack.c.l.b16 %v5398
      %v5514 = vunpack.c.l.b16 %v5408
      %v5515 = vunpack.c.l.b16 %v5422
      %v5516 = vunpack.c.l.b16 %v5432
      %v5517 = vunpack.c.l.b16 %v5446
      %v5518 = vunpack.c.l.b16 %v5456
      %v5519 = vunpack.c.l.b16 %v5470
      %v5520 = vunpack.c.l.b16 %v5480
      %v5521 = vunpack.c.l.b16 %v5494
      %v5522 = vunpack.c.l.b16 %v5504
      %v5523 = vpack.c.b16 %v5508, %v5507
      %v5524 = vpack.c.b16 %v5510, %v5509
      %v5525 = vpack.c.b16 %v5512, %v5511
      %v5526 = vpack.c.b16 %v5514, %v5513
      %v5527 = vpack.c.b16 %v5516, %v5515
      %v5528 = vpack.c.b16 %v5518, %v5517
      %v5529 = vpack.c.b16 %v5520, %v5519
      %v5530 = vpack.c.b16 %v5522, %v5521
      %v5532 = vsel %vm1240, %v5523, 0
      %v5535 = vsel %vm1240, %v5524, 0
      %v5538 = vsel %vm1240, %v5525, 0
      %v5541 = vsel %vm1240, %v5526, 0
      %v5544 = vsel %vm1240, %v5527, 0
      %v5547 = vsel %vm1240, %v5528, 0
      %v5550 = vsel %vm1240, %v5529, 0
      %v5553 = vsel %vm1240, %v5530, 0
      %v5556 = vsel %vm1271, %v5506, 0
      %5558 = vmatprep.subr.bf16.mxu0 0
      %5559 = vmatpush1.bf16.msra.mxu0 0
      %5560 = vmatprep.subr.bf16.mxu0 0
      %5561 = vmatpush1.bf16.msra.mxu0 0
      %5562 = vmatprep.subr.bf16.mxu0 0
      %5563 = vmatpush1.bf16.msra.mxu0 0
      %5564 = vmatprep.subr.bf16.mxu0 0
      %5565 = vmatpush1.bf16.msra.mxu0 0
      %5566 = vmatprep.subr.bf16.mxu0 0
      %5567 = vmatpush1.bf16.msra.mxu0 0
      %5568 = vmatprep.subr.bf16.mxu0 0
      %5569 = vmatpush1.bf16.msra.mxu0 0
      %5570 = vmatprep.subr.bf16.mxu0 0
      %5571 = vmatpush1.bf16.msra.mxu0 0
      %5572 = vmatprep.subr.bf16.mxu0 0
      %5573 = vmatpush1.bf16.msra.mxu0 %v5556
      %5574 = vmatprep.subr.bf16.mxu0 0
      %5575 = vmatpush2.bf16.msra.mxu0 0
      %5576 = vmatprep.subr.bf16.mxu0 0
      %5577 = vmatpush2.bf16.msra.mxu0 0
      %5578 = vmatprep.subr.bf16.mxu0 0
      %5579 = vmatpush2.bf16.msra.mxu0 0
      %5580 = vmatprep.subr.bf16.mxu0 0
      %5581 = vmatpush2.bf16.msra.mxu0 0
      %5582 = vmatprep.subr.bf16.mxu0 0
      %5583 = vmatpush2.bf16.msra.mxu0 0
      %5584 = vmatprep.subr.bf16.mxu0 0
      %5585 = vmatpush2.bf16.msra.mxu0 0
      %5586 = vmatprep.subr.bf16.mxu0 0
      %5587 = vmatpush2.bf16.msra.mxu0 0
      %5588 = vmatprep.subr.bf16.mxu0 0
      %5589 = vmatpush2.bf16.msra.mxu0 0
      %5590 = vmatprep.mubr.bf16.mxu0 0
      %5591 = vmatmul.mubr.bf16.gmra.mxu0 %v5532
      %v5592 = vpop.f32.mrf.mxu0
      %v5593 = vadd.f32 0.0, %v5592
      %v5594 = vpop.f32.mrf.mxu0
      %v5595 = vpop.f32.mrf.mxu0
      %v5596 = vadd.f32 0.0, %v5595
      %v5597 = vpop.f32.mrf.mxu0
      %5598 = vmatprep.mubr.bf16.mxu0 0
      %5599 = vmatmul.mubr.bf16.gmra.mxu0 %v5535
      %v5600 = vpop.f32.mrf.mxu0
      %v5601 = vadd.f32 0.0, %v5600
      %v5602 = vpop.f32.mrf.mxu0
      %v5603 = vpop.f32.mrf.mxu0
      %v5604 = vadd.f32 0.0, %v5603
      %v5605 = vpop.f32.mrf.mxu0
      %5606 = vmatprep.mubr.bf16.mxu0 0
      %5607 = vmatmul.mubr.bf16.gmra.mxu0 %v5538
      %v5608 = vpop.f32.mrf.mxu0
      %v5609 = vadd.f32 0.0, %v5608
      %v5610 = vpop.f32.mrf.mxu0
      %v5611 = vpop.f32.mrf.mxu0
      %v5612 = vadd.f32 0.0, %v5611
      %v5613 = vpop.f32.mrf.mxu0
      %5614 = vmatprep.mubr.bf16.mxu0 0
      %5615 = vmatmul.mubr.bf16.gmra.mxu0 %v5541
      %v5616 = vpop.f32.mrf.mxu0
      %v5617 = vadd.f32 0.0, %v5616
      %v5618 = vpop.f32.mrf.mxu0
      %v5619 = vpop.f32.mrf.mxu0
      %v5620 = vadd.f32 0.0, %v5619
      %v5621 = vpop.f32.mrf.mxu0
      %5622 = vmatprep.mubr.bf16.mxu0 0
      %5623 = vmatmul.mubr.bf16.gmra.mxu0 %v5544
      %v5624 = vpop.f32.mrf.mxu0
      %v5625 = vadd.f32 0.0, %v5624
      %v5626 = vpop.f32.mrf.mxu0
      %v5627 = vpop.f32.mrf.mxu0
      %v5628 = vadd.f32 0.0, %v5627
      %v5629 = vpop.f32.mrf.mxu0
      %5630 = vmatprep.mubr.bf16.mxu0 0
      %5631 = vmatmul.mubr.bf16.gmra.mxu0 %v5547
      %v5632 = vpop.f32.mrf.mxu0
      %v5633 = vadd.f32 0.0, %v5632
      %v5634 = vpop.f32.mrf.mxu0
      %v5635 = vpop.f32.mrf.mxu0
      %v5636 = vadd.f32 0.0, %v5635
      %v5637 = vpop.f32.mrf.mxu0
      %5638 = vmatprep.mubr.bf16.mxu0 0
      %5639 = vmatmul.mubr.bf16.gmra.mxu0 %v5550
      %v5640 = vpop.f32.mrf.mxu0
      %v5641 = vadd.f32 0.0, %v5640
      %v5642 = vpop.f32.mrf.mxu0
      %v5643 = vpop.f32.mrf.mxu0
      %v5644 = vadd.f32 0.0, %v5643
      %v5645 = vpop.f32.mrf.mxu0
      %5646 = vmatprep.mubr.bf16.mxu0 0
      %5647 = vmatmul.mubr.bf16.gmra.mxu0 %v5553
      %v5648 = vpop.f32.mrf.mxu0
      %v5649 = vadd.f32 0.0, %v5648
      %v5650 = vpop.f32.mrf.mxu0
      %v5651 = vpop.f32.mrf.mxu0
      %v5652 = vadd.f32 0.0, %v5651
      %v5653 = vpop.f32.mrf.mxu0
      %5654 = vdwg.mxu0
      %v5655 = vadd.f32 %v5273, %v5593
      %v5656 = vadd.f32 %v5274, %v5596
      %v5657 = vadd.f32 %v5275, %v5601
      %v5658 = vadd.f32 %v5276, %v5604
      %v5659 = vadd.f32 %v5277, %v5609
      %v5660 = vadd.f32 %v5278, %v5612
      %v5661 = vadd.f32 %v5279, %v5617
      %v5662 = vadd.f32 %v5280, %v5620
      %v5663 = vadd.f32 %v5281, %v5625
      %v5664 = vadd.f32 %v5282, %v5628
      %v5665 = vadd.f32 %v5283, %v5633
      %v5666 = vadd.f32 %v5284, %v5636
      %v5667 = vadd.f32 %v5285, %v5641
      %v5668 = vadd.f32 %v5286, %v5644
      %v5669 = vadd.f32 %v5287, %v5649
      %v5670 = vadd.f32 %v5288, %v5652
      %v5671 = vld [vmem:[%s1885] sm:$0xe]
      %v5672 = vld [vmem:[%s1885 + $0xc] sm:$0xe]
      %v5673 = vld [vmem:[%s1885 + $0x18] sm:$0xe]
      %v5674 = vld [vmem:[%s1885 + $0x24] sm:$0xe]
      %v5675 = vld [vmem:[%s1885 + $0x30] sm:$0xe]
      %v5676 = vld [vmem:[%s1885 + $0x3c] sm:$0xe]
      %v5677 = vld [vmem:[%s1885 + $0x48] sm:$0xe]
      %v5678 = vld [vmem:[%s1885 + $0x54] sm:$0xe]
      %v5703 = vrot.slane %v5671, 5
      %v5704 = vrot.slane %v5703, 4
      %v5705 = vrot.slane %v5290, 5
      %v5706 = vsel %vm1616, %v5704, %v5705
      %v5707 = vrot.slane %v5705, 4
      %v5708 = vrot.slane %v5291, 5
      %v5709 = vsel %vm1616, %v5707, %v5708
      %v5710 = vrot.slane %v5672, 5
      %v5711 = vrot.slane %v5710, 4
      %v5712 = vrot.slane %v5293, 5
      %v5713 = vsel %vm1616, %v5711, %v5712
      %v5714 = vrot.slane %v5712, 4
      %v5715 = vrot.slane %v5294, 5
      %v5716 = vsel %vm1616, %v5714, %v5715
      %v5717 = vrot.slane %v5673, 5
      %v5718 = vrot.slane %v5717, 4
      %v5719 = vrot.slane %v5296, 5
      %v5720 = vsel %vm1616, %v5718, %v5719
      %v5721 = vrot.slane %v5719, 4
      %v5722 = vrot.slane %v5297, 5
      %v5723 = vsel %vm1616, %v5721, %v5722
      %v5724 = vrot.slane %v5674, 5
      %v5725 = vrot.slane %v5724, 4
      %v5726 = vrot.slane %v5299, 5
      %v5727 = vsel %vm1616, %v5725, %v5726
      %v5728 = vrot.slane %v5726, 4
      %v5729 = vrot.slane %v5300, 5
      %v5730 = vsel %vm1616, %v5728, %v5729
      %v5731 = vrot.slane %v5675, 5
      %v5732 = vrot.slane %v5731, 4
      %v5733 = vrot.slane %v5302, 5
      %v5734 = vsel %vm1616, %v5732, %v5733
      %v5735 = vrot.slane %v5733, 4
      %v5736 = vrot.slane %v5303, 5
      %v5737 = vsel %vm1616, %v5735, %v5736
      %v5738 = vrot.slane %v5676, 5
      %v5739 = vrot.slane %v5738, 4
      %v5740 = vrot.slane %v5305, 5
      %v5741 = vsel %vm1616, %v5739, %v5740
      %v5742 = vrot.slane %v5740, 4
      %v5743 = vrot.slane %v5306, 5
      %v5744 = vsel %vm1616, %v5742, %v5743
      %v5745 = vrot.slane %v5677, 5
      %v5746 = vrot.slane %v5745, 4
      %v5747 = vrot.slane %v5308, 5
      %v5748 = vsel %vm1616, %v5746, %v5747
      %v5749 = vrot.slane %v5747, 4
      %v5750 = vrot.slane %v5309, 5
      %v5751 = vsel %vm1616, %v5749, %v5750
      %v5752 = vrot.slane %v5678, 5
      %v5753 = vrot.slane %v5752, 4
      %v5754 = vrot.slane %v5311, 5
      %v5755 = vsel %vm1616, %v5753, %v5754
      %v5756 = vrot.slane %v5754, 4
      %v5757 = vrot.slane %v5312, 5
      %v5758 = vsel %vm1616, %v5756, %v5757
      %s5759 = scalar_lea.vmem %s5, 20
      %v5760 = vld [vmem:[%s5759] sm:$0xf]
      %v5761 = vunpack.c.l.b16 %v5706
      %v5762 = vunpack.c.l.b16 %v5709
      %v5763 = vunpack.c.l.b16 %v5713
      %v5764 = vunpack.c.l.b16 %v5716
      %v5765 = vunpack.c.l.b16 %v5720
      %v5766 = vunpack.c.l.b16 %v5723
      %v5767 = vunpack.c.l.b16 %v5727
      %v5768 = vunpack.c.l.b16 %v5730
      %v5769 = vunpack.c.l.b16 %v5734
      %v5770 = vunpack.c.l.b16 %v5737
      %v5771 = vunpack.c.l.b16 %v5741
      %v5772 = vunpack.c.l.b16 %v5744
      %v5773 = vunpack.c.l.b16 %v5748
      %v5774 = vunpack.c.l.b16 %v5751
      %v5775 = vunpack.c.l.b16 %v5755
      %v5776 = vunpack.c.l.b16 %v5758
      %v5777 = vpack.c.b16 %v5762, %v5761
      %v5778 = vpack.c.b16 %v5764, %v5763
      %v5779 = vpack.c.b16 %v5766, %v5765
      %v5780 = vpack.c.b16 %v5768, %v5767
      %v5781 = vpack.c.b16 %v5770, %v5769
      %v5782 = vpack.c.b16 %v5772, %v5771
      %v5783 = vpack.c.b16 %v5774, %v5773
      %v5784 = vpack.c.b16 %v5776, %v5775
      %v5786 = vsel %vm1240, %v5777, 0
      %v5789 = vsel %vm1240, %v5778, 0
      %v5792 = vsel %vm1240, %v5779, 0
      %v5795 = vsel %vm1240, %v5780, 0
      %v5798 = vsel %vm1240, %v5781, 0
      %v5801 = vsel %vm1240, %v5782, 0
      %v5804 = vsel %vm1240, %v5783, 0
      %v5807 = vsel %vm1240, %v5784, 0
      %v5810 = vsel %vm1271, %v5760, 0
      %5812 = vmatprep.subr.bf16.mxu0 0
      %5813 = vmatpush1.bf16.msra.mxu0 0
      %5814 = vmatprep.subr.bf16.mxu0 0
      %5815 = vmatpush1.bf16.msra.mxu0 0
      %5816 = vmatprep.subr.bf16.mxu0 0
      %5817 = vmatpush1.bf16.msra.mxu0 0
      %5818 = vmatprep.subr.bf16.mxu0 0
      %5819 = vmatpush1.bf16.msra.mxu0 0
      %5820 = vmatprep.subr.bf16.mxu0 0
      %5821 = vmatpush1.bf16.msra.mxu0 0
      %5822 = vmatprep.subr.bf16.mxu0 0
      %5823 = vmatpush1.bf16.msra.mxu0 0
      %5824 = vmatprep.subr.bf16.mxu0 0
      %5825 = vmatpush1.bf16.msra.mxu0 0
      %5826 = vmatprep.subr.bf16.mxu0 0
      %5827 = vmatpush1.bf16.msra.mxu0 %v5810
      %5828 = vmatprep.subr.bf16.mxu0 0
      %5829 = vmatpush2.bf16.msra.mxu0 0
      %5830 = vmatprep.subr.bf16.mxu0 0
      %5831 = vmatpush2.bf16.msra.mxu0 0
      %5832 = vmatprep.subr.bf16.mxu0 0
      %5833 = vmatpush2.bf16.msra.mxu0 0
      %5834 = vmatprep.subr.bf16.mxu0 0
      %5835 = vmatpush2.bf16.msra.mxu0 0
      %5836 = vmatprep.subr.bf16.mxu0 0
      %5837 = vmatpush2.bf16.msra.mxu0 0
      %5838 = vmatprep.subr.bf16.mxu0 0
      %5839 = vmatpush2.bf16.msra.mxu0 0
      %5840 = vmatprep.subr.bf16.mxu0 0
      %5841 = vmatpush2.bf16.msra.mxu0 0
      %5842 = vmatprep.subr.bf16.mxu0 0
      %5843 = vmatpush2.bf16.msra.mxu0 0
      %5844 = vmatprep.mubr.bf16.mxu0 0
      %5845 = vmatmul.mubr.bf16.gmra.mxu0 %v5786
      %v5846 = vpop.f32.mrf.mxu0
      %v5847 = vadd.f32 0.0, %v5846
      %v5848 = vpop.f32.mrf.mxu0
      %v5849 = vpop.f32.mrf.mxu0
      %v5850 = vadd.f32 0.0, %v5849
      %v5851 = vpop.f32.mrf.mxu0
      %5852 = vmatprep.mubr.bf16.mxu0 0
      %5853 = vmatmul.mubr.bf16.gmra.mxu0 %v5789
      %v5854 = vpop.f32.mrf.mxu0
      %v5855 = vadd.f32 0.0, %v5854
      %v5856 = vpop.f32.mrf.mxu0
      %v5857 = vpop.f32.mrf.mxu0
      %v5858 = vadd.f32 0.0, %v5857
      %v5859 = vpop.f32.mrf.mxu0
      %5860 = vmatprep.mubr.bf16.mxu0 0
      %5861 = vmatmul.mubr.bf16.gmra.mxu0 %v5792
      %v5862 = vpop.f32.mrf.mxu0
      %v5863 = vadd.f32 0.0, %v5862
      %v5864 = vpop.f32.mrf.mxu0
      %v5865 = vpop.f32.mrf.mxu0
      %v5866 = vadd.f32 0.0, %v5865
      %v5867 = vpop.f32.mrf.mxu0
      %5868 = vmatprep.mubr.bf16.mxu0 0
      %5869 = vmatmul.mubr.bf16.gmra.mxu0 %v5795
      %v5870 = vpop.f32.mrf.mxu0
      %v5871 = vadd.f32 0.0, %v5870
      %v5872 = vpop.f32.mrf.mxu0
      %v5873 = vpop.f32.mrf.mxu0
      %v5874 = vadd.f32 0.0, %v5873
      %v5875 = vpop.f32.mrf.mxu0
      %5876 = vmatprep.mubr.bf16.mxu0 0
      %5877 = vmatmul.mubr.bf16.gmra.mxu0 %v5798
      %v5878 = vpop.f32.mrf.mxu0
      %v5879 = vadd.f32 0.0, %v5878
      %v5880 = vpop.f32.mrf.mxu0
      %v5881 = vpop.f32.mrf.mxu0
      %v5882 = vadd.f32 0.0, %v5881
      %v5883 = vpop.f32.mrf.mxu0
      %5884 = vmatprep.mubr.bf16.mxu0 0
      %5885 = vmatmul.mubr.bf16.gmra.mxu0 %v5801
      %v5886 = vpop.f32.mrf.mxu0
      %v5887 = vadd.f32 0.0, %v5886
      %v5888 = vpop.f32.mrf.mxu0
      %v5889 = vpop.f32.mrf.mxu0
      %v5890 = vadd.f32 0.0, %v5889
      %v5891 = vpop.f32.mrf.mxu0
      %5892 = vmatprep.mubr.bf16.mxu0 0
      %5893 = vmatmul.mubr.bf16.gmra.mxu0 %v5804
      %v5894 = vpop.f32.mrf.mxu0
      %v5895 = vadd.f32 0.0, %v5894
      %v5896 = vpop.f32.mrf.mxu0
      %v5897 = vpop.f32.mrf.mxu0
      %v5898 = vadd.f32 0.0, %v5897
      %v5899 = vpop.f32.mrf.mxu0
      %5900 = vmatprep.mubr.bf16.mxu0 0
      %5901 = vmatmul.mubr.bf16.gmra.mxu0 %v5807
      %v5902 = vpop.f32.mrf.mxu0
      %v5903 = vadd.f32 0.0, %v5902
      %v5904 = vpop.f32.mrf.mxu0
      %v5905 = vpop.f32.mrf.mxu0
      %v5906 = vadd.f32 0.0, %v5905
      %v5907 = vpop.f32.mrf.mxu0
      %5908 = vdwg.mxu0
      %v5909 = vadd.f32 %v5655, %v5847
      %v5910 = vadd.f32 %v5656, %v5850
      %v5911 = vadd.f32 %v5657, %v5855
      %v5912 = vadd.f32 %v5658, %v5858
      %v5913 = vadd.f32 %v5659, %v5863
      %v5914 = vadd.f32 %v5660, %v5866
      %v5915 = vadd.f32 %v5661, %v5871
      %v5916 = vadd.f32 %v5662, %v5874
      %v5917 = vadd.f32 %v5663, %v5879
      %v5918 = vadd.f32 %v5664, %v5882
      %v5919 = vadd.f32 %v5665, %v5887
      %v5920 = vadd.f32 %v5666, %v5890
      %v5921 = vadd.f32 %v5667, %v5895
      %v5922 = vadd.f32 %v5668, %v5898
      %v5923 = vadd.f32 %v5669, %v5903
      %v5924 = vadd.f32 %v5670, %v5906
      %v5925 = vld [vmem:[%s811] sm:$0xf]
      %v5926 = vld [vmem:[%s811 + $0x4] sm:$0xf]
      %v5927 = vld [vmem:[%s811 + $0xc] sm:$0xf]
      %v5928 = vld [vmem:[%s811 + $0x10] sm:$0xf]
      %v5929 = vld [vmem:[%s811 + $0x18] sm:$0xf]
      %v5930 = vld [vmem:[%s811 + $0x1c] sm:$0xf]
      %v5931 = vld [vmem:[%s811 + $0x24] sm:$0xf]
      %v5932 = vld [vmem:[%s811 + $0x28] sm:$0xf]
      %v5933 = vld [vmem:[%s811 + $0x30] sm:$0xf]
      %v5934 = vld [vmem:[%s811 + $0x34] sm:$0xf]
      %v5935 = vld [vmem:[%s811 + $0x3c] sm:$0xf]
      %v5936 = vld [vmem:[%s811 + $0x40] sm:$0xf]
      %v5937 = vld [vmem:[%s811 + $0x48] sm:$0xf]
      %v5938 = vld [vmem:[%s811 + $0x4c] sm:$0xf]
      %v5939 = vld [vmem:[%s811 + $0x54] sm:$0xf]
      %v5940 = vld [vmem:[%s811 + $0x58] sm:$0xf]
      %s5941 = scalar_lea.vmem %s5, 24
      %v5942 = vld [vmem:[%s5941] sm:$0xf]
      %v5959 = vunpack.c.l.b16 %v5925
      %v5960 = vunpack.c.l.b16 %v5926
      %v5961 = vunpack.c.l.b16 %v5927
      %v5962 = vunpack.c.l.b16 %v5928
      %v5963 = vunpack.c.l.b16 %v5929
      %v5964 = vunpack.c.l.b16 %v5930
      %v5965 = vunpack.c.l.b16 %v5931
      %v5966 = vunpack.c.l.b16 %v5932
      %v5967 = vunpack.c.l.b16 %v5933
      %v5968 = vunpack.c.l.b16 %v5934
      %v5969 = vunpack.c.l.b16 %v5935
      %v5970 = vunpack.c.l.b16 %v5936
      %v5971 = vunpack.c.l.b16 %v5937
      %v5972 = vunpack.c.l.b16 %v5938
      %v5973 = vunpack.c.l.b16 %v5939
      %v5974 = vunpack.c.l.b16 %v5940
      %v5975 = vpack.c.b16 %v5960, %v5959
      %v5976 = vpack.c.b16 %v5962, %v5961
      %v5977 = vpack.c.b16 %v5964, %v5963
      %v5978 = vpack.c.b16 %v5966, %v5965
      %v5979 = vpack.c.b16 %v5968, %v5967
      %v5980 = vpack.c.b16 %v5970, %v5969
      %v5981 = vpack.c.b16 %v5972, %v5971
      %v5982 = vpack.c.b16 %v5974, %v5973
      %v5984 = vsel %vm1240, %v5975, 0
      %v5987 = vsel %vm1240, %v5976, 0
      %v5990 = vsel %vm1240, %v5977, 0
      %v5993 = vsel %vm1240, %v5978, 0
      %v5996 = vsel %vm1240, %v5979, 0
      %v5999 = vsel %vm1240, %v5980, 0
      %v6002 = vsel %vm1240, %v5981, 0
      %v6005 = vsel %vm1240, %v5982, 0
      %v6008 = vsel %vm1271, %v5942, 0
      %6010 = vmatprep.subr.bf16.mxu0 0
      %6011 = vmatpush1.bf16.msra.mxu0 0
      %6012 = vmatprep.subr.bf16.mxu0 0
      %6013 = vmatpush1.bf16.msra.mxu0 0
      %6014 = vmatprep.subr.bf16.mxu0 0
      %6015 = vmatpush1.bf16.msra.mxu0 0
      %6016 = vmatprep.subr.bf16.mxu0 0
      %6017 = vmatpush1.bf16.msra.mxu0 0
      %6018 = vmatprep.subr.bf16.mxu0 0
      %6019 = vmatpush1.bf16.msra.mxu0 0
      %6020 = vmatprep.subr.bf16.mxu0 0
      %6021 = vmatpush1.bf16.msra.mxu0 0
      %6022 = vmatprep.subr.bf16.mxu0 0
      %6023 = vmatpush1.bf16.msra.mxu0 0
      %6024 = vmatprep.subr.bf16.mxu0 0
      %6025 = vmatpush1.bf16.msra.mxu0 %v6008
      %6026 = vmatprep.subr.bf16.mxu0 0
      %6027 = vmatpush2.bf16.msra.mxu0 0
      %6028 = vmatprep.subr.bf16.mxu0 0
      %6029 = vmatpush2.bf16.msra.mxu0 0
      %6030 = vmatprep.subr.bf16.mxu0 0
      %6031 = vmatpush2.bf16.msra.mxu0 0
      %6032 = vmatprep.subr.bf16.mxu0 0
      %6033 = vmatpush2.bf16.msra.mxu0 0
      %6034 = vmatprep.subr.bf16.mxu0 0
      %6035 = vmatpush2.bf16.msra.mxu0 0
      %6036 = vmatprep.subr.bf16.mxu0 0
      %6037 = vmatpush2.bf16.msra.mxu0 0
      %6038 = vmatprep.subr.bf16.mxu0 0
      %6039 = vmatpush2.bf16.msra.mxu0 0
      %6040 = vmatprep.subr.bf16.mxu0 0
      %6041 = vmatpush2.bf16.msra.mxu0 0
      %6042 = vmatprep.mubr.bf16.mxu0 0
      %6043 = vmatmul.mubr.bf16.gmra.mxu0 %v5984
      %v6044 = vpop.f32.mrf.mxu0
      %v6045 = vadd.f32 0.0, %v6044
      %v6046 = vpop.f32.mrf.mxu0
      %v6047 = vpop.f32.mrf.mxu0
      %v6048 = vadd.f32 0.0, %v6047
      %v6049 = vpop.f32.mrf.mxu0
      %6050 = vmatprep.mubr.bf16.mxu0 0
      %6051 = vmatmul.mubr.bf16.gmra.mxu0 %v5987
      %v6052 = vpop.f32.mrf.mxu0
      %v6053 = vadd.f32 0.0, %v6052
      %v6054 = vpop.f32.mrf.mxu0
      %v6055 = vpop.f32.mrf.mxu0
      %v6056 = vadd.f32 0.0, %v6055
      %v6057 = vpop.f32.mrf.mxu0
      %6058 = vmatprep.mubr.bf16.mxu0 0
      %6059 = vmatmul.mubr.bf16.gmra.mxu0 %v5990
      %v6060 = vpop.f32.mrf.mxu0
      %v6061 = vadd.f32 0.0, %v6060
      %v6062 = vpop.f32.mrf.mxu0
      %v6063 = vpop.f32.mrf.mxu0
      %v6064 = vadd.f32 0.0, %v6063
      %v6065 = vpop.f32.mrf.mxu0
      %6066 = vmatprep.mubr.bf16.mxu0 0
      %6067 = vmatmul.mubr.bf16.gmra.mxu0 %v5993
      %v6068 = vpop.f32.mrf.mxu0
      %v6069 = vadd.f32 0.0, %v6068
      %v6070 = vpop.f32.mrf.mxu0
      %v6071 = vpop.f32.mrf.mxu0
      %v6072 = vadd.f32 0.0, %v6071
      %v6073 = vpop.f32.mrf.mxu0
      %6074 = vmatprep.mubr.bf16.mxu0 0
      %6075 = vmatmul.mubr.bf16.gmra.mxu0 %v5996
      %v6076 = vpop.f32.mrf.mxu0
      %v6077 = vadd.f32 0.0, %v6076
      %v6078 = vpop.f32.mrf.mxu0
      %v6079 = vpop.f32.mrf.mxu0
      %v6080 = vadd.f32 0.0, %v6079
      %v6081 = vpop.f32.mrf.mxu0
      %6082 = vmatprep.mubr.bf16.mxu0 0
      %6083 = vmatmul.mubr.bf16.gmra.mxu0 %v5999
      %v6084 = vpop.f32.mrf.mxu0
      %v6085 = vadd.f32 0.0, %v6084
      %v6086 = vpop.f32.mrf.mxu0
      %v6087 = vpop.f32.mrf.mxu0
      %v6088 = vadd.f32 0.0, %v6087
      %v6089 = vpop.f32.mrf.mxu0
      %6090 = vmatprep.mubr.bf16.mxu0 0
      %6091 = vmatmul.mubr.bf16.gmra.mxu0 %v6002
      %v6092 = vpop.f32.mrf.mxu0
      %v6093 = vadd.f32 0.0, %v6092
      %v6094 = vpop.f32.mrf.mxu0
      %v6095 = vpop.f32.mrf.mxu0
      %v6096 = vadd.f32 0.0, %v6095
      %v6097 = vpop.f32.mrf.mxu0
      %6098 = vmatprep.mubr.bf16.mxu0 0
      %6099 = vmatmul.mubr.bf16.gmra.mxu0 %v6005
      %v6100 = vpop.f32.mrf.mxu0
      %v6101 = vadd.f32 0.0, %v6100
      %v6102 = vpop.f32.mrf.mxu0
      %v6103 = vpop.f32.mrf.mxu0
      %v6104 = vadd.f32 0.0, %v6103
      %v6105 = vpop.f32.mrf.mxu0
      %6106 = vdwg.mxu0
      %v6107 = vadd.f32 %v5909, %v6045
      %v6108 = vadd.f32 %v5910, %v6048
      %v6109 = vadd.f32 %v5911, %v6053
      %v6110 = vadd.f32 %v5912, %v6056
      %v6111 = vadd.f32 %v5913, %v6061
      %v6112 = vadd.f32 %v5914, %v6064
      %v6113 = vadd.f32 %v5915, %v6069
      %v6114 = vadd.f32 %v5916, %v6072
      %v6115 = vadd.f32 %v5917, %v6077
      %v6116 = vadd.f32 %v5918, %v6080
      %v6117 = vadd.f32 %v5919, %v6085
      %v6118 = vadd.f32 %v5920, %v6088
      %v6119 = vadd.f32 %v5921, %v6093
      %v6120 = vadd.f32 %v5922, %v6096
      %v6121 = vadd.f32 %v5923, %v6101
      %v6122 = vadd.f32 %v5924, %v6104
      %v6123 = vld [vmem:[%s811] sm:$0xf]
      %v6124 = vld [vmem:[%s811 + $0x4] sm:$0xf]
      %v6125 = vld [vmem:[%s811 + $0x8] sm:$0x1]
      %v6126 = vld [vmem:[%s811 + $0xc] sm:$0xf]
      %v6127 = vld [vmem:[%s811 + $0x10] sm:$0xf]
      %v6128 = vld [vmem:[%s811 + $0x14] sm:$0x1]
      %v6129 = vld [vmem:[%s811 + $0x18] sm:$0xf]
      %v6130 = vld [vmem:[%s811 + $0x1c] sm:$0xf]
      %v6131 = vld [vmem:[%s811 + $0x20] sm:$0x1]
      %v6132 = vld [vmem:[%s811 + $0x24] sm:$0xf]
      %v6133 = vld [vmem:[%s811 + $0x28] sm:$0xf]
      %v6134 = vld [vmem:[%s811 + $0x2c] sm:$0x1]
      %v6135 = vld [vmem:[%s811 + $0x30] sm:$0xf]
      %v6136 = vld [vmem:[%s811 + $0x34] sm:$0xf]
      %v6137 = vld [vmem:[%s811 + $0x38] sm:$0x1]
      %v6138 = vld [vmem:[%s811 + $0x3c] sm:$0xf]
      %v6139 = vld [vmem:[%s811 + $0x40] sm:$0xf]
      %v6140 = vld [vmem:[%s811 + $0x44] sm:$0x1]
      %v6141 = vld [vmem:[%s811 + $0x48] sm:$0xf]
      %v6142 = vld [vmem:[%s811 + $0x4c] sm:$0xf]
      %v6143 = vld [vmem:[%s811 + $0x50] sm:$0x1]
      %v6144 = vld [vmem:[%s811 + $0x54] sm:$0xf]
      %v6145 = vld [vmem:[%s811 + $0x58] sm:$0xf]
      %v6146 = vld [vmem:[%s811 + $0x5c] sm:$0x1]
      %v6148 = vshrl.u32 %v6123, 16
      %v6150 = vrot.slane %v6148, 4
      %v6151 = vshll.u32 %v6123, 16
      %v6153 = vrot.slane %v6151, 5
      %v6154 = vor.u32 %v6150, %v6153
      %v6155 = vrot.slane %v6154, 4
      %v6157 = vshll.u32 %v6124, 16
      %v6159 = vrot.slane %v6157, 5
      %v6160 = vsel %vm967, %v6155, %v6159
      %v6161 = vshrl.u32 %v6124, 16
      %v6163 = vrot.slane %v6161, 4
      %v6164 = vor.u32 %v6163, %v6159
      %v6165 = vrot.slane %v6164, 4
      %v6167 = vshll.u32 %v6125, 16
      %v6169 = vrot.slane %v6167, 5
      %v6170 = vsel %vm967, %v6165, %v6169
      %v6172 = vshrl.u32 %v6126, 16
      %v6174 = vrot.slane %v6172, 4
      %v6175 = vshll.u32 %v6126, 16
      %v6177 = vrot.slane %v6175, 5
      %v6178 = vor.u32 %v6174, %v6177
      %v6179 = vrot.slane %v6178, 4
      %v6181 = vshll.u32 %v6127, 16
      %v6183 = vrot.slane %v6181, 5
      %v6184 = vsel %vm967, %v6179, %v6183
      %v6185 = vshrl.u32 %v6127, 16
      %v6187 = vrot.slane %v6185, 4
      %v6188 = vor.u32 %v6187, %v6183
      %v6189 = vrot.slane %v6188, 4
      %v6191 = vshll.u32 %v6128, 16
      %v6193 = vrot.slane %v6191, 5
      %v6194 = vsel %vm967, %v6189, %v6193
      %v6196 = vshrl.u32 %v6129, 16
      %v6198 = vrot.slane %v6196, 4
      %v6199 = vshll.u32 %v6129, 16
      %v6201 = vrot.slane %v6199, 5
      %v6202 = vor.u32 %v6198, %v6201
      %v6203 = vrot.slane %v6202, 4
      %v6205 = vshll.u32 %v6130, 16
      %v6207 = vrot.slane %v6205, 5
      %v6208 = vsel %vm967, %v6203, %v6207
      %v6209 = vshrl.u32 %v6130, 16
      %v6211 = vrot.slane %v6209, 4
      %v6212 = vor.u32 %v6211, %v6207
      %v6213 = vrot.slane %v6212, 4
      %v6215 = vshll.u32 %v6131, 16
      %v6217 = vrot.slane %v6215, 5
      %v6218 = vsel %vm967, %v6213, %v6217
      %v6220 = vshrl.u32 %v6132, 16
      %v6222 = vrot.slane %v6220, 4
      %v6223 = vshll.u32 %v6132, 16
      %v6225 = vrot.slane %v6223, 5
      %v6226 = vor.u32 %v6222, %v6225
      %v6227 = vrot.slane %v6226, 4
      %v6229 = vshll.u32 %v6133, 16
      %v6231 = vrot.slane %v6229, 5
      %v6232 = vsel %vm967, %v6227, %v6231
      %v6233 = vshrl.u32 %v6133, 16
      %v6235 = vrot.slane %v6233, 4
      %v6236 = vor.u32 %v6235, %v6231
      %v6237 = vrot.slane %v6236, 4
      %v6239 = vshll.u32 %v6134, 16
      %v6241 = vrot.slane %v6239, 5
      %v6242 = vsel %vm967, %v6237, %v6241
      %v6244 = vshrl.u32 %v6135, 16
      %v6246 = vrot.slane %v6244, 4
      %v6247 = vshll.u32 %v6135, 16
      %v6249 = vrot.slane %v6247, 5
      %v6250 = vor.u32 %v6246, %v6249
      %v6251 = vrot.slane %v6250, 4
      %v6253 = vshll.u32 %v6136, 16
      %v6255 = vrot.slane %v6253, 5
      %v6256 = vsel %vm967, %v6251, %v6255
      %v6257 = vshrl.u32 %v6136, 16
      %v6259 = vrot.slane %v6257, 4
      %v6260 = vor.u32 %v6259, %v6255
      %v6261 = vrot.slane %v6260, 4
      %v6263 = vshll.u32 %v6137, 16
      %v6265 = vrot.slane %v6263, 5
      %v6266 = vsel %vm967, %v6261, %v6265
      %v6268 = vshrl.u32 %v6138, 16
      %v6270 = vrot.slane %v6268, 4
      %v6271 = vshll.u32 %v6138, 16
      %v6273 = vrot.slane %v6271, 5
      %v6274 = vor.u32 %v6270, %v6273
      %v6275 = vrot.slane %v6274, 4
      %v6277 = vshll.u32 %v6139, 16
      %v6279 = vrot.slane %v6277, 5
      %v6280 = vsel %vm967, %v6275, %v6279
      %v6281 = vshrl.u32 %v6139, 16
      %v6283 = vrot.slane %v6281, 4
      %v6284 = vor.u32 %v6283, %v6279
      %v6285 = vrot.slane %v6284, 4
      %v6287 = vshll.u32 %v6140, 16
      %v6289 = vrot.slane %v6287, 5
      %v6290 = vsel %vm967, %v6285, %v6289
      %v6292 = vshrl.u32 %v6141, 16
      %v6294 = vrot.slane %v6292, 4
      %v6295 = vshll.u32 %v6141, 16
      %v6297 = vrot.slane %v6295, 5
      %v6298 = vor.u32 %v6294, %v6297
      %v6299 = vrot.slane %v6298, 4
      %v6301 = vshll.u32 %v6142, 16
      %v6303 = vrot.slane %v6301, 5
      %v6304 = vsel %vm967, %v6299, %v6303
      %v6305 = vshrl.u32 %v6142, 16
      %v6307 = vrot.slane %v6305, 4
      %v6308 = vor.u32 %v6307, %v6303
      %v6309 = vrot.slane %v6308, 4
      %v6311 = vshll.u32 %v6143, 16
      %v6313 = vrot.slane %v6311, 5
      %v6314 = vsel %vm967, %v6309, %v6313
      %v6316 = vshrl.u32 %v6144, 16
      %v6318 = vrot.slane %v6316, 4
      %v6319 = vshll.u32 %v6144, 16
      %v6321 = vrot.slane %v6319, 5
      %v6322 = vor.u32 %v6318, %v6321
      %v6323 = vrot.slane %v6322, 4
      %v6325 = vshll.u32 %v6145, 16
      %v6327 = vrot.slane %v6325, 5
      %v6328 = vsel %vm967, %v6323, %v6327
      %v6329 = vshrl.u32 %v6145, 16
      %v6331 = vrot.slane %v6329, 4
      %v6332 = vor.u32 %v6331, %v6327
      %v6333 = vrot.slane %v6332, 4
      %v6335 = vshll.u32 %v6146, 16
      %v6337 = vrot.slane %v6335, 5
      %v6338 = vsel %vm967, %v6333, %v6337
      %s6339 = scalar_lea.vmem %s5, 28
      %v6340 = vld [vmem:[%s6339] sm:$0xf]
      %v6341 = vunpack.c.l.b16 %v6160
      %v6342 = vunpack.c.l.b16 %v6170
      %v6343 = vunpack.c.l.b16 %v6184
      %v6344 = vunpack.c.l.b16 %v6194
      %v6345 = vunpack.c.l.b16 %v6208
      %v6346 = vunpack.c.l.b16 %v6218
      %v6347 = vunpack.c.l.b16 %v6232
      %v6348 = vunpack.c.l.b16 %v6242
      %v6349 = vunpack.c.l.b16 %v6256
      %v6350 = vunpack.c.l.b16 %v6266
      %v6351 = vunpack.c.l.b16 %v6280
      %v6352 = vunpack.c.l.b16 %v6290
      %v6353 = vunpack.c.l.b16 %v6304
      %v6354 = vunpack.c.l.b16 %v6314
      %v6355 = vunpack.c.l.b16 %v6328
      %v6356 = vunpack.c.l.b16 %v6338
      %v6357 = vpack.c.b16 %v6342, %v6341
      %v6358 = vpack.c.b16 %v6344, %v6343
      %v6359 = vpack.c.b16 %v6346, %v6345
      %v6360 = vpack.c.b16 %v6348, %v6347
      %v6361 = vpack.c.b16 %v6350, %v6349
      %v6362 = vpack.c.b16 %v6352, %v6351
      %v6363 = vpack.c.b16 %v6354, %v6353
      %v6364 = vpack.c.b16 %v6356, %v6355
      %v6366 = vsel %vm1240, %v6357, 0
      %v6369 = vsel %vm1240, %v6358, 0
      %v6372 = vsel %vm1240, %v6359, 0
      %v6375 = vsel %vm1240, %v6360, 0
      %v6378 = vsel %vm1240, %v6361, 0
      %v6381 = vsel %vm1240, %v6362, 0
      %v6384 = vsel %vm1240, %v6363, 0
      %v6387 = vsel %vm1240, %v6364, 0
      %v6390 = vsel %vm1271, %v6340, 0
      %6392 = vmatprep.subr.bf16.mxu0 0
      %6393 = vmatpush1.bf16.msra.mxu0 0
      %6394 = vmatprep.subr.bf16.mxu0 0
      %6395 = vmatpush1.bf16.msra.mxu0 0
      %6396 = vmatprep.subr.bf16.mxu0 0
      %6397 = vmatpush1.bf16.msra.mxu0 0
      %6398 = vmatprep.subr.bf16.mxu0 0
      %6399 = vmatpush1.bf16.msra.mxu0 0
      %6400 = vmatprep.subr.bf16.mxu0 0
      %6401 = vmatpush1.bf16.msra.mxu0 0
      %6402 = vmatprep.subr.bf16.mxu0 0
      %6403 = vmatpush1.bf16.msra.mxu0 0
      %6404 = vmatprep.subr.bf16.mxu0 0
      %6405 = vmatpush1.bf16.msra.mxu0 0
      %6406 = vmatprep.subr.bf16.mxu0 0
      %6407 = vmatpush1.bf16.msra.mxu0 %v6390
      %6408 = vmatprep.subr.bf16.mxu0 0
      %6409 = vmatpush2.bf16.msra.mxu0 0
      %6410 = vmatprep.subr.bf16.mxu0 0
      %6411 = vmatpush2.bf16.msra.mxu0 0
      %6412 = vmatprep.subr.bf16.mxu0 0
      %6413 = vmatpush2.bf16.msra.mxu0 0
      %6414 = vmatprep.subr.bf16.mxu0 0
      %6415 = vmatpush2.bf16.msra.mxu0 0
      %6416 = vmatprep.subr.bf16.mxu0 0
      %6417 = vmatpush2.bf16.msra.mxu0 0
      %6418 = vmatprep.subr.bf16.mxu0 0
      %6419 = vmatpush2.bf16.msra.mxu0 0
      %6420 = vmatprep.subr.bf16.mxu0 0
      %6421 = vmatpush2.bf16.msra.mxu0 0
      %6422 = vmatprep.subr.bf16.mxu0 0
      %6423 = vmatpush2.bf16.msra.mxu0 0
      %6424 = vmatprep.mubr.bf16.mxu0 0
      %6425 = vmatmul.mubr.bf16.gmra.mxu0 %v6366
      %v6426 = vpop.f32.mrf.mxu0
      %v6427 = vadd.f32 0.0, %v6426
      %v6428 = vpop.f32.mrf.mxu0
      %v6429 = vpop.f32.mrf.mxu0
      %v6430 = vadd.f32 0.0, %v6429
      %v6431 = vpop.f32.mrf.mxu0
      %6432 = vmatprep.mubr.bf16.mxu0 0
      %6433 = vmatmul.mubr.bf16.gmra.mxu0 %v6369
      %v6434 = vpop.f32.mrf.mxu0
      %v6435 = vadd.f32 0.0, %v6434
      %v6436 = vpop.f32.mrf.mxu0
      %v6437 = vpop.f32.mrf.mxu0
      %v6438 = vadd.f32 0.0, %v6437
      %v6439 = vpop.f32.mrf.mxu0
      %6440 = vmatprep.mubr.bf16.mxu0 0
      %6441 = vmatmul.mubr.bf16.gmra.mxu0 %v6372
      %v6442 = vpop.f32.mrf.mxu0
      %v6443 = vadd.f32 0.0, %v6442
      %v6444 = vpop.f32.mrf.mxu0
      %v6445 = vpop.f32.mrf.mxu0
      %v6446 = vadd.f32 0.0, %v6445
      %v6447 = vpop.f32.mrf.mxu0
      %6448 = vmatprep.mubr.bf16.mxu0 0
      %6449 = vmatmul.mubr.bf16.gmra.mxu0 %v6375
      %v6450 = vpop.f32.mrf.mxu0
      %v6451 = vadd.f32 0.0, %v6450
      %v6452 = vpop.f32.mrf.mxu0
      %v6453 = vpop.f32.mrf.mxu0
      %v6454 = vadd.f32 0.0, %v6453
      %v6455 = vpop.f32.mrf.mxu0
      %6456 = vmatprep.mubr.bf16.mxu0 0
      %6457 = vmatmul.mubr.bf16.gmra.mxu0 %v6378
      %v6458 = vpop.f32.mrf.mxu0
      %v6459 = vadd.f32 0.0, %v6458
      %v6460 = vpop.f32.mrf.mxu0
      %v6461 = vpop.f32.mrf.mxu0
      %v6462 = vadd.f32 0.0, %v6461
      %v6463 = vpop.f32.mrf.mxu0
      %6464 = vmatprep.mubr.bf16.mxu0 0
      %6465 = vmatmul.mubr.bf16.gmra.mxu0 %v6381
      %v6466 = vpop.f32.mrf.mxu0
      %v6467 = vadd.f32 0.0, %v6466
      %v6468 = vpop.f32.mrf.mxu0
      %v6469 = vpop.f32.mrf.mxu0
      %v6470 = vadd.f32 0.0, %v6469
      %v6471 = vpop.f32.mrf.mxu0
      %6472 = vmatprep.mubr.bf16.mxu0 0
      %6473 = vmatmul.mubr.bf16.gmra.mxu0 %v6384
      %v6474 = vpop.f32.mrf.mxu0
      %v6475 = vadd.f32 0.0, %v6474
      %v6476 = vpop.f32.mrf.mxu0
      %v6477 = vpop.f32.mrf.mxu0
      %v6478 = vadd.f32 0.0, %v6477
      %v6479 = vpop.f32.mrf.mxu0
      %6480 = vmatprep.mubr.bf16.mxu0 0
      %6481 = vmatmul.mubr.bf16.gmra.mxu0 %v6387
      %v6482 = vpop.f32.mrf.mxu0
      %v6483 = vadd.f32 0.0, %v6482
      %v6484 = vpop.f32.mrf.mxu0
      %v6485 = vpop.f32.mrf.mxu0
      %v6486 = vadd.f32 0.0, %v6485
      %v6487 = vpop.f32.mrf.mxu0
      %6488 = vdwg.mxu0
      %v6489 = vadd.f32 %v6107, %v6427
      %v6490 = vadd.f32 %v6108, %v6430
      %v6491 = vadd.f32 %v6109, %v6435
      %v6492 = vadd.f32 %v6110, %v6438
      %v6493 = vadd.f32 %v6111, %v6443
      %v6494 = vadd.f32 %v6112, %v6446
      %v6495 = vadd.f32 %v6113, %v6451
      %v6496 = vadd.f32 %v6114, %v6454
      %v6497 = vadd.f32 %v6115, %v6459
      %v6498 = vadd.f32 %v6116, %v6462
      %v6499 = vadd.f32 %v6117, %v6467
      %v6500 = vadd.f32 %v6118, %v6470
      %v6501 = vadd.f32 %v6119, %v6475
      %v6502 = vadd.f32 %v6120, %v6478
      %v6503 = vadd.f32 %v6121, %v6483
      %v6504 = vadd.f32 %v6122, %v6486
      %v6505 = vld [vmem:[%s811] sm:$0xe]
      %v6506 = vld [vmem:[%s811 + $0xc] sm:$0xe]
      %v6507 = vld [vmem:[%s811 + $0x18] sm:$0xe]
      %v6508 = vld [vmem:[%s811 + $0x24] sm:$0xe]
      %v6509 = vld [vmem:[%s811 + $0x30] sm:$0xe]
      %v6510 = vld [vmem:[%s811 + $0x3c] sm:$0xe]
      %v6511 = vld [vmem:[%s811 + $0x48] sm:$0xe]
      %v6512 = vld [vmem:[%s811 + $0x54] sm:$0xe]
      %v6537 = vrot.slane %v6505, 5
      %v6538 = vrot.slane %v6537, 4
      %v6539 = vrot.slane %v6124, 5
      %v6540 = vsel %vm1616, %v6538, %v6539
      %v6541 = vrot.slane %v6539, 4
      %v6542 = vrot.slane %v6125, 5
      %v6543 = vsel %vm1616, %v6541, %v6542
      %v6544 = vrot.slane %v6506, 5
      %v6545 = vrot.slane %v6544, 4
      %v6546 = vrot.slane %v6127, 5
      %v6547 = vsel %vm1616, %v6545, %v6546
      %v6548 = vrot.slane %v6546, 4
      %v6549 = vrot.slane %v6128, 5
      %v6550 = vsel %vm1616, %v6548, %v6549
      %v6551 = vrot.slane %v6507, 5
      %v6552 = vrot.slane %v6551, 4
      %v6553 = vrot.slane %v6130, 5
      %v6554 = vsel %vm1616, %v6552, %v6553
      %v6555 = vrot.slane %v6553, 4
      %v6556 = vrot.slane %v6131, 5
      %v6557 = vsel %vm1616, %v6555, %v6556
      %v6558 = vrot.slane %v6508, 5
      %v6559 = vrot.slane %v6558, 4
      %v6560 = vrot.slane %v6133, 5
      %v6561 = vsel %vm1616, %v6559, %v6560
      %v6562 = vrot.slane %v6560, 4
      %v6563 = vrot.slane %v6134, 5
      %v6564 = vsel %vm1616, %v6562, %v6563
      %v6565 = vrot.slane %v6509, 5
      %v6566 = vrot.slane %v6565, 4
      %v6567 = vrot.slane %v6136, 5
      %v6568 = vsel %vm1616, %v6566, %v6567
      %v6569 = vrot.slane %v6567, 4
      %v6570 = vrot.slane %v6137, 5
      %v6571 = vsel %vm1616, %v6569, %v6570
      %v6572 = vrot.slane %v6510, 5
      %v6573 = vrot.slane %v6572, 4
      %v6574 = vrot.slane %v6139, 5
      %v6575 = vsel %vm1616, %v6573, %v6574
      %v6576 = vrot.slane %v6574, 4
      %v6577 = vrot.slane %v6140, 5
      %v6578 = vsel %vm1616, %v6576, %v6577
      %v6579 = vrot.slane %v6511, 5
      %v6580 = vrot.slane %v6579, 4
      %v6581 = vrot.slane %v6142, 5
      %v6582 = vsel %vm1616, %v6580, %v6581
      %v6583 = vrot.slane %v6581, 4
      %v6584 = vrot.slane %v6143, 5
      %v6585 = vsel %vm1616, %v6583, %v6584
      %v6586 = vrot.slane %v6512, 5
      %v6587 = vrot.slane %v6586, 4
      %v6588 = vrot.slane %v6145, 5
      %v6589 = vsel %vm1616, %v6587, %v6588
      %v6590 = vrot.slane %v6588, 4
      %v6591 = vrot.slane %v6146, 5
      %v6592 = vsel %vm1616, %v6590, %v6591
      %s6593 = scalar_lea.vmem %s5, 32
      %v6594 = vld [vmem:[%s6593] sm:$0xf]
      %v6595 = vunpack.c.l.b16 %v6540
      %v6596 = vunpack.c.l.b16 %v6543
      %v6597 = vunpack.c.l.b16 %v6547
      %v6598 = vunpack.c.l.b16 %v6550
      %v6599 = vunpack.c.l.b16 %v6554
      %v6600 = vunpack.c.l.b16 %v6557
      %v6601 = vunpack.c.l.b16 %v6561
      %v6602 = vunpack.c.l.b16 %v6564
      %v6603 = vunpack.c.l.b16 %v6568
      %v6604 = vunpack.c.l.b16 %v6571
      %v6605 = vunpack.c.l.b16 %v6575
      %v6606 = vunpack.c.l.b16 %v6578
      %v6607 = vunpack.c.l.b16 %v6582
      %v6608 = vunpack.c.l.b16 %v6585
      %v6609 = vunpack.c.l.b16 %v6589
      %v6610 = vunpack.c.l.b16 %v6592
      %v6611 = vpack.c.b16 %v6596, %v6595
      %v6612 = vpack.c.b16 %v6598, %v6597
      %v6613 = vpack.c.b16 %v6600, %v6599
      %v6614 = vpack.c.b16 %v6602, %v6601
      %v6615 = vpack.c.b16 %v6604, %v6603
      %v6616 = vpack.c.b16 %v6606, %v6605
      %v6617 = vpack.c.b16 %v6608, %v6607
      %v6618 = vpack.c.b16 %v6610, %v6609
      %v6620 = vsel %vm1240, %v6611, 0
      %v6623 = vsel %vm1240, %v6612, 0
      %v6626 = vsel %vm1240, %v6613, 0
      %v6629 = vsel %vm1240, %v6614, 0
      %v6632 = vsel %vm1240, %v6615, 0
      %v6635 = vsel %vm1240, %v6616, 0
      %v6638 = vsel %vm1240, %v6617, 0
      %v6641 = vsel %vm1240, %v6618, 0
      %v6644 = vsel %vm1271, %v6594, 0
      %6646 = vmatprep.subr.bf16.mxu0 0
      %6647 = vmatpush1.bf16.msra.mxu0 0
      %6648 = vmatprep.subr.bf16.mxu0 0
      %6649 = vmatpush1.bf16.msra.mxu0 0
      %6650 = vmatprep.subr.bf16.mxu0 0
      %6651 = vmatpush1.bf16.msra.mxu0 0
      %6652 = vmatprep.subr.bf16.mxu0 0
      %6653 = vmatpush1.bf16.msra.mxu0 0
      %6654 = vmatprep.subr.bf16.mxu0 0
      %6655 = vmatpush1.bf16.msra.mxu0 0
      %6656 = vmatprep.subr.bf16.mxu0 0
      %6657 = vmatpush1.bf16.msra.mxu0 0
      %6658 = vmatprep.subr.bf16.mxu0 0
      %6659 = vmatpush1.bf16.msra.mxu0 0
      %6660 = vmatprep.subr.bf16.mxu0 0
      %6661 = vmatpush1.bf16.msra.mxu0 %v6644
      %6662 = vmatprep.subr.bf16.mxu0 0
      %6663 = vmatpush2.bf16.msra.mxu0 0
      %6664 = vmatprep.subr.bf16.mxu0 0
      %6665 = vmatpush2.bf16.msra.mxu0 0
      %6666 = vmatprep.subr.bf16.mxu0 0
      %6667 = vmatpush2.bf16.msra.mxu0 0
      %6668 = vmatprep.subr.bf16.mxu0 0
      %6669 = vmatpush2.bf16.msra.mxu0 0
      %6670 = vmatprep.subr.bf16.mxu0 0
      %6671 = vmatpush2.bf16.msra.mxu0 0
      %6672 = vmatprep.subr.bf16.mxu0 0
      %6673 = vmatpush2.bf16.msra.mxu0 0
      %6674 = vmatprep.subr.bf16.mxu0 0
      %6675 = vmatpush2.bf16.msra.mxu0 0
      %6676 = vmatprep.subr.bf16.mxu0 0
      %6677 = vmatpush2.bf16.msra.mxu0 0
      %6678 = vmatprep.mubr.bf16.mxu0 0
      %6679 = vmatmul.mubr.bf16.gmra.mxu0 %v6620
      %v6680 = vpop.f32.mrf.mxu0
      %v6681 = vadd.f32 0.0, %v6680
      %v6682 = vpop.f32.mrf.mxu0
      %v6683 = vpop.f32.mrf.mxu0
      %v6684 = vadd.f32 0.0, %v6683
      %v6685 = vpop.f32.mrf.mxu0
      %6686 = vmatprep.mubr.bf16.mxu0 0
      %6687 = vmatmul.mubr.bf16.gmra.mxu0 %v6623
      %v6688 = vpop.f32.mrf.mxu0
      %v6689 = vadd.f32 0.0, %v6688
      %v6690 = vpop.f32.mrf.mxu0
      %v6691 = vpop.f32.mrf.mxu0
      %v6692 = vadd.f32 0.0, %v6691
      %v6693 = vpop.f32.mrf.mxu0
      %6694 = vmatprep.mubr.bf16.mxu0 0
      %6695 = vmatmul.mubr.bf16.gmra.mxu0 %v6626
      %v6696 = vpop.f32.mrf.mxu0
      %v6697 = vadd.f32 0.0, %v6696
      %v6698 = vpop.f32.mrf.mxu0
      %v6699 = vpop.f32.mrf.mxu0
      %v6700 = vadd.f32 0.0, %v6699
      %v6701 = vpop.f32.mrf.mxu0
      %6702 = vmatprep.mubr.bf16.mxu0 0
      %6703 = vmatmul.mubr.bf16.gmra.mxu0 %v6629
      %v6704 = vpop.f32.mrf.mxu0
      %v6705 = vadd.f32 0.0, %v6704
      %v6706 = vpop.f32.mrf.mxu0
      %v6707 = vpop.f32.mrf.mxu0
      %v6708 = vadd.f32 0.0, %v6707
      %v6709 = vpop.f32.mrf.mxu0
      %6710 = vmatprep.mubr.bf16.mxu0 0
      %6711 = vmatmul.mubr.bf16.gmra.mxu0 %v6632
      %v6712 = vpop.f32.mrf.mxu0
      %v6713 = vadd.f32 0.0, %v6712
      %v6714 = vpop.f32.mrf.mxu0
      %v6715 = vpop.f32.mrf.mxu0
      %v6716 = vadd.f32 0.0, %v6715
      %v6717 = vpop.f32.mrf.mxu0
      %6718 = vmatprep.mubr.bf16.mxu0 0
      %6719 = vmatmul.mubr.bf16.gmra.mxu0 %v6635
      %v6720 = vpop.f32.mrf.mxu0
      %v6721 = vadd.f32 0.0, %v6720
      %v6722 = vpop.f32.mrf.mxu0
      %v6723 = vpop.f32.mrf.mxu0
      %v6724 = vadd.f32 0.0, %v6723
      %v6725 = vpop.f32.mrf.mxu0
      %6726 = vmatprep.mubr.bf16.mxu0 0
      %6727 = vmatmul.mubr.bf16.gmra.mxu0 %v6638
      %v6728 = vpop.f32.mrf.mxu0
      %v6729 = vadd.f32 0.0, %v6728
      %v6730 = vpop.f32.mrf.mxu0
      %v6731 = vpop.f32.mrf.mxu0
      %v6732 = vadd.f32 0.0, %v6731
      %v6733 = vpop.f32.mrf.mxu0
      %6734 = vmatprep.mubr.bf16.mxu0 0
      %6735 = vmatmul.mubr.bf16.gmra.mxu0 %v6641
      %v6736 = vpop.f32.mrf.mxu0
      %v6737 = vadd.f32 0.0, %v6736
      %v6738 = vpop.f32.mrf.mxu0
      %v6739 = vpop.f32.mrf.mxu0
      %v6740 = vadd.f32 0.0, %v6739
      %v6741 = vpop.f32.mrf.mxu0
      %6742 = vdwg.mxu0
      %v6743 = vadd.f32 %v6489, %v6681
      %v6744 = vadd.f32 %v6490, %v6684
      %v6745 = vadd.f32 %v6491, %v6689
      %v6746 = vadd.f32 %v6492, %v6692
      %v6747 = vadd.f32 %v6493, %v6697
      %v6748 = vadd.f32 %v6494, %v6700
      %v6749 = vadd.f32 %v6495, %v6705
      %v6750 = vadd.f32 %v6496, %v6708
      %v6751 = vadd.f32 %v6497, %v6713
      %v6752 = vadd.f32 %v6498, %v6716
      %v6753 = vadd.f32 %v6499, %v6721
      %v6754 = vadd.f32 %v6500, %v6724
      %v6755 = vadd.f32 %v6501, %v6729
      %v6756 = vadd.f32 %v6502, %v6732
      %v6757 = vadd.f32 %v6503, %v6737
      %v6758 = vadd.f32 %v6504, %v6740
      %v6759 = vld [vmem:[%s6] sm:$0x1]
      %v6761 = vlaneseq
      %v6762 = vshrl.u32 %v6761, 7
      %v6763 = vsub.s32 0, %v6762
      %v6764 = vrot.slane %v6759, %v6763
      %v6766 = vadd.f32 %v6743, %v6764
      %v6767 = vadd.f32 %v6744, %v6764
      %v6768 = vadd.f32 %v6745, %v6764
      %v6769 = vadd.f32 %v6746, %v6764
      %v6770 = vadd.f32 %v6747, %v6764
      %v6771 = vadd.f32 %v6748, %v6764
      %v6772 = vadd.f32 %v6749, %v6764
      %v6773 = vadd.f32 %v6750, %v6764
      %v6774 = vadd.f32 %v6751, %v6764
      %v6775 = vadd.f32 %v6752, %v6764
      %v6776 = vadd.f32 %v6753, %v6764
      %v6777 = vadd.f32 %v6754, %v6764
      %v6778 = vadd.f32 %v6755, %v6764
      %v6779 = vadd.f32 %v6756, %v6764
      %v6780 = vadd.f32 %v6757, %v6764
      %v6781 = vadd.f32 %v6758, %v6764
      %v6782 = vmax.f32 %v6766, 0.0
      %v6783 = vmax.f32 %v6767, 0.0
      %v6784 = vmax.f32 %v6768, 0.0
      %v6785 = vmax.f32 %v6769, 0.0
      %v6786 = vmax.f32 %v6770, 0.0
      %v6787 = vmax.f32 %v6771, 0.0
      %v6788 = vmax.f32 %v6772, 0.0
      %v6789 = vmax.f32 %v6773, 0.0
      %v6790 = vmax.f32 %v6774, 0.0
      %v6791 = vmax.f32 %v6775, 0.0
      %v6792 = vmax.f32 %v6776, 0.0
      %v6793 = vmax.f32 %v6777, 0.0
      %v6794 = vmax.f32 %v6778, 0.0
      %v6795 = vmax.f32 %v6779, 0.0
      %v6796 = vmax.f32 %v6780, 0.0
      %v6797 = vmax.f32 %v6781, 0.0
      %v6798 = vld [vmem:[%s453] sm:$0xf]
      %v6799 = vld [vmem:[%s453 + $0x4] sm:$0xf]
      %v6800 = vld [vmem:[%s453 + $0x8] sm:$0xf]
      %v6801 = vld [vmem:[%s453 + $0xc] sm:$0xf]
      %v6802 = vld [vmem:[%s453 + $0x10] sm:$0xf]
      %v6803 = vld [vmem:[%s453 + $0x14] sm:$0xf]
      %v6804 = vld [vmem:[%s453 + $0x18] sm:$0xf]
      %v6805 = vld [vmem:[%s453 + $0x1c] sm:$0xf]
      %v6806 = vld [vmem:[%s453 + $0x20] sm:$0xf]
      %v6807 = vld [vmem:[%s453 + $0x24] sm:$0xf]
      %v6808 = vld [vmem:[%s453 + $0x28] sm:$0xf]
      %v6809 = vld [vmem:[%s453 + $0x2c] sm:$0xf]
      %v6810 = vld [vmem:[%s453 + $0x30] sm:$0xf]
      %v6811 = vld [vmem:[%s453 + $0x34] sm:$0xf]
      %v6812 = vld [vmem:[%s453 + $0x38] sm:$0xf]
      %v6813 = vld [vmem:[%s453 + $0x3c] sm:$0xf]
      %v6814 = vunpack.c.l.bf16 %v6798
      %v6815 = vunpack.c.l.bf16 %v6799
      %v6816 = vunpack.c.l.bf16 %v6800
      %v6817 = vunpack.c.l.bf16 %v6801
      %v6818 = vunpack.c.l.bf16 %v6802
      %v6819 = vunpack.c.l.bf16 %v6803
      %v6820 = vunpack.c.l.bf16 %v6804
      %v6821 = vunpack.c.l.bf16 %v6805
      %v6822 = vunpack.c.l.bf16 %v6806
      %v6823 = vunpack.c.l.bf16 %v6807
      %v6824 = vunpack.c.l.bf16 %v6808
      %v6825 = vunpack.c.l.bf16 %v6809
      %v6826 = vunpack.c.l.bf16 %v6810
      %v6827 = vunpack.c.l.bf16 %v6811
      %v6828 = vunpack.c.l.bf16 %v6812
      %v6829 = vunpack.c.l.bf16 %v6813
      %s6830 = sld [smem:[#allocation3]]
      %v6831 = vstv %s6830
      %v6832 = vmul.f32 %v6831, %v6814
      %v6833 = vmul.f32 %v6831, %v6815
      %v6834 = vmul.f32 %v6831, %v6816
      %v6835 = vmul.f32 %v6831, %v6817
      %v6836 = vmul.f32 %v6831, %v6818
      %v6837 = vmul.f32 %v6831, %v6819
      %v6838 = vmul.f32 %v6831, %v6820
      %v6839 = vmul.f32 %v6831, %v6821
      %v6840 = vmul.f32 %v6831, %v6822
      %v6841 = vmul.f32 %v6831, %v6823
      %v6842 = vmul.f32 %v6831, %v6824
      %v6843 = vmul.f32 %v6831, %v6825
      %v6844 = vmul.f32 %v6831, %v6826
      %v6845 = vmul.f32 %v6831, %v6827
      %v6846 = vmul.f32 %v6831, %v6828
      %v6847 = vmul.f32 %v6831, %v6829
      %v6848 = vadd.f32 %v6832, %v6782
      %v6849 = vadd.f32 %v6833, %v6783
      %v6850 = vadd.f32 %v6834, %v6784
      %v6851 = vadd.f32 %v6835, %v6785
      %v6852 = vadd.f32 %v6836, %v6786
      %v6853 = vadd.f32 %v6837, %v6787
      %v6854 = vadd.f32 %v6838, %v6788
      %v6855 = vadd.f32 %v6839, %v6789
      %v6856 = vadd.f32 %v6840, %v6790
      %v6857 = vadd.f32 %v6841, %v6791
      %v6858 = vadd.f32 %v6842, %v6792
      %v6859 = vadd.f32 %v6843, %v6793
      %v6860 = vadd.f32 %v6844, %v6794
      %v6861 = vadd.f32 %v6845, %v6795
      %v6862 = vadd.f32 %v6846, %v6796
      %v6863 = vadd.f32 %v6847, %v6797
      %v6864 = vpack.c.bf16 %v6849, %v6848
      %v6865 = vpack.c.bf16 %v6851, %v6850
      %v6866 = vpack.c.bf16 %v6853, %v6852
      %v6867 = vpack.c.bf16 %v6855, %v6854
      %v6868 = vpack.c.bf16 %v6857, %v6856
      %v6869 = vpack.c.bf16 %v6859, %v6858
      %v6870 = vpack.c.bf16 %v6861, %v6860
      %v6871 = vpack.c.bf16 %v6863, %v6862
      %v6880 = vunpack.c.l.b16 %v6864
      %v6881 = vunpack.c.h.b16 %v6864
      %v6882 = vunpack.c.l.b16 %v6865
      %v6883 = vunpack.c.h.b16 %v6865
      %v6884 = vunpack.c.l.b16 %v6866
      %v6885 = vunpack.c.h.b16 %v6866
      %v6886 = vunpack.c.l.b16 %v6867
      %v6887 = vunpack.c.h.b16 %v6867
      %v6888 = vunpack.c.l.b16 %v6868
      %v6889 = vunpack.c.h.b16 %v6868
      %v6890 = vunpack.c.l.b16 %v6869
      %v6891 = vunpack.c.h.b16 %v6869
      %v6892 = vunpack.c.l.b16 %v6870
      %v6893 = vunpack.c.h.b16 %v6870
      %v6894 = vunpack.c.l.b16 %v6871
      %v6895 = vunpack.c.h.b16 %v6871
      %v6896 = vpack.c.b16 %v6880, %v6880
      %v6897 = vpack.c.b16 %v6881, %v6881
      %v6898 = vpack.c.b16 %v6882, %v6882
      %v6899 = vpack.c.b16 %v6883, %v6883
      %v6900 = vpack.c.b16 %v6884, %v6884
      %v6901 = vpack.c.b16 %v6885, %v6885
      %v6902 = vpack.c.b16 %v6886, %v6886
      %v6903 = vpack.c.b16 %v6887, %v6887
      %v6904 = vpack.c.b16 %v6888, %v6888
      %v6905 = vpack.c.b16 %v6889, %v6889
      %v6906 = vpack.c.b16 %v6890, %v6890
      %v6907 = vpack.c.b16 %v6891, %v6891
      %v6908 = vpack.c.b16 %v6892, %v6892
      %v6909 = vpack.c.b16 %v6893, %v6893
      %v6910 = vpack.c.b16 %v6894, %v6894
      %v6911 = vpack.c.b16 %v6895, %v6895
      %6928 = vst.msk [vmem:[%s483] sm:$0xf] %vm623, %v6896
      %6929 = vst.msk [vmem:[%s483 + $0x4] sm:$0xf] %vm623, %v6897
      %6930 = vst.msk [vmem:[%s483 + $0x8] sm:$0xf] %vm623, %v6898
      %6931 = vst.msk [vmem:[%s483 + $0xc] sm:$0xf] %vm623, %v6899
      %6932 = vst.msk [vmem:[%s483 + $0x10] sm:$0xf] %vm623, %v6900
      %6933 = vst.msk [vmem:[%s483 + $0x14] sm:$0xf] %vm623, %v6901
      %6934 = vst.msk [vmem:[%s483 + $0x18] sm:$0xf] %vm623, %v6902
      %6935 = vst.msk [vmem:[%s483 + $0x1c] sm:$0xf] %vm623, %v6903
      %6936 = vst.msk [vmem:[%s483 + $0x20] sm:$0xf] %vm623, %v6904
      %6937 = vst.msk [vmem:[%s483 + $0x24] sm:$0xf] %vm623, %v6905
      %6938 = vst.msk [vmem:[%s483 + $0x28] sm:$0xf] %vm623, %v6906
      %6939 = vst.msk [vmem:[%s483 + $0x2c] sm:$0xf] %vm623, %v6907
      %6940 = vst.msk [vmem:[%s483 + $0x30] sm:$0xf] %vm623, %v6908
      %6941 = vst.msk [vmem:[%s483 + $0x34] sm:$0xf] %vm623, %v6909
      %6942 = vst.msk [vmem:[%s483 + $0x38] sm:$0xf] %vm623, %v6910
      %6943 = vst.msk [vmem:[%s483 + $0x3c] sm:$0xf] %vm623, %v6911
      %s6944 = smul.u32 8, %s25
      %p6945 = scmp.lt.s32.totalorder %s24, 1
      %s6946 = scalar_select %p6945, %s24, 1
      %p6947 = scmp.lt.s32.totalorder %s6944, 15
      %s6948 = scalar_select %p6947, %s6944, 15
      %s6949 = smul.addr %s6948, 2
      %s6950 = smul.addr %s6946, 32
      %s6951 = sadd.s32 %s6949, %s6950
      %s6952 = smul.addr %s6951, 4
      %s6953 = scalar_lea.vmem %s8, %s6952
      // Predicated region
      $region53: #{yolo_nas_csp_layer.5} parent=51 // pred_check
        %p6954 = pneg %p257
      $region54: #{yolo_nas_csp_layer.5} parent=51 // pred_check_branch
        %6956 = sbr.rel (%p6954) target = $region56
      $region55: #{yolo_nas_csp_layer.5} parent=51 // pred_region
        %s6957 = smul.u32 8, %s25
      $region56: #{yolo_nas_csp_layer.5} parent=51 // pred_fallthru
        _
    $region52: #{yolo_nas_csp_layer.5} parent=5 // pred_fallthru
      _
    %p6958 = scmp.le.s32.totalorder 2, %s15
    // Predicated region
    $region57: #{yolo_nas_csp_layer.5} parent=5 // pred_check
      %p6959 = pneg %p6958
    $region58: #{yolo_nas_csp_layer.5} parent=5 // pred_check_branch
      %6961 = sbr.rel (%p6959) target = $region60
    $region59: #{yolo_nas_csp_layer.5} parent=5 // pred_region
      %s6962 = ssub.s32 %s15, 2
      // Predicated region
      $region61: #{yolo_nas_csp_layer.5} parent=59 // pred_check
        %p6963 = pneg %p263
      $region62: #{yolo_nas_csp_layer.5} parent=59 // pred_check_branch
        %6965 = sbr.rel (%p6963) target = $region64
      $region63: #{yolo_nas_csp_layer.5} parent=59 // pred_region
        %s6966 = smul.u32 8, %s27
        %p6967 = scmp.lt.s32.totalorder %s26, 1
        %s6968 = scalar_select %p6967, %s26, 1
        %p6969 = scmp.lt.s32.totalorder %s6966, 15
        %s6970 = scalar_select %p6969, %s6966, 15
        %s6971 = smul.addr %s6970, 2
        %s6972 = smul.addr %s6968, 32
        %s6973 = sadd.s32 %s6971, %s6972
        %s6974 = smul.addr %s6973, 4
        %s6975 = scalar_lea.vmem %s8, %s6974
      $region64: #{yolo_nas_csp_layer.5} parent=59 // pred_fallthru
        _
    $region60: #{yolo_nas_csp_layer.5} parent=5 // pred_fallthru
      _
  $region6: #{yolo_nas_csp_layer.5} parent=0 // loop_footer
    %s19 = sadd.s32 1, %s15
  $region7: #{yolo_nas_csp_layer.5} parent=0 // loop_footer_branch
    %14 = sbr.rel target = $region3
  $region8: #{yolo_nas_csp_layer.5} parent=0 // loop_exit
    _

</llo_original>
